<compile_context>
chip_gen: v7x
topology: tpu7x:2x2x1
jax: 0.10.0
libtpu: 0.0.40
codegen_flags: <defaults>
</compile_context>

<pallas_src>
import functools

import jax
import jax.numpy as jnp
import numpy as np
from jax.experimental import pallas as pl
from jax.experimental.pallas import tpu as pltpu


_LANES = 128                      # padded GEMM/BN width (4 * cout, padded up to 128)
_VMEM_LIMIT = 48 * 1024 * 1024    # whole-layer blocks + scratch fit well under this


def _pick_chunk(m):
    """Largest row-chunk <= 128 that divides m (bounds vreg pressure in the loops)."""
    for c in (128, 64, 32, 16, 8):
        if m % c == 0:
            return c
    return m


# ---------------------------------------------------------------------------
# Fused per-layer kernel:
#   im2col (VMEM) -> K=9*Cin GEMM (bf16 MXU) -> BN stats -> normalize + LeakyReLU
# ---------------------------------------------------------------------------
def _deconv_bn_lrelu_kernel(
    xpad_ref,     # (B*(H+2), W+2, Cin) f32 : zero-padded NHWC input, (batch,row) flattened
    w_ref,        # (9*Cin, 128)       bf16 : parity-decomposed deconv weights (zero padded)
    bias_ref,     # (1, 128)           f32  : conv bias, tiled over the 4 parities
    gamma_ref,    # (1, 128)           f32  : BN gamma, tiled over the 4 parities
    beta_ref,     # (1, 128)           f32  : BN beta, tiled over the 4 parities
    a_ref,        # (128, 128)         f32  : parity->channel averaging matrix (incl. 1/(4M))
    o_ref,        # (M, 4*cout)        f32  : pre-interleave layer output
    patches_ref,  # (M, 9*Cin)         f32  : VMEM scratch, im2col patches
    conv_ref,     # (M, 128)           f32  : VMEM scratch, conv + bias activations
    *, batch, height, chunk, eps, slope,
):
    bsz, hgt = batch, height
    wid = xpad_ref.shape[1] - 2
    cin = xpad_ref.shape[2]
    m = o_ref.shape[0]
    nout = o_ref.shape[1]
    n_pad = conv_ref.shape[1]

    # ---- Phase 1: im2col entirely inside VMEM (no HBM patches round trip). ----
    for bi in range(bsz):                           # static; batch is small
        src0 = bi * (hgt + 2)
        dst0 = bi * hgt * wid

        def fill_row(qy, src0=src0, dst0=dst0):
            m0 = dst0 + qy * wid
            if not isinstance(qy, int) and wid % 8 == 0:
                m0 = pl.multiple_of(m0, 8)
            for ny in range(3):
                for nx in range(3):
                    t = ny * 3 + nx
                    patches_ref[pl.ds(m0, wid), t * cin:(t + 1) * cin] = (
                        xpad_ref[src0 + qy + ny, nx:nx + wid, :])

        if hgt <= 8:                                # tiny layers: fully static offsets
            for qy in range(hgt):
                fill_row(qy)
        else:                                       # larger layers: rolled loop
            def fill_row_loop(qy, carry):
                fill_row(qy)
                return carry
            jax.lax.fori_loop(0, hgt, fill_row_loop, 0)

    # ---- Phase 2: chunked K=9*Cin GEMM (bf16 MXU, f32 accumulate) + BN sums. ----
    wmat = w_ref[...]
    bias = bias_ref[...]
    nchunks = m // chunk

    def gemm_chunk(ci, carry):
        s1, s2 = carry
        r0 = pl.multiple_of(ci * chunk, chunk)
        p = patches_ref[pl.ds(r0, chunk), :].astype(jnp.bfloat16)
        c = jnp.dot(p, wmat, preferred_element_type=jnp.float32) + bias
        conv_ref[pl.ds(r0, chunk), :] = c
        return (s1 + jnp.sum(c, axis=0, keepdims=True),
                s2 + jnp.sum(c * c, axis=0, keepdims=True))

    s1, s2 = jax.lax.fori_loop(
        0, nchunks, gemm_chunk,
        (jnp.zeros((1, n_pad), jnp.float32), jnp.zeros((1, n_pad), jnp.float32)))

    # ---- Phase 3: BatchNorm2d training statistics (biased var) -> scale / shift. ----
    # a_ref sums each channel's 4 parity columns and divides by the element count 4*M,
    # broadcasting the per-channel mean / E[x^2] back over all 128 columns.
    mean = jnp.dot(s1, a_ref[...], preferred_element_type=jnp.float32)   # (1, 128)
    ex2 = jnp.dot(s2, a_ref[...], preferred_element_type=jnp.float32)    # (1, 128)
    var = ex2 - mean * mean
    scale = gamma_ref[...] * jax.lax.rsqrt(var + eps)
    shift = beta_ref[...] - mean * scale

    # ---- Phase 4: fused normalize + LeakyReLU + store. ----
    def norm_chunk(ci, carry):
        r0 = pl.multiple_of(ci * chunk, chunk)
        c = conv_ref[pl.ds(r0, chunk), :]
        y = c * scale + shift
        y = jnp.where(y >= 0.0, y, slope * y)
        o_ref[pl.ds(r0, chunk), :] = y[:, 0:nout]
        return carry

    jax.lax.fori_loop(0, nchunks, norm_chunk, 0)


# ---------------------------------------------------------------------------
# Per-layer wrapper: constant prep, pallas_call, parity interleave
# ---------------------------------------------------------------------------
def _build_deconv_constants(w, bias, gamma, beta, m):
    """ConvTranspose2d(k=6,s=2,p=2) weights -> parity-decomposed GEMM constants.

    w: (Cin, Cout, 6, 6).  Row index of weff is (ny*3+nx)*Cin+ic, column index is
    (ry*2+rx)*Cout+oc; columns are zero-padded to 128 so all in-kernel compute is
    lane dense (only matters for the cout=1 last layer).
    """
    cin, cout, _, _ = w.shape
    n = 4 * cout
    pad_n = _LANES - n

    wr = jnp.transpose(w, (2, 3, 0, 1))                                  # (ky, kx, ic, oc)
    idx = 2 * (2 - np.arange(3))[:, None] + np.arange(2)[None, :]        # [n, r] -> k
    weff = wr[idx[:, None, :, None], idx[None, :, None, :]]              # (3,3,2,2,ci,co)
    weff = jnp.transpose(weff, (0, 1, 4, 2, 3, 5)).reshape(9 * cin, n)
    weff = jnp.pad(weff, ((0, 0), (0, pad_n))).astype(jnp.bfloat16)

    def tile_pad(v):
        return jnp.pad(jnp.tile(v, 4), (0, pad_n)).reshape(1, _LANES).astype(jnp.float32)

    bias_t, gamma_t, beta_t = tile_pad(bias), tile_pad(gamma), tile_pad(beta)

    # Parity-combining / broadcasting matrix for the BN batch statistics.
    a = np.zeros((_LANES, _LANES), np.float32)
    ii = np.arange(n)
    a[np.ix_(ii, ii)] = (ii[:, None] % cout == ii[None, :] % cout) / (4.0 * m)
    return weff, bias_t, gamma_t, beta_t, jnp.asarray(a)


def deconv_bn_lrelu(x_nhwc, w, bias, gamma, beta, *, eps=1e-5, slope=0.2):
    """x: (B, H, W, Cin) -> (B, 2H, 2W, Cout).  One fused Pallas kernel per layer."""
    bsz, hgt, wid, cin = x_nhwc.shape
    cout = w.shape[1]
    n = 4 * cout
    m = bsz * hgt * wid
    chunk = _pick_chunk(m)

    weff, bias_t, gamma_t, beta_t, a = _build_deconv_constants(w, bias, gamma, beta, m)

    # Zero-pad spatially and flatten (batch, row) so the kernel only needs 1-D
    # dynamic indexing on the leading axis.
    xpad = jnp.pad(x_nhwc, ((0, 0), (1, 1), (1, 1), (0, 0)))
    xpad = xpad.reshape(bsz * (hgt + 2), wid + 2, cin)

    kernel = functools.partial(
        _deconv_bn_lrelu_kernel,
        batch=bsz, height=hgt, chunk=chunk, eps=eps, slope=slope)

    y = pl.pallas_call(
        kernel,
        out_shape=jax.ShapeDtypeStruct((m, n), jnp.float32),
        grid=(1,),
        in_specs=[
            pl.BlockSpec((bsz * (hgt + 2), wid + 2, cin), lambda i: (0, 0, 0)),
            pl.BlockSpec((9 * cin, _LANES), lambda i: (0, 0)),
            pl.BlockSpec((1, _LANES), lambda i: (0, 0)),
            pl.BlockSpec((1, _LANES), lambda i: (0, 0)),
            pl.BlockSpec((1, _LANES), lambda i: (0, 0)),
            pl.BlockSpec((_LANES, _LANES), lambda i: (0, 0)),
        ],
        out_specs=pl.BlockSpec((m, n), lambda i: (0, 0)),
        scratch_shapes=[
            pltpu.VMEM((m, 9 * cin), jnp.float32),
            pltpu.VMEM((m, _LANES), jnp.float32),
        ],
        compiler_params=pltpu.CompilerParams(
            dimension_semantics=("arbitrary",),
            vmem_limit_bytes=_VMEM_LIMIT,
        ),
    )(xpad, weff, bias_t, gamma_t, beta_t, a)

    # Interleave the 4 parity outputs back into the 2x upsampled NHWC grid (small glue).
    y = y.reshape(bsz, hgt, wid, 2, 2, cout)
    y = jnp.transpose(y, (0, 1, 3, 2, 4, 5)).reshape(bsz, 2 * hgt, 2 * wid, cout)
    return y


# ---------------------------------------------------------------------------
# Full model
# ---------------------------------------------------------------------------
def init_params(key):
    n_filter = 32
    keys = iter(jax.random.split(key, 32))
    params = {
        "lin_w": jax.random.normal(next(keys), (42, 512), jnp.float32) / np.sqrt(42.0),
        "lin_b": 0.1 * jax.random.normal(next(keys), (512,), jnp.float32),
        "layers": [],
    }
    for i in range(5):
        cin = n_filter
        cout = n_filter if i < 4 else 1
        params["layers"].append(
            dict(
                w=jax.random.normal(next(keys), (cin, cout, 6, 6), jnp.float32)
                / np.sqrt(cin * 36.0),
                b=0.1 * jax.random.normal(next(keys), (cout,), jnp.float32),
                gamma=1.0 + 0.1 * jax.random.normal(next(keys), (cout,), jnp.float32),
                beta=0.1 * jax.random.normal(next(keys), (cout,), jnp.float32),
            )
        )
    return params


def depth_generator_forward(params, x):
    """x: (B, 42) -> (B, 1, 128, 128)  (NCHW, matching the PyTorch module)."""
    bsz = x.shape[0]
    # Linear layer: only B rows -> left to XLA (a Pallas call here is pure overhead).
    h = jnp.dot(x, params["lin_w"], precision=jax.lax.Precision.HIGHEST) + params["lin_b"]
    feat = h.reshape(bsz, 32, 4, 4)               # PyTorch reshape semantics (NCHW)
    feat = jnp.transpose(feat, (0, 2, 3, 1))      # -> NHWC for the deconv pipeline
    for layer in params["layers"]:
        feat = deconv_bn_lrelu(feat, layer["w"], layer["b"], layer["gamma"], layer["beta"])
    return jnp.transpose(feat, (0, 3, 1, 2))      # back to NCHW


# ---------------------------------------------------------------------------
# Pure-JAX reference (lax.conv_general_dilated) for validation
# ---------------------------------------------------------------------------
def reference_forward(params, x):
    hp = jax.lax.Precision.HIGHEST
    b = x.shape[0]
    h = jnp.dot(x, params["lin_w"], precision=hp) + params["lin_b"]
    feat = h.reshape(b, 32, 4, 4)  # NCHW
    eps = 1e-5
    for layer in params["layers"]:
        w = layer["w"]  # (cin, cout, 6, 6)
        cout = w.shape[1]
        w_flip = jnp.transpose(w[:, :, ::-1, ::-1], (1, 0, 2, 3))  # OIHW, rot180
        conv = jax.lax.conv_general_dilated(
            feat, w_flip, window_strides=(1, 1),
            padding=((3, 3), (3, 3)), lhs_dilation=(2, 2),
            dimension_numbers=("NCHW", "OIHW", "NCHW"), precision=hp,
        ) + layer["b"].reshape(1, cout, 1, 1)
        mean = jnp.mean(conv, axis=(0, 2, 3), keepdims=True)
        var = jnp.var(conv, axis=(0, 2, 3), keepdims=True)
        y = (conv - mean) / jnp.sqrt(var + eps)
        y = y * layer["gamma"].reshape(1, cout, 1, 1) + layer["beta"].reshape(1, cout, 1, 1)
        feat = jnp.where(y >= 0.0, y, 0.2 * y)
    return feat


if __name__ == "__main__":
    key = jax.random.PRNGKey(0)
    pkey, xkey = jax.random.split(key)
    params = init_params(pkey)
    x = jax.random.normal(xkey, (2, 21 * 2), jnp.float32)  # batch=2, features=42

    out = jax.block_until_ready(jax.jit(depth_generator_forward)(params, x))
    assert out.shape == (2, 1, 128, 128), out.shape

    ref = jax.block_until_ready(reference_forward(params, x))
    # bf16 MXU operands (per the perf review) vs the all-f32 reference need slightly
    # more headroom than the previous all-f32 version's 2e-2.
    np.testing.assert_allclose(np.asarray(out), np.asarray(ref), rtol=3e-2, atol=3e-2)

    print("KERNEL_OK")
</pallas_src>

<mosaic_0001>
module attributes {stable_mosaic.version = 11 : i64} {
  func.func @_deconv_bn_lrelu_kernel(%arg0: i32, %arg1: memref<12x6x32xf32, #tpu.memory_space<vmem>>, %arg2: memref<288x128xbf16, #tpu.memory_space<vmem>>, %arg3: memref<1x128xf32, #tpu.memory_space<vmem>>, %arg4: memref<1x128xf32, #tpu.memory_space<vmem>>, %arg5: memref<1x128xf32, #tpu.memory_space<vmem>>, %arg6: memref<128x128xf32, #tpu.memory_space<vmem>>, %arg7: memref<32x128xf32, #tpu.memory_space<vmem>>, %arg8: memref<32x288xf32, #tpu.memory_space<vmem>>, %arg9: memref<32x128xf32, #tpu.memory_space<vmem>>) attributes {dimension_semantics = [#tpu.dimension_semantics<arbitrary>], iteration_bounds = array<i64: 1>, scalar_prefetch = 0 : i64, scratch_operands = 2 : i64, tpu.core_type = #tpu.core_type<tc>, window_params = [{pipeline_mode = #tpu.pipeline_mode<synchronous>, transform_indices = @transform_0, window_bounds = array<i64: 12, 6, 32>}, {pipeline_mode = #tpu.pipeline_mode<synchronous>, transform_indices = @transform_1, window_bounds = array<i64: 288, 128>}, {pipeline_mode = #tpu.pipeline_mode<synchronous>, transform_indices = @transform_2, window_bounds = array<i64: 1, 128>}, {pipeline_mode = #tpu.pipeline_mode<synchronous>, transform_indices = @transform_3, window_bounds = array<i64: 1, 128>}, {pipeline_mode = #tpu.pipeline_mode<synchronous>, transform_indices = @transform_4, window_bounds = array<i64: 1, 128>}, {pipeline_mode = #tpu.pipeline_mode<synchronous>, transform_indices = @transform_5, window_bounds = array<i64: 128, 128>}, {pipeline_mode = #tpu.pipeline_mode<synchronous>, transform_indices = @transform_6, window_bounds = array<i64: 32, 128>}]} {
    %c0 = arith.constant 0 : index
    %c0_0 = arith.constant 0 : index
    %c0_1 = arith.constant 0 : index
    %0 = vector.load %arg1[%c0, %c0_0, %c0_1] : memref<12x6x32xf32, #tpu.memory_space<vmem>>, vector<1x4x32xf32>
    %1 = vector.shape_cast %0 : vector<1x4x32xf32> to vector<4x32xf32>
    %c0_2 = arith.constant 0 : index
    %c0_3 = arith.constant 0 : index
    %2 = vector.load %arg8[%c0_2, %c0_3] : memref<32x288xf32, #tpu.memory_space<vmem>>, vector<4x32xf32>
    tpu.vector_store %arg8[%c0_2, %c0_3], %1 {strides = array<i32>} : memref<32x288xf32, #tpu.memory_space<vmem>>, vector<4x32xf32>,
    %c0_4 = arith.constant 0 : index
    %c1 = arith.constant 1 : index
    %c0_5 = arith.constant 0 : index
    %3 = vector.load %arg1[%c0_4, %c1, %c0_5] : memref<12x6x32xf32, #tpu.memory_space<vmem>>, vector<1x4x32xf32>
    %4 = vector.shape_cast %3 : vector<1x4x32xf32> to vector<4x32xf32>
    %c0_6 = arith.constant 0 : index
    %c32 = arith.constant 32 : index
    %5 = vector.load %arg8[%c0_6, %c32] : memref<32x288xf32, #tpu.memory_space<vmem>>, vector<4x32xf32>
    tpu.vector_store %arg8[%c0_6, %c32], %4 {strides = array<i32>} : memref<32x288xf32, #tpu.memory_space<vmem>>, vector<4x32xf32>,
    %c0_7 = arith.constant 0 : index
    %c2 = arith.constant 2 : index
    %c0_8 = arith.constant 0 : index
    %6 = vector.load %arg1[%c0_7, %c2, %c0_8] : memref<12x6x32xf32, #tpu.memory_space<vmem>>, vector<1x4x32xf32>
    %7 = vector.shape_cast %6 : vector<1x4x32xf32> to vector<4x32xf32>
    %c0_9 = arith.constant 0 : index
    %c64 = arith.constant 64 : index
    %8 = vector.load %arg8[%c0_9, %c64] : memref<32x288xf32, #tpu.memory_space<vmem>>, vector<4x32xf32>
    tpu.vector_store %arg8[%c0_9, %c64], %7 {strides = array<i32>} : memref<32x288xf32, #tpu.memory_space<vmem>>, vector<4x32xf32>,
    %c1_10 = arith.constant 1 : index
    %c0_11 = arith.constant 0 : index
    %c0_12 = arith.constant 0 : index
    %9 = vector.load %arg1[%c1_10, %c0_11, %c0_12] : memref<12x6x32xf32, #tpu.memory_space<vmem>>, vector<1x4x32xf32>
    %10 = vector.shape_cast %9 : vector<1x4x32xf32> to vector<4x32xf32>
    %c0_13 = arith.constant 0 : index
    %c96 = arith.constant 96 : index
    %11 = vector.load %arg8[%c0_13, %c96] : memref<32x288xf32, #tpu.memory_space<vmem>>, vector<4x32xf32>
    tpu.vector_store %arg8[%c0_13, %c96], %10 {strides = array<i32>} : memref<32x288xf32, #tpu.memory_space<vmem>>, vector<4x32xf32>,
    %c1_14 = arith.constant 1 : index
    %c1_15 = arith.constant 1 : index
    %c0_16 = arith.constant 0 : index
    %12 = vector.load %arg1[%c1_14, %c1_15, %c0_16] : memref<12x6x32xf32, #tpu.memory_space<vmem>>, vector<1x4x32xf32>
    %13 = vector.shape_cast %12 : vector<1x4x32xf32> to vector<4x32xf32>
    %c0_17 = arith.constant 0 : index
    %c128 = arith.constant 128 : index
    %14 = vector.load %arg8[%c0_17, %c128] : memref<32x288xf32, #tpu.memory_space<vmem>>, vector<4x32xf32>
    tpu.vector_store %arg8[%c0_17, %c128], %13 {strides = array<i32>} : memref<32x288xf32, #tpu.memory_space<vmem>>, vector<4x32xf32>,
    %c1_18 = arith.constant 1 : index
    %c2_19 = arith.constant 2 : index
    %c0_20 = arith.constant 0 : index
    %15 = vector.load %arg1[%c1_18, %c2_19, %c0_20] : memref<12x6x32xf32, #tpu.memory_space<vmem>>, vector<1x4x32xf32>
    %16 = vector.shape_cast %15 : vector<1x4x32xf32> to vector<4x32xf32>
    %c0_21 = arith.constant 0 : index
    %c160 = arith.constant 160 : index
    %17 = vector.load %arg8[%c0_21, %c160] : memref<32x288xf32, #tpu.memory_space<vmem>>, vector<4x32xf32>
    tpu.vector_store %arg8[%c0_21, %c160], %16 {strides = array<i32>} : memref<32x288xf32, #tpu.memory_space<vmem>>, vector<4x32xf32>,
    %c2_22 = arith.constant 2 : index
    %c0_23 = arith.constant 0 : index
    %c0_24 = arith.constant 0 : index
    %18 = vector.load %arg1[%c2_22, %c0_23, %c0_24] : memref<12x6x32xf32, #tpu.memory_space<vmem>>, vector<1x4x32xf32>
    %19 = vector.shape_cast %18 : vector<1x4x32xf32> to vector<4x32xf32>
    %c0_25 = arith.constant 0 : index
    %c192 = arith.constant 192 : index
    %20 = vector.load %arg8[%c0_25, %c192] : memref<32x288xf32, #tpu.memory_space<vmem>>, vector<4x32xf32>
    tpu.vector_store %arg8[%c0_25, %c192], %19 {strides = array<i32>} : memref<32x288xf32, #tpu.memory_space<vmem>>, vector<4x32xf32>,
    %c2_26 = arith.constant 2 : index
    %c1_27 = arith.constant 1 : index
    %c0_28 = arith.constant 0 : index
    %21 = vector.load %arg1[%c2_26, %c1_27, %c0_28] : memref<12x6x32xf32, #tpu.memory_space<vmem>>, vector<1x4x32xf32>
    %22 = vector.shape_cast %21 : vector<1x4x32xf32> to vector<4x32xf32>
    %c0_29 = arith.constant 0 : index
    %c224 = arith.constant 224 : index
    %23 = vector.load %arg8[%c0_29, %c224] : memref<32x288xf32, #tpu.memory_space<vmem>>, vector<4x32xf32>
    tpu.vector_store %arg8[%c0_29, %c224], %22 {strides = array<i32>} : memref<32x288xf32, #tpu.memory_space<vmem>>, vector<4x32xf32>,
    %c2_30 = arith.constant 2 : index
    %c2_31 = arith.constant 2 : index
    %c0_32 = arith.constant 0 : index
    %24 = vector.load %arg1[%c2_30, %c2_31, %c0_32] : memref<12x6x32xf32, #tpu.memory_space<vmem>>, vector<1x4x32xf32>
    %25 = vector.shape_cast %24 : vector<1x4x32xf32> to vector<4x32xf32>
    %c0_33 = arith.constant 0 : index
    %c256 = arith.constant 256 : index
    %26 = vector.load %arg8[%c0_33, %c256] : memref<32x288xf32, #tpu.memory_space<vmem>>, vector<4x32xf32>
    tpu.vector_store %arg8[%c0_33, %c256], %25 {strides = array<i32>} : memref<32x288xf32, #tpu.memory_space<vmem>>, vector<4x32xf32>,
    %c1_34 = arith.constant 1 : index
    %c0_35 = arith.constant 0 : index
    %c0_36 = arith.constant 0 : index
    %27 = vector.load %arg1[%c1_34, %c0_35, %c0_36] : memref<12x6x32xf32, #tpu.memory_space<vmem>>, vector<1x4x32xf32>
    %28 = vector.shape_cast %27 : vector<1x4x32xf32> to vector<4x32xf32>
    %c4 = arith.constant 4 : index
    %c0_37 = arith.constant 0 : index
    %29 = vector.load %arg8[%c4, %c0_37] : memref<32x288xf32, #tpu.memory_space<vmem>>, vector<4x32xf32>
    tpu.vector_store %arg8[%c4, %c0_37], %28 {strides = array<i32>} : memref<32x288xf32, #tpu.memory_space<vmem>>, vector<4x32xf32>,
    %c1_38 = arith.constant 1 : index
    %c1_39 = arith.constant 1 : index
    %c0_40 = arith.constant 0 : index
    %30 = vector.load %arg1[%c1_38, %c1_39, %c0_40] : memref<12x6x32xf32, #tpu.memory_space<vmem>>, vector<1x4x32xf32>
    %31 = vector.shape_cast %30 : vector<1x4x32xf32> to vector<4x32xf32>
    %c4_41 = arith.constant 4 : index
    %c32_42 = arith.constant 32 : index
    %32 = vector.load %arg8[%c4_41, %c32_42] : memref<32x288xf32, #tpu.memory_space<vmem>>, vector<4x32xf32>
    tpu.vector_store %arg8[%c4_41, %c32_42], %31 {strides = array<i32>} : memref<32x288xf32, #tpu.memory_space<vmem>>, vector<4x32xf32>,
    %c1_43 = arith.constant 1 : index
    %c2_44 = arith.constant 2 : index
    %c0_45 = arith.constant 0 : index
    %33 = vector.load %arg1[%c1_43, %c2_44, %c0_45] : memref<12x6x32xf32, #tpu.memory_space<vmem>>, vector<1x4x32xf32>
    %34 = vector.shape_cast %33 : vector<1x4x32xf32> to vector<4x32xf32>
    %c4_46 = arith.constant 4 : index
    %c64_47 = arith.constant 64 : index
    %35 = vector.load %arg8[%c4_46, %c64_47] : memref<32x288xf32, #tpu.memory_space<vmem>>, vector<4x32xf32>
    tpu.vector_store %arg8[%c4_46, %c64_47], %34 {strides = array<i32>} : memref<32x288xf32, #tpu.memory_space<vmem>>, vector<4x32xf32>,
    %c2_48 = arith.constant 2 : index
    %c0_49 = arith.constant 0 : index
    %c0_50 = arith.constant 0 : index
    %36 = vector.load %arg1[%c2_48, %c0_49, %c0_50] : memref<12x6x32xf32, #tpu.memory_space<vmem>>, vector<1x4x32xf32>
    %37 = vector.shape_cast %36 : vector<1x4x32xf32> to vector<4x32xf32>
    %c4_51 = arith.constant 4 : index
    %c96_52 = arith.constant 96 : index
    %38 = vector.load %arg8[%c4_51, %c96_52] : memref<32x288xf32, #tpu.memory_space<vmem>>, vector<4x32xf32>
    tpu.vector_store %arg8[%c4_51, %c96_52], %37 {strides = array<i32>} : memref<32x288xf32, #tpu.memory_space<vmem>>, vector<4x32xf32>,
    %c2_53 = arith.constant 2 : index
    %c1_54 = arith.constant 1 : index
    %c0_55 = arith.constant 0 : index
    %39 = vector.load %arg1[%c2_53, %c1_54, %c0_55] : memref<12x6x32xf32, #tpu.memory_space<vmem>>, vector<1x4x32xf32>
    %40 = vector.shape_cast %39 : vector<1x4x32xf32> to vector<4x32xf32>
    %c4_56 = arith.constant 4 : index
    %c128_57 = arith.constant 128 : index
    %41 = vector.load %arg8[%c4_56, %c128_57] : memref<32x288xf32, #tpu.memory_space<vmem>>, vector<4x32xf32>
    tpu.vector_store %arg8[%c4_56, %c128_57], %40 {strides = array<i32>} : memref<32x288xf32, #tpu.memory_space<vmem>>, vector<4x32xf32>,
    %c2_58 = arith.constant 2 : index
    %c2_59 = arith.constant 2 : index
    %c0_60 = arith.constant 0 : index
    %42 = vector.load %arg1[%c2_58, %c2_59, %c0_60] : memref<12x6x32xf32, #tpu.memory_space<vmem>>, vector<1x4x32xf32>
    %43 = vector.shape_cast %42 : vector<1x4x32xf32> to vector<4x32xf32>
    %c4_61 = arith.constant 4 : index
    %c160_62 = arith.constant 160 : index
    %44 = vector.load %arg8[%c4_61, %c160_62] : memref<32x288xf32, #tpu.memory_space<vmem>>, vector<4x32xf32>
    tpu.vector_store %arg8[%c4_61, %c160_62], %43 {strides = array<i32>} : memref<32x288xf32, #tpu.memory_space<vmem>>, vector<4x32xf32>,
    %c3 = arith.constant 3 : index
    %c0_63 = arith.constant 0 : index
    %c0_64 = arith.constant 0 : index
    %45 = vector.load %arg1[%c3, %c0_63, %c0_64] : memref<12x6x32xf32, #tpu.memory_space<vmem>>, vector<1x4x32xf32>
    %46 = vector.shape_cast %45 : vector<1x4x32xf32> to vector<4x32xf32>
    %c4_65 = arith.constant 4 : index
    %c192_66 = arith.constant 192 : index
    %47 = vector.load %arg8[%c4_65, %c192_66] : memref<32x288xf32, #tpu.memory_space<vmem>>, vector<4x32xf32>
    tpu.vector_store %arg8[%c4_65, %c192_66], %46 {strides = array<i32>} : memref<32x288xf32, #tpu.memory_space<vmem>>, vector<4x32xf32>,
    %c3_67 = arith.constant 3 : index
    %c1_68 = arith.constant 1 : index
    %c0_69 = arith.constant 0 : index
    %48 = vector.load %arg1[%c3_67, %c1_68, %c0_69] : memref<12x6x32xf32, #tpu.memory_space<vmem>>, vector<1x4x32xf32>
    %49 = vector.shape_cast %48 : vector<1x4x32xf32> to vector<4x32xf32>
    %c4_70 = arith.constant 4 : index
    %c224_71 = arith.constant 224 : index
    %50 = vector.load %arg8[%c4_70, %c224_71] : memref<32x288xf32, #tpu.memory_space<vmem>>, vector<4x32xf32>
    tpu.vector_store %arg8[%c4_70, %c224_71], %49 {strides = array<i32>} : memref<32x288xf32, #tpu.memory_space<vmem>>, vector<4x32xf32>,
    %c3_72 = arith.constant 3 : index
    %c2_73 = arith.constant 2 : index
    %c0_74 = arith.constant 0 : index
    %51 = vector.load %arg1[%c3_72, %c2_73, %c0_74] : memref<12x6x32xf32, #tpu.memory_space<vmem>>, vector<1x4x32xf32>
    %52 = vector.shape_cast %51 : vector<1x4x32xf32> to vector<4x32xf32>
    %c4_75 = arith.constant 4 : index
    %c256_76 = arith.constant 256 : index
    %53 = vector.load %arg8[%c4_75, %c256_76] : memref<32x288xf32, #tpu.memory_space<vmem>>, vector<4x32xf32>
    tpu.vector_store %arg8[%c4_75, %c256_76], %52 {strides = array<i32>} : memref<32x288xf32, #tpu.memory_space<vmem>>, vector<4x32xf32>,
    %c2_77 = arith.constant 2 : index
    %c0_78 = arith.constant 0 : index
    %c0_79 = arith.constant 0 : index
    %54 = vector.load %arg1[%c2_77, %c0_78, %c0_79] : memref<12x6x32xf32, #tpu.memory_space<vmem>>, vector<1x4x32xf32>
    %55 = vector.shape_cast %54 : vector<1x4x32xf32> to vector<4x32xf32>
    %c8 = arith.constant 8 : index
    %c0_80 = arith.constant 0 : index
    %56 = vector.load %arg8[%c8, %c0_80] : memref<32x288xf32, #tpu.memory_space<vmem>>, vector<4x32xf32>
    tpu.vector_store %arg8[%c8, %c0_80], %55 {strides = array<i32>} : memref<32x288xf32, #tpu.memory_space<vmem>>, vector<4x32xf32>,
    %c2_81 = arith.constant 2 : index
    %c1_82 = arith.constant 1 : index
    %c0_83 = arith.constant 0 : index
    %57 = vector.load %arg1[%c2_81, %c1_82, %c0_83] : memref<12x6x32xf32, #tpu.memory_space<vmem>>, vector<1x4x32xf32>
    %58 = vector.shape_cast %57 : vector<1x4x32xf32> to vector<4x32xf32>
    %c8_84 = arith.constant 8 : index
    %c32_85 = arith.constant 32 : index
    %59 = vector.load %arg8[%c8_84, %c32_85] : memref<32x288xf32, #tpu.memory_space<vmem>>, vector<4x32xf32>
    tpu.vector_store %arg8[%c8_84, %c32_85], %58 {strides = array<i32>} : memref<32x288xf32, #tpu.memory_space<vmem>>, vector<4x32xf32>,
    %c2_86 = arith.constant 2 : index
    %c2_87 = arith.constant 2 : index
    %c0_88 = arith.constant 0 : index
    %60 = vector.load %arg1[%c2_86, %c2_87, %c0_88] : memref<12x6x32xf32, #tpu.memory_space<vmem>>, vector<1x4x32xf32>
    %61 = vector.shape_cast %60 : vector<1x4x32xf32> to vector<4x32xf32>
    %c8_89 = arith.constant 8 : index
    %c64_90 = arith.constant 64 : index
    %62 = vector.load %arg8[%c8_89, %c64_90] : memref<32x288xf32, #tpu.memory_space<vmem>>, vector<4x32xf32>
    tpu.vector_store %arg8[%c8_89, %c64_90], %61 {strides = array<i32>} : memref<32x288xf32, #tpu.memory_space<vmem>>, vector<4x32xf32>,
    %c3_91 = arith.constant 3 : index
    %c0_92 = arith.constant 0 : index
    %c0_93 = arith.constant 0 : index
    %63 = vector.load %arg1[%c3_91, %c0_92, %c0_93] : memref<12x6x32xf32, #tpu.memory_space<vmem>>, vector<1x4x32xf32>
    %64 = vector.shape_cast %63 : vector<1x4x32xf32> to vector<4x32xf32>
    %c8_94 = arith.constant 8 : index
    %c96_95 = arith.constant 96 : index
    %65 = vector.load %arg8[%c8_94, %c96_95] : memref<32x288xf32, #tpu.memory_space<vmem>>, vector<4x32xf32>
    tpu.vector_store %arg8[%c8_94, %c96_95], %64 {strides = array<i32>} : memref<32x288xf32, #tpu.memory_space<vmem>>, vector<4x32xf32>,
    %c3_96 = arith.constant 3 : index
    %c1_97 = arith.constant 1 : index
    %c0_98 = arith.constant 0 : index
    %66 = vector.load %arg1[%c3_96, %c1_97, %c0_98] : memref<12x6x32xf32, #tpu.memory_space<vmem>>, vector<1x4x32xf32>
    %67 = vector.shape_cast %66 : vector<1x4x32xf32> to vector<4x32xf32>
    %c8_99 = arith.constant 8 : index
    %c128_100 = arith.constant 128 : index
    %68 = vector.load %arg8[%c8_99, %c128_100] : memref<32x288xf32, #tpu.memory_space<vmem>>, vector<4x32xf32>
    tpu.vector_store %arg8[%c8_99, %c128_100], %67 {strides = array<i32>} : memref<32x288xf32, #tpu.memory_space<vmem>>, vector<4x32xf32>,
    %c3_101 = arith.constant 3 : index
    %c2_102 = arith.constant 2 : index
    %c0_103 = arith.constant 0 : index
    %69 = vector.load %arg1[%c3_101, %c2_102, %c0_103] : memref<12x6x32xf32, #tpu.memory_space<vmem>>, vector<1x4x32xf32>
    %70 = vector.shape_cast %69 : vector<1x4x32xf32> to vector<4x32xf32>
    %c8_104 = arith.constant 8 : index
    %c160_105 = arith.constant 160 : index
    %71 = vector.load %arg8[%c8_104, %c160_105] : memref<32x288xf32, #tpu.memory_space<vmem>>, vector<4x32xf32>
    tpu.vector_store %arg8[%c8_104, %c160_105], %70 {strides = array<i32>} : memref<32x288xf32, #tpu.memory_space<vmem>>, vector<4x32xf32>,
    %c4_106 = arith.constant 4 : index
    %c0_107 = arith.constant 0 : index
    %c0_108 = arith.constant 0 : index
    %72 = vector.load %arg1[%c4_106, %c0_107, %c0_108] : memref<12x6x32xf32, #tpu.memory_space<vmem>>, vector<1x4x32xf32>
    %73 = vector.shape_cast %72 : vector<1x4x32xf32> to vector<4x32xf32>
    %c8_109 = arith.constant 8 : index
    %c192_110 = arith.constant 192 : index
    %74 = vector.load %arg8[%c8_109, %c192_110] : memref<32x288xf32, #tpu.memory_space<vmem>>, vector<4x32xf32>
    tpu.vector_store %arg8[%c8_109, %c192_110], %73 {strides = array<i32>} : memref<32x288xf32, #tpu.memory_space<vmem>>, vector<4x32xf32>,
    %c4_111 = arith.constant 4 : index
    %c1_112 = arith.constant 1 : index
    %c0_113 = arith.constant 0 : index
    %75 = vector.load %arg1[%c4_111, %c1_112, %c0_113] : memref<12x6x32xf32, #tpu.memory_space<vmem>>, vector<1x4x32xf32>
    %76 = vector.shape_cast %75 : vector<1x4x32xf32> to vector<4x32xf32>
    %c8_114 = arith.constant 8 : index
    %c224_115 = arith.constant 224 : index
    %77 = vector.load %arg8[%c8_114, %c224_115] : memref<32x288xf32, #tpu.memory_space<vmem>>, vector<4x32xf32>
    tpu.vector_store %arg8[%c8_114, %c224_115], %76 {strides = array<i32>} : memref<32x288xf32, #tpu.memory_space<vmem>>, vector<4x32xf32>,
    %c4_116 = arith.constant 4 : index
    %c2_117 = arith.constant 2 : index
    %c0_118 = arith.constant 0 : index
    %78 = vector.load %arg1[%c4_116, %c2_117, %c0_118] : memref<12x6x32xf32, #tpu.memory_space<vmem>>, vector<1x4x32xf32>
    %79 = vector.shape_cast %78 : vector<1x4x32xf32> to vector<4x32xf32>
    %c8_119 = arith.constant 8 : index
    %c256_120 = arith.constant 256 : index
    %80 = vector.load %arg8[%c8_119, %c256_120] : memref<32x288xf32, #tpu.memory_space<vmem>>, vector<4x32xf32>
    tpu.vector_store %arg8[%c8_119, %c256_120], %79 {strides = array<i32>} : memref<32x288xf32, #tpu.memory_space<vmem>>, vector<4x32xf32>,
    %c3_121 = arith.constant 3 : index
    %c0_122 = arith.constant 0 : index
    %c0_123 = arith.constant 0 : index
    %81 = vector.load %arg1[%c3_121, %c0_122, %c0_123] : memref<12x6x32xf32, #tpu.memory_space<vmem>>, vector<1x4x32xf32>
    %82 = vector.shape_cast %81 : vector<1x4x32xf32> to vector<4x32xf32>
    %c12 = arith.constant 12 : index
    %c0_124 = arith.constant 0 : index
    %83 = vector.load %arg8[%c12, %c0_124] : memref<32x288xf32, #tpu.memory_space<vmem>>, vector<4x32xf32>
    tpu.vector_store %arg8[%c12, %c0_124], %82 {strides = array<i32>} : memref<32x288xf32, #tpu.memory_space<vmem>>, vector<4x32xf32>,
    %c3_125 = arith.constant 3 : index
    %c1_126 = arith.constant 1 : index
    %c0_127 = arith.constant 0 : index
    %84 = vector.load %arg1[%c3_125, %c1_126, %c0_127] : memref<12x6x32xf32, #tpu.memory_space<vmem>>, vector<1x4x32xf32>
    %85 = vector.shape_cast %84 : vector<1x4x32xf32> to vector<4x32xf32>
    %c12_128 = arith.constant 12 : index
    %c32_129 = arith.constant 32 : index
    %86 = vector.load %arg8[%c12_128, %c32_129] : memref<32x288xf32, #tpu.memory_space<vmem>>, vector<4x32xf32>
    tpu.vector_store %arg8[%c12_128, %c32_129], %85 {strides = array<i32>} : memref<32x288xf32, #tpu.memory_space<vmem>>, vector<4x32xf32>,
    %c3_130 = arith.constant 3 : index
    %c2_131 = arith.constant 2 : index
    %c0_132 = arith.constant 0 : index
    %87 = vector.load %arg1[%c3_130, %c2_131, %c0_132] : memref<12x6x32xf32, #tpu.memory_space<vmem>>, vector<1x4x32xf32>
    %88 = vector.shape_cast %87 : vector<1x4x32xf32> to vector<4x32xf32>
    %c12_133 = arith.constant 12 : index
    %c64_134 = arith.constant 64 : index
    %89 = vector.load %arg8[%c12_133, %c64_134] : memref<32x288xf32, #tpu.memory_space<vmem>>, vector<4x32xf32>
    tpu.vector_store %arg8[%c12_133, %c64_134], %88 {strides = array<i32>} : memref<32x288xf32, #tpu.memory_space<vmem>>, vector<4x32xf32>,
    %c4_135 = arith.constant 4 : index
    %c0_136 = arith.constant 0 : index
    %c0_137 = arith.constant 0 : index
    %90 = vector.load %arg1[%c4_135, %c0_136, %c0_137] : memref<12x6x32xf32, #tpu.memory_space<vmem>>, vector<1x4x32xf32>
    %91 = vector.shape_cast %90 : vector<1x4x32xf32> to vector<4x32xf32>
    %c12_138 = arith.constant 12 : index
    %c96_139 = arith.constant 96 : index
    %92 = vector.load %arg8[%c12_138, %c96_139] : memref<32x288xf32, #tpu.memory_space<vmem>>, vector<4x32xf32>
    tpu.vector_store %arg8[%c12_138, %c96_139], %91 {strides = array<i32>} : memref<32x288xf32, #tpu.memory_space<vmem>>, vector<4x32xf32>,
    %c4_140 = arith.constant 4 : index
    %c1_141 = arith.constant 1 : index
    %c0_142 = arith.constant 0 : index
    %93 = vector.load %arg1[%c4_140, %c1_141, %c0_142] : memref<12x6x32xf32, #tpu.memory_space<vmem>>, vector<1x4x32xf32>
    %94 = vector.shape_cast %93 : vector<1x4x32xf32> to vector<4x32xf32>
    %c12_143 = arith.constant 12 : index
    %c128_144 = arith.constant 128 : index
    %95 = vector.load %arg8[%c12_143, %c128_144] : memref<32x288xf32, #tpu.memory_space<vmem>>, vector<4x32xf32>
    tpu.vector_store %arg8[%c12_143, %c128_144], %94 {strides = array<i32>} : memref<32x288xf32, #tpu.memory_space<vmem>>, vector<4x32xf32>,
    %c4_145 = arith.constant 4 : index
    %c2_146 = arith.constant 2 : index
    %c0_147 = arith.constant 0 : index
    %96 = vector.load %arg1[%c4_145, %c2_146, %c0_147] : memref<12x6x32xf32, #tpu.memory_space<vmem>>, vector<1x4x32xf32>
    %97 = vector.shape_cast %96 : vector<1x4x32xf32> to vector<4x32xf32>
    %c12_148 = arith.constant 12 : index
    %c160_149 = arith.constant 160 : index
    %98 = vector.load %arg8[%c12_148, %c160_149] : memref<32x288xf32, #tpu.memory_space<vmem>>, vector<4x32xf32>
    tpu.vector_store %arg8[%c12_148, %c160_149], %97 {strides = array<i32>} : memref<32x288xf32, #tpu.memory_space<vmem>>, vector<4x32xf32>,
    %c5 = arith.constant 5 : index
    %c0_150 = arith.constant 0 : index
    %c0_151 = arith.constant 0 : index
    %99 = vector.load %arg1[%c5, %c0_150, %c0_151] : memref<12x6x32xf32, #tpu.memory_space<vmem>>, vector<1x4x32xf32>
    %100 = vector.shape_cast %99 : vector<1x4x32xf32> to vector<4x32xf32>
    %c12_152 = arith.constant 12 : index
    %c192_153 = arith.constant 192 : index
    %101 = vector.load %arg8[%c12_152, %c192_153] : memref<32x288xf32, #tpu.memory_space<vmem>>, vector<4x32xf32>
    tpu.vector_store %arg8[%c12_152, %c192_153], %100 {strides = array<i32>} : memref<32x288xf32, #tpu.memory_space<vmem>>, vector<4x32xf32>,
    %c5_154 = arith.constant 5 : index
    %c1_155 = arith.constant 1 : index
    %c0_156 = arith.constant 0 : index
    %102 = vector.load %arg1[%c5_154, %c1_155, %c0_156] : memref<12x6x32xf32, #tpu.memory_space<vmem>>, vector<1x4x32xf32>
    %103 = vector.shape_cast %102 : vector<1x4x32xf32> to vector<4x32xf32>
    %c12_157 = arith.constant 12 : index
    %c224_158 = arith.constant 224 : index
    %104 = vector.load %arg8[%c12_157, %c224_158] : memref<32x288xf32, #tpu.memory_space<vmem>>, vector<4x32xf32>
    tpu.vector_store %arg8[%c12_157, %c224_158], %103 {strides = array<i32>} : memref<32x288xf32, #tpu.memory_space<vmem>>, vector<4x32xf32>,
    %c5_159 = arith.constant 5 : index
    %c2_160 = arith.constant 2 : index
    %c0_161 = arith.constant 0 : index
    %105 = vector.load %arg1[%c5_159, %c2_160, %c0_161] : memref<12x6x32xf32, #tpu.memory_space<vmem>>, vector<1x4x32xf32>
    %106 = vector.shape_cast %105 : vector<1x4x32xf32> to vector<4x32xf32>
    %c12_162 = arith.constant 12 : index
    %c256_163 = arith.constant 256 : index
    %107 = vector.load %arg8[%c12_162, %c256_163] : memref<32x288xf32, #tpu.memory_space<vmem>>, vector<4x32xf32>
    tpu.vector_store %arg8[%c12_162, %c256_163], %106 {strides = array<i32>} : memref<32x288xf32, #tpu.memory_space<vmem>>, vector<4x32xf32>,
    %c6 = arith.constant 6 : index
    %c0_164 = arith.constant 0 : index
    %c0_165 = arith.constant 0 : index
    %108 = vector.load %arg1[%c6, %c0_164, %c0_165] : memref<12x6x32xf32, #tpu.memory_space<vmem>>, vector<1x4x32xf32>
    %109 = vector.shape_cast %108 : vector<1x4x32xf32> to vector<4x32xf32>
    %c16 = arith.constant 16 : index
    %c0_166 = arith.constant 0 : index
    %110 = vector.load %arg8[%c16, %c0_166] : memref<32x288xf32, #tpu.memory_space<vmem>>, vector<4x32xf32>
    tpu.vector_store %arg8[%c16, %c0_166], %109 {strides = array<i32>} : memref<32x288xf32, #tpu.memory_space<vmem>>, vector<4x32xf32>,
    %c6_167 = arith.constant 6 : index
    %c1_168 = arith.constant 1 : index
    %c0_169 = arith.constant 0 : index
    %111 = vector.load %arg1[%c6_167, %c1_168, %c0_169] : memref<12x6x32xf32, #tpu.memory_space<vmem>>, vector<1x4x32xf32>
    %112 = vector.shape_cast %111 : vector<1x4x32xf32> to vector<4x32xf32>
    %c16_170 = arith.constant 16 : index
    %c32_171 = arith.constant 32 : index
    %113 = vector.load %arg8[%c16_170, %c32_171] : memref<32x288xf32, #tpu.memory_space<vmem>>, vector<4x32xf32>
    tpu.vector_store %arg8[%c16_170, %c32_171], %112 {strides = array<i32>} : memref<32x288xf32, #tpu.memory_space<vmem>>, vector<4x32xf32>,
    %c6_172 = arith.constant 6 : index
    %c2_173 = arith.constant 2 : index
    %c0_174 = arith.constant 0 : index
    %114 = vector.load %arg1[%c6_172, %c2_173, %c0_174] : memref<12x6x32xf32, #tpu.memory_space<vmem>>, vector<1x4x32xf32>
    %115 = vector.shape_cast %114 : vector<1x4x32xf32> to vector<4x32xf32>
    %c16_175 = arith.constant 16 : index
    %c64_176 = arith.constant 64 : index
    %116 = vector.load %arg8[%c16_175, %c64_176] : memref<32x288xf32, #tpu.memory_space<vmem>>, vector<4x32xf32>
    tpu.vector_store %arg8[%c16_175, %c64_176], %115 {strides = array<i32>} : memref<32x288xf32, #tpu.memory_space<vmem>>, vector<4x32xf32>,
    %c7 = arith.constant 7 : index
    %c0_177 = arith.constant 0 : index
    %c0_178 = arith.constant 0 : index
    %117 = vector.load %arg1[%c7, %c0_177, %c0_178] : memref<12x6x32xf32, #tpu.memory_space<vmem>>, vector<1x4x32xf32>
    %118 = vector.shape_cast %117 : vector<1x4x32xf32> to vector<4x32xf32>
    %c16_179 = arith.constant 16 : index
    %c96_180 = arith.constant 96 : index
    %119 = vector.load %arg8[%c16_179, %c96_180] : memref<32x288xf32, #tpu.memory_space<vmem>>, vector<4x32xf32>
    tpu.vector_store %arg8[%c16_179, %c96_180], %118 {strides = array<i32>} : memref<32x288xf32, #tpu.memory_space<vmem>>, vector<4x32xf32>,
    %c7_181 = arith.constant 7 : index
    %c1_182 = arith.constant 1 : index
    %c0_183 = arith.constant 0 : index
    %120 = vector.load %arg1[%c7_181, %c1_182, %c0_183] : memref<12x6x32xf32, #tpu.memory_space<vmem>>, vector<1x4x32xf32>
    %121 = vector.shape_cast %120 : vector<1x4x32xf32> to vector<4x32xf32>
    %c16_184 = arith.constant 16 : index
    %c128_185 = arith.constant 128 : index
    %122 = vector.load %arg8[%c16_184, %c128_185] : memref<32x288xf32, #tpu.memory_space<vmem>>, vector<4x32xf32>
    tpu.vector_store %arg8[%c16_184, %c128_185], %121 {strides = array<i32>} : memref<32x288xf32, #tpu.memory_space<vmem>>, vector<4x32xf32>,
    %c7_186 = arith.constant 7 : index
    %c2_187 = arith.constant 2 : index
    %c0_188 = arith.constant 0 : index
    %123 = vector.load %arg1[%c7_186, %c2_187, %c0_188] : memref<12x6x32xf32, #tpu.memory_space<vmem>>, vector<1x4x32xf32>
    %124 = vector.shape_cast %123 : vector<1x4x32xf32> to vector<4x32xf32>
    %c16_189 = arith.constant 16 : index
    %c160_190 = arith.constant 160 : index
    %125 = vector.load %arg8[%c16_189, %c160_190] : memref<32x288xf32, #tpu.memory_space<vmem>>, vector<4x32xf32>
    tpu.vector_store %arg8[%c16_189, %c160_190], %124 {strides = array<i32>} : memref<32x288xf32, #tpu.memory_space<vmem>>, vector<4x32xf32>,
    %c8_191 = arith.constant 8 : index
    %c0_192 = arith.constant 0 : index
    %c0_193 = arith.constant 0 : index
    %126 = vector.load %arg1[%c8_191, %c0_192, %c0_193] : memref<12x6x32xf32, #tpu.memory_space<vmem>>, vector<1x4x32xf32>
    %127 = vector.shape_cast %126 : vector<1x4x32xf32> to vector<4x32xf32>
    %c16_194 = arith.constant 16 : index
    %c192_195 = arith.constant 192 : index
    %128 = vector.load %arg8[%c16_194, %c192_195] : memref<32x288xf32, #tpu.memory_space<vmem>>, vector<4x32xf32>
    tpu.vector_store %arg8[%c16_194, %c192_195], %127 {strides = array<i32>} : memref<32x288xf32, #tpu.memory_space<vmem>>, vector<4x32xf32>,
    %c8_196 = arith.constant 8 : index
    %c1_197 = arith.constant 1 : index
    %c0_198 = arith.constant 0 : index
    %129 = vector.load %arg1[%c8_196, %c1_197, %c0_198] : memref<12x6x32xf32, #tpu.memory_space<vmem>>, vector<1x4x32xf32>
    %130 = vector.shape_cast %129 : vector<1x4x32xf32> to vector<4x32xf32>
    %c16_199 = arith.constant 16 : index
    %c224_200 = arith.constant 224 : index
    %131 = vector.load %arg8[%c16_199, %c224_200] : memref<32x288xf32, #tpu.memory_space<vmem>>, vector<4x32xf32>
    tpu.vector_store %arg8[%c16_199, %c224_200], %130 {strides = array<i32>} : memref<32x288xf32, #tpu.memory_space<vmem>>, vector<4x32xf32>,
    %c8_201 = arith.constant 8 : index
    %c2_202 = arith.constant 2 : index
    %c0_203 = arith.constant 0 : index
    %132 = vector.load %arg1[%c8_201, %c2_202, %c0_203] : memref<12x6x32xf32, #tpu.memory_space<vmem>>, vector<1x4x32xf32>
    %133 = vector.shape_cast %132 : vector<1x4x32xf32> to vector<4x32xf32>
    %c16_204 = arith.constant 16 : index
    %c256_205 = arith.constant 256 : index
    %134 = vector.load %arg8[%c16_204, %c256_205] : memref<32x288xf32, #tpu.memory_space<vmem>>, vector<4x32xf32>
    tpu.vector_store %arg8[%c16_204, %c256_205], %133 {strides = array<i32>} : memref<32x288xf32, #tpu.memory_space<vmem>>, vector<4x32xf32>,
    %c7_206 = arith.constant 7 : index
    %c0_207 = arith.constant 0 : index
    %c0_208 = arith.constant 0 : index
    %135 = vector.load %arg1[%c7_206, %c0_207, %c0_208] : memref<12x6x32xf32, #tpu.memory_space<vmem>>, vector<1x4x32xf32>
    %136 = vector.shape_cast %135 : vector<1x4x32xf32> to vector<4x32xf32>
    %c20 = arith.constant 20 : index
    %c0_209 = arith.constant 0 : index
    %137 = vector.load %arg8[%c20, %c0_209] : memref<32x288xf32, #tpu.memory_space<vmem>>, vector<4x32xf32>
    tpu.vector_store %arg8[%c20, %c0_209], %136 {strides = array<i32>} : memref<32x288xf32, #tpu.memory_space<vmem>>, vector<4x32xf32>,
    %c7_210 = arith.constant 7 : index
    %c1_211 = arith.constant 1 : index
    %c0_212 = arith.constant 0 : index
    %138 = vector.load %arg1[%c7_210, %c1_211, %c0_212] : memref<12x6x32xf32, #tpu.memory_space<vmem>>, vector<1x4x32xf32>
    %139 = vector.shape_cast %138 : vector<1x4x32xf32> to vector<4x32xf32>
    %c20_213 = arith.constant 20 : index
    %c32_214 = arith.constant 32 : index
    %140 = vector.load %arg8[%c20_213, %c32_214] : memref<32x288xf32, #tpu.memory_space<vmem>>, vector<4x32xf32>
    tpu.vector_store %arg8[%c20_213, %c32_214], %139 {strides = array<i32>} : memref<32x288xf32, #tpu.memory_space<vmem>>, vector<4x32xf32>,
    %c7_215 = arith.constant 7 : index
    %c2_216 = arith.constant 2 : index
    %c0_217 = arith.constant 0 : index
    %141 = vector.load %arg1[%c7_215, %c2_216, %c0_217] : memref<12x6x32xf32, #tpu.memory_space<vmem>>, vector<1x4x32xf32>
    %142 = vector.shape_cast %141 : vector<1x4x32xf32> to vector<4x32xf32>
    %c20_218 = arith.constant 20 : index
    %c64_219 = arith.constant 64 : index
    %143 = vector.load %arg8[%c20_218, %c64_219] : memref<32x288xf32, #tpu.memory_space<vmem>>, vector<4x32xf32>
    tpu.vector_store %arg8[%c20_218, %c64_219], %142 {strides = array<i32>} : memref<32x288xf32, #tpu.memory_space<vmem>>, vector<4x32xf32>,
    %c8_220 = arith.constant 8 : index
    %c0_221 = arith.constant 0 : index
    %c0_222 = arith.constant 0 : index
    %144 = vector.load %arg1[%c8_220, %c0_221, %c0_222] : memref<12x6x32xf32, #tpu.memory_space<vmem>>, vector<1x4x32xf32>
    %145 = vector.shape_cast %144 : vector<1x4x32xf32> to vector<4x32xf32>
    %c20_223 = arith.constant 20 : index
    %c96_224 = arith.constant 96 : index
    %146 = vector.load %arg8[%c20_223, %c96_224] : memref<32x288xf32, #tpu.memory_space<vmem>>, vector<4x32xf32>
    tpu.vector_store %arg8[%c20_223, %c96_224], %145 {strides = array<i32>} : memref<32x288xf32, #tpu.memory_space<vmem>>, vector<4x32xf32>,
    %c8_225 = arith.constant 8 : index
    %c1_226 = arith.constant 1 : index
    %c0_227 = arith.constant 0 : index
    %147 = vector.load %arg1[%c8_225, %c1_226, %c0_227] : memref<12x6x32xf32, #tpu.memory_space<vmem>>, vector<1x4x32xf32>
    %148 = vector.shape_cast %147 : vector<1x4x32xf32> to vector<4x32xf32>
    %c20_228 = arith.constant 20 : index
    %c128_229 = arith.constant 128 : index
    %149 = vector.load %arg8[%c20_228, %c128_229] : memref<32x288xf32, #tpu.memory_space<vmem>>, vector<4x32xf32>
    tpu.vector_store %arg8[%c20_228, %c128_229], %148 {strides = array<i32>} : memref<32x288xf32, #tpu.memory_space<vmem>>, vector<4x32xf32>,
    %c8_230 = arith.constant 8 : index
    %c2_231 = arith.constant 2 : index
    %c0_232 = arith.constant 0 : index
    %150 = vector.load %arg1[%c8_230, %c2_231, %c0_232] : memref<12x6x32xf32, #tpu.memory_space<vmem>>, vector<1x4x32xf32>
    %151 = vector.shape_cast %150 : vector<1x4x32xf32> to vector<4x32xf32>
    %c20_233 = arith.constant 20 : index
    %c160_234 = arith.constant 160 : index
    %152 = vector.load %arg8[%c20_233, %c160_234] : memref<32x288xf32, #tpu.memory_space<vmem>>, vector<4x32xf32>
    tpu.vector_store %arg8[%c20_233, %c160_234], %151 {strides = array<i32>} : memref<32x288xf32, #tpu.memory_space<vmem>>, vector<4x32xf32>,
    %c9 = arith.constant 9 : index
    %c0_235 = arith.constant 0 : index
    %c0_236 = arith.constant 0 : index
    %153 = vector.load %arg1[%c9, %c0_235, %c0_236] : memref<12x6x32xf32, #tpu.memory_space<vmem>>, vector<1x4x32xf32>
    %154 = vector.shape_cast %153 : vector<1x4x32xf32> to vector<4x32xf32>
    %c20_237 = arith.constant 20 : index
    %c192_238 = arith.constant 192 : index
    %155 = vector.load %arg8[%c20_237, %c192_238] : memref<32x288xf32, #tpu.memory_space<vmem>>, vector<4x32xf32>
    tpu.vector_store %arg8[%c20_237, %c192_238], %154 {strides = array<i32>} : memref<32x288xf32, #tpu.memory_space<vmem>>, vector<4x32xf32>,
    %c9_239 = arith.constant 9 : index
    %c1_240 = arith.constant 1 : index
    %c0_241 = arith.constant 0 : index
    %156 = vector.load %arg1[%c9_239, %c1_240, %c0_241] : memref<12x6x32xf32, #tpu.memory_space<vmem>>, vector<1x4x32xf32>
    %157 = vector.shape_cast %156 : vector<1x4x32xf32> to vector<4x32xf32>
    %c20_242 = arith.constant 20 : index
    %c224_243 = arith.constant 224 : index
    %158 = vector.load %arg8[%c20_242, %c224_243] : memref<32x288xf32, #tpu.memory_space<vmem>>, vector<4x32xf32>
    tpu.vector_store %arg8[%c20_242, %c224_243], %157 {strides = array<i32>} : memref<32x288xf32, #tpu.memory_space<vmem>>, vector<4x32xf32>,
    %c9_244 = arith.constant 9 : index
    %c2_245 = arith.constant 2 : index
    %c0_246 = arith.constant 0 : index
    %159 = vector.load %arg1[%c9_244, %c2_245, %c0_246] : memref<12x6x32xf32, #tpu.memory_space<vmem>>, vector<1x4x32xf32>
    %160 = vector.shape_cast %159 : vector<1x4x32xf32> to vector<4x32xf32>
    %c20_247 = arith.constant 20 : index
    %c256_248 = arith.constant 256 : index
    %161 = vector.load %arg8[%c20_247, %c256_248] : memref<32x288xf32, #tpu.memory_space<vmem>>, vector<4x32xf32>
    tpu.vector_store %arg8[%c20_247, %c256_248], %160 {strides = array<i32>} : memref<32x288xf32, #tpu.memory_space<vmem>>, vector<4x32xf32>,
    %c8_249 = arith.constant 8 : index
    %c0_250 = arith.constant 0 : index
    %c0_251 = arith.constant 0 : index
    %162 = vector.load %arg1[%c8_249, %c0_250, %c0_251] : memref<12x6x32xf32, #tpu.memory_space<vmem>>, vector<1x4x32xf32>
    %163 = vector.shape_cast %162 : vector<1x4x32xf32> to vector<4x32xf32>
    %c24 = arith.constant 24 : index
    %c0_252 = arith.constant 0 : index
    %164 = vector.load %arg8[%c24, %c0_252] : memref<32x288xf32, #tpu.memory_space<vmem>>, vector<4x32xf32>
    tpu.vector_store %arg8[%c24, %c0_252], %163 {strides = array<i32>} : memref<32x288xf32, #tpu.memory_space<vmem>>, vector<4x32xf32>,
    %c8_253 = arith.constant 8 : index
    %c1_254 = arith.constant 1 : index
    %c0_255 = arith.constant 0 : index
    %165 = vector.load %arg1[%c8_253, %c1_254, %c0_255] : memref<12x6x32xf32, #tpu.memory_space<vmem>>, vector<1x4x32xf32>
    %166 = vector.shape_cast %165 : vector<1x4x32xf32> to vector<4x32xf32>
    %c24_256 = arith.constant 24 : index
    %c32_257 = arith.constant 32 : index
    %167 = vector.load %arg8[%c24_256, %c32_257] : memref<32x288xf32, #tpu.memory_space<vmem>>, vector<4x32xf32>
    tpu.vector_store %arg8[%c24_256, %c32_257], %166 {strides = array<i32>} : memref<32x288xf32, #tpu.memory_space<vmem>>, vector<4x32xf32>,
    %c8_258 = arith.constant 8 : index
    %c2_259 = arith.constant 2 : index
    %c0_260 = arith.constant 0 : index
    %168 = vector.load %arg1[%c8_258, %c2_259, %c0_260] : memref<12x6x32xf32, #tpu.memory_space<vmem>>, vector<1x4x32xf32>
    %169 = vector.shape_cast %168 : vector<1x4x32xf32> to vector<4x32xf32>
    %c24_261 = arith.constant 24 : index
    %c64_262 = arith.constant 64 : index
    %170 = vector.load %arg8[%c24_261, %c64_262] : memref<32x288xf32, #tpu.memory_space<vmem>>, vector<4x32xf32>
    tpu.vector_store %arg8[%c24_261, %c64_262], %169 {strides = array<i32>} : memref<32x288xf32, #tpu.memory_space<vmem>>, vector<4x32xf32>,
    %c9_263 = arith.constant 9 : index
    %c0_264 = arith.constant 0 : index
    %c0_265 = arith.constant 0 : index
    %171 = vector.load %arg1[%c9_263, %c0_264, %c0_265] : memref<12x6x32xf32, #tpu.memory_space<vmem>>, vector<1x4x32xf32>
    %172 = vector.shape_cast %171 : vector<1x4x32xf32> to vector<4x32xf32>
    %c24_266 = arith.constant 24 : index
    %c96_267 = arith.constant 96 : index
    %173 = vector.load %arg8[%c24_266, %c96_267] : memref<32x288xf32, #tpu.memory_space<vmem>>, vector<4x32xf32>
    tpu.vector_store %arg8[%c24_266, %c96_267], %172 {strides = array<i32>} : memref<32x288xf32, #tpu.memory_space<vmem>>, vector<4x32xf32>,
    %c9_268 = arith.constant 9 : index
    %c1_269 = arith.constant 1 : index
    %c0_270 = arith.constant 0 : index
    %174 = vector.load %arg1[%c9_268, %c1_269, %c0_270] : memref<12x6x32xf32, #tpu.memory_space<vmem>>, vector<1x4x32xf32>
    %175 = vector.shape_cast %174 : vector<1x4x32xf32> to vector<4x32xf32>
    %c24_271 = arith.constant 24 : index
    %c128_272 = arith.constant 128 : index
    %176 = vector.load %arg8[%c24_271, %c128_272] : memref<32x288xf32, #tpu.memory_space<vmem>>, vector<4x32xf32>
    tpu.vector_store %arg8[%c24_271, %c128_272], %175 {strides = array<i32>} : memref<32x288xf32, #tpu.memory_space<vmem>>, vector<4x32xf32>,
    %c9_273 = arith.constant 9 : index
    %c2_274 = arith.constant 2 : index
    %c0_275 = arith.constant 0 : index
    %177 = vector.load %arg1[%c9_273, %c2_274, %c0_275] : memref<12x6x32xf32, #tpu.memory_space<vmem>>, vector<1x4x32xf32>
    %178 = vector.shape_cast %177 : vector<1x4x32xf32> to vector<4x32xf32>
    %c24_276 = arith.constant 24 : index
    %c160_277 = arith.constant 160 : index
    %179 = vector.load %arg8[%c24_276, %c160_277] : memref<32x288xf32, #tpu.memory_space<vmem>>, vector<4x32xf32>
    tpu.vector_store %arg8[%c24_276, %c160_277], %178 {strides = array<i32>} : memref<32x288xf32, #tpu.memory_space<vmem>>, vector<4x32xf32>,
    %c10 = arith.constant 10 : index
    %c0_278 = arith.constant 0 : index
    %c0_279 = arith.constant 0 : index
    %180 = vector.load %arg1[%c10, %c0_278, %c0_279] : memref<12x6x32xf32, #tpu.memory_space<vmem>>, vector<1x4x32xf32>
    %181 = vector.shape_cast %180 : vector<1x4x32xf32> to vector<4x32xf32>
    %c24_280 = arith.constant 24 : index
    %c192_281 = arith.constant 192 : index
    %182 = vector.load %arg8[%c24_280, %c192_281] : memref<32x288xf32, #tpu.memory_space<vmem>>, vector<4x32xf32>
    tpu.vector_store %arg8[%c24_280, %c192_281], %181 {strides = array<i32>} : memref<32x288xf32, #tpu.memory_space<vmem>>, vector<4x32xf32>,
    %c10_282 = arith.constant 10 : index
    %c1_283 = arith.constant 1 : index
    %c0_284 = arith.constant 0 : index
    %183 = vector.load %arg1[%c10_282, %c1_283, %c0_284] : memref<12x6x32xf32, #tpu.memory_space<vmem>>, vector<1x4x32xf32>
    %184 = vector.shape_cast %183 : vector<1x4x32xf32> to vector<4x32xf32>
    %c24_285 = arith.constant 24 : index
    %c224_286 = arith.constant 224 : index
    %185 = vector.load %arg8[%c24_285, %c224_286] : memref<32x288xf32, #tpu.memory_space<vmem>>, vector<4x32xf32>
    tpu.vector_store %arg8[%c24_285, %c224_286], %184 {strides = array<i32>} : memref<32x288xf32, #tpu.memory_space<vmem>>, vector<4x32xf32>,
    %c10_287 = arith.constant 10 : index
    %c2_288 = arith.constant 2 : index
    %c0_289 = arith.constant 0 : index
    %186 = vector.load %arg1[%c10_287, %c2_288, %c0_289] : memref<12x6x32xf32, #tpu.memory_space<vmem>>, vector<1x4x32xf32>
    %187 = vector.shape_cast %186 : vector<1x4x32xf32> to vector<4x32xf32>
    %c24_290 = arith.constant 24 : index
    %c256_291 = arith.constant 256 : index
    %188 = vector.load %arg8[%c24_290, %c256_291] : memref<32x288xf32, #tpu.memory_space<vmem>>, vector<4x32xf32>
    tpu.vector_store %arg8[%c24_290, %c256_291], %187 {strides = array<i32>} : memref<32x288xf32, #tpu.memory_space<vmem>>, vector<4x32xf32>,
    %c9_292 = arith.constant 9 : index
    %c0_293 = arith.constant 0 : index
    %c0_294 = arith.constant 0 : index
    %189 = vector.load %arg1[%c9_292, %c0_293, %c0_294] : memref<12x6x32xf32, #tpu.memory_space<vmem>>, vector<1x4x32xf32>
    %190 = vector.shape_cast %189 : vector<1x4x32xf32> to vector<4x32xf32>
    %c28 = arith.constant 28 : index
    %c0_295 = arith.constant 0 : index
    %191 = vector.load %arg8[%c28, %c0_295] : memref<32x288xf32, #tpu.memory_space<vmem>>, vector<4x32xf32>
    tpu.vector_store %arg8[%c28, %c0_295], %190 {strides = array<i32>} : memref<32x288xf32, #tpu.memory_space<vmem>>, vector<4x32xf32>,
    %c9_296 = arith.constant 9 : index
    %c1_297 = arith.constant 1 : index
    %c0_298 = arith.constant 0 : index
    %192 = vector.load %arg1[%c9_296, %c1_297, %c0_298] : memref<12x6x32xf32, #tpu.memory_space<vmem>>, vector<1x4x32xf32>
    %193 = vector.shape_cast %192 : vector<1x4x32xf32> to vector<4x32xf32>
    %c28_299 = arith.constant 28 : index
    %c32_300 = arith.constant 32 : index
    %194 = vector.load %arg8[%c28_299, %c32_300] : memref<32x288xf32, #tpu.memory_space<vmem>>, vector<4x32xf32>
    tpu.vector_store %arg8[%c28_299, %c32_300], %193 {strides = array<i32>} : memref<32x288xf32, #tpu.memory_space<vmem>>, vector<4x32xf32>,
    %c9_301 = arith.constant 9 : index
    %c2_302 = arith.constant 2 : index
    %c0_303 = arith.constant 0 : index
    %195 = vector.load %arg1[%c9_301, %c2_302, %c0_303] : memref<12x6x32xf32, #tpu.memory_space<vmem>>, vector<1x4x32xf32>
    %196 = vector.shape_cast %195 : vector<1x4x32xf32> to vector<4x32xf32>
    %c28_304 = arith.constant 28 : index
    %c64_305 = arith.constant 64 : index
    %197 = vector.load %arg8[%c28_304, %c64_305] : memref<32x288xf32, #tpu.memory_space<vmem>>, vector<4x32xf32>
    tpu.vector_store %arg8[%c28_304, %c64_305], %196 {strides = array<i32>} : memref<32x288xf32, #tpu.memory_space<vmem>>, vector<4x32xf32>,
    %c10_306 = arith.constant 10 : index
    %c0_307 = arith.constant 0 : index
    %c0_308 = arith.constant 0 : index
    %198 = vector.load %arg1[%c10_306, %c0_307, %c0_308] : memref<12x6x32xf32, #tpu.memory_space<vmem>>, vector<1x4x32xf32>
    %199 = vector.shape_cast %198 : vector<1x4x32xf32> to vector<4x32xf32>
    %c28_309 = arith.constant 28 : index
    %c96_310 = arith.constant 96 : index
    %200 = vector.load %arg8[%c28_309, %c96_310] : memref<32x288xf32, #tpu.memory_space<vmem>>, vector<4x32xf32>
    tpu.vector_store %arg8[%c28_309, %c96_310], %199 {strides = array<i32>} : memref<32x288xf32, #tpu.memory_space<vmem>>, vector<4x32xf32>,
    %c10_311 = arith.constant 10 : index
    %c1_312 = arith.constant 1 : index
    %c0_313 = arith.constant 0 : index
    %201 = vector.load %arg1[%c10_311, %c1_312, %c0_313] : memref<12x6x32xf32, #tpu.memory_space<vmem>>, vector<1x4x32xf32>
    %202 = vector.shape_cast %201 : vector<1x4x32xf32> to vector<4x32xf32>
    %c28_314 = arith.constant 28 : index
    %c128_315 = arith.constant 128 : index
    %203 = vector.load %arg8[%c28_314, %c128_315] : memref<32x288xf32, #tpu.memory_space<vmem>>, vector<4x32xf32>
    tpu.vector_store %arg8[%c28_314, %c128_315], %202 {strides = array<i32>} : memref<32x288xf32, #tpu.memory_space<vmem>>, vector<4x32xf32>,
    %c10_316 = arith.constant 10 : index
    %c2_317 = arith.constant 2 : index
    %c0_318 = arith.constant 0 : index
    %204 = vector.load %arg1[%c10_316, %c2_317, %c0_318] : memref<12x6x32xf32, #tpu.memory_space<vmem>>, vector<1x4x32xf32>
    %205 = vector.shape_cast %204 : vector<1x4x32xf32> to vector<4x32xf32>
    %c28_319 = arith.constant 28 : index
    %c160_320 = arith.constant 160 : index
    %206 = vector.load %arg8[%c28_319, %c160_320] : memref<32x288xf32, #tpu.memory_space<vmem>>, vector<4x32xf32>
    tpu.vector_store %arg8[%c28_319, %c160_320], %205 {strides = array<i32>} : memref<32x288xf32, #tpu.memory_space<vmem>>, vector<4x32xf32>,
    %c11 = arith.constant 11 : index
    %c0_321 = arith.constant 0 : index
    %c0_322 = arith.constant 0 : index
    %207 = vector.load %arg1[%c11, %c0_321, %c0_322] : memref<12x6x32xf32, #tpu.memory_space<vmem>>, vector<1x4x32xf32>
    %208 = vector.shape_cast %207 : vector<1x4x32xf32> to vector<4x32xf32>
    %c28_323 = arith.constant 28 : index
    %c192_324 = arith.constant 192 : index
    %209 = vector.load %arg8[%c28_323, %c192_324] : memref<32x288xf32, #tpu.memory_space<vmem>>, vector<4x32xf32>
    tpu.vector_store %arg8[%c28_323, %c192_324], %208 {strides = array<i32>} : memref<32x288xf32, #tpu.memory_space<vmem>>, vector<4x32xf32>,
    %c11_325 = arith.constant 11 : index
    %c1_326 = arith.constant 1 : index
    %c0_327 = arith.constant 0 : index
    %210 = vector.load %arg1[%c11_325, %c1_326, %c0_327] : memref<12x6x32xf32, #tpu.memory_space<vmem>>, vector<1x4x32xf32>
    %211 = vector.shape_cast %210 : vector<1x4x32xf32> to vector<4x32xf32>
    %c28_328 = arith.constant 28 : index
    %c224_329 = arith.constant 224 : index
    %212 = vector.load %arg8[%c28_328, %c224_329] : memref<32x288xf32, #tpu.memory_space<vmem>>, vector<4x32xf32>
    tpu.vector_store %arg8[%c28_328, %c224_329], %211 {strides = array<i32>} : memref<32x288xf32, #tpu.memory_space<vmem>>, vector<4x32xf32>,
    %c11_330 = arith.constant 11 : index
    %c2_331 = arith.constant 2 : index
    %c0_332 = arith.constant 0 : index
    %213 = vector.load %arg1[%c11_330, %c2_331, %c0_332] : memref<12x6x32xf32, #tpu.memory_space<vmem>>, vector<1x4x32xf32>
    %214 = vector.shape_cast %213 : vector<1x4x32xf32> to vector<4x32xf32>
    %c28_333 = arith.constant 28 : index
    %c256_334 = arith.constant 256 : index
    %215 = vector.load %arg8[%c28_333, %c256_334] : memref<32x288xf32, #tpu.memory_space<vmem>>, vector<4x32xf32>
    tpu.vector_store %arg8[%c28_333, %c256_334], %214 {strides = array<i32>} : memref<32x288xf32, #tpu.memory_space<vmem>>, vector<4x32xf32>,
    %c0_335 = arith.constant 0 : index
    %c0_336 = arith.constant 0 : index
    %216 = vector.load %arg2[%c0_335, %c0_336] : memref<288x128xbf16, #tpu.memory_space<vmem>>, vector<288x128xbf16>
    %c0_337 = arith.constant 0 : index
    %c0_338 = arith.constant 0 : index
    %217 = vector.load %arg3[%c0_337, %c0_338] : memref<1x128xf32, #tpu.memory_space<vmem>>, vector<1x128xf32>
    %cst = arith.constant 0.000000e+00 : f32
    %218 = vector.broadcast %cst : f32 to vector<1x128xf32>
    %cst_339 = arith.constant 0.000000e+00 : f32
    %219 = vector.broadcast %cst_339 : f32 to vector<1x128xf32>
    %c0_i32 = arith.constant 0 : i32
    %c32_i32 = arith.constant 32 : i32
    %220 = arith.muli %c0_i32, %c32_i32 : i32
    %221 = tpu.assume_multiple %220, 32 : i32
    %222 = arith.index_cast %221 : i32 to index
    %c0_340 = arith.constant 0 : index
    %223 = vector.load %arg8[%222, %c0_340] : memref<32x288xf32, #tpu.memory_space<vmem>>, vector<32x288xf32>
    %224 = arith.truncf %223 : vector<32x288xf32> to vector<32x288xbf16>
    %cst_341 = arith.constant dense<0.000000e+00> : vector<32x128xf32>
    %225 = tpu.matmul %224, %216, %cst_341 {dimension_numbers = #tpu.dot_dimension_numbers<[1], [0], [0], [1], [0, 0, 1, 1], [], []>} : vector<32x288xbf16>, vector<288x128xbf16>, vector<32x128xf32> -> vector<32x128xf32>
    %226 = vector.broadcast %217 : vector<1x128xf32> to vector<32x128xf32>
    %227 = arith.addf %225, %226 : vector<32x128xf32>
    %228 = arith.index_cast %221 : i32 to index
    %c0_342 = arith.constant 0 : index
    %229 = vector.load %arg9[%228, %c0_342] : memref<32x128xf32, #tpu.memory_space<vmem>>, vector<32x128xf32>
    tpu.vector_store %arg9[%228, %c0_342], %227 {strides = array<i32>} : memref<32x128xf32, #tpu.memory_space<vmem>>, vector<32x128xf32>,
    %cst_343 = arith.constant dense<0.000000e+00> : vector<128xf32>
    %230 = vector.multi_reduction <add>, %227, %cst_343 [0] : vector<32x128xf32> to vector<128xf32>
    %231 = vector.shape_cast %230 : vector<128xf32> to vector<1x128xf32>
    %232 = arith.addf %218, %231 : vector<1x128xf32>
    %233 = arith.mulf %227, %227 : vector<32x128xf32>
    %cst_344 = arith.constant dense<0.000000e+00> : vector<128xf32>
    %234 = vector.multi_reduction <add>, %233, %cst_344 [0] : vector<32x128xf32> to vector<128xf32>
    %235 = vector.shape_cast %234 : vector<128xf32> to vector<1x128xf32>
    %236 = arith.addf %219, %235 : vector<1x128xf32>
    %c1_i32 = arith.constant 1 : i32
    %c0_345 = arith.constant 0 : index
    %c0_346 = arith.constant 0 : index
    %237 = vector.load %arg6[%c0_345, %c0_346] : memref<128x128xf32, #tpu.memory_space<vmem>>, vector<128x128xf32>
    %cst_347 = arith.constant dense<0.000000e+00> : vector<1x128xf32>
    %238 = tpu.matmul %232, %237, %cst_347 {dimension_numbers = #tpu.dot_dimension_numbers<[1], [0], [0], [1], [0, 0, 1, 1], [], []>} : vector<1x128xf32>, vector<128x128xf32>, vector<1x128xf32> -> vector<1x128xf32>
    %c0_348 = arith.constant 0 : index
    %c0_349 = arith.constant 0 : index
    %239 = vector.load %arg6[%c0_348, %c0_349] : memref<128x128xf32, #tpu.memory_space<vmem>>, vector<128x128xf32>
    %cst_350 = arith.constant dense<0.000000e+00> : vector<1x128xf32>
    %240 = tpu.matmul %236, %239, %cst_350 {dimension_numbers = #tpu.dot_dimension_numbers<[1], [0], [0], [1], [0, 0, 1, 1], [], []>} : vector<1x128xf32>, vector<128x128xf32>, vector<1x128xf32> -> vector<1x128xf32>
    %241 = arith.mulf %238, %238 : vector<1x128xf32>
    %242 = arith.subf %240, %241 : vector<1x128xf32>
    %c0_351 = arith.constant 0 : index
    %c0_352 = arith.constant 0 : index
    %243 = vector.load %arg4[%c0_351, %c0_352] : memref<1x128xf32, #tpu.memory_space<vmem>>, vector<1x128xf32>
    %cst_353 = arith.constant 9.99999974E-6 : f32
    %244 = vector.broadcast %cst_353 : f32 to vector<1x128xf32>
    %245 = arith.addf %242, %244 : vector<1x128xf32>
    %246 = math.rsqrt %245 : vector<1x128xf32>
    %247 = arith.mulf %243, %246 : vector<1x128xf32>
    %c0_354 = arith.constant 0 : index
    %c0_355 = arith.constant 0 : index
    %248 = vector.load %arg5[%c0_354, %c0_355] : memref<1x128xf32, #tpu.memory_space<vmem>>, vector<1x128xf32>
    %249 = arith.mulf %238, %247 : vector<1x128xf32>
    %250 = arith.subf %248, %249 : vector<1x128xf32>
    %c0_i32_356 = arith.constant 0 : i32
    %c32_i32_357 = arith.constant 32 : i32
    %251 = arith.muli %c0_i32_356, %c32_i32_357 : i32
    %252 = tpu.assume_multiple %251, 32 : i32
    %253 = arith.index_cast %252 : i32 to index
    %c0_358 = arith.constant 0 : index
    %254 = vector.load %arg9[%253, %c0_358] : memref<32x128xf32, #tpu.memory_space<vmem>>, vector<32x128xf32>
    %255 = vector.broadcast %247 : vector<1x128xf32> to vector<32x128xf32>
    %256 = arith.mulf %254, %255 : vector<32x128xf32>
    %257 = vector.broadcast %250 : vector<1x128xf32> to vector<32x128xf32>
    %258 = arith.addf %256, %257 : vector<32x128xf32>
    %cst_359 = arith.constant 0.000000e+00 : f32
    %259 = vector.broadcast %cst_359 : f32 to vector<32x128xf32>
    %260 = arith.cmpf oge, %258, %259 : vector<32x128xf32>
    %cst_360 = arith.constant 2.000000e-01 : f32
    %261 = vector.broadcast %cst_360 : f32 to vector<32x128xf32>
    %262 = arith.mulf %261, %258 : vector<32x128xf32>
    %263 = arith.select %260, %258, %262 : vector<32x128xi1>, vector<32x128xf32>
    %264 = arith.index_cast %252 : i32 to index
    %c0_361 = arith.constant 0 : index
    %265 = vector.load %arg7[%264, %c0_361] : memref<32x128xf32, #tpu.memory_space<vmem>>, vector<32x128xf32>
    tpu.vector_store %arg7[%264, %c0_361], %263 {strides = array<i32>} : memref<32x128xf32, #tpu.memory_space<vmem>>, vector<32x128xf32>,
    %c1_i32_362 = arith.constant 1 : i32
    return
  }
  func.func @transform_0(%arg0: i32) -> (i32, i32, i32) {
    %c0_i32 = arith.constant 0 : i32
    %c0_i32_0 = arith.constant 0 : i32
    %c0_i32_1 = arith.constant 0 : i32
    %c0_i32_2 = arith.constant 0 : i32
    return %c0_i32, %c0_i32_0, %c0_i32_1 : i32, i32, i32
  }
  func.func @transform_1(%arg0: i32) -> (i32, i32) {
    %c0_i32 = arith.constant 0 : i32
    %c0_i32_0 = arith.constant 0 : i32
    %c0_i32_1 = arith.constant 0 : i32
    return %c0_i32, %c0_i32_0 : i32, i32
  }
  func.func @transform_2(%arg0: i32) -> (i32, i32) {
    %c0_i32 = arith.constant 0 : i32
    %c0_i32_0 = arith.constant 0 : i32
    %c0_i32_1 = arith.constant 0 : i32
    return %c0_i32, %c0_i32_0 : i32, i32
  }
  func.func @transform_3(%arg0: i32) -> (i32, i32) {
    %c0_i32 = arith.constant 0 : i32
    %c0_i32_0 = arith.constant 0 : i32
    %c0_i32_1 = arith.constant 0 : i32
    return %c0_i32, %c0_i32_0 : i32, i32
  }
  func.func @transform_4(%arg0: i32) -> (i32, i32) {
    %c0_i32 = arith.constant 0 : i32
    %c0_i32_0 = arith.constant 0 : i32
    %c0_i32_1 = arith.constant 0 : i32
    return %c0_i32, %c0_i32_0 : i32, i32
  }
  func.func @transform_5(%arg0: i32) -> (i32, i32) {
    %c0_i32 = arith.constant 0 : i32
    %c0_i32_0 = arith.constant 0 : i32
    %c0_i32_1 = arith.constant 0 : i32
    return %c0_i32, %c0_i32_0 : i32, i32
  }
  func.func @transform_6(%arg0: i32) -> (i32, i32) {
    %c0_i32 = arith.constant 0 : i32
    %c0_i32_0 = arith.constant 0 : i32
    %c0_i32_1 = arith.constant 0 : i32
    return %c0_i32, %c0_i32_0 : i32, i32
  }
}

module attributes {stable_mosaic.version = 11 : i64} {
  func.func @_deconv_bn_lrelu_kernel(%arg0: i32, %arg1: memref<20x10x32xf32, #tpu.memory_space<vmem>>, %arg2: memref<288x128xbf16, #tpu.memory_space<vmem>>, %arg3: memref<1x128xf32, #tpu.memory_space<vmem>>, %arg4: memref<1x128xf32, #tpu.memory_space<vmem>>, %arg5: memref<1x128xf32, #tpu.memory_space<vmem>>, %arg6: memref<128x128xf32, #tpu.memory_space<vmem>>, %arg7: memref<128x128xf32, #tpu.memory_space<vmem>>, %arg8: memref<128x288xf32, #tpu.memory_space<vmem>>, %arg9: memref<128x128xf32, #tpu.memory_space<vmem>>) attributes {dimension_semantics = [#tpu.dimension_semantics<arbitrary>], iteration_bounds = array<i64: 1>, scalar_prefetch = 0 : i64, scratch_operands = 2 : i64, tpu.core_type = #tpu.core_type<tc>, window_params = [{pipeline_mode = #tpu.pipeline_mode<synchronous>, transform_indices = @transform_0, window_bounds = array<i64: 20, 10, 32>}, {pipeline_mode = #tpu.pipeline_mode<synchronous>, transform_indices = @transform_1, window_bounds = array<i64: 288, 128>}, {pipeline_mode = #tpu.pipeline_mode<synchronous>, transform_indices = @transform_2, window_bounds = array<i64: 1, 128>}, {pipeline_mode = #tpu.pipeline_mode<synchronous>, transform_indices = @transform_3, window_bounds = array<i64: 1, 128>}, {pipeline_mode = #tpu.pipeline_mode<synchronous>, transform_indices = @transform_4, window_bounds = array<i64: 1, 128>}, {pipeline_mode = #tpu.pipeline_mode<synchronous>, transform_indices = @transform_5, window_bounds = array<i64: 128, 128>}, {pipeline_mode = #tpu.pipeline_mode<synchronous>, transform_indices = @transform_6, window_bounds = array<i64: 128, 128>}]} {
    %c0 = arith.constant 0 : index
    %c0_0 = arith.constant 0 : index
    %c0_1 = arith.constant 0 : index
    %0 = vector.load %arg1[%c0, %c0_0, %c0_1] : memref<20x10x32xf32, #tpu.memory_space<vmem>>, vector<1x8x32xf32>
    %1 = vector.shape_cast %0 : vector<1x8x32xf32> to vector<8x32xf32>
    %c0_2 = arith.constant 0 : index
    %c0_3 = arith.constant 0 : index
    %2 = vector.load %arg8[%c0_2, %c0_3] : memref<128x288xf32, #tpu.memory_space<vmem>>, vector<8x32xf32>
    tpu.vector_store %arg8[%c0_2, %c0_3], %1 {strides = array<i32>} : memref<128x288xf32, #tpu.memory_space<vmem>>, vector<8x32xf32>,
    %c0_4 = arith.constant 0 : index
    %c1 = arith.constant 1 : index
    %c0_5 = arith.constant 0 : index
    %3 = vector.load %arg1[%c0_4, %c1, %c0_5] : memref<20x10x32xf32, #tpu.memory_space<vmem>>, vector<1x8x32xf32>
    %4 = vector.shape_cast %3 : vector<1x8x32xf32> to vector<8x32xf32>
    %c0_6 = arith.constant 0 : index
    %c32 = arith.constant 32 : index
    %5 = vector.load %arg8[%c0_6, %c32] : memref<128x288xf32, #tpu.memory_space<vmem>>, vector<8x32xf32>
    tpu.vector_store %arg8[%c0_6, %c32], %4 {strides = array<i32>} : memref<128x288xf32, #tpu.memory_space<vmem>>, vector<8x32xf32>,
    %c0_7 = arith.constant 0 : index
    %c2 = arith.constant 2 : index
    %c0_8 = arith.constant 0 : index
    %6 = vector.load %arg1[%c0_7, %c2, %c0_8] : memref<20x10x32xf32, #tpu.memory_space<vmem>>, vector<1x8x32xf32>
    %7 = vector.shape_cast %6 : vector<1x8x32xf32> to vector<8x32xf32>
    %c0_9 = arith.constant 0 : index
    %c64 = arith.constant 64 : index
    %8 = vector.load %arg8[%c0_9, %c64] : memref<128x288xf32, #tpu.memory_space<vmem>>, vector<8x32xf32>
    tpu.vector_store %arg8[%c0_9, %c64], %7 {strides = array<i32>} : memref<128x288xf32, #tpu.memory_space<vmem>>, vector<8x32xf32>,
    %c1_10 = arith.constant 1 : index
    %c0_11 = arith.constant 0 : index
    %c0_12 = arith.constant 0 : index
    %9 = vector.load %arg1[%c1_10, %c0_11, %c0_12] : memref<20x10x32xf32, #tpu.memory_space<vmem>>, vector<1x8x32xf32>
    %10 = vector.shape_cast %9 : vector<1x8x32xf32> to vector<8x32xf32>
    %c0_13 = arith.constant 0 : index
    %c96 = arith.constant 96 : index
    %11 = vector.load %arg8[%c0_13, %c96] : memref<128x288xf32, #tpu.memory_space<vmem>>, vector<8x32xf32>
    tpu.vector_store %arg8[%c0_13, %c96], %10 {strides = array<i32>} : memref<128x288xf32, #tpu.memory_space<vmem>>, vector<8x32xf32>,
    %c1_14 = arith.constant 1 : index
    %c1_15 = arith.constant 1 : index
    %c0_16 = arith.constant 0 : index
    %12 = vector.load %arg1[%c1_14, %c1_15, %c0_16] : memref<20x10x32xf32, #tpu.memory_space<vmem>>, vector<1x8x32xf32>
    %13 = vector.shape_cast %12 : vector<1x8x32xf32> to vector<8x32xf32>
    %c0_17 = arith.constant 0 : index
    %c128 = arith.constant 128 : index
    %14 = vector.load %arg8[%c0_17, %c128] : memref<128x288xf32, #tpu.memory_space<vmem>>, vector<8x32xf32>
    tpu.vector_store %arg8[%c0_17, %c128], %13 {strides = array<i32>} : memref<128x288xf32, #tpu.memory_space<vmem>>, vector<8x32xf32>,
    %c1_18 = arith.constant 1 : index
    %c2_19 = arith.constant 2 : index
    %c0_20 = arith.constant 0 : index
    %15 = vector.load %arg1[%c1_18, %c2_19, %c0_20] : memref<20x10x32xf32, #tpu.memory_space<vmem>>, vector<1x8x32xf32>
    %16 = vector.shape_cast %15 : vector<1x8x32xf32> to vector<8x32xf32>
    %c0_21 = arith.constant 0 : index
    %c160 = arith.constant 160 : index
    %17 = vector.load %arg8[%c0_21, %c160] : memref<128x288xf32, #tpu.memory_space<vmem>>, vector<8x32xf32>
    tpu.vector_store %arg8[%c0_21, %c160], %16 {strides = array<i32>} : memref<128x288xf32, #tpu.memory_space<vmem>>, vector<8x32xf32>,
    %c2_22 = arith.constant 2 : index
    %c0_23 = arith.constant 0 : index
    %c0_24 = arith.constant 0 : index
    %18 = vector.load %arg1[%c2_22, %c0_23, %c0_24] : memref<20x10x32xf32, #tpu.memory_space<vmem>>, vector<1x8x32xf32>
    %19 = vector.shape_cast %18 : vector<1x8x32xf32> to vector<8x32xf32>
    %c0_25 = arith.constant 0 : index
    %c192 = arith.constant 192 : index
    %20 = vector.load %arg8[%c0_25, %c192] : memref<128x288xf32, #tpu.memory_space<vmem>>, vector<8x32xf32>
    tpu.vector_store %arg8[%c0_25, %c192], %19 {strides = array<i32>} : memref<128x288xf32, #tpu.memory_space<vmem>>, vector<8x32xf32>,
    %c2_26 = arith.constant 2 : index
    %c1_27 = arith.constant 1 : index
    %c0_28 = arith.constant 0 : index
    %21 = vector.load %arg1[%c2_26, %c1_27, %c0_28] : memref<20x10x32xf32, #tpu.memory_space<vmem>>, vector<1x8x32xf32>
    %22 = vector.shape_cast %21 : vector<1x8x32xf32> to vector<8x32xf32>
    %c0_29 = arith.constant 0 : index
    %c224 = arith.constant 224 : index
    %23 = vector.load %arg8[%c0_29, %c224] : memref<128x288xf32, #tpu.memory_space<vmem>>, vector<8x32xf32>
    tpu.vector_store %arg8[%c0_29, %c224], %22 {strides = array<i32>} : memref<128x288xf32, #tpu.memory_space<vmem>>, vector<8x32xf32>,
    %c2_30 = arith.constant 2 : index
    %c2_31 = arith.constant 2 : index
    %c0_32 = arith.constant 0 : index
    %24 = vector.load %arg1[%c2_30, %c2_31, %c0_32] : memref<20x10x32xf32, #tpu.memory_space<vmem>>, vector<1x8x32xf32>
    %25 = vector.shape_cast %24 : vector<1x8x32xf32> to vector<8x32xf32>
    %c0_33 = arith.constant 0 : index
    %c256 = arith.constant 256 : index
    %26 = vector.load %arg8[%c0_33, %c256] : memref<128x288xf32, #tpu.memory_space<vmem>>, vector<8x32xf32>
    tpu.vector_store %arg8[%c0_33, %c256], %25 {strides = array<i32>} : memref<128x288xf32, #tpu.memory_space<vmem>>, vector<8x32xf32>,
    %c1_34 = arith.constant 1 : index
    %c0_35 = arith.constant 0 : index
    %c0_36 = arith.constant 0 : index
    %27 = vector.load %arg1[%c1_34, %c0_35, %c0_36] : memref<20x10x32xf32, #tpu.memory_space<vmem>>, vector<1x8x32xf32>
    %28 = vector.shape_cast %27 : vector<1x8x32xf32> to vector<8x32xf32>
    %c8 = arith.constant 8 : index
    %c0_37 = arith.constant 0 : index
    %29 = vector.load %arg8[%c8, %c0_37] : memref<128x288xf32, #tpu.memory_space<vmem>>, vector<8x32xf32>
    tpu.vector_store %arg8[%c8, %c0_37], %28 {strides = array<i32>} : memref<128x288xf32, #tpu.memory_space<vmem>>, vector<8x32xf32>,
    %c1_38 = arith.constant 1 : index
    %c1_39 = arith.constant 1 : index
    %c0_40 = arith.constant 0 : index
    %30 = vector.load %arg1[%c1_38, %c1_39, %c0_40] : memref<20x10x32xf32, #tpu.memory_space<vmem>>, vector<1x8x32xf32>
    %31 = vector.shape_cast %30 : vector<1x8x32xf32> to vector<8x32xf32>
    %c8_41 = arith.constant 8 : index
    %c32_42 = arith.constant 32 : index
    %32 = vector.load %arg8[%c8_41, %c32_42] : memref<128x288xf32, #tpu.memory_space<vmem>>, vector<8x32xf32>
    tpu.vector_store %arg8[%c8_41, %c32_42], %31 {strides = array<i32>} : memref<128x288xf32, #tpu.memory_space<vmem>>, vector<8x32xf32>,
    %c1_43 = arith.constant 1 : index
    %c2_44 = arith.constant 2 : index
    %c0_45 = arith.constant 0 : index
    %33 = vector.load %arg1[%c1_43, %c2_44, %c0_45] : memref<20x10x32xf32, #tpu.memory_space<vmem>>, vector<1x8x32xf32>
    %34 = vector.shape_cast %33 : vector<1x8x32xf32> to vector<8x32xf32>
    %c8_46 = arith.constant 8 : index
    %c64_47 = arith.constant 64 : index
    %35 = vector.load %arg8[%c8_46, %c64_47] : memref<128x288xf32, #tpu.memory_space<vmem>>, vector<8x32xf32>
    tpu.vector_store %arg8[%c8_46, %c64_47], %34 {strides = array<i32>} : memref<128x288xf32, #tpu.memory_space<vmem>>, vector<8x32xf32>,
    %c2_48 = arith.constant 2 : index
    %c0_49 = arith.constant 0 : index
    %c0_50 = arith.constant 0 : index
    %36 = vector.load %arg1[%c2_48, %c0_49, %c0_50] : memref<20x10x32xf32, #tpu.memory_space<vmem>>, vector<1x8x32xf32>
    %37 = vector.shape_cast %36 : vector<1x8x32xf32> to vector<8x32xf32>
    %c8_51 = arith.constant 8 : index
    %c96_52 = arith.constant 96 : index
    %38 = vector.load %arg8[%c8_51, %c96_52] : memref<128x288xf32, #tpu.memory_space<vmem>>, vector<8x32xf32>
    tpu.vector_store %arg8[%c8_51, %c96_52], %37 {strides = array<i32>} : memref<128x288xf32, #tpu.memory_space<vmem>>, vector<8x32xf32>,
    %c2_53 = arith.constant 2 : index
    %c1_54 = arith.constant 1 : index
    %c0_55 = arith.constant 0 : index
    %39 = vector.load %arg1[%c2_53, %c1_54, %c0_55] : memref<20x10x32xf32, #tpu.memory_space<vmem>>, vector<1x8x32xf32>
    %40 = vector.shape_cast %39 : vector<1x8x32xf32> to vector<8x32xf32>
    %c8_56 = arith.constant 8 : index
    %c128_57 = arith.constant 128 : index
    %41 = vector.load %arg8[%c8_56, %c128_57] : memref<128x288xf32, #tpu.memory_space<vmem>>, vector<8x32xf32>
    tpu.vector_store %arg8[%c8_56, %c128_57], %40 {strides = array<i32>} : memref<128x288xf32, #tpu.memory_space<vmem>>, vector<8x32xf32>,
    %c2_58 = arith.constant 2 : index
    %c2_59 = arith.constant 2 : index
    %c0_60 = arith.constant 0 : index
    %42 = vector.load %arg1[%c2_58, %c2_59, %c0_60] : memref<20x10x32xf32, #tpu.memory_space<vmem>>, vector<1x8x32xf32>
    %43 = vector.shape_cast %42 : vector<1x8x32xf32> to vector<8x32xf32>
    %c8_61 = arith.constant 8 : index
    %c160_62 = arith.constant 160 : index
    %44 = vector.load %arg8[%c8_61, %c160_62] : memref<128x288xf32, #tpu.memory_space<vmem>>, vector<8x32xf32>
    tpu.vector_store %arg8[%c8_61, %c160_62], %43 {strides = array<i32>} : memref<128x288xf32, #tpu.memory_space<vmem>>, vector<8x32xf32>,
    %c3 = arith.constant 3 : index
    %c0_63 = arith.constant 0 : index
    %c0_64 = arith.constant 0 : index
    %45 = vector.load %arg1[%c3, %c0_63, %c0_64] : memref<20x10x32xf32, #tpu.memory_space<vmem>>, vector<1x8x32xf32>
    %46 = vector.shape_cast %45 : vector<1x8x32xf32> to vector<8x32xf32>
    %c8_65 = arith.constant 8 : index
    %c192_66 = arith.constant 192 : index
    %47 = vector.load %arg8[%c8_65, %c192_66] : memref<128x288xf32, #tpu.memory_space<vmem>>, vector<8x32xf32>
    tpu.vector_store %arg8[%c8_65, %c192_66], %46 {strides = array<i32>} : memref<128x288xf32, #tpu.memory_space<vmem>>, vector<8x32xf32>,
    %c3_67 = arith.constant 3 : index
    %c1_68 = arith.constant 1 : index
    %c0_69 = arith.constant 0 : index
    %48 = vector.load %arg1[%c3_67, %c1_68, %c0_69] : memref<20x10x32xf32, #tpu.memory_space<vmem>>, vector<1x8x32xf32>
    %49 = vector.shape_cast %48 : vector<1x8x32xf32> to vector<8x32xf32>
    %c8_70 = arith.constant 8 : index
    %c224_71 = arith.constant 224 : index
    %50 = vector.load %arg8[%c8_70, %c224_71] : memref<128x288xf32, #tpu.memory_space<vmem>>, vector<8x32xf32>
    tpu.vector_store %arg8[%c8_70, %c224_71], %49 {strides = array<i32>} : memref<128x288xf32, #tpu.memory_space<vmem>>, vector<8x32xf32>,
    %c3_72 = arith.constant 3 : index
    %c2_73 = arith.constant 2 : index
    %c0_74 = arith.constant 0 : index
    %51 = vector.load %arg1[%c3_72, %c2_73, %c0_74] : memref<20x10x32xf32, #tpu.memory_space<vmem>>, vector<1x8x32xf32>
    %52 = vector.shape_cast %51 : vector<1x8x32xf32> to vector<8x32xf32>
    %c8_75 = arith.constant 8 : index
    %c256_76 = arith.constant 256 : index
    %53 = vector.load %arg8[%c8_75, %c256_76] : memref<128x288xf32, #tpu.memory_space<vmem>>, vector<8x32xf32>
    tpu.vector_store %arg8[%c8_75, %c256_76], %52 {strides = array<i32>} : memref<128x288xf32, #tpu.memory_space<vmem>>, vector<8x32xf32>,
    %c2_77 = arith.constant 2 : index
    %c0_78 = arith.constant 0 : index
    %c0_79 = arith.constant 0 : index
    %54 = vector.load %arg1[%c2_77, %c0_78, %c0_79] : memref<20x10x32xf32, #tpu.memory_space<vmem>>, vector<1x8x32xf32>
    %55 = vector.shape_cast %54 : vector<1x8x32xf32> to vector<8x32xf32>
    %c16 = arith.constant 16 : index
    %c0_80 = arith.constant 0 : index
    %56 = vector.load %arg8[%c16, %c0_80] : memref<128x288xf32, #tpu.memory_space<vmem>>, vector<8x32xf32>
    tpu.vector_store %arg8[%c16, %c0_80], %55 {strides = array<i32>} : memref<128x288xf32, #tpu.memory_space<vmem>>, vector<8x32xf32>,
    %c2_81 = arith.constant 2 : index
    %c1_82 = arith.constant 1 : index
    %c0_83 = arith.constant 0 : index
    %57 = vector.load %arg1[%c2_81, %c1_82, %c0_83] : memref<20x10x32xf32, #tpu.memory_space<vmem>>, vector<1x8x32xf32>
    %58 = vector.shape_cast %57 : vector<1x8x32xf32> to vector<8x32xf32>
    %c16_84 = arith.constant 16 : index
    %c32_85 = arith.constant 32 : index
    %59 = vector.load %arg8[%c16_84, %c32_85] : memref<128x288xf32, #tpu.memory_space<vmem>>, vector<8x32xf32>
    tpu.vector_store %arg8[%c16_84, %c32_85], %58 {strides = array<i32>} : memref<128x288xf32, #tpu.memory_space<vmem>>, vector<8x32xf32>,
    %c2_86 = arith.constant 2 : index
    %c2_87 = arith.constant 2 : index
    %c0_88 = arith.constant 0 : index
    %60 = vector.load %arg1[%c2_86, %c2_87, %c0_88] : memref<20x10x32xf32, #tpu.memory_space<vmem>>, vector<1x8x32xf32>
    %61 = vector.shape_cast %60 : vector<1x8x32xf32> to vector<8x32xf32>
    %c16_89 = arith.constant 16 : index
    %c64_90 = arith.constant 64 : index
    %62 = vector.load %arg8[%c16_89, %c64_90] : memref<128x288xf32, #tpu.memory_space<vmem>>, vector<8x32xf32>
    tpu.vector_store %arg8[%c16_89, %c64_90], %61 {strides = array<i32>} : memref<128x288xf32, #tpu.memory_space<vmem>>, vector<8x32xf32>,
    %c3_91 = arith.constant 3 : index
    %c0_92 = arith.constant 0 : index
    %c0_93 = arith.constant 0 : index
    %63 = vector.load %arg1[%c3_91, %c0_92, %c0_93] : memref<20x10x32xf32, #tpu.memory_space<vmem>>, vector<1x8x32xf32>
    %64 = vector.shape_cast %63 : vector<1x8x32xf32> to vector<8x32xf32>
    %c16_94 = arith.constant 16 : index
    %c96_95 = arith.constant 96 : index
    %65 = vector.load %arg8[%c16_94, %c96_95] : memref<128x288xf32, #tpu.memory_space<vmem>>, vector<8x32xf32>
    tpu.vector_store %arg8[%c16_94, %c96_95], %64 {strides = array<i32>} : memref<128x288xf32, #tpu.memory_space<vmem>>, vector<8x32xf32>,
    %c3_96 = arith.constant 3 : index
    %c1_97 = arith.constant 1 : index
    %c0_98 = arith.constant 0 : index
    %66 = vector.load %arg1[%c3_96, %c1_97, %c0_98] : memref<20x10x32xf32, #tpu.memory_space<vmem>>, vector<1x8x32xf32>
    %67 = vector.shape_cast %66 : vector<1x8x32xf32> to vector<8x32xf32>
    %c16_99 = arith.constant 16 : index
    %c128_100 = arith.constant 128 : index
    %68 = vector.load %arg8[%c16_99, %c128_100] : memref<128x288xf32, #tpu.memory_space<vmem>>, vector<8x32xf32>
    tpu.vector_store %arg8[%c16_99, %c128_100], %67 {strides = array<i32>} : memref<128x288xf32, #tpu.memory_space<vmem>>, vector<8x32xf32>,
    %c3_101 = arith.constant 3 : index
    %c2_102 = arith.constant 2 : index
    %c0_103 = arith.constant 0 : index
    %69 = vector.load %arg1[%c3_101, %c2_102, %c0_103] : memref<20x10x32xf32, #tpu.memory_space<vmem>>, vector<1x8x32xf32>
    %70 = vector.shape_cast %69 : vector<1x8x32xf32> to vector<8x32xf32>
    %c16_104 = arith.constant 16 : index
    %c160_105 = arith.constant 160 : index
    %71 = vector.load %arg8[%c16_104, %c160_105] : memref<128x288xf32, #tpu.memory_space<vmem>>, vector<8x32xf32>
    tpu.vector_store %arg8[%c16_104, %c160_105], %70 {strides = array<i32>} : memref<128x288xf32, #tpu.memory_space<vmem>>, vector<8x32xf32>,
    %c4 = arith.constant 4 : index
    %c0_106 = arith.constant 0 : index
    %c0_107 = arith.constant 0 : index
    %72 = vector.load %arg1[%c4, %c0_106, %c0_107] : memref<20x10x32xf32, #tpu.memory_space<vmem>>, vector<1x8x32xf32>
    %73 = vector.shape_cast %72 : vector<1x8x32xf32> to vector<8x32xf32>
    %c16_108 = arith.constant 16 : index
    %c192_109 = arith.constant 192 : index
    %74 = vector.load %arg8[%c16_108, %c192_109] : memref<128x288xf32, #tpu.memory_space<vmem>>, vector<8x32xf32>
    tpu.vector_store %arg8[%c16_108, %c192_109], %73 {strides = array<i32>} : memref<128x288xf32, #tpu.memory_space<vmem>>, vector<8x32xf32>,
    %c4_110 = arith.constant 4 : index
    %c1_111 = arith.constant 1 : index
    %c0_112 = arith.constant 0 : index
    %75 = vector.load %arg1[%c4_110, %c1_111, %c0_112] : memref<20x10x32xf32, #tpu.memory_space<vmem>>, vector<1x8x32xf32>
    %76 = vector.shape_cast %75 : vector<1x8x32xf32> to vector<8x32xf32>
    %c16_113 = arith.constant 16 : index
    %c224_114 = arith.constant 224 : index
    %77 = vector.load %arg8[%c16_113, %c224_114] : memref<128x288xf32, #tpu.memory_space<vmem>>, vector<8x32xf32>
    tpu.vector_store %arg8[%c16_113, %c224_114], %76 {strides = array<i32>} : memref<128x288xf32, #tpu.memory_space<vmem>>, vector<8x32xf32>,
    %c4_115 = arith.constant 4 : index
    %c2_116 = arith.constant 2 : index
    %c0_117 = arith.constant 0 : index
    %78 = vector.load %arg1[%c4_115, %c2_116, %c0_117] : memref<20x10x32xf32, #tpu.memory_space<vmem>>, vector<1x8x32xf32>
    %79 = vector.shape_cast %78 : vector<1x8x32xf32> to vector<8x32xf32>
    %c16_118 = arith.constant 16 : index
    %c256_119 = arith.constant 256 : index
    %80 = vector.load %arg8[%c16_118, %c256_119] : memref<128x288xf32, #tpu.memory_space<vmem>>, vector<8x32xf32>
    tpu.vector_store %arg8[%c16_118, %c256_119], %79 {strides = array<i32>} : memref<128x288xf32, #tpu.memory_space<vmem>>, vector<8x32xf32>,
    %c3_120 = arith.constant 3 : index
    %c0_121 = arith.constant 0 : index
    %c0_122 = arith.constant 0 : index
    %81 = vector.load %arg1[%c3_120, %c0_121, %c0_122] : memref<20x10x32xf32, #tpu.memory_space<vmem>>, vector<1x8x32xf32>
    %82 = vector.shape_cast %81 : vector<1x8x32xf32> to vector<8x32xf32>
    %c24 = arith.constant 24 : index
    %c0_123 = arith.constant 0 : index
    %83 = vector.load %arg8[%c24, %c0_123] : memref<128x288xf32, #tpu.memory_space<vmem>>, vector<8x32xf32>
    tpu.vector_store %arg8[%c24, %c0_123], %82 {strides = array<i32>} : memref<128x288xf32, #tpu.memory_space<vmem>>, vector<8x32xf32>,
    %c3_124 = arith.constant 3 : index
    %c1_125 = arith.constant 1 : index
    %c0_126 = arith.constant 0 : index
    %84 = vector.load %arg1[%c3_124, %c1_125, %c0_126] : memref<20x10x32xf32, #tpu.memory_space<vmem>>, vector<1x8x32xf32>
    %85 = vector.shape_cast %84 : vector<1x8x32xf32> to vector<8x32xf32>
    %c24_127 = arith.constant 24 : index
    %c32_128 = arith.constant 32 : index
    %86 = vector.load %arg8[%c24_127, %c32_128] : memref<128x288xf32, #tpu.memory_space<vmem>>, vector<8x32xf32>
    tpu.vector_store %arg8[%c24_127, %c32_128], %85 {strides = array<i32>} : memref<128x288xf32, #tpu.memory_space<vmem>>, vector<8x32xf32>,
    %c3_129 = arith.constant 3 : index
    %c2_130 = arith.constant 2 : index
    %c0_131 = arith.constant 0 : index
    %87 = vector.load %arg1[%c3_129, %c2_130, %c0_131] : memref<20x10x32xf32, #tpu.memory_space<vmem>>, vector<1x8x32xf32>
    %88 = vector.shape_cast %87 : vector<1x8x32xf32> to vector<8x32xf32>
    %c24_132 = arith.constant 24 : index
    %c64_133 = arith.constant 64 : index
    %89 = vector.load %arg8[%c24_132, %c64_133] : memref<128x288xf32, #tpu.memory_space<vmem>>, vector<8x32xf32>
    tpu.vector_store %arg8[%c24_132, %c64_133], %88 {strides = array<i32>} : memref<128x288xf32, #tpu.memory_space<vmem>>, vector<8x32xf32>,
    %c4_134 = arith.constant 4 : index
    %c0_135 = arith.constant 0 : index
    %c0_136 = arith.constant 0 : index
    %90 = vector.load %arg1[%c4_134, %c0_135, %c0_136] : memref<20x10x32xf32, #tpu.memory_space<vmem>>, vector<1x8x32xf32>
    %91 = vector.shape_cast %90 : vector<1x8x32xf32> to vector<8x32xf32>
    %c24_137 = arith.constant 24 : index
    %c96_138 = arith.constant 96 : index
    %92 = vector.load %arg8[%c24_137, %c96_138] : memref<128x288xf32, #tpu.memory_space<vmem>>, vector<8x32xf32>
    tpu.vector_store %arg8[%c24_137, %c96_138], %91 {strides = array<i32>} : memref<128x288xf32, #tpu.memory_space<vmem>>, vector<8x32xf32>,
    %c4_139 = arith.constant 4 : index
    %c1_140 = arith.constant 1 : index
    %c0_141 = arith.constant 0 : index
    %93 = vector.load %arg1[%c4_139, %c1_140, %c0_141] : memref<20x10x32xf32, #tpu.memory_space<vmem>>, vector<1x8x32xf32>
    %94 = vector.shape_cast %93 : vector<1x8x32xf32> to vector<8x32xf32>
    %c24_142 = arith.constant 24 : index
    %c128_143 = arith.constant 128 : index
    %95 = vector.load %arg8[%c24_142, %c128_143] : memref<128x288xf32, #tpu.memory_space<vmem>>, vector<8x32xf32>
    tpu.vector_store %arg8[%c24_142, %c128_143], %94 {strides = array<i32>} : memref<128x288xf32, #tpu.memory_space<vmem>>, vector<8x32xf32>,
    %c4_144 = arith.constant 4 : index
    %c2_145 = arith.constant 2 : index
    %c0_146 = arith.constant 0 : index
    %96 = vector.load %arg1[%c4_144, %c2_145, %c0_146] : memref<20x10x32xf32, #tpu.memory_space<vmem>>, vector<1x8x32xf32>
    %97 = vector.shape_cast %96 : vector<1x8x32xf32> to vector<8x32xf32>
    %c24_147 = arith.constant 24 : index
    %c160_148 = arith.constant 160 : index
    %98 = vector.load %arg8[%c24_147, %c160_148] : memref<128x288xf32, #tpu.memory_space<vmem>>, vector<8x32xf32>
    tpu.vector_store %arg8[%c24_147, %c160_148], %97 {strides = array<i32>} : memref<128x288xf32, #tpu.memory_space<vmem>>, vector<8x32xf32>,
    %c5 = arith.constant 5 : index
    %c0_149 = arith.constant 0 : index
    %c0_150 = arith.constant 0 : index
    %99 = vector.load %arg1[%c5, %c0_149, %c0_150] : memref<20x10x32xf32, #tpu.memory_space<vmem>>, vector<1x8x32xf32>
    %100 = vector.shape_cast %99 : vector<1x8x32xf32> to vector<8x32xf32>
    %c24_151 = arith.constant 24 : index
    %c192_152 = arith.constant 192 : index
    %101 = vector.load %arg8[%c24_151, %c192_152] : memref<128x288xf32, #tpu.memory_space<vmem>>, vector<8x32xf32>
    tpu.vector_store %arg8[%c24_151, %c192_152], %100 {strides = array<i32>} : memref<128x288xf32, #tpu.memory_space<vmem>>, vector<8x32xf32>,
    %c5_153 = arith.constant 5 : index
    %c1_154 = arith.constant 1 : index
    %c0_155 = arith.constant 0 : index
    %102 = vector.load %arg1[%c5_153, %c1_154, %c0_155] : memref<20x10x32xf32, #tpu.memory_space<vmem>>, vector<1x8x32xf32>
    %103 = vector.shape_cast %102 : vector<1x8x32xf32> to vector<8x32xf32>
    %c24_156 = arith.constant 24 : index
    %c224_157 = arith.constant 224 : index
    %104 = vector.load %arg8[%c24_156, %c224_157] : memref<128x288xf32, #tpu.memory_space<vmem>>, vector<8x32xf32>
    tpu.vector_store %arg8[%c24_156, %c224_157], %103 {strides = array<i32>} : memref<128x288xf32, #tpu.memory_space<vmem>>, vector<8x32xf32>,
    %c5_158 = arith.constant 5 : index
    %c2_159 = arith.constant 2 : index
    %c0_160 = arith.constant 0 : index
    %105 = vector.load %arg1[%c5_158, %c2_159, %c0_160] : memref<20x10x32xf32, #tpu.memory_space<vmem>>, vector<1x8x32xf32>
    %106 = vector.shape_cast %105 : vector<1x8x32xf32> to vector<8x32xf32>
    %c24_161 = arith.constant 24 : index
    %c256_162 = arith.constant 256 : index
    %107 = vector.load %arg8[%c24_161, %c256_162] : memref<128x288xf32, #tpu.memory_space<vmem>>, vector<8x32xf32>
    tpu.vector_store %arg8[%c24_161, %c256_162], %106 {strides = array<i32>} : memref<128x288xf32, #tpu.memory_space<vmem>>, vector<8x32xf32>,
    %c4_163 = arith.constant 4 : index
    %c0_164 = arith.constant 0 : index
    %c0_165 = arith.constant 0 : index
    %108 = vector.load %arg1[%c4_163, %c0_164, %c0_165] : memref<20x10x32xf32, #tpu.memory_space<vmem>>, vector<1x8x32xf32>
    %109 = vector.shape_cast %108 : vector<1x8x32xf32> to vector<8x32xf32>
    %c32_166 = arith.constant 32 : index
    %c0_167 = arith.constant 0 : index
    %110 = vector.load %arg8[%c32_166, %c0_167] : memref<128x288xf32, #tpu.memory_space<vmem>>, vector<8x32xf32>
    tpu.vector_store %arg8[%c32_166, %c0_167], %109 {strides = array<i32>} : memref<128x288xf32, #tpu.memory_space<vmem>>, vector<8x32xf32>,
    %c4_168 = arith.constant 4 : index
    %c1_169 = arith.constant 1 : index
    %c0_170 = arith.constant 0 : index
    %111 = vector.load %arg1[%c4_168, %c1_169, %c0_170] : memref<20x10x32xf32, #tpu.memory_space<vmem>>, vector<1x8x32xf32>
    %112 = vector.shape_cast %111 : vector<1x8x32xf32> to vector<8x32xf32>
    %c32_171 = arith.constant 32 : index
    %c32_172 = arith.constant 32 : index
    %113 = vector.load %arg8[%c32_171, %c32_172] : memref<128x288xf32, #tpu.memory_space<vmem>>, vector<8x32xf32>
    tpu.vector_store %arg8[%c32_171, %c32_172], %112 {strides = array<i32>} : memref<128x288xf32, #tpu.memory_space<vmem>>, vector<8x32xf32>,
    %c4_173 = arith.constant 4 : index
    %c2_174 = arith.constant 2 : index
    %c0_175 = arith.constant 0 : index
    %114 = vector.load %arg1[%c4_173, %c2_174, %c0_175] : memref<20x10x32xf32, #tpu.memory_space<vmem>>, vector<1x8x32xf32>
    %115 = vector.shape_cast %114 : vector<1x8x32xf32> to vector<8x32xf32>
    %c32_176 = arith.constant 32 : index
    %c64_177 = arith.constant 64 : index
    %116 = vector.load %arg8[%c32_176, %c64_177] : memref<128x288xf32, #tpu.memory_space<vmem>>, vector<8x32xf32>
    tpu.vector_store %arg8[%c32_176, %c64_177], %115 {strides = array<i32>} : memref<128x288xf32, #tpu.memory_space<vmem>>, vector<8x32xf32>,
    %c5_178 = arith.constant 5 : index
    %c0_179 = arith.constant 0 : index
    %c0_180 = arith.constant 0 : index
    %117 = vector.load %arg1[%c5_178, %c0_179, %c0_180] : memref<20x10x32xf32, #tpu.memory_space<vmem>>, vector<1x8x32xf32>
    %118 = vector.shape_cast %117 : vector<1x8x32xf32> to vector<8x32xf32>
    %c32_181 = arith.constant 32 : index
    %c96_182 = arith.constant 96 : index
    %119 = vector.load %arg8[%c32_181, %c96_182] : memref<128x288xf32, #tpu.memory_space<vmem>>, vector<8x32xf32>
    tpu.vector_store %arg8[%c32_181, %c96_182], %118 {strides = array<i32>} : memref<128x288xf32, #tpu.memory_space<vmem>>, vector<8x32xf32>,
    %c5_183 = arith.constant 5 : index
    %c1_184 = arith.constant 1 : index
    %c0_185 = arith.constant 0 : index
    %120 = vector.load %arg1[%c5_183, %c1_184, %c0_185] : memref<20x10x32xf32, #tpu.memory_space<vmem>>, vector<1x8x32xf32>
    %121 = vector.shape_cast %120 : vector<1x8x32xf32> to vector<8x32xf32>
    %c32_186 = arith.constant 32 : index
    %c128_187 = arith.constant 128 : index
    %122 = vector.load %arg8[%c32_186, %c128_187] : memref<128x288xf32, #tpu.memory_space<vmem>>, vector<8x32xf32>
    tpu.vector_store %arg8[%c32_186, %c128_187], %121 {strides = array<i32>} : memref<128x288xf32, #tpu.memory_space<vmem>>, vector<8x32xf32>,
    %c5_188 = arith.constant 5 : index
    %c2_189 = arith.constant 2 : index
    %c0_190 = arith.constant 0 : index
    %123 = vector.load %arg1[%c5_188, %c2_189, %c0_190] : memref<20x10x32xf32, #tpu.memory_space<vmem>>, vector<1x8x32xf32>
    %124 = vector.shape_cast %123 : vector<1x8x32xf32> to vector<8x32xf32>
    %c32_191 = arith.constant 32 : index
    %c160_192 = arith.constant 160 : index
    %125 = vector.load %arg8[%c32_191, %c160_192] : memref<128x288xf32, #tpu.memory_space<vmem>>, vector<8x32xf32>
    tpu.vector_store %arg8[%c32_191, %c160_192], %124 {strides = array<i32>} : memref<128x288xf32, #tpu.memory_space<vmem>>, vector<8x32xf32>,
    %c6 = arith.constant 6 : index
    %c0_193 = arith.constant 0 : index
    %c0_194 = arith.constant 0 : index
    %126 = vector.load %arg1[%c6, %c0_193, %c0_194] : memref<20x10x32xf32, #tpu.memory_space<vmem>>, vector<1x8x32xf32>
    %127 = vector.shape_cast %126 : vector<1x8x32xf32> to vector<8x32xf32>
    %c32_195 = arith.constant 32 : index
    %c192_196 = arith.constant 192 : index
    %128 = vector.load %arg8[%c32_195, %c192_196] : memref<128x288xf32, #tpu.memory_space<vmem>>, vector<8x32xf32>
    tpu.vector_store %arg8[%c32_195, %c192_196], %127 {strides = array<i32>} : memref<128x288xf32, #tpu.memory_space<vmem>>, vector<8x32xf32>,
    %c6_197 = arith.constant 6 : index
    %c1_198 = arith.constant 1 : index
    %c0_199 = arith.constant 0 : index
    %129 = vector.load %arg1[%c6_197, %c1_198, %c0_199] : memref<20x10x32xf32, #tpu.memory_space<vmem>>, vector<1x8x32xf32>
    %130 = vector.shape_cast %129 : vector<1x8x32xf32> to vector<8x32xf32>
    %c32_200 = arith.constant 32 : index
    %c224_201 = arith.constant 224 : index
    %131 = vector.load %arg8[%c32_200, %c224_201] : memref<128x288xf32, #tpu.memory_space<vmem>>, vector<8x32xf32>
    tpu.vector_store %arg8[%c32_200, %c224_201], %130 {strides = array<i32>} : memref<128x288xf32, #tpu.memory_space<vmem>>, vector<8x32xf32>,
    %c6_202 = arith.constant 6 : index
    %c2_203 = arith.constant 2 : index
    %c0_204 = arith.constant 0 : index
    %132 = vector.load %arg1[%c6_202, %c2_203, %c0_204] : memref<20x10x32xf32, #tpu.memory_space<vmem>>, vector<1x8x32xf32>
    %133 = vector.shape_cast %132 : vector<1x8x32xf32> to vector<8x32xf32>
    %c32_205 = arith.constant 32 : index
    %c256_206 = arith.constant 256 : index
    %134 = vector.load %arg8[%c32_205, %c256_206] : memref<128x288xf32, #tpu.memory_space<vmem>>, vector<8x32xf32>
    tpu.vector_store %arg8[%c32_205, %c256_206], %133 {strides = array<i32>} : memref<128x288xf32, #tpu.memory_space<vmem>>, vector<8x32xf32>,
    %c5_207 = arith.constant 5 : index
    %c0_208 = arith.constant 0 : index
    %c0_209 = arith.constant 0 : index
    %135 = vector.load %arg1[%c5_207, %c0_208, %c0_209] : memref<20x10x32xf32, #tpu.memory_space<vmem>>, vector<1x8x32xf32>
    %136 = vector.shape_cast %135 : vector<1x8x32xf32> to vector<8x32xf32>
    %c40 = arith.constant 40 : index
    %c0_210 = arith.constant 0 : index
    %137 = vector.load %arg8[%c40, %c0_210] : memref<128x288xf32, #tpu.memory_space<vmem>>, vector<8x32xf32>
    tpu.vector_store %arg8[%c40, %c0_210], %136 {strides = array<i32>} : memref<128x288xf32, #tpu.memory_space<vmem>>, vector<8x32xf32>,
    %c5_211 = arith.constant 5 : index
    %c1_212 = arith.constant 1 : index
    %c0_213 = arith.constant 0 : index
    %138 = vector.load %arg1[%c5_211, %c1_212, %c0_213] : memref<20x10x32xf32, #tpu.memory_space<vmem>>, vector<1x8x32xf32>
    %139 = vector.shape_cast %138 : vector<1x8x32xf32> to vector<8x32xf32>
    %c40_214 = arith.constant 40 : index
    %c32_215 = arith.constant 32 : index
    %140 = vector.load %arg8[%c40_214, %c32_215] : memref<128x288xf32, #tpu.memory_space<vmem>>, vector<8x32xf32>
    tpu.vector_store %arg8[%c40_214, %c32_215], %139 {strides = array<i32>} : memref<128x288xf32, #tpu.memory_space<vmem>>, vector<8x32xf32>,
    %c5_216 = arith.constant 5 : index
    %c2_217 = arith.constant 2 : index
    %c0_218 = arith.constant 0 : index
    %141 = vector.load %arg1[%c5_216, %c2_217, %c0_218] : memref<20x10x32xf32, #tpu.memory_space<vmem>>, vector<1x8x32xf32>
    %142 = vector.shape_cast %141 : vector<1x8x32xf32> to vector<8x32xf32>
    %c40_219 = arith.constant 40 : index
    %c64_220 = arith.constant 64 : index
    %143 = vector.load %arg8[%c40_219, %c64_220] : memref<128x288xf32, #tpu.memory_space<vmem>>, vector<8x32xf32>
    tpu.vector_store %arg8[%c40_219, %c64_220], %142 {strides = array<i32>} : memref<128x288xf32, #tpu.memory_space<vmem>>, vector<8x32xf32>,
    %c6_221 = arith.constant 6 : index
    %c0_222 = arith.constant 0 : index
    %c0_223 = arith.constant 0 : index
    %144 = vector.load %arg1[%c6_221, %c0_222, %c0_223] : memref<20x10x32xf32, #tpu.memory_space<vmem>>, vector<1x8x32xf32>
    %145 = vector.shape_cast %144 : vector<1x8x32xf32> to vector<8x32xf32>
    %c40_224 = arith.constant 40 : index
    %c96_225 = arith.constant 96 : index
    %146 = vector.load %arg8[%c40_224, %c96_225] : memref<128x288xf32, #tpu.memory_space<vmem>>, vector<8x32xf32>
    tpu.vector_store %arg8[%c40_224, %c96_225], %145 {strides = array<i32>} : memref<128x288xf32, #tpu.memory_space<vmem>>, vector<8x32xf32>,
    %c6_226 = arith.constant 6 : index
    %c1_227 = arith.constant 1 : index
    %c0_228 = arith.constant 0 : index
    %147 = vector.load %arg1[%c6_226, %c1_227, %c0_228] : memref<20x10x32xf32, #tpu.memory_space<vmem>>, vector<1x8x32xf32>
    %148 = vector.shape_cast %147 : vector<1x8x32xf32> to vector<8x32xf32>
    %c40_229 = arith.constant 40 : index
    %c128_230 = arith.constant 128 : index
    %149 = vector.load %arg8[%c40_229, %c128_230] : memref<128x288xf32, #tpu.memory_space<vmem>>, vector<8x32xf32>
    tpu.vector_store %arg8[%c40_229, %c128_230], %148 {strides = array<i32>} : memref<128x288xf32, #tpu.memory_space<vmem>>, vector<8x32xf32>,
    %c6_231 = arith.constant 6 : index
    %c2_232 = arith.constant 2 : index
    %c0_233 = arith.constant 0 : index
    %150 = vector.load %arg1[%c6_231, %c2_232, %c0_233] : memref<20x10x32xf32, #tpu.memory_space<vmem>>, vector<1x8x32xf32>
    %151 = vector.shape_cast %150 : vector<1x8x32xf32> to vector<8x32xf32>
    %c40_234 = arith.constant 40 : index
    %c160_235 = arith.constant 160 : index
    %152 = vector.load %arg8[%c40_234, %c160_235] : memref<128x288xf32, #tpu.memory_space<vmem>>, vector<8x32xf32>
    tpu.vector_store %arg8[%c40_234, %c160_235], %151 {strides = array<i32>} : memref<128x288xf32, #tpu.memory_space<vmem>>, vector<8x32xf32>,
    %c7 = arith.constant 7 : index
    %c0_236 = arith.constant 0 : index
    %c0_237 = arith.constant 0 : index
    %153 = vector.load %arg1[%c7, %c0_236, %c0_237] : memref<20x10x32xf32, #tpu.memory_space<vmem>>, vector<1x8x32xf32>
    %154 = vector.shape_cast %153 : vector<1x8x32xf32> to vector<8x32xf32>
    %c40_238 = arith.constant 40 : index
    %c192_239 = arith.constant 192 : index
    %155 = vector.load %arg8[%c40_238, %c192_239] : memref<128x288xf32, #tpu.memory_space<vmem>>, vector<8x32xf32>
    tpu.vector_store %arg8[%c40_238, %c192_239], %154 {strides = array<i32>} : memref<128x288xf32, #tpu.memory_space<vmem>>, vector<8x32xf32>,
    %c7_240 = arith.constant 7 : index
    %c1_241 = arith.constant 1 : index
    %c0_242 = arith.constant 0 : index
    %156 = vector.load %arg1[%c7_240, %c1_241, %c0_242] : memref<20x10x32xf32, #tpu.memory_space<vmem>>, vector<1x8x32xf32>
    %157 = vector.shape_cast %156 : vector<1x8x32xf32> to vector<8x32xf32>
    %c40_243 = arith.constant 40 : index
    %c224_244 = arith.constant 224 : index
    %158 = vector.load %arg8[%c40_243, %c224_244] : memref<128x288xf32, #tpu.memory_space<vmem>>, vector<8x32xf32>
    tpu.vector_store %arg8[%c40_243, %c224_244], %157 {strides = array<i32>} : memref<128x288xf32, #tpu.memory_space<vmem>>, vector<8x32xf32>,
    %c7_245 = arith.constant 7 : index
    %c2_246 = arith.constant 2 : index
    %c0_247 = arith.constant 0 : index
    %159 = vector.load %arg1[%c7_245, %c2_246, %c0_247] : memref<20x10x32xf32, #tpu.memory_space<vmem>>, vector<1x8x32xf32>
    %160 = vector.shape_cast %159 : vector<1x8x32xf32> to vector<8x32xf32>
    %c40_248 = arith.constant 40 : index
    %c256_249 = arith.constant 256 : index
    %161 = vector.load %arg8[%c40_248, %c256_249] : memref<128x288xf32, #tpu.memory_space<vmem>>, vector<8x32xf32>
    tpu.vector_store %arg8[%c40_248, %c256_249], %160 {strides = array<i32>} : memref<128x288xf32, #tpu.memory_space<vmem>>, vector<8x32xf32>,
    %c6_250 = arith.constant 6 : index
    %c0_251 = arith.constant 0 : index
    %c0_252 = arith.constant 0 : index
    %162 = vector.load %arg1[%c6_250, %c0_251, %c0_252] : memref<20x10x32xf32, #tpu.memory_space<vmem>>, vector<1x8x32xf32>
    %163 = vector.shape_cast %162 : vector<1x8x32xf32> to vector<8x32xf32>
    %c48 = arith.constant 48 : index
    %c0_253 = arith.constant 0 : index
    %164 = vector.load %arg8[%c48, %c0_253] : memref<128x288xf32, #tpu.memory_space<vmem>>, vector<8x32xf32>
    tpu.vector_store %arg8[%c48, %c0_253], %163 {strides = array<i32>} : memref<128x288xf32, #tpu.memory_space<vmem>>, vector<8x32xf32>,
    %c6_254 = arith.constant 6 : index
    %c1_255 = arith.constant 1 : index
    %c0_256 = arith.constant 0 : index
    %165 = vector.load %arg1[%c6_254, %c1_255, %c0_256] : memref<20x10x32xf32, #tpu.memory_space<vmem>>, vector<1x8x32xf32>
    %166 = vector.shape_cast %165 : vector<1x8x32xf32> to vector<8x32xf32>
    %c48_257 = arith.constant 48 : index
    %c32_258 = arith.constant 32 : index
    %167 = vector.load %arg8[%c48_257, %c32_258] : memref<128x288xf32, #tpu.memory_space<vmem>>, vector<8x32xf32>
    tpu.vector_store %arg8[%c48_257, %c32_258], %166 {strides = array<i32>} : memref<128x288xf32, #tpu.memory_space<vmem>>, vector<8x32xf32>,
    %c6_259 = arith.constant 6 : index
    %c2_260 = arith.constant 2 : index
    %c0_261 = arith.constant 0 : index
    %168 = vector.load %arg1[%c6_259, %c2_260, %c0_261] : memref<20x10x32xf32, #tpu.memory_space<vmem>>, vector<1x8x32xf32>
    %169 = vector.shape_cast %168 : vector<1x8x32xf32> to vector<8x32xf32>
    %c48_262 = arith.constant 48 : index
    %c64_263 = arith.constant 64 : index
    %170 = vector.load %arg8[%c48_262, %c64_263] : memref<128x288xf32, #tpu.memory_space<vmem>>, vector<8x32xf32>
    tpu.vector_store %arg8[%c48_262, %c64_263], %169 {strides = array<i32>} : memref<128x288xf32, #tpu.memory_space<vmem>>, vector<8x32xf32>,
    %c7_264 = arith.constant 7 : index
    %c0_265 = arith.constant 0 : index
    %c0_266 = arith.constant 0 : index
    %171 = vector.load %arg1[%c7_264, %c0_265, %c0_266] : memref<20x10x32xf32, #tpu.memory_space<vmem>>, vector<1x8x32xf32>
    %172 = vector.shape_cast %171 : vector<1x8x32xf32> to vector<8x32xf32>
    %c48_267 = arith.constant 48 : index
    %c96_268 = arith.constant 96 : index
    %173 = vector.load %arg8[%c48_267, %c96_268] : memref<128x288xf32, #tpu.memory_space<vmem>>, vector<8x32xf32>
    tpu.vector_store %arg8[%c48_267, %c96_268], %172 {strides = array<i32>} : memref<128x288xf32, #tpu.memory_space<vmem>>, vector<8x32xf32>,
    %c7_269 = arith.constant 7 : index
    %c1_270 = arith.constant 1 : index
    %c0_271 = arith.constant 0 : index
    %174 = vector.load %arg1[%c7_269, %c1_270, %c0_271] : memref<20x10x32xf32, #tpu.memory_space<vmem>>, vector<1x8x32xf32>
    %175 = vector.shape_cast %174 : vector<1x8x32xf32> to vector<8x32xf32>
    %c48_272 = arith.constant 48 : index
    %c128_273 = arith.constant 128 : index
    %176 = vector.load %arg8[%c48_272, %c128_273] : memref<128x288xf32, #tpu.memory_space<vmem>>, vector<8x32xf32>
    tpu.vector_store %arg8[%c48_272, %c128_273], %175 {strides = array<i32>} : memref<128x288xf32, #tpu.memory_space<vmem>>, vector<8x32xf32>,
    %c7_274 = arith.constant 7 : index
    %c2_275 = arith.constant 2 : index
    %c0_276 = arith.constant 0 : index
    %177 = vector.load %arg1[%c7_274, %c2_275, %c0_276] : memref<20x10x32xf32, #tpu.memory_space<vmem>>, vector<1x8x32xf32>
    %178 = vector.shape_cast %177 : vector<1x8x32xf32> to vector<8x32xf32>
    %c48_277 = arith.constant 48 : index
    %c160_278 = arith.constant 160 : index
    %179 = vector.load %arg8[%c48_277, %c160_278] : memref<128x288xf32, #tpu.memory_space<vmem>>, vector<8x32xf32>
    tpu.vector_store %arg8[%c48_277, %c160_278], %178 {strides = array<i32>} : memref<128x288xf32, #tpu.memory_space<vmem>>, vector<8x32xf32>,
    %c8_279 = arith.constant 8 : index
    %c0_280 = arith.constant 0 : index
    %c0_281 = arith.constant 0 : index
    %180 = vector.load %arg1[%c8_279, %c0_280, %c0_281] : memref<20x10x32xf32, #tpu.memory_space<vmem>>, vector<1x8x32xf32>
    %181 = vector.shape_cast %180 : vector<1x8x32xf32> to vector<8x32xf32>
    %c48_282 = arith.constant 48 : index
    %c192_283 = arith.constant 192 : index
    %182 = vector.load %arg8[%c48_282, %c192_283] : memref<128x288xf32, #tpu.memory_space<vmem>>, vector<8x32xf32>
    tpu.vector_store %arg8[%c48_282, %c192_283], %181 {strides = array<i32>} : memref<128x288xf32, #tpu.memory_space<vmem>>, vector<8x32xf32>,
    %c8_284 = arith.constant 8 : index
    %c1_285 = arith.constant 1 : index
    %c0_286 = arith.constant 0 : index
    %183 = vector.load %arg1[%c8_284, %c1_285, %c0_286] : memref<20x10x32xf32, #tpu.memory_space<vmem>>, vector<1x8x32xf32>
    %184 = vector.shape_cast %183 : vector<1x8x32xf32> to vector<8x32xf32>
    %c48_287 = arith.constant 48 : index
    %c224_288 = arith.constant 224 : index
    %185 = vector.load %arg8[%c48_287, %c224_288] : memref<128x288xf32, #tpu.memory_space<vmem>>, vector<8x32xf32>
    tpu.vector_store %arg8[%c48_287, %c224_288], %184 {strides = array<i32>} : memref<128x288xf32, #tpu.memory_space<vmem>>, vector<8x32xf32>,
    %c8_289 = arith.constant 8 : index
    %c2_290 = arith.constant 2 : index
    %c0_291 = arith.constant 0 : index
    %186 = vector.load %arg1[%c8_289, %c2_290, %c0_291] : memref<20x10x32xf32, #tpu.memory_space<vmem>>, vector<1x8x32xf32>
    %187 = vector.shape_cast %186 : vector<1x8x32xf32> to vector<8x32xf32>
    %c48_292 = arith.constant 48 : index
    %c256_293 = arith.constant 256 : index
    %188 = vector.load %arg8[%c48_292, %c256_293] : memref<128x288xf32, #tpu.memory_space<vmem>>, vector<8x32xf32>
    tpu.vector_store %arg8[%c48_292, %c256_293], %187 {strides = array<i32>} : memref<128x288xf32, #tpu.memory_space<vmem>>, vector<8x32xf32>,
    %c7_294 = arith.constant 7 : index
    %c0_295 = arith.constant 0 : index
    %c0_296 = arith.constant 0 : index
    %189 = vector.load %arg1[%c7_294, %c0_295, %c0_296] : memref<20x10x32xf32, #tpu.memory_space<vmem>>, vector<1x8x32xf32>
    %190 = vector.shape_cast %189 : vector<1x8x32xf32> to vector<8x32xf32>
    %c56 = arith.constant 56 : index
    %c0_297 = arith.constant 0 : index
    %191 = vector.load %arg8[%c56, %c0_297] : memref<128x288xf32, #tpu.memory_space<vmem>>, vector<8x32xf32>
    tpu.vector_store %arg8[%c56, %c0_297], %190 {strides = array<i32>} : memref<128x288xf32, #tpu.memory_space<vmem>>, vector<8x32xf32>,
    %c7_298 = arith.constant 7 : index
    %c1_299 = arith.constant 1 : index
    %c0_300 = arith.constant 0 : index
    %192 = vector.load %arg1[%c7_298, %c1_299, %c0_300] : memref<20x10x32xf32, #tpu.memory_space<vmem>>, vector<1x8x32xf32>
    %193 = vector.shape_cast %192 : vector<1x8x32xf32> to vector<8x32xf32>
    %c56_301 = arith.constant 56 : index
    %c32_302 = arith.constant 32 : index
    %194 = vector.load %arg8[%c56_301, %c32_302] : memref<128x288xf32, #tpu.memory_space<vmem>>, vector<8x32xf32>
    tpu.vector_store %arg8[%c56_301, %c32_302], %193 {strides = array<i32>} : memref<128x288xf32, #tpu.memory_space<vmem>>, vector<8x32xf32>,
    %c7_303 = arith.constant 7 : index
    %c2_304 = arith.constant 2 : index
    %c0_305 = arith.constant 0 : index
    %195 = vector.load %arg1[%c7_303, %c2_304, %c0_305] : memref<20x10x32xf32, #tpu.memory_space<vmem>>, vector<1x8x32xf32>
    %196 = vector.shape_cast %195 : vector<1x8x32xf32> to vector<8x32xf32>
    %c56_306 = arith.constant 56 : index
    %c64_307 = arith.constant 64 : index
    %197 = vector.load %arg8[%c56_306, %c64_307] : memref<128x288xf32, #tpu.memory_space<vmem>>, vector<8x32xf32>
    tpu.vector_store %arg8[%c56_306, %c64_307], %196 {strides = array<i32>} : memref<128x288xf32, #tpu.memory_space<vmem>>, vector<8x32xf32>,
    %c8_308 = arith.constant 8 : index
    %c0_309 = arith.constant 0 : index
    %c0_310 = arith.constant 0 : index
    %198 = vector.load %arg1[%c8_308, %c0_309, %c0_310] : memref<20x10x32xf32, #tpu.memory_space<vmem>>, vector<1x8x32xf32>
    %199 = vector.shape_cast %198 : vector<1x8x32xf32> to vector<8x32xf32>
    %c56_311 = arith.constant 56 : index
    %c96_312 = arith.constant 96 : index
    %200 = vector.load %arg8[%c56_311, %c96_312] : memref<128x288xf32, #tpu.memory_space<vmem>>, vector<8x32xf32>
    tpu.vector_store %arg8[%c56_311, %c96_312], %199 {strides = array<i32>} : memref<128x288xf32, #tpu.memory_space<vmem>>, vector<8x32xf32>,
    %c8_313 = arith.constant 8 : index
    %c1_314 = arith.constant 1 : index
    %c0_315 = arith.constant 0 : index
    %201 = vector.load %arg1[%c8_313, %c1_314, %c0_315] : memref<20x10x32xf32, #tpu.memory_space<vmem>>, vector<1x8x32xf32>
    %202 = vector.shape_cast %201 : vector<1x8x32xf32> to vector<8x32xf32>
    %c56_316 = arith.constant 56 : index
    %c128_317 = arith.constant 128 : index
    %203 = vector.load %arg8[%c56_316, %c128_317] : memref<128x288xf32, #tpu.memory_space<vmem>>, vector<8x32xf32>
    tpu.vector_store %arg8[%c56_316, %c128_317], %202 {strides = array<i32>} : memref<128x288xf32, #tpu.memory_space<vmem>>, vector<8x32xf32>,
    %c8_318 = arith.constant 8 : index
    %c2_319 = arith.constant 2 : index
    %c0_320 = arith.constant 0 : index
    %204 = vector.load %arg1[%c8_318, %c2_319, %c0_320] : memref<20x10x32xf32, #tpu.memory_space<vmem>>, vector<1x8x32xf32>
    %205 = vector.shape_cast %204 : vector<1x8x32xf32> to vector<8x32xf32>
    %c56_321 = arith.constant 56 : index
    %c160_322 = arith.constant 160 : index
    %206 = vector.load %arg8[%c56_321, %c160_322] : memref<128x288xf32, #tpu.memory_space<vmem>>, vector<8x32xf32>
    tpu.vector_store %arg8[%c56_321, %c160_322], %205 {strides = array<i32>} : memref<128x288xf32, #tpu.memory_space<vmem>>, vector<8x32xf32>,
    %c9 = arith.constant 9 : index
    %c0_323 = arith.constant 0 : index
    %c0_324 = arith.constant 0 : index
    %207 = vector.load %arg1[%c9, %c0_323, %c0_324] : memref<20x10x32xf32, #tpu.memory_space<vmem>>, vector<1x8x32xf32>
    %208 = vector.shape_cast %207 : vector<1x8x32xf32> to vector<8x32xf32>
    %c56_325 = arith.constant 56 : index
    %c192_326 = arith.constant 192 : index
    %209 = vector.load %arg8[%c56_325, %c192_326] : memref<128x288xf32, #tpu.memory_space<vmem>>, vector<8x32xf32>
    tpu.vector_store %arg8[%c56_325, %c192_326], %208 {strides = array<i32>} : memref<128x288xf32, #tpu.memory_space<vmem>>, vector<8x32xf32>,
    %c9_327 = arith.constant 9 : index
    %c1_328 = arith.constant 1 : index
    %c0_329 = arith.constant 0 : index
    %210 = vector.load %arg1[%c9_327, %c1_328, %c0_329] : memref<20x10x32xf32, #tpu.memory_space<vmem>>, vector<1x8x32xf32>
    %211 = vector.shape_cast %210 : vector<1x8x32xf32> to vector<8x32xf32>
    %c56_330 = arith.constant 56 : index
    %c224_331 = arith.constant 224 : index
    %212 = vector.load %arg8[%c56_330, %c224_331] : memref<128x288xf32, #tpu.memory_space<vmem>>, vector<8x32xf32>
    tpu.vector_store %arg8[%c56_330, %c224_331], %211 {strides = array<i32>} : memref<128x288xf32, #tpu.memory_space<vmem>>, vector<8x32xf32>,
    %c9_332 = arith.constant 9 : index
    %c2_333 = arith.constant 2 : index
    %c0_334 = arith.constant 0 : index
    %213 = vector.load %arg1[%c9_332, %c2_333, %c0_334] : memref<20x10x32xf32, #tpu.memory_space<vmem>>, vector<1x8x32xf32>
    %214 = vector.shape_cast %213 : vector<1x8x32xf32> to vector<8x32xf32>
    %c56_335 = arith.constant 56 : index
    %c256_336 = arith.constant 256 : index
    %215 = vector.load %arg8[%c56_335, %c256_336] : memref<128x288xf32, #tpu.memory_space<vmem>>, vector<8x32xf32>
    tpu.vector_store %arg8[%c56_335, %c256_336], %214 {strides = array<i32>} : memref<128x288xf32, #tpu.memory_space<vmem>>, vector<8x32xf32>,
    %c10 = arith.constant 10 : index
    %c0_337 = arith.constant 0 : index
    %c0_338 = arith.constant 0 : index
    %216 = vector.load %arg1[%c10, %c0_337, %c0_338] : memref<20x10x32xf32, #tpu.memory_space<vmem>>, vector<1x8x32xf32>
    %217 = vector.shape_cast %216 : vector<1x8x32xf32> to vector<8x32xf32>
    %c64_339 = arith.constant 64 : index
    %c0_340 = arith.constant 0 : index
    %218 = vector.load %arg8[%c64_339, %c0_340] : memref<128x288xf32, #tpu.memory_space<vmem>>, vector<8x32xf32>
    tpu.vector_store %arg8[%c64_339, %c0_340], %217 {strides = array<i32>} : memref<128x288xf32, #tpu.memory_space<vmem>>, vector<8x32xf32>,
    %c10_341 = arith.constant 10 : index
    %c1_342 = arith.constant 1 : index
    %c0_343 = arith.constant 0 : index
    %219 = vector.load %arg1[%c10_341, %c1_342, %c0_343] : memref<20x10x32xf32, #tpu.memory_space<vmem>>, vector<1x8x32xf32>
    %220 = vector.shape_cast %219 : vector<1x8x32xf32> to vector<8x32xf32>
    %c64_344 = arith.constant 64 : index
    %c32_345 = arith.constant 32 : index
    %221 = vector.load %arg8[%c64_344, %c32_345] : memref<128x288xf32, #tpu.memory_space<vmem>>, vector<8x32xf32>
    tpu.vector_store %arg8[%c64_344, %c32_345], %220 {strides = array<i32>} : memref<128x288xf32, #tpu.memory_space<vmem>>, vector<8x32xf32>,
    %c10_346 = arith.constant 10 : index
    %c2_347 = arith.constant 2 : index
    %c0_348 = arith.constant 0 : index
    %222 = vector.load %arg1[%c10_346, %c2_347, %c0_348] : memref<20x10x32xf32, #tpu.memory_space<vmem>>, vector<1x8x32xf32>
    %223 = vector.shape_cast %222 : vector<1x8x32xf32> to vector<8x32xf32>
    %c64_349 = arith.constant 64 : index
    %c64_350 = arith.constant 64 : index
    %224 = vector.load %arg8[%c64_349, %c64_350] : memref<128x288xf32, #tpu.memory_space<vmem>>, vector<8x32xf32>
    tpu.vector_store %arg8[%c64_349, %c64_350], %223 {strides = array<i32>} : memref<128x288xf32, #tpu.memory_space<vmem>>, vector<8x32xf32>,
    %c11 = arith.constant 11 : index
    %c0_351 = arith.constant 0 : index
    %c0_352 = arith.constant 0 : index
    %225 = vector.load %arg1[%c11, %c0_351, %c0_352] : memref<20x10x32xf32, #tpu.memory_space<vmem>>, vector<1x8x32xf32>
    %226 = vector.shape_cast %225 : vector<1x8x32xf32> to vector<8x32xf32>
    %c64_353 = arith.constant 64 : index
    %c96_354 = arith.constant 96 : index
    %227 = vector.load %arg8[%c64_353, %c96_354] : memref<128x288xf32, #tpu.memory_space<vmem>>, vector<8x32xf32>
    tpu.vector_store %arg8[%c64_353, %c96_354], %226 {strides = array<i32>} : memref<128x288xf32, #tpu.memory_space<vmem>>, vector<8x32xf32>,
    %c11_355 = arith.constant 11 : index
    %c1_356 = arith.constant 1 : index
    %c0_357 = arith.constant 0 : index
    %228 = vector.load %arg1[%c11_355, %c1_356, %c0_357] : memref<20x10x32xf32, #tpu.memory_space<vmem>>, vector<1x8x32xf32>
    %229 = vector.shape_cast %228 : vector<1x8x32xf32> to vector<8x32xf32>
    %c64_358 = arith.constant 64 : index
    %c128_359 = arith.constant 128 : index
    %230 = vector.load %arg8[%c64_358, %c128_359] : memref<128x288xf32, #tpu.memory_space<vmem>>, vector<8x32xf32>
    tpu.vector_store %arg8[%c64_358, %c128_359], %229 {strides = array<i32>} : memref<128x288xf32, #tpu.memory_space<vmem>>, vector<8x32xf32>,
    %c11_360 = arith.constant 11 : index
    %c2_361 = arith.constant 2 : index
    %c0_362 = arith.constant 0 : index
    %231 = vector.load %arg1[%c11_360, %c2_361, %c0_362] : memref<20x10x32xf32, #tpu.memory_space<vmem>>, vector<1x8x32xf32>
    %232 = vector.shape_cast %231 : vector<1x8x32xf32> to vector<8x32xf32>
    %c64_363 = arith.constant 64 : index
    %c160_364 = arith.constant 160 : index
    %233 = vector.load %arg8[%c64_363, %c160_364] : memref<128x288xf32, #tpu.memory_space<vmem>>, vector<8x32xf32>
    tpu.vector_store %arg8[%c64_363, %c160_364], %232 {strides = array<i32>} : memref<128x288xf32, #tpu.memory_space<vmem>>, vector<8x32xf32>,
    %c12 = arith.constant 12 : index
    %c0_365 = arith.constant 0 : index
    %c0_366 = arith.constant 0 : index
    %234 = vector.load %arg1[%c12, %c0_365, %c0_366] : memref<20x10x32xf32, #tpu.memory_space<vmem>>, vector<1x8x32xf32>
    %235 = vector.shape_cast %234 : vector<1x8x32xf32> to vector<8x32xf32>
    %c64_367 = arith.constant 64 : index
    %c192_368 = arith.constant 192 : index
    %236 = vector.load %arg8[%c64_367, %c192_368] : memref<128x288xf32, #tpu.memory_space<vmem>>, vector<8x32xf32>
    tpu.vector_store %arg8[%c64_367, %c192_368], %235 {strides = array<i32>} : memref<128x288xf32, #tpu.memory_space<vmem>>, vector<8x32xf32>,
    %c12_369 = arith.constant 12 : index
    %c1_370 = arith.constant 1 : index
    %c0_371 = arith.constant 0 : index
    %237 = vector.load %arg1[%c12_369, %c1_370, %c0_371] : memref<20x10x32xf32, #tpu.memory_space<vmem>>, vector<1x8x32xf32>
    %238 = vector.shape_cast %237 : vector<1x8x32xf32> to vector<8x32xf32>
    %c64_372 = arith.constant 64 : index
    %c224_373 = arith.constant 224 : index
    %239 = vector.load %arg8[%c64_372, %c224_373] : memref<128x288xf32, #tpu.memory_space<vmem>>, vector<8x32xf32>
    tpu.vector_store %arg8[%c64_372, %c224_373], %238 {strides = array<i32>} : memref<128x288xf32, #tpu.memory_space<vmem>>, vector<8x32xf32>,
    %c12_374 = arith.constant 12 : index
    %c2_375 = arith.constant 2 : index
    %c0_376 = arith.constant 0 : index
    %240 = vector.load %arg1[%c12_374, %c2_375, %c0_376] : memref<20x10x32xf32, #tpu.memory_space<vmem>>, vector<1x8x32xf32>
    %241 = vector.shape_cast %240 : vector<1x8x32xf32> to vector<8x32xf32>
    %c64_377 = arith.constant 64 : index
    %c256_378 = arith.constant 256 : index
    %242 = vector.load %arg8[%c64_377, %c256_378] : memref<128x288xf32, #tpu.memory_space<vmem>>, vector<8x32xf32>
    tpu.vector_store %arg8[%c64_377, %c256_378], %241 {strides = array<i32>} : memref<128x288xf32, #tpu.memory_space<vmem>>, vector<8x32xf32>,
    %c11_379 = arith.constant 11 : index
    %c0_380 = arith.constant 0 : index
    %c0_381 = arith.constant 0 : index
    %243 = vector.load %arg1[%c11_379, %c0_380, %c0_381] : memref<20x10x32xf32, #tpu.memory_space<vmem>>, vector<1x8x32xf32>
    %244 = vector.shape_cast %243 : vector<1x8x32xf32> to vector<8x32xf32>
    %c72 = arith.constant 72 : index
    %c0_382 = arith.constant 0 : index
    %245 = vector.load %arg8[%c72, %c0_382] : memref<128x288xf32, #tpu.memory_space<vmem>>, vector<8x32xf32>
    tpu.vector_store %arg8[%c72, %c0_382], %244 {strides = array<i32>} : memref<128x288xf32, #tpu.memory_space<vmem>>, vector<8x32xf32>,
    %c11_383 = arith.constant 11 : index
    %c1_384 = arith.constant 1 : index
    %c0_385 = arith.constant 0 : index
    %246 = vector.load %arg1[%c11_383, %c1_384, %c0_385] : memref<20x10x32xf32, #tpu.memory_space<vmem>>, vector<1x8x32xf32>
    %247 = vector.shape_cast %246 : vector<1x8x32xf32> to vector<8x32xf32>
    %c72_386 = arith.constant 72 : index
    %c32_387 = arith.constant 32 : index
    %248 = vector.load %arg8[%c72_386, %c32_387] : memref<128x288xf32, #tpu.memory_space<vmem>>, vector<8x32xf32>
    tpu.vector_store %arg8[%c72_386, %c32_387], %247 {strides = array<i32>} : memref<128x288xf32, #tpu.memory_space<vmem>>, vector<8x32xf32>,
    %c11_388 = arith.constant 11 : index
    %c2_389 = arith.constant 2 : index
    %c0_390 = arith.constant 0 : index
    %249 = vector.load %arg1[%c11_388, %c2_389, %c0_390] : memref<20x10x32xf32, #tpu.memory_space<vmem>>, vector<1x8x32xf32>
    %250 = vector.shape_cast %249 : vector<1x8x32xf32> to vector<8x32xf32>
    %c72_391 = arith.constant 72 : index
    %c64_392 = arith.constant 64 : index
    %251 = vector.load %arg8[%c72_391, %c64_392] : memref<128x288xf32, #tpu.memory_space<vmem>>, vector<8x32xf32>
    tpu.vector_store %arg8[%c72_391, %c64_392], %250 {strides = array<i32>} : memref<128x288xf32, #tpu.memory_space<vmem>>, vector<8x32xf32>,
    %c12_393 = arith.constant 12 : index
    %c0_394 = arith.constant 0 : index
    %c0_395 = arith.constant 0 : index
    %252 = vector.load %arg1[%c12_393, %c0_394, %c0_395] : memref<20x10x32xf32, #tpu.memory_space<vmem>>, vector<1x8x32xf32>
    %253 = vector.shape_cast %252 : vector<1x8x32xf32> to vector<8x32xf32>
    %c72_396 = arith.constant 72 : index
    %c96_397 = arith.constant 96 : index
    %254 = vector.load %arg8[%c72_396, %c96_397] : memref<128x288xf32, #tpu.memory_space<vmem>>, vector<8x32xf32>
    tpu.vector_store %arg8[%c72_396, %c96_397], %253 {strides = array<i32>} : memref<128x288xf32, #tpu.memory_space<vmem>>, vector<8x32xf32>,
    %c12_398 = arith.constant 12 : index
    %c1_399 = arith.constant 1 : index
    %c0_400 = arith.constant 0 : index
    %255 = vector.load %arg1[%c12_398, %c1_399, %c0_400] : memref<20x10x32xf32, #tpu.memory_space<vmem>>, vector<1x8x32xf32>
    %256 = vector.shape_cast %255 : vector<1x8x32xf32> to vector<8x32xf32>
    %c72_401 = arith.constant 72 : index
    %c128_402 = arith.constant 128 : index
    %257 = vector.load %arg8[%c72_401, %c128_402] : memref<128x288xf32, #tpu.memory_space<vmem>>, vector<8x32xf32>
    tpu.vector_store %arg8[%c72_401, %c128_402], %256 {strides = array<i32>} : memref<128x288xf32, #tpu.memory_space<vmem>>, vector<8x32xf32>,
    %c12_403 = arith.constant 12 : index
    %c2_404 = arith.constant 2 : index
    %c0_405 = arith.constant 0 : index
    %258 = vector.load %arg1[%c12_403, %c2_404, %c0_405] : memref<20x10x32xf32, #tpu.memory_space<vmem>>, vector<1x8x32xf32>
    %259 = vector.shape_cast %258 : vector<1x8x32xf32> to vector<8x32xf32>
    %c72_406 = arith.constant 72 : index
    %c160_407 = arith.constant 160 : index
    %260 = vector.load %arg8[%c72_406, %c160_407] : memref<128x288xf32, #tpu.memory_space<vmem>>, vector<8x32xf32>
    tpu.vector_store %arg8[%c72_406, %c160_407], %259 {strides = array<i32>} : memref<128x288xf32, #tpu.memory_space<vmem>>, vector<8x32xf32>,
    %c13 = arith.constant 13 : index
    %c0_408 = arith.constant 0 : index
    %c0_409 = arith.constant 0 : index
    %261 = vector.load %arg1[%c13, %c0_408, %c0_409] : memref<20x10x32xf32, #tpu.memory_space<vmem>>, vector<1x8x32xf32>
    %262 = vector.shape_cast %261 : vector<1x8x32xf32> to vector<8x32xf32>
    %c72_410 = arith.constant 72 : index
    %c192_411 = arith.constant 192 : index
    %263 = vector.load %arg8[%c72_410, %c192_411] : memref<128x288xf32, #tpu.memory_space<vmem>>, vector<8x32xf32>
    tpu.vector_store %arg8[%c72_410, %c192_411], %262 {strides = array<i32>} : memref<128x288xf32, #tpu.memory_space<vmem>>, vector<8x32xf32>,
    %c13_412 = arith.constant 13 : index
    %c1_413 = arith.constant 1 : index
    %c0_414 = arith.constant 0 : index
    %264 = vector.load %arg1[%c13_412, %c1_413, %c0_414] : memref<20x10x32xf32, #tpu.memory_space<vmem>>, vector<1x8x32xf32>
    %265 = vector.shape_cast %264 : vector<1x8x32xf32> to vector<8x32xf32>
    %c72_415 = arith.constant 72 : index
    %c224_416 = arith.constant 224 : index
    %266 = vector.load %arg8[%c72_415, %c224_416] : memref<128x288xf32, #tpu.memory_space<vmem>>, vector<8x32xf32>
    tpu.vector_store %arg8[%c72_415, %c224_416], %265 {strides = array<i32>} : memref<128x288xf32, #tpu.memory_space<vmem>>, vector<8x32xf32>,
    %c13_417 = arith.constant 13 : index
    %c2_418 = arith.constant 2 : index
    %c0_419 = arith.constant 0 : index
    %267 = vector.load %arg1[%c13_417, %c2_418, %c0_419] : memref<20x10x32xf32, #tpu.memory_space<vmem>>, vector<1x8x32xf32>
    %268 = vector.shape_cast %267 : vector<1x8x32xf32> to vector<8x32xf32>
    %c72_420 = arith.constant 72 : index
    %c256_421 = arith.constant 256 : index
    %269 = vector.load %arg8[%c72_420, %c256_421] : memref<128x288xf32, #tpu.memory_space<vmem>>, vector<8x32xf32>
    tpu.vector_store %arg8[%c72_420, %c256_421], %268 {strides = array<i32>} : memref<128x288xf32, #tpu.memory_space<vmem>>, vector<8x32xf32>,
    %c12_422 = arith.constant 12 : index
    %c0_423 = arith.constant 0 : index
    %c0_424 = arith.constant 0 : index
    %270 = vector.load %arg1[%c12_422, %c0_423, %c0_424] : memref<20x10x32xf32, #tpu.memory_space<vmem>>, vector<1x8x32xf32>
    %271 = vector.shape_cast %270 : vector<1x8x32xf32> to vector<8x32xf32>
    %c80 = arith.constant 80 : index
    %c0_425 = arith.constant 0 : index
    %272 = vector.load %arg8[%c80, %c0_425] : memref<128x288xf32, #tpu.memory_space<vmem>>, vector<8x32xf32>
    tpu.vector_store %arg8[%c80, %c0_425], %271 {strides = array<i32>} : memref<128x288xf32, #tpu.memory_space<vmem>>, vector<8x32xf32>,
    %c12_426 = arith.constant 12 : index
    %c1_427 = arith.constant 1 : index
    %c0_428 = arith.constant 0 : index
    %273 = vector.load %arg1[%c12_426, %c1_427, %c0_428] : memref<20x10x32xf32, #tpu.memory_space<vmem>>, vector<1x8x32xf32>
    %274 = vector.shape_cast %273 : vector<1x8x32xf32> to vector<8x32xf32>
    %c80_429 = arith.constant 80 : index
    %c32_430 = arith.constant 32 : index
    %275 = vector.load %arg8[%c80_429, %c32_430] : memref<128x288xf32, #tpu.memory_space<vmem>>, vector<8x32xf32>
    tpu.vector_store %arg8[%c80_429, %c32_430], %274 {strides = array<i32>} : memref<128x288xf32, #tpu.memory_space<vmem>>, vector<8x32xf32>,
    %c12_431 = arith.constant 12 : index
    %c2_432 = arith.constant 2 : index
    %c0_433 = arith.constant 0 : index
    %276 = vector.load %arg1[%c12_431, %c2_432, %c0_433] : memref<20x10x32xf32, #tpu.memory_space<vmem>>, vector<1x8x32xf32>
    %277 = vector.shape_cast %276 : vector<1x8x32xf32> to vector<8x32xf32>
    %c80_434 = arith.constant 80 : index
    %c64_435 = arith.constant 64 : index
    %278 = vector.load %arg8[%c80_434, %c64_435] : memref<128x288xf32, #tpu.memory_space<vmem>>, vector<8x32xf32>
    tpu.vector_store %arg8[%c80_434, %c64_435], %277 {strides = array<i32>} : memref<128x288xf32, #tpu.memory_space<vmem>>, vector<8x32xf32>,
    %c13_436 = arith.constant 13 : index
    %c0_437 = arith.constant 0 : index
    %c0_438 = arith.constant 0 : index
    %279 = vector.load %arg1[%c13_436, %c0_437, %c0_438] : memref<20x10x32xf32, #tpu.memory_space<vmem>>, vector<1x8x32xf32>
    %280 = vector.shape_cast %279 : vector<1x8x32xf32> to vector<8x32xf32>
    %c80_439 = arith.constant 80 : index
    %c96_440 = arith.constant 96 : index
    %281 = vector.load %arg8[%c80_439, %c96_440] : memref<128x288xf32, #tpu.memory_space<vmem>>, vector<8x32xf32>
    tpu.vector_store %arg8[%c80_439, %c96_440], %280 {strides = array<i32>} : memref<128x288xf32, #tpu.memory_space<vmem>>, vector<8x32xf32>,
    %c13_441 = arith.constant 13 : index
    %c1_442 = arith.constant 1 : index
    %c0_443 = arith.constant 0 : index
    %282 = vector.load %arg1[%c13_441, %c1_442, %c0_443] : memref<20x10x32xf32, #tpu.memory_space<vmem>>, vector<1x8x32xf32>
    %283 = vector.shape_cast %282 : vector<1x8x32xf32> to vector<8x32xf32>
    %c80_444 = arith.constant 80 : index
    %c128_445 = arith.constant 128 : index
    %284 = vector.load %arg8[%c80_444, %c128_445] : memref<128x288xf32, #tpu.memory_space<vmem>>, vector<8x32xf32>
    tpu.vector_store %arg8[%c80_444, %c128_445], %283 {strides = array<i32>} : memref<128x288xf32, #tpu.memory_space<vmem>>, vector<8x32xf32>,
    %c13_446 = arith.constant 13 : index
    %c2_447 = arith.constant 2 : index
    %c0_448 = arith.constant 0 : index
    %285 = vector.load %arg1[%c13_446, %c2_447, %c0_448] : memref<20x10x32xf32, #tpu.memory_space<vmem>>, vector<1x8x32xf32>
    %286 = vector.shape_cast %285 : vector<1x8x32xf32> to vector<8x32xf32>
    %c80_449 = arith.constant 80 : index
    %c160_450 = arith.constant 160 : index
    %287 = vector.load %arg8[%c80_449, %c160_450] : memref<128x288xf32, #tpu.memory_space<vmem>>, vector<8x32xf32>
    tpu.vector_store %arg8[%c80_449, %c160_450], %286 {strides = array<i32>} : memref<128x288xf32, #tpu.memory_space<vmem>>, vector<8x32xf32>,
    %c14 = arith.constant 14 : index
    %c0_451 = arith.constant 0 : index
    %c0_452 = arith.constant 0 : index
    %288 = vector.load %arg1[%c14, %c0_451, %c0_452] : memref<20x10x32xf32, #tpu.memory_space<vmem>>, vector<1x8x32xf32>
    %289 = vector.shape_cast %288 : vector<1x8x32xf32> to vector<8x32xf32>
    %c80_453 = arith.constant 80 : index
    %c192_454 = arith.constant 192 : index
    %290 = vector.load %arg8[%c80_453, %c192_454] : memref<128x288xf32, #tpu.memory_space<vmem>>, vector<8x32xf32>
    tpu.vector_store %arg8[%c80_453, %c192_454], %289 {strides = array<i32>} : memref<128x288xf32, #tpu.memory_space<vmem>>, vector<8x32xf32>,
    %c14_455 = arith.constant 14 : index
    %c1_456 = arith.constant 1 : index
    %c0_457 = arith.constant 0 : index
    %291 = vector.load %arg1[%c14_455, %c1_456, %c0_457] : memref<20x10x32xf32, #tpu.memory_space<vmem>>, vector<1x8x32xf32>
    %292 = vector.shape_cast %291 : vector<1x8x32xf32> to vector<8x32xf32>
    %c80_458 = arith.constant 80 : index
    %c224_459 = arith.constant 224 : index
    %293 = vector.load %arg8[%c80_458, %c224_459] : memref<128x288xf32, #tpu.memory_space<vmem>>, vector<8x32xf32>
    tpu.vector_store %arg8[%c80_458, %c224_459], %292 {strides = array<i32>} : memref<128x288xf32, #tpu.memory_space<vmem>>, vector<8x32xf32>,
    %c14_460 = arith.constant 14 : index
    %c2_461 = arith.constant 2 : index
    %c0_462 = arith.constant 0 : index
    %294 = vector.load %arg1[%c14_460, %c2_461, %c0_462] : memref<20x10x32xf32, #tpu.memory_space<vmem>>, vector<1x8x32xf32>
    %295 = vector.shape_cast %294 : vector<1x8x32xf32> to vector<8x32xf32>
    %c80_463 = arith.constant 80 : index
    %c256_464 = arith.constant 256 : index
    %296 = vector.load %arg8[%c80_463, %c256_464] : memref<128x288xf32, #tpu.memory_space<vmem>>, vector<8x32xf32>
    tpu.vector_store %arg8[%c80_463, %c256_464], %295 {strides = array<i32>} : memref<128x288xf32, #tpu.memory_space<vmem>>, vector<8x32xf32>,
    %c13_465 = arith.constant 13 : index
    %c0_466 = arith.constant 0 : index
    %c0_467 = arith.constant 0 : index
    %297 = vector.load %arg1[%c13_465, %c0_466, %c0_467] : memref<20x10x32xf32, #tpu.memory_space<vmem>>, vector<1x8x32xf32>
    %298 = vector.shape_cast %297 : vector<1x8x32xf32> to vector<8x32xf32>
    %c88 = arith.constant 88 : index
    %c0_468 = arith.constant 0 : index
    %299 = vector.load %arg8[%c88, %c0_468] : memref<128x288xf32, #tpu.memory_space<vmem>>, vector<8x32xf32>
    tpu.vector_store %arg8[%c88, %c0_468], %298 {strides = array<i32>} : memref<128x288xf32, #tpu.memory_space<vmem>>, vector<8x32xf32>,
    %c13_469 = arith.constant 13 : index
    %c1_470 = arith.constant 1 : index
    %c0_471 = arith.constant 0 : index
    %300 = vector.load %arg1[%c13_469, %c1_470, %c0_471] : memref<20x10x32xf32, #tpu.memory_space<vmem>>, vector<1x8x32xf32>
    %301 = vector.shape_cast %300 : vector<1x8x32xf32> to vector<8x32xf32>
    %c88_472 = arith.constant 88 : index
    %c32_473 = arith.constant 32 : index
    %302 = vector.load %arg8[%c88_472, %c32_473] : memref<128x288xf32, #tpu.memory_space<vmem>>, vector<8x32xf32>
    tpu.vector_store %arg8[%c88_472, %c32_473], %301 {strides = array<i32>} : memref<128x288xf32, #tpu.memory_space<vmem>>, vector<8x32xf32>,
    %c13_474 = arith.constant 13 : index
    %c2_475 = arith.constant 2 : index
    %c0_476 = arith.constant 0 : index
    %303 = vector.load %arg1[%c13_474, %c2_475, %c0_476] : memref<20x10x32xf32, #tpu.memory_space<vmem>>, vector<1x8x32xf32>
    %304 = vector.shape_cast %303 : vector<1x8x32xf32> to vector<8x32xf32>
    %c88_477 = arith.constant 88 : index
    %c64_478 = arith.constant 64 : index
    %305 = vector.load %arg8[%c88_477, %c64_478] : memref<128x288xf32, #tpu.memory_space<vmem>>, vector<8x32xf32>
    tpu.vector_store %arg8[%c88_477, %c64_478], %304 {strides = array<i32>} : memref<128x288xf32, #tpu.memory_space<vmem>>, vector<8x32xf32>,
    %c14_479 = arith.constant 14 : index
    %c0_480 = arith.constant 0 : index
    %c0_481 = arith.constant 0 : index
    %306 = vector.load %arg1[%c14_479, %c0_480, %c0_481] : memref<20x10x32xf32, #tpu.memory_space<vmem>>, vector<1x8x32xf32>
    %307 = vector.shape_cast %306 : vector<1x8x32xf32> to vector<8x32xf32>
    %c88_482 = arith.constant 88 : index
    %c96_483 = arith.constant 96 : index
    %308 = vector.load %arg8[%c88_482, %c96_483] : memref<128x288xf32, #tpu.memory_space<vmem>>, vector<8x32xf32>
    tpu.vector_store %arg8[%c88_482, %c96_483], %307 {strides = array<i32>} : memref<128x288xf32, #tpu.memory_space<vmem>>, vector<8x32xf32>,
    %c14_484 = arith.constant 14 : index
    %c1_485 = arith.constant 1 : index
    %c0_486 = arith.constant 0 : index
    %309 = vector.load %arg1[%c14_484, %c1_485, %c0_486] : memref<20x10x32xf32, #tpu.memory_space<vmem>>, vector<1x8x32xf32>
    %310 = vector.shape_cast %309 : vector<1x8x32xf32> to vector<8x32xf32>
    %c88_487 = arith.constant 88 : index
    %c128_488 = arith.constant 128 : index
    %311 = vector.load %arg8[%c88_487, %c128_488] : memref<128x288xf32, #tpu.memory_space<vmem>>, vector<8x32xf32>
    tpu.vector_store %arg8[%c88_487, %c128_488], %310 {strides = array<i32>} : memref<128x288xf32, #tpu.memory_space<vmem>>, vector<8x32xf32>,
    %c14_489 = arith.constant 14 : index
    %c2_490 = arith.constant 2 : index
    %c0_491 = arith.constant 0 : index
    %312 = vector.load %arg1[%c14_489, %c2_490, %c0_491] : memref<20x10x32xf32, #tpu.memory_space<vmem>>, vector<1x8x32xf32>
    %313 = vector.shape_cast %312 : vector<1x8x32xf32> to vector<8x32xf32>
    %c88_492 = arith.constant 88 : index
    %c160_493 = arith.constant 160 : index
    %314 = vector.load %arg8[%c88_492, %c160_493] : memref<128x288xf32, #tpu.memory_space<vmem>>, vector<8x32xf32>
    tpu.vector_store %arg8[%c88_492, %c160_493], %313 {strides = array<i32>} : memref<128x288xf32, #tpu.memory_space<vmem>>, vector<8x32xf32>,
    %c15 = arith.constant 15 : index
    %c0_494 = arith.constant 0 : index
    %c0_495 = arith.constant 0 : index
    %315 = vector.load %arg1[%c15, %c0_494, %c0_495] : memref<20x10x32xf32, #tpu.memory_space<vmem>>, vector<1x8x32xf32>
    %316 = vector.shape_cast %315 : vector<1x8x32xf32> to vector<8x32xf32>
    %c88_496 = arith.constant 88 : index
    %c192_497 = arith.constant 192 : index
    %317 = vector.load %arg8[%c88_496, %c192_497] : memref<128x288xf32, #tpu.memory_space<vmem>>, vector<8x32xf32>
    tpu.vector_store %arg8[%c88_496, %c192_497], %316 {strides = array<i32>} : memref<128x288xf32, #tpu.memory_space<vmem>>, vector<8x32xf32>,
    %c15_498 = arith.constant 15 : index
    %c1_499 = arith.constant 1 : index
    %c0_500 = arith.constant 0 : index
    %318 = vector.load %arg1[%c15_498, %c1_499, %c0_500] : memref<20x10x32xf32, #tpu.memory_space<vmem>>, vector<1x8x32xf32>
    %319 = vector.shape_cast %318 : vector<1x8x32xf32> to vector<8x32xf32>
    %c88_501 = arith.constant 88 : index
    %c224_502 = arith.constant 224 : index
    %320 = vector.load %arg8[%c88_501, %c224_502] : memref<128x288xf32, #tpu.memory_space<vmem>>, vector<8x32xf32>
    tpu.vector_store %arg8[%c88_501, %c224_502], %319 {strides = array<i32>} : memref<128x288xf32, #tpu.memory_space<vmem>>, vector<8x32xf32>,
    %c15_503 = arith.constant 15 : index
    %c2_504 = arith.constant 2 : index
    %c0_505 = arith.constant 0 : index
    %321 = vector.load %arg1[%c15_503, %c2_504, %c0_505] : memref<20x10x32xf32, #tpu.memory_space<vmem>>, vector<1x8x32xf32>
    %322 = vector.shape_cast %321 : vector<1x8x32xf32> to vector<8x32xf32>
    %c88_506 = arith.constant 88 : index
    %c256_507 = arith.constant 256 : index
    %323 = vector.load %arg8[%c88_506, %c256_507] : memref<128x288xf32, #tpu.memory_space<vmem>>, vector<8x32xf32>
    tpu.vector_store %arg8[%c88_506, %c256_507], %322 {strides = array<i32>} : memref<128x288xf32, #tpu.memory_space<vmem>>, vector<8x32xf32>,
    %c14_508 = arith.constant 14 : index
    %c0_509 = arith.constant 0 : index
    %c0_510 = arith.constant 0 : index
    %324 = vector.load %arg1[%c14_508, %c0_509, %c0_510] : memref<20x10x32xf32, #tpu.memory_space<vmem>>, vector<1x8x32xf32>
    %325 = vector.shape_cast %324 : vector<1x8x32xf32> to vector<8x32xf32>
    %c96_511 = arith.constant 96 : index
    %c0_512 = arith.constant 0 : index
    %326 = vector.load %arg8[%c96_511, %c0_512] : memref<128x288xf32, #tpu.memory_space<vmem>>, vector<8x32xf32>
    tpu.vector_store %arg8[%c96_511, %c0_512], %325 {strides = array<i32>} : memref<128x288xf32, #tpu.memory_space<vmem>>, vector<8x32xf32>,
    %c14_513 = arith.constant 14 : index
    %c1_514 = arith.constant 1 : index
    %c0_515 = arith.constant 0 : index
    %327 = vector.load %arg1[%c14_513, %c1_514, %c0_515] : memref<20x10x32xf32, #tpu.memory_space<vmem>>, vector<1x8x32xf32>
    %328 = vector.shape_cast %327 : vector<1x8x32xf32> to vector<8x32xf32>
    %c96_516 = arith.constant 96 : index
    %c32_517 = arith.constant 32 : index
    %329 = vector.load %arg8[%c96_516, %c32_517] : memref<128x288xf32, #tpu.memory_space<vmem>>, vector<8x32xf32>
    tpu.vector_store %arg8[%c96_516, %c32_517], %328 {strides = array<i32>} : memref<128x288xf32, #tpu.memory_space<vmem>>, vector<8x32xf32>,
    %c14_518 = arith.constant 14 : index
    %c2_519 = arith.constant 2 : index
    %c0_520 = arith.constant 0 : index
    %330 = vector.load %arg1[%c14_518, %c2_519, %c0_520] : memref<20x10x32xf32, #tpu.memory_space<vmem>>, vector<1x8x32xf32>
    %331 = vector.shape_cast %330 : vector<1x8x32xf32> to vector<8x32xf32>
    %c96_521 = arith.constant 96 : index
    %c64_522 = arith.constant 64 : index
    %332 = vector.load %arg8[%c96_521, %c64_522] : memref<128x288xf32, #tpu.memory_space<vmem>>, vector<8x32xf32>
    tpu.vector_store %arg8[%c96_521, %c64_522], %331 {strides = array<i32>} : memref<128x288xf32, #tpu.memory_space<vmem>>, vector<8x32xf32>,
    %c15_523 = arith.constant 15 : index
    %c0_524 = arith.constant 0 : index
    %c0_525 = arith.constant 0 : index
    %333 = vector.load %arg1[%c15_523, %c0_524, %c0_525] : memref<20x10x32xf32, #tpu.memory_space<vmem>>, vector<1x8x32xf32>
    %334 = vector.shape_cast %333 : vector<1x8x32xf32> to vector<8x32xf32>
    %c96_526 = arith.constant 96 : index
    %c96_527 = arith.constant 96 : index
    %335 = vector.load %arg8[%c96_526, %c96_527] : memref<128x288xf32, #tpu.memory_space<vmem>>, vector<8x32xf32>
    tpu.vector_store %arg8[%c96_526, %c96_527], %334 {strides = array<i32>} : memref<128x288xf32, #tpu.memory_space<vmem>>, vector<8x32xf32>,
    %c15_528 = arith.constant 15 : index
    %c1_529 = arith.constant 1 : index
    %c0_530 = arith.constant 0 : index
    %336 = vector.load %arg1[%c15_528, %c1_529, %c0_530] : memref<20x10x32xf32, #tpu.memory_space<vmem>>, vector<1x8x32xf32>
    %337 = vector.shape_cast %336 : vector<1x8x32xf32> to vector<8x32xf32>
    %c96_531 = arith.constant 96 : index
    %c128_532 = arith.constant 128 : index
    %338 = vector.load %arg8[%c96_531, %c128_532] : memref<128x288xf32, #tpu.memory_space<vmem>>, vector<8x32xf32>
    tpu.vector_store %arg8[%c96_531, %c128_532], %337 {strides = array<i32>} : memref<128x288xf32, #tpu.memory_space<vmem>>, vector<8x32xf32>,
    %c15_533 = arith.constant 15 : index
    %c2_534 = arith.constant 2 : index
    %c0_535 = arith.constant 0 : index
    %339 = vector.load %arg1[%c15_533, %c2_534, %c0_535] : memref<20x10x32xf32, #tpu.memory_space<vmem>>, vector<1x8x32xf32>
    %340 = vector.shape_cast %339 : vector<1x8x32xf32> to vector<8x32xf32>
    %c96_536 = arith.constant 96 : index
    %c160_537 = arith.constant 160 : index
    %341 = vector.load %arg8[%c96_536, %c160_537] : memref<128x288xf32, #tpu.memory_space<vmem>>, vector<8x32xf32>
    tpu.vector_store %arg8[%c96_536, %c160_537], %340 {strides = array<i32>} : memref<128x288xf32, #tpu.memory_space<vmem>>, vector<8x32xf32>,
    %c16_538 = arith.constant 16 : index
    %c0_539 = arith.constant 0 : index
    %c0_540 = arith.constant 0 : index
    %342 = vector.load %arg1[%c16_538, %c0_539, %c0_540] : memref<20x10x32xf32, #tpu.memory_space<vmem>>, vector<1x8x32xf32>
    %343 = vector.shape_cast %342 : vector<1x8x32xf32> to vector<8x32xf32>
    %c96_541 = arith.constant 96 : index
    %c192_542 = arith.constant 192 : index
    %344 = vector.load %arg8[%c96_541, %c192_542] : memref<128x288xf32, #tpu.memory_space<vmem>>, vector<8x32xf32>
    tpu.vector_store %arg8[%c96_541, %c192_542], %343 {strides = array<i32>} : memref<128x288xf32, #tpu.memory_space<vmem>>, vector<8x32xf32>,
    %c16_543 = arith.constant 16 : index
    %c1_544 = arith.constant 1 : index
    %c0_545 = arith.constant 0 : index
    %345 = vector.load %arg1[%c16_543, %c1_544, %c0_545] : memref<20x10x32xf32, #tpu.memory_space<vmem>>, vector<1x8x32xf32>
    %346 = vector.shape_cast %345 : vector<1x8x32xf32> to vector<8x32xf32>
    %c96_546 = arith.constant 96 : index
    %c224_547 = arith.constant 224 : index
    %347 = vector.load %arg8[%c96_546, %c224_547] : memref<128x288xf32, #tpu.memory_space<vmem>>, vector<8x32xf32>
    tpu.vector_store %arg8[%c96_546, %c224_547], %346 {strides = array<i32>} : memref<128x288xf32, #tpu.memory_space<vmem>>, vector<8x32xf32>,
    %c16_548 = arith.constant 16 : index
    %c2_549 = arith.constant 2 : index
    %c0_550 = arith.constant 0 : index
    %348 = vector.load %arg1[%c16_548, %c2_549, %c0_550] : memref<20x10x32xf32, #tpu.memory_space<vmem>>, vector<1x8x32xf32>
    %349 = vector.shape_cast %348 : vector<1x8x32xf32> to vector<8x32xf32>
    %c96_551 = arith.constant 96 : index
    %c256_552 = arith.constant 256 : index
    %350 = vector.load %arg8[%c96_551, %c256_552] : memref<128x288xf32, #tpu.memory_space<vmem>>, vector<8x32xf32>
    tpu.vector_store %arg8[%c96_551, %c256_552], %349 {strides = array<i32>} : memref<128x288xf32, #tpu.memory_space<vmem>>, vector<8x32xf32>,
    %c15_553 = arith.constant 15 : index
    %c0_554 = arith.constant 0 : index
    %c0_555 = arith.constant 0 : index
    %351 = vector.load %arg1[%c15_553, %c0_554, %c0_555] : memref<20x10x32xf32, #tpu.memory_space<vmem>>, vector<1x8x32xf32>
    %352 = vector.shape_cast %351 : vector<1x8x32xf32> to vector<8x32xf32>
    %c104 = arith.constant 104 : index
    %c0_556 = arith.constant 0 : index
    %353 = vector.load %arg8[%c104, %c0_556] : memref<128x288xf32, #tpu.memory_space<vmem>>, vector<8x32xf32>
    tpu.vector_store %arg8[%c104, %c0_556], %352 {strides = array<i32>} : memref<128x288xf32, #tpu.memory_space<vmem>>, vector<8x32xf32>,
    %c15_557 = arith.constant 15 : index
    %c1_558 = arith.constant 1 : index
    %c0_559 = arith.constant 0 : index
    %354 = vector.load %arg1[%c15_557, %c1_558, %c0_559] : memref<20x10x32xf32, #tpu.memory_space<vmem>>, vector<1x8x32xf32>
    %355 = vector.shape_cast %354 : vector<1x8x32xf32> to vector<8x32xf32>
    %c104_560 = arith.constant 104 : index
    %c32_561 = arith.constant 32 : index
    %356 = vector.load %arg8[%c104_560, %c32_561] : memref<128x288xf32, #tpu.memory_space<vmem>>, vector<8x32xf32>
    tpu.vector_store %arg8[%c104_560, %c32_561], %355 {strides = array<i32>} : memref<128x288xf32, #tpu.memory_space<vmem>>, vector<8x32xf32>,
    %c15_562 = arith.constant 15 : index
    %c2_563 = arith.constant 2 : index
    %c0_564 = arith.constant 0 : index
    %357 = vector.load %arg1[%c15_562, %c2_563, %c0_564] : memref<20x10x32xf32, #tpu.memory_space<vmem>>, vector<1x8x32xf32>
    %358 = vector.shape_cast %357 : vector<1x8x32xf32> to vector<8x32xf32>
    %c104_565 = arith.constant 104 : index
    %c64_566 = arith.constant 64 : index
    %359 = vector.load %arg8[%c104_565, %c64_566] : memref<128x288xf32, #tpu.memory_space<vmem>>, vector<8x32xf32>
    tpu.vector_store %arg8[%c104_565, %c64_566], %358 {strides = array<i32>} : memref<128x288xf32, #tpu.memory_space<vmem>>, vector<8x32xf32>,
    %c16_567 = arith.constant 16 : index
    %c0_568 = arith.constant 0 : index
    %c0_569 = arith.constant 0 : index
    %360 = vector.load %arg1[%c16_567, %c0_568, %c0_569] : memref<20x10x32xf32, #tpu.memory_space<vmem>>, vector<1x8x32xf32>
    %361 = vector.shape_cast %360 : vector<1x8x32xf32> to vector<8x32xf32>
    %c104_570 = arith.constant 104 : index
    %c96_571 = arith.constant 96 : index
    %362 = vector.load %arg8[%c104_570, %c96_571] : memref<128x288xf32, #tpu.memory_space<vmem>>, vector<8x32xf32>
    tpu.vector_store %arg8[%c104_570, %c96_571], %361 {strides = array<i32>} : memref<128x288xf32, #tpu.memory_space<vmem>>, vector<8x32xf32>,
    %c16_572 = arith.constant 16 : index
    %c1_573 = arith.constant 1 : index
    %c0_574 = arith.constant 0 : index
    %363 = vector.load %arg1[%c16_572, %c1_573, %c0_574] : memref<20x10x32xf32, #tpu.memory_space<vmem>>, vector<1x8x32xf32>
    %364 = vector.shape_cast %363 : vector<1x8x32xf32> to vector<8x32xf32>
    %c104_575 = arith.constant 104 : index
    %c128_576 = arith.constant 128 : index
    %365 = vector.load %arg8[%c104_575, %c128_576] : memref<128x288xf32, #tpu.memory_space<vmem>>, vector<8x32xf32>
    tpu.vector_store %arg8[%c104_575, %c128_576], %364 {strides = array<i32>} : memref<128x288xf32, #tpu.memory_space<vmem>>, vector<8x32xf32>,
    %c16_577 = arith.constant 16 : index
    %c2_578 = arith.constant 2 : index
    %c0_579 = arith.constant 0 : index
    %366 = vector.load %arg1[%c16_577, %c2_578, %c0_579] : memref<20x10x32xf32, #tpu.memory_space<vmem>>, vector<1x8x32xf32>
    %367 = vector.shape_cast %366 : vector<1x8x32xf32> to vector<8x32xf32>
    %c104_580 = arith.constant 104 : index
    %c160_581 = arith.constant 160 : index
    %368 = vector.load %arg8[%c104_580, %c160_581] : memref<128x288xf32, #tpu.memory_space<vmem>>, vector<8x32xf32>
    tpu.vector_store %arg8[%c104_580, %c160_581], %367 {strides = array<i32>} : memref<128x288xf32, #tpu.memory_space<vmem>>, vector<8x32xf32>,
    %c17 = arith.constant 17 : index
    %c0_582 = arith.constant 0 : index
    %c0_583 = arith.constant 0 : index
    %369 = vector.load %arg1[%c17, %c0_582, %c0_583] : memref<20x10x32xf32, #tpu.memory_space<vmem>>, vector<1x8x32xf32>
    %370 = vector.shape_cast %369 : vector<1x8x32xf32> to vector<8x32xf32>
    %c104_584 = arith.constant 104 : index
    %c192_585 = arith.constant 192 : index
    %371 = vector.load %arg8[%c104_584, %c192_585] : memref<128x288xf32, #tpu.memory_space<vmem>>, vector<8x32xf32>
    tpu.vector_store %arg8[%c104_584, %c192_585], %370 {strides = array<i32>} : memref<128x288xf32, #tpu.memory_space<vmem>>, vector<8x32xf32>,
    %c17_586 = arith.constant 17 : index
    %c1_587 = arith.constant 1 : index
    %c0_588 = arith.constant 0 : index
    %372 = vector.load %arg1[%c17_586, %c1_587, %c0_588] : memref<20x10x32xf32, #tpu.memory_space<vmem>>, vector<1x8x32xf32>
    %373 = vector.shape_cast %372 : vector<1x8x32xf32> to vector<8x32xf32>
    %c104_589 = arith.constant 104 : index
    %c224_590 = arith.constant 224 : index
    %374 = vector.load %arg8[%c104_589, %c224_590] : memref<128x288xf32, #tpu.memory_space<vmem>>, vector<8x32xf32>
    tpu.vector_store %arg8[%c104_589, %c224_590], %373 {strides = array<i32>} : memref<128x288xf32, #tpu.memory_space<vmem>>, vector<8x32xf32>,
    %c17_591 = arith.constant 17 : index
    %c2_592 = arith.constant 2 : index
    %c0_593 = arith.constant 0 : index
    %375 = vector.load %arg1[%c17_591, %c2_592, %c0_593] : memref<20x10x32xf32, #tpu.memory_space<vmem>>, vector<1x8x32xf32>
    %376 = vector.shape_cast %375 : vector<1x8x32xf32> to vector<8x32xf32>
    %c104_594 = arith.constant 104 : index
    %c256_595 = arith.constant 256 : index
    %377 = vector.load %arg8[%c104_594, %c256_595] : memref<128x288xf32, #tpu.memory_space<vmem>>, vector<8x32xf32>
    tpu.vector_store %arg8[%c104_594, %c256_595], %376 {strides = array<i32>} : memref<128x288xf32, #tpu.memory_space<vmem>>, vector<8x32xf32>,
    %c16_596 = arith.constant 16 : index
    %c0_597 = arith.constant 0 : index
    %c0_598 = arith.constant 0 : index
    %378 = vector.load %arg1[%c16_596, %c0_597, %c0_598] : memref<20x10x32xf32, #tpu.memory_space<vmem>>, vector<1x8x32xf32>
    %379 = vector.shape_cast %378 : vector<1x8x32xf32> to vector<8x32xf32>
    %c112 = arith.constant 112 : index
    %c0_599 = arith.constant 0 : index
    %380 = vector.load %arg8[%c112, %c0_599] : memref<128x288xf32, #tpu.memory_space<vmem>>, vector<8x32xf32>
    tpu.vector_store %arg8[%c112, %c0_599], %379 {strides = array<i32>} : memref<128x288xf32, #tpu.memory_space<vmem>>, vector<8x32xf32>,
    %c16_600 = arith.constant 16 : index
    %c1_601 = arith.constant 1 : index
    %c0_602 = arith.constant 0 : index
    %381 = vector.load %arg1[%c16_600, %c1_601, %c0_602] : memref<20x10x32xf32, #tpu.memory_space<vmem>>, vector<1x8x32xf32>
    %382 = vector.shape_cast %381 : vector<1x8x32xf32> to vector<8x32xf32>
    %c112_603 = arith.constant 112 : index
    %c32_604 = arith.constant 32 : index
    %383 = vector.load %arg8[%c112_603, %c32_604] : memref<128x288xf32, #tpu.memory_space<vmem>>, vector<8x32xf32>
    tpu.vector_store %arg8[%c112_603, %c32_604], %382 {strides = array<i32>} : memref<128x288xf32, #tpu.memory_space<vmem>>, vector<8x32xf32>,
    %c16_605 = arith.constant 16 : index
    %c2_606 = arith.constant 2 : index
    %c0_607 = arith.constant 0 : index
    %384 = vector.load %arg1[%c16_605, %c2_606, %c0_607] : memref<20x10x32xf32, #tpu.memory_space<vmem>>, vector<1x8x32xf32>
    %385 = vector.shape_cast %384 : vector<1x8x32xf32> to vector<8x32xf32>
    %c112_608 = arith.constant 112 : index
    %c64_609 = arith.constant 64 : index
    %386 = vector.load %arg8[%c112_608, %c64_609] : memref<128x288xf32, #tpu.memory_space<vmem>>, vector<8x32xf32>
    tpu.vector_store %arg8[%c112_608, %c64_609], %385 {strides = array<i32>} : memref<128x288xf32, #tpu.memory_space<vmem>>, vector<8x32xf32>,
    %c17_610 = arith.constant 17 : index
    %c0_611 = arith.constant 0 : index
    %c0_612 = arith.constant 0 : index
    %387 = vector.load %arg1[%c17_610, %c0_611, %c0_612] : memref<20x10x32xf32, #tpu.memory_space<vmem>>, vector<1x8x32xf32>
    %388 = vector.shape_cast %387 : vector<1x8x32xf32> to vector<8x32xf32>
    %c112_613 = arith.constant 112 : index
    %c96_614 = arith.constant 96 : index
    %389 = vector.load %arg8[%c112_613, %c96_614] : memref<128x288xf32, #tpu.memory_space<vmem>>, vector<8x32xf32>
    tpu.vector_store %arg8[%c112_613, %c96_614], %388 {strides = array<i32>} : memref<128x288xf32, #tpu.memory_space<vmem>>, vector<8x32xf32>,
    %c17_615 = arith.constant 17 : index
    %c1_616 = arith.constant 1 : index
    %c0_617 = arith.constant 0 : index
    %390 = vector.load %arg1[%c17_615, %c1_616, %c0_617] : memref<20x10x32xf32, #tpu.memory_space<vmem>>, vector<1x8x32xf32>
    %391 = vector.shape_cast %390 : vector<1x8x32xf32> to vector<8x32xf32>
    %c112_618 = arith.constant 112 : index
    %c128_619 = arith.constant 128 : index
    %392 = vector.load %arg8[%c112_618, %c128_619] : memref<128x288xf32, #tpu.memory_space<vmem>>, vector<8x32xf32>
    tpu.vector_store %arg8[%c112_618, %c128_619], %391 {strides = array<i32>} : memref<128x288xf32, #tpu.memory_space<vmem>>, vector<8x32xf32>,
    %c17_620 = arith.constant 17 : index
    %c2_621 = arith.constant 2 : index
    %c0_622 = arith.constant 0 : index
    %393 = vector.load %arg1[%c17_620, %c2_621, %c0_622] : memref<20x10x32xf32, #tpu.memory_space<vmem>>, vector<1x8x32xf32>
    %394 = vector.shape_cast %393 : vector<1x8x32xf32> to vector<8x32xf32>
    %c112_623 = arith.constant 112 : index
    %c160_624 = arith.constant 160 : index
    %395 = vector.load %arg8[%c112_623, %c160_624] : memref<128x288xf32, #tpu.memory_space<vmem>>, vector<8x32xf32>
    tpu.vector_store %arg8[%c112_623, %c160_624], %394 {strides = array<i32>} : memref<128x288xf32, #tpu.memory_space<vmem>>, vector<8x32xf32>,
    %c18 = arith.constant 18 : index
    %c0_625 = arith.constant 0 : index
    %c0_626 = arith.constant 0 : index
    %396 = vector.load %arg1[%c18, %c0_625, %c0_626] : memref<20x10x32xf32, #tpu.memory_space<vmem>>, vector<1x8x32xf32>
    %397 = vector.shape_cast %396 : vector<1x8x32xf32> to vector<8x32xf32>
    %c112_627 = arith.constant 112 : index
    %c192_628 = arith.constant 192 : index
    %398 = vector.load %arg8[%c112_627, %c192_628] : memref<128x288xf32, #tpu.memory_space<vmem>>, vector<8x32xf32>
    tpu.vector_store %arg8[%c112_627, %c192_628], %397 {strides = array<i32>} : memref<128x288xf32, #tpu.memory_space<vmem>>, vector<8x32xf32>,
    %c18_629 = arith.constant 18 : index
    %c1_630 = arith.constant 1 : index
    %c0_631 = arith.constant 0 : index
    %399 = vector.load %arg1[%c18_629, %c1_630, %c0_631] : memref<20x10x32xf32, #tpu.memory_space<vmem>>, vector<1x8x32xf32>
    %400 = vector.shape_cast %399 : vector<1x8x32xf32> to vector<8x32xf32>
    %c112_632 = arith.constant 112 : index
    %c224_633 = arith.constant 224 : index
    %401 = vector.load %arg8[%c112_632, %c224_633] : memref<128x288xf32, #tpu.memory_space<vmem>>, vector<8x32xf32>
    tpu.vector_store %arg8[%c112_632, %c224_633], %400 {strides = array<i32>} : memref<128x288xf32, #tpu.memory_space<vmem>>, vector<8x32xf32>,
    %c18_634 = arith.constant 18 : index
    %c2_635 = arith.constant 2 : index
    %c0_636 = arith.constant 0 : index
    %402 = vector.load %arg1[%c18_634, %c2_635, %c0_636] : memref<20x10x32xf32, #tpu.memory_space<vmem>>, vector<1x8x32xf32>
    %403 = vector.shape_cast %402 : vector<1x8x32xf32> to vector<8x32xf32>
    %c112_637 = arith.constant 112 : index
    %c256_638 = arith.constant 256 : index
    %404 = vector.load %arg8[%c112_637, %c256_638] : memref<128x288xf32, #tpu.memory_space<vmem>>, vector<8x32xf32>
    tpu.vector_store %arg8[%c112_637, %c256_638], %403 {strides = array<i32>} : memref<128x288xf32, #tpu.memory_space<vmem>>, vector<8x32xf32>,
    %c17_639 = arith.constant 17 : index
    %c0_640 = arith.constant 0 : index
    %c0_641 = arith.constant 0 : index
    %405 = vector.load %arg1[%c17_639, %c0_640, %c0_641] : memref<20x10x32xf32, #tpu.memory_space<vmem>>, vector<1x8x32xf32>
    %406 = vector.shape_cast %405 : vector<1x8x32xf32> to vector<8x32xf32>
    %c120 = arith.constant 120 : index
    %c0_642 = arith.constant 0 : index
    %407 = vector.load %arg8[%c120, %c0_642] : memref<128x288xf32, #tpu.memory_space<vmem>>, vector<8x32xf32>
    tpu.vector_store %arg8[%c120, %c0_642], %406 {strides = array<i32>} : memref<128x288xf32, #tpu.memory_space<vmem>>, vector<8x32xf32>,
    %c17_643 = arith.constant 17 : index
    %c1_644 = arith.constant 1 : index
    %c0_645 = arith.constant 0 : index
    %408 = vector.load %arg1[%c17_643, %c1_644, %c0_645] : memref<20x10x32xf32, #tpu.memory_space<vmem>>, vector<1x8x32xf32>
    %409 = vector.shape_cast %408 : vector<1x8x32xf32> to vector<8x32xf32>
    %c120_646 = arith.constant 120 : index
    %c32_647 = arith.constant 32 : index
    %410 = vector.load %arg8[%c120_646, %c32_647] : memref<128x288xf32, #tpu.memory_space<vmem>>, vector<8x32xf32>
    tpu.vector_store %arg8[%c120_646, %c32_647], %409 {strides = array<i32>} : memref<128x288xf32, #tpu.memory_space<vmem>>, vector<8x32xf32>,
    %c17_648 = arith.constant 17 : index
    %c2_649 = arith.constant 2 : index
    %c0_650 = arith.constant 0 : index
    %411 = vector.load %arg1[%c17_648, %c2_649, %c0_650] : memref<20x10x32xf32, #tpu.memory_space<vmem>>, vector<1x8x32xf32>
    %412 = vector.shape_cast %411 : vector<1x8x32xf32> to vector<8x32xf32>
    %c120_651 = arith.constant 120 : index
    %c64_652 = arith.constant 64 : index
    %413 = vector.load %arg8[%c120_651, %c64_652] : memref<128x288xf32, #tpu.memory_space<vmem>>, vector<8x32xf32>
    tpu.vector_store %arg8[%c120_651, %c64_652], %412 {strides = array<i32>} : memref<128x288xf32, #tpu.memory_space<vmem>>, vector<8x32xf32>,
    %c18_653 = arith.constant 18 : index
    %c0_654 = arith.constant 0 : index
    %c0_655 = arith.constant 0 : index
    %414 = vector.load %arg1[%c18_653, %c0_654, %c0_655] : memref<20x10x32xf32, #tpu.memory_space<vmem>>, vector<1x8x32xf32>
    %415 = vector.shape_cast %414 : vector<1x8x32xf32> to vector<8x32xf32>
    %c120_656 = arith.constant 120 : index
    %c96_657 = arith.constant 96 : index
    %416 = vector.load %arg8[%c120_656, %c96_657] : memref<128x288xf32, #tpu.memory_space<vmem>>, vector<8x32xf32>
    tpu.vector_store %arg8[%c120_656, %c96_657], %415 {strides = array<i32>} : memref<128x288xf32, #tpu.memory_space<vmem>>, vector<8x32xf32>,
    %c18_658 = arith.constant 18 : index
    %c1_659 = arith.constant 1 : index
    %c0_660 = arith.constant 0 : index
    %417 = vector.load %arg1[%c18_658, %c1_659, %c0_660] : memref<20x10x32xf32, #tpu.memory_space<vmem>>, vector<1x8x32xf32>
    %418 = vector.shape_cast %417 : vector<1x8x32xf32> to vector<8x32xf32>
    %c120_661 = arith.constant 120 : index
    %c128_662 = arith.constant 128 : index
    %419 = vector.load %arg8[%c120_661, %c128_662] : memref<128x288xf32, #tpu.memory_space<vmem>>, vector<8x32xf32>
    tpu.vector_store %arg8[%c120_661, %c128_662], %418 {strides = array<i32>} : memref<128x288xf32, #tpu.memory_space<vmem>>, vector<8x32xf32>,
    %c18_663 = arith.constant 18 : index
    %c2_664 = arith.constant 2 : index
    %c0_665 = arith.constant 0 : index
    %420 = vector.load %arg1[%c18_663, %c2_664, %c0_665] : memref<20x10x32xf32, #tpu.memory_space<vmem>>, vector<1x8x32xf32>
    %421 = vector.shape_cast %420 : vector<1x8x32xf32> to vector<8x32xf32>
    %c120_666 = arith.constant 120 : index
    %c160_667 = arith.constant 160 : index
    %422 = vector.load %arg8[%c120_666, %c160_667] : memref<128x288xf32, #tpu.memory_space<vmem>>, vector<8x32xf32>
    tpu.vector_store %arg8[%c120_666, %c160_667], %421 {strides = array<i32>} : memref<128x288xf32, #tpu.memory_space<vmem>>, vector<8x32xf32>,
    %c19 = arith.constant 19 : index
    %c0_668 = arith.constant 0 : index
    %c0_669 = arith.constant 0 : index
    %423 = vector.load %arg1[%c19, %c0_668, %c0_669] : memref<20x10x32xf32, #tpu.memory_space<vmem>>, vector<1x8x32xf32>
    %424 = vector.shape_cast %423 : vector<1x8x32xf32> to vector<8x32xf32>
    %c120_670 = arith.constant 120 : index
    %c192_671 = arith.constant 192 : index
    %425 = vector.load %arg8[%c120_670, %c192_671] : memref<128x288xf32, #tpu.memory_space<vmem>>, vector<8x32xf32>
    tpu.vector_store %arg8[%c120_670, %c192_671], %424 {strides = array<i32>} : memref<128x288xf32, #tpu.memory_space<vmem>>, vector<8x32xf32>,
    %c19_672 = arith.constant 19 : index
    %c1_673 = arith.constant 1 : index
    %c0_674 = arith.constant 0 : index
    %426 = vector.load %arg1[%c19_672, %c1_673, %c0_674] : memref<20x10x32xf32, #tpu.memory_space<vmem>>, vector<1x8x32xf32>
    %427 = vector.shape_cast %426 : vector<1x8x32xf32> to vector<8x32xf32>
    %c120_675 = arith.constant 120 : index
    %c224_676 = arith.constant 224 : index
    %428 = vector.load %arg8[%c120_675, %c224_676] : memref<128x288xf32, #tpu.memory_space<vmem>>, vector<8x32xf32>
    tpu.vector_store %arg8[%c120_675, %c224_676], %427 {strides = array<i32>} : memref<128x288xf32, #tpu.memory_space<vmem>>, vector<8x32xf32>,
    %c19_677 = arith.constant 19 : index
    %c2_678 = arith.constant 2 : index
    %c0_679 = arith.constant 0 : index
    %429 = vector.load %arg1[%c19_677, %c2_678, %c0_679] : memref<20x10x32xf32, #tpu.memory_space<vmem>>, vector<1x8x32xf32>
    %430 = vector.shape_cast %429 : vector<1x8x32xf32> to vector<8x32xf32>
    %c120_680 = arith.constant 120 : index
    %c256_681 = arith.constant 256 : index
    %431 = vector.load %arg8[%c120_680, %c256_681] : memref<128x288xf32, #tpu.memory_space<vmem>>, vector<8x32xf32>
    tpu.vector_store %arg8[%c120_680, %c256_681], %430 {strides = array<i32>} : memref<128x288xf32, #tpu.memory_space<vmem>>, vector<8x32xf32>,
    %c0_682 = arith.constant 0 : index
    %c0_683 = arith.constant 0 : index
    %432 = vector.load %arg2[%c0_682, %c0_683] : memref<288x128xbf16, #tpu.memory_space<vmem>>, vector<288x128xbf16>
    %c0_684 = arith.constant 0 : index
    %c0_685 = arith.constant 0 : index
    %433 = vector.load %arg3[%c0_684, %c0_685] : memref<1x128xf32, #tpu.memory_space<vmem>>, vector<1x128xf32>
    %cst = arith.constant 0.000000e+00 : f32
    %434 = vector.broadcast %cst : f32 to vector<1x128xf32>
    %cst_686 = arith.constant 0.000000e+00 : f32
    %435 = vector.broadcast %cst_686 : f32 to vector<1x128xf32>
    %c0_i32 = arith.constant 0 : i32
    %c128_i32 = arith.constant 128 : i32
    %436 = arith.muli %c0_i32, %c128_i32 : i32
    %437 = tpu.assume_multiple %436, 128 : i32
    %438 = arith.index_cast %437 : i32 to index
    %c0_687 = arith.constant 0 : index
    %439 = vector.load %arg8[%438, %c0_687] : memref<128x288xf32, #tpu.memory_space<vmem>>, vector<128x288xf32>
    %440 = arith.truncf %439 : vector<128x288xf32> to vector<128x288xbf16>
    %cst_688 = arith.constant dense<0.000000e+00> : vector<128x128xf32>
    %441 = tpu.matmul %440, %432, %cst_688 {dimension_numbers = #tpu.dot_dimension_numbers<[1], [0], [0], [1], [0, 0, 1, 1], [], []>} : vector<128x288xbf16>, vector<288x128xbf16>, vector<128x128xf32> -> vector<128x128xf32>
    %442 = vector.broadcast %433 : vector<1x128xf32> to vector<128x128xf32>
    %443 = arith.addf %441, %442 : vector<128x128xf32>
    %444 = arith.index_cast %437 : i32 to index
    %c0_689 = arith.constant 0 : index
    %445 = vector.load %arg9[%444, %c0_689] : memref<128x128xf32, #tpu.memory_space<vmem>>, vector<128x128xf32>
    tpu.vector_store %arg9[%444, %c0_689], %443 {strides = array<i32>} : memref<128x128xf32, #tpu.memory_space<vmem>>, vector<128x128xf32>,
    %cst_690 = arith.constant dense<0.000000e+00> : vector<128xf32>
    %446 = vector.multi_reduction <add>, %443, %cst_690 [0] : vector<128x128xf32> to vector<128xf32>
    %447 = vector.shape_cast %446 : vector<128xf32> to vector<1x128xf32>
    %448 = arith.addf %434, %447 : vector<1x128xf32>
    %449 = arith.mulf %443, %443 : vector<128x128xf32>
    %cst_691 = arith.constant dense<0.000000e+00> : vector<128xf32>
    %450 = vector.multi_reduction <add>, %449, %cst_691 [0] : vector<128x128xf32> to vector<128xf32>
    %451 = vector.shape_cast %450 : vector<128xf32> to vector<1x128xf32>
    %452 = arith.addf %435, %451 : vector<1x128xf32>
    %c1_i32 = arith.constant 1 : i32
    %c0_692 = arith.constant 0 : index
    %c0_693 = arith.constant 0 : index
    %453 = vector.load %arg6[%c0_692, %c0_693] : memref<128x128xf32, #tpu.memory_space<vmem>>, vector<128x128xf32>
    %cst_694 = arith.constant dense<0.000000e+00> : vector<1x128xf32>
    %454 = tpu.matmul %448, %453, %cst_694 {dimension_numbers = #tpu.dot_dimension_numbers<[1], [0], [0], [1], [0, 0, 1, 1], [], []>} : vector<1x128xf32>, vector<128x128xf32>, vector<1x128xf32> -> vector<1x128xf32>
    %c0_695 = arith.constant 0 : index
    %c0_696 = arith.constant 0 : index
    %455 = vector.load %arg6[%c0_695, %c0_696] : memref<128x128xf32, #tpu.memory_space<vmem>>, vector<128x128xf32>
    %cst_697 = arith.constant dense<0.000000e+00> : vector<1x128xf32>
    %456 = tpu.matmul %452, %455, %cst_697 {dimension_numbers = #tpu.dot_dimension_numbers<[1], [0], [0], [1], [0, 0, 1, 1], [], []>} : vector<1x128xf32>, vector<128x128xf32>, vector<1x128xf32> -> vector<1x128xf32>
    %457 = arith.mulf %454, %454 : vector<1x128xf32>
    %458 = arith.subf %456, %457 : vector<1x128xf32>
    %c0_698 = arith.constant 0 : index
    %c0_699 = arith.constant 0 : index
    %459 = vector.load %arg4[%c0_698, %c0_699] : memref<1x128xf32, #tpu.memory_space<vmem>>, vector<1x128xf32>
    %cst_700 = arith.constant 9.99999974E-6 : f32
    %460 = vector.broadcast %cst_700 : f32 to vector<1x128xf32>
    %461 = arith.addf %458, %460 : vector<1x128xf32>
    %462 = math.rsqrt %461 : vector<1x128xf32>
    %463 = arith.mulf %459, %462 : vector<1x128xf32>
    %c0_701 = arith.constant 0 : index
    %c0_702 = arith.constant 0 : index
    %464 = vector.load %arg5[%c0_701, %c0_702] : memref<1x128xf32, #tpu.memory_space<vmem>>, vector<1x128xf32>
    %465 = arith.mulf %454, %463 : vector<1x128xf32>
    %466 = arith.subf %464, %465 : vector<1x128xf32>
    %c0_i32_703 = arith.constant 0 : i32
    %c128_i32_704 = arith.constant 128 : i32
    %467 = arith.muli %c0_i32_703, %c128_i32_704 : i32
    %468 = tpu.assume_multiple %467, 128 : i32
    %469 = arith.index_cast %468 : i32 to index
    %c0_705 = arith.constant 0 : index
    %470 = vector.load %arg9[%469, %c0_705] : memref<128x128xf32, #tpu.memory_space<vmem>>, vector<128x128xf32>
    %471 = vector.broadcast %463 : vector<1x128xf32> to vector<128x128xf32>
    %472 = arith.mulf %470, %471 : vector<128x128xf32>
    %473 = vector.broadcast %466 : vector<1x128xf32> to vector<128x128xf32>
    %474 = arith.addf %472, %473 : vector<128x128xf32>
    %cst_706 = arith.constant 0.000000e+00 : f32
    %475 = vector.broadcast %cst_706 : f32 to vector<128x128xf32>
    %476 = arith.cmpf oge, %474, %475 : vector<128x128xf32>
    %cst_707 = arith.constant 2.000000e-01 : f32
    %477 = vector.broadcast %cst_707 : f32 to vector<128x128xf32>
    %478 = arith.mulf %477, %474 : vector<128x128xf32>
    %479 = arith.select %476, %474, %478 : vector<128x128xi1>, vector<128x128xf32>
    %480 = arith.index_cast %468 : i32 to index
    %c0_708 = arith.constant 0 : index
    %481 = vector.load %arg7[%480, %c0_708] : memref<128x128xf32, #tpu.memory_space<vmem>>, vector<128x128xf32>
    tpu.vector_store %arg7[%480, %c0_708], %479 {strides = array<i32>} : memref<128x128xf32, #tpu.memory_space<vmem>>, vector<128x128xf32>,
    %c1_i32_709 = arith.constant 1 : i32
    return
  }
  func.func @transform_0(%arg0: i32) -> (i32, i32, i32) {
    %c0_i32 = arith.constant 0 : i32
    %c0_i32_0 = arith.constant 0 : i32
    %c0_i32_1 = arith.constant 0 : i32
    %c0_i32_2 = arith.constant 0 : i32
    return %c0_i32, %c0_i32_0, %c0_i32_1 : i32, i32, i32
  }
  func.func @transform_1(%arg0: i32) -> (i32, i32) {
    %c0_i32 = arith.constant 0 : i32
    %c0_i32_0 = arith.constant 0 : i32
    %c0_i32_1 = arith.constant 0 : i32
    return %c0_i32, %c0_i32_0 : i32, i32
  }
  func.func @transform_2(%arg0: i32) -> (i32, i32) {
    %c0_i32 = arith.constant 0 : i32
    %c0_i32_0 = arith.constant 0 : i32
    %c0_i32_1 = arith.constant 0 : i32
    return %c0_i32, %c0_i32_0 : i32, i32
  }
  func.func @transform_3(%arg0: i32) -> (i32, i32) {
    %c0_i32 = arith.constant 0 : i32
    %c0_i32_0 = arith.constant 0 : i32
    %c0_i32_1 = arith.constant 0 : i32
    return %c0_i32, %c0_i32_0 : i32, i32
  }
  func.func @transform_4(%arg0: i32) -> (i32, i32) {
    %c0_i32 = arith.constant 0 : i32
    %c0_i32_0 = arith.constant 0 : i32
    %c0_i32_1 = arith.constant 0 : i32
    return %c0_i32, %c0_i32_0 : i32, i32
  }
  func.func @transform_5(%arg0: i32) -> (i32, i32) {
    %c0_i32 = arith.constant 0 : i32
    %c0_i32_0 = arith.constant 0 : i32
    %c0_i32_1 = arith.constant 0 : i32
    return %c0_i32, %c0_i32_0 : i32, i32
  }
  func.func @transform_6(%arg0: i32) -> (i32, i32) {
    %c0_i32 = arith.constant 0 : i32
    %c0_i32_0 = arith.constant 0 : i32
    %c0_i32_1 = arith.constant 0 : i32
    return %c0_i32, %c0_i32_0 : i32, i32
  }
}

module attributes {stable_mosaic.version = 11 : i64} {
  func.func @_deconv_bn_lrelu_kernel(%arg0: i32, %arg1: memref<36x18x32xf32, #tpu.memory_space<vmem>>, %arg2: memref<288x128xbf16, #tpu.memory_space<vmem>>, %arg3: memref<1x128xf32, #tpu.memory_space<vmem>>, %arg4: memref<1x128xf32, #tpu.memory_space<vmem>>, %arg5: memref<1x128xf32, #tpu.memory_space<vmem>>, %arg6: memref<128x128xf32, #tpu.memory_space<vmem>>, %arg7: memref<512x128xf32, #tpu.memory_space<vmem>>, %arg8: memref<512x288xf32, #tpu.memory_space<vmem>>, %arg9: memref<512x128xf32, #tpu.memory_space<vmem>>) attributes {dimension_semantics = [#tpu.dimension_semantics<arbitrary>], iteration_bounds = array<i64: 1>, scalar_prefetch = 0 : i64, scratch_operands = 2 : i64, tpu.core_type = #tpu.core_type<tc>, window_params = [{pipeline_mode = #tpu.pipeline_mode<synchronous>, transform_indices = @transform_0, window_bounds = array<i64: 36, 18, 32>}, {pipeline_mode = #tpu.pipeline_mode<synchronous>, transform_indices = @transform_1, window_bounds = array<i64: 288, 128>}, {pipeline_mode = #tpu.pipeline_mode<synchronous>, transform_indices = @transform_2, window_bounds = array<i64: 1, 128>}, {pipeline_mode = #tpu.pipeline_mode<synchronous>, transform_indices = @transform_3, window_bounds = array<i64: 1, 128>}, {pipeline_mode = #tpu.pipeline_mode<synchronous>, transform_indices = @transform_4, window_bounds = array<i64: 1, 128>}, {pipeline_mode = #tpu.pipeline_mode<synchronous>, transform_indices = @transform_5, window_bounds = array<i64: 128, 128>}, {pipeline_mode = #tpu.pipeline_mode<synchronous>, transform_indices = @transform_6, window_bounds = array<i64: 512, 128>}]} {
    %c0_i32 = arith.constant 0 : i32
    %c16_i32 = arith.constant 16 : i32
    %0 = arith.addi %c0_i32, %c16_i32 : i32
    %c1_i32 = arith.constant 1 : i32
    scf.for %arg10 = %c0_i32 to %0 step %c1_i32  : i32 {
      %c16_i32_27 = arith.constant 16 : i32
      %23 = arith.muli %arg10, %c16_i32_27 : i32
      %c0_i32_28 = arith.constant 0 : i32
      %24 = arith.addi %c0_i32_28, %23 : i32
      %25 = tpu.assume_multiple %24, 8 : i32
      %c0_i32_29 = arith.constant 0 : i32
      %26 = arith.addi %c0_i32_29, %arg10 : i32
      %c0_i32_30 = arith.constant 0 : i32
      %27 = arith.addi %26, %c0_i32_30 : i32
      %28 = arith.index_cast %27 : i32 to index
      %c0_31 = arith.constant 0 : index
      %c0_32 = arith.constant 0 : index
      %29 = vector.load %arg1[%28, %c0_31, %c0_32] : memref<36x18x32xf32, #tpu.memory_space<vmem>>, vector<1x16x32xf32>
      %30 = vector.shape_cast %29 : vector<1x16x32xf32> to vector<16x32xf32>
      %31 = arith.index_cast %25 : i32 to index
      %c0_33 = arith.constant 0 : index
      %32 = vector.load %arg8[%31, %c0_33] : memref<512x288xf32, #tpu.memory_space<vmem>>, vector<16x32xf32>
      tpu.vector_store %arg8[%31, %c0_33], %30 {strides = array<i32>} : memref<512x288xf32, #tpu.memory_space<vmem>>, vector<16x32xf32>,
      %c0_i32_34 = arith.constant 0 : i32
      %33 = arith.addi %c0_i32_34, %arg10 : i32
      %c0_i32_35 = arith.constant 0 : i32
      %34 = arith.addi %33, %c0_i32_35 : i32
      %35 = arith.index_cast %34 : i32 to index
      %c1 = arith.constant 1 : index
      %c0_36 = arith.constant 0 : index
      %36 = vector.load %arg1[%35, %c1, %c0_36] : memref<36x18x32xf32, #tpu.memory_space<vmem>>, vector<1x16x32xf32>
      %37 = vector.shape_cast %36 : vector<1x16x32xf32> to vector<16x32xf32>
      %38 = arith.index_cast %25 : i32 to index
      %c32 = arith.constant 32 : index
      %39 = vector.load %arg8[%38, %c32] : memref<512x288xf32, #tpu.memory_space<vmem>>, vector<16x32xf32>
      tpu.vector_store %arg8[%38, %c32], %37 {strides = array<i32>} : memref<512x288xf32, #tpu.memory_space<vmem>>, vector<16x32xf32>,
      %c0_i32_37 = arith.constant 0 : i32
      %40 = arith.addi %c0_i32_37, %arg10 : i32
      %c0_i32_38 = arith.constant 0 : i32
      %41 = arith.addi %40, %c0_i32_38 : i32
      %42 = arith.index_cast %41 : i32 to index
      %c2 = arith.constant 2 : index
      %c0_39 = arith.constant 0 : index
      %43 = vector.load %arg1[%42, %c2, %c0_39] : memref<36x18x32xf32, #tpu.memory_space<vmem>>, vector<1x16x32xf32>
      %44 = vector.shape_cast %43 : vector<1x16x32xf32> to vector<16x32xf32>
      %45 = arith.index_cast %25 : i32 to index
      %c64 = arith.constant 64 : index
      %46 = vector.load %arg8[%45, %c64] : memref<512x288xf32, #tpu.memory_space<vmem>>, vector<16x32xf32>
      tpu.vector_store %arg8[%45, %c64], %44 {strides = array<i32>} : memref<512x288xf32, #tpu.memory_space<vmem>>, vector<16x32xf32>,
      %c0_i32_40 = arith.constant 0 : i32
      %47 = arith.addi %c0_i32_40, %arg10 : i32
      %c1_i32_41 = arith.constant 1 : i32
      %48 = arith.addi %47, %c1_i32_41 : i32
      %49 = arith.index_cast %48 : i32 to index
      %c0_42 = arith.constant 0 : index
      %c0_43 = arith.constant 0 : index
      %50 = vector.load %arg1[%49, %c0_42, %c0_43] : memref<36x18x32xf32, #tpu.memory_space<vmem>>, vector<1x16x32xf32>
      %51 = vector.shape_cast %50 : vector<1x16x32xf32> to vector<16x32xf32>
      %52 = arith.index_cast %25 : i32 to index
      %c96 = arith.constant 96 : index
      %53 = vector.load %arg8[%52, %c96] : memref<512x288xf32, #tpu.memory_space<vmem>>, vector<16x32xf32>
      tpu.vector_store %arg8[%52, %c96], %51 {strides = array<i32>} : memref<512x288xf32, #tpu.memory_space<vmem>>, vector<16x32xf32>,
      %c0_i32_44 = arith.constant 0 : i32
      %54 = arith.addi %c0_i32_44, %arg10 : i32
      %c1_i32_45 = arith.constant 1 : i32
      %55 = arith.addi %54, %c1_i32_45 : i32
      %56 = arith.index_cast %55 : i32 to index
      %c1_46 = arith.constant 1 : index
      %c0_47 = arith.constant 0 : index
      %57 = vector.load %arg1[%56, %c1_46, %c0_47] : memref<36x18x32xf32, #tpu.memory_space<vmem>>, vector<1x16x32xf32>
      %58 = vector.shape_cast %57 : vector<1x16x32xf32> to vector<16x32xf32>
      %59 = arith.index_cast %25 : i32 to index
      %c128 = arith.constant 128 : index
      %60 = vector.load %arg8[%59, %c128] : memref<512x288xf32, #tpu.memory_space<vmem>>, vector<16x32xf32>
      tpu.vector_store %arg8[%59, %c128], %58 {strides = array<i32>} : memref<512x288xf32, #tpu.memory_space<vmem>>, vector<16x32xf32>,
      %c0_i32_48 = arith.constant 0 : i32
      %61 = arith.addi %c0_i32_48, %arg10 : i32
      %c1_i32_49 = arith.constant 1 : i32
      %62 = arith.addi %61, %c1_i32_49 : i32
      %63 = arith.index_cast %62 : i32 to index
      %c2_50 = arith.constant 2 : index
      %c0_51 = arith.constant 0 : index
      %64 = vector.load %arg1[%63, %c2_50, %c0_51] : memref<36x18x32xf32, #tpu.memory_space<vmem>>, vector<1x16x32xf32>
      %65 = vector.shape_cast %64 : vector<1x16x32xf32> to vector<16x32xf32>
      %66 = arith.index_cast %25 : i32 to index
      %c160 = arith.constant 160 : index
      %67 = vector.load %arg8[%66, %c160] : memref<512x288xf32, #tpu.memory_space<vmem>>, vector<16x32xf32>
      tpu.vector_store %arg8[%66, %c160], %65 {strides = array<i32>} : memref<512x288xf32, #tpu.memory_space<vmem>>, vector<16x32xf32>,
      %c0_i32_52 = arith.constant 0 : i32
      %68 = arith.addi %c0_i32_52, %arg10 : i32
      %c2_i32 = arith.constant 2 : i32
      %69 = arith.addi %68, %c2_i32 : i32
      %70 = arith.index_cast %69 : i32 to index
      %c0_53 = arith.constant 0 : index
      %c0_54 = arith.constant 0 : index
      %71 = vector.load %arg1[%70, %c0_53, %c0_54] : memref<36x18x32xf32, #tpu.memory_space<vmem>>, vector<1x16x32xf32>
      %72 = vector.shape_cast %71 : vector<1x16x32xf32> to vector<16x32xf32>
      %73 = arith.index_cast %25 : i32 to index
      %c192 = arith.constant 192 : index
      %74 = vector.load %arg8[%73, %c192] : memref<512x288xf32, #tpu.memory_space<vmem>>, vector<16x32xf32>
      tpu.vector_store %arg8[%73, %c192], %72 {strides = array<i32>} : memref<512x288xf32, #tpu.memory_space<vmem>>, vector<16x32xf32>,
      %c0_i32_55 = arith.constant 0 : i32
      %75 = arith.addi %c0_i32_55, %arg10 : i32
      %c2_i32_56 = arith.constant 2 : i32
      %76 = arith.addi %75, %c2_i32_56 : i32
      %77 = arith.index_cast %76 : i32 to index
      %c1_57 = arith.constant 1 : index
      %c0_58 = arith.constant 0 : index
      %78 = vector.load %arg1[%77, %c1_57, %c0_58] : memref<36x18x32xf32, #tpu.memory_space<vmem>>, vector<1x16x32xf32>
      %79 = vector.shape_cast %78 : vector<1x16x32xf32> to vector<16x32xf32>
      %80 = arith.index_cast %25 : i32 to index
      %c224 = arith.constant 224 : index
      %81 = vector.load %arg8[%80, %c224] : memref<512x288xf32, #tpu.memory_space<vmem>>, vector<16x32xf32>
      tpu.vector_store %arg8[%80, %c224], %79 {strides = array<i32>} : memref<512x288xf32, #tpu.memory_space<vmem>>, vector<16x32xf32>,
      %c0_i32_59 = arith.constant 0 : i32
      %82 = arith.addi %c0_i32_59, %arg10 : i32
      %c2_i32_60 = arith.constant 2 : i32
      %83 = arith.addi %82, %c2_i32_60 : i32
      %84 = arith.index_cast %83 : i32 to index
      %c2_61 = arith.constant 2 : index
      %c0_62 = arith.constant 0 : index
      %85 = vector.load %arg1[%84, %c2_61, %c0_62] : memref<36x18x32xf32, #tpu.memory_space<vmem>>, vector<1x16x32xf32>
      %86 = vector.shape_cast %85 : vector<1x16x32xf32> to vector<16x32xf32>
      %87 = arith.index_cast %25 : i32 to index
      %c256 = arith.constant 256 : index
      %88 = vector.load %arg8[%87, %c256] : memref<512x288xf32, #tpu.memory_space<vmem>>, vector<16x32xf32>
      tpu.vector_store %arg8[%87, %c256], %86 {strides = array<i32>} : memref<512x288xf32, #tpu.memory_space<vmem>>, vector<16x32xf32>,
    }
    %c16_i32_0 = arith.constant 16 : i32
    %c0_i32_1 = arith.constant 0 : i32
    %c16_i32_2 = arith.constant 16 : i32
    %1 = arith.addi %c0_i32_1, %c16_i32_2 : i32
    %c1_i32_3 = arith.constant 1 : i32
    scf.for %arg10 = %c0_i32_1 to %1 step %c1_i32_3  : i32 {
      %c16_i32_27 = arith.constant 16 : i32
      %23 = arith.muli %arg10, %c16_i32_27 : i32
      %c256_i32 = arith.constant 256 : i32
      %24 = arith.addi %c256_i32, %23 : i32
      %25 = tpu.assume_multiple %24, 8 : i32
      %c18_i32 = arith.constant 18 : i32
      %26 = arith.addi %c18_i32, %arg10 : i32
      %c0_i32_28 = arith.constant 0 : i32
      %27 = arith.addi %26, %c0_i32_28 : i32
      %28 = arith.index_cast %27 : i32 to index
      %c0_29 = arith.constant 0 : index
      %c0_30 = arith.constant 0 : index
      %29 = vector.load %arg1[%28, %c0_29, %c0_30] : memref<36x18x32xf32, #tpu.memory_space<vmem>>, vector<1x16x32xf32>
      %30 = vector.shape_cast %29 : vector<1x16x32xf32> to vector<16x32xf32>
      %31 = arith.index_cast %25 : i32 to index
      %c0_31 = arith.constant 0 : index
      %32 = vector.load %arg8[%31, %c0_31] : memref<512x288xf32, #tpu.memory_space<vmem>>, vector<16x32xf32>
      tpu.vector_store %arg8[%31, %c0_31], %30 {strides = array<i32>} : memref<512x288xf32, #tpu.memory_space<vmem>>, vector<16x32xf32>,
      %c18_i32_32 = arith.constant 18 : i32
      %33 = arith.addi %c18_i32_32, %arg10 : i32
      %c0_i32_33 = arith.constant 0 : i32
      %34 = arith.addi %33, %c0_i32_33 : i32
      %35 = arith.index_cast %34 : i32 to index
      %c1 = arith.constant 1 : index
      %c0_34 = arith.constant 0 : index
      %36 = vector.load %arg1[%35, %c1, %c0_34] : memref<36x18x32xf32, #tpu.memory_space<vmem>>, vector<1x16x32xf32>
      %37 = vector.shape_cast %36 : vector<1x16x32xf32> to vector<16x32xf32>
      %38 = arith.index_cast %25 : i32 to index
      %c32 = arith.constant 32 : index
      %39 = vector.load %arg8[%38, %c32] : memref<512x288xf32, #tpu.memory_space<vmem>>, vector<16x32xf32>
      tpu.vector_store %arg8[%38, %c32], %37 {strides = array<i32>} : memref<512x288xf32, #tpu.memory_space<vmem>>, vector<16x32xf32>,
      %c18_i32_35 = arith.constant 18 : i32
      %40 = arith.addi %c18_i32_35, %arg10 : i32
      %c0_i32_36 = arith.constant 0 : i32
      %41 = arith.addi %40, %c0_i32_36 : i32
      %42 = arith.index_cast %41 : i32 to index
      %c2 = arith.constant 2 : index
      %c0_37 = arith.constant 0 : index
      %43 = vector.load %arg1[%42, %c2, %c0_37] : memref<36x18x32xf32, #tpu.memory_space<vmem>>, vector<1x16x32xf32>
      %44 = vector.shape_cast %43 : vector<1x16x32xf32> to vector<16x32xf32>
      %45 = arith.index_cast %25 : i32 to index
      %c64 = arith.constant 64 : index
      %46 = vector.load %arg8[%45, %c64] : memref<512x288xf32, #tpu.memory_space<vmem>>, vector<16x32xf32>
      tpu.vector_store %arg8[%45, %c64], %44 {strides = array<i32>} : memref<512x288xf32, #tpu.memory_space<vmem>>, vector<16x32xf32>,
      %c18_i32_38 = arith.constant 18 : i32
      %47 = arith.addi %c18_i32_38, %arg10 : i32
      %c1_i32_39 = arith.constant 1 : i32
      %48 = arith.addi %47, %c1_i32_39 : i32
      %49 = arith.index_cast %48 : i32 to index
      %c0_40 = arith.constant 0 : index
      %c0_41 = arith.constant 0 : index
      %50 = vector.load %arg1[%49, %c0_40, %c0_41] : memref<36x18x32xf32, #tpu.memory_space<vmem>>, vector<1x16x32xf32>
      %51 = vector.shape_cast %50 : vector<1x16x32xf32> to vector<16x32xf32>
      %52 = arith.index_cast %25 : i32 to index
      %c96 = arith.constant 96 : index
      %53 = vector.load %arg8[%52, %c96] : memref<512x288xf32, #tpu.memory_space<vmem>>, vector<16x32xf32>
      tpu.vector_store %arg8[%52, %c96], %51 {strides = array<i32>} : memref<512x288xf32, #tpu.memory_space<vmem>>, vector<16x32xf32>,
      %c18_i32_42 = arith.constant 18 : i32
      %54 = arith.addi %c18_i32_42, %arg10 : i32
      %c1_i32_43 = arith.constant 1 : i32
      %55 = arith.addi %54, %c1_i32_43 : i32
      %56 = arith.index_cast %55 : i32 to index
      %c1_44 = arith.constant 1 : index
      %c0_45 = arith.constant 0 : index
      %57 = vector.load %arg1[%56, %c1_44, %c0_45] : memref<36x18x32xf32, #tpu.memory_space<vmem>>, vector<1x16x32xf32>
      %58 = vector.shape_cast %57 : vector<1x16x32xf32> to vector<16x32xf32>
      %59 = arith.index_cast %25 : i32 to index
      %c128 = arith.constant 128 : index
      %60 = vector.load %arg8[%59, %c128] : memref<512x288xf32, #tpu.memory_space<vmem>>, vector<16x32xf32>
      tpu.vector_store %arg8[%59, %c128], %58 {strides = array<i32>} : memref<512x288xf32, #tpu.memory_space<vmem>>, vector<16x32xf32>,
      %c18_i32_46 = arith.constant 18 : i32
      %61 = arith.addi %c18_i32_46, %arg10 : i32
      %c1_i32_47 = arith.constant 1 : i32
      %62 = arith.addi %61, %c1_i32_47 : i32
      %63 = arith.index_cast %62 : i32 to index
      %c2_48 = arith.constant 2 : index
      %c0_49 = arith.constant 0 : index
      %64 = vector.load %arg1[%63, %c2_48, %c0_49] : memref<36x18x32xf32, #tpu.memory_space<vmem>>, vector<1x16x32xf32>
      %65 = vector.shape_cast %64 : vector<1x16x32xf32> to vector<16x32xf32>
      %66 = arith.index_cast %25 : i32 to index
      %c160 = arith.constant 160 : index
      %67 = vector.load %arg8[%66, %c160] : memref<512x288xf32, #tpu.memory_space<vmem>>, vector<16x32xf32>
      tpu.vector_store %arg8[%66, %c160], %65 {strides = array<i32>} : memref<512x288xf32, #tpu.memory_space<vmem>>, vector<16x32xf32>,
      %c18_i32_50 = arith.constant 18 : i32
      %68 = arith.addi %c18_i32_50, %arg10 : i32
      %c2_i32 = arith.constant 2 : i32
      %69 = arith.addi %68, %c2_i32 : i32
      %70 = arith.index_cast %69 : i32 to index
      %c0_51 = arith.constant 0 : index
      %c0_52 = arith.constant 0 : index
      %71 = vector.load %arg1[%70, %c0_51, %c0_52] : memref<36x18x32xf32, #tpu.memory_space<vmem>>, vector<1x16x32xf32>
      %72 = vector.shape_cast %71 : vector<1x16x32xf32> to vector<16x32xf32>
      %73 = arith.index_cast %25 : i32 to index
      %c192 = arith.constant 192 : index
      %74 = vector.load %arg8[%73, %c192] : memref<512x288xf32, #tpu.memory_space<vmem>>, vector<16x32xf32>
      tpu.vector_store %arg8[%73, %c192], %72 {strides = array<i32>} : memref<512x288xf32, #tpu.memory_space<vmem>>, vector<16x32xf32>,
      %c18_i32_53 = arith.constant 18 : i32
      %75 = arith.addi %c18_i32_53, %arg10 : i32
      %c2_i32_54 = arith.constant 2 : i32
      %76 = arith.addi %75, %c2_i32_54 : i32
      %77 = arith.index_cast %76 : i32 to index
      %c1_55 = arith.constant 1 : index
      %c0_56 = arith.constant 0 : index
      %78 = vector.load %arg1[%77, %c1_55, %c0_56] : memref<36x18x32xf32, #tpu.memory_space<vmem>>, vector<1x16x32xf32>
      %79 = vector.shape_cast %78 : vector<1x16x32xf32> to vector<16x32xf32>
      %80 = arith.index_cast %25 : i32 to index
      %c224 = arith.constant 224 : index
      %81 = vector.load %arg8[%80, %c224] : memref<512x288xf32, #tpu.memory_space<vmem>>, vector<16x32xf32>
      tpu.vector_store %arg8[%80, %c224], %79 {strides = array<i32>} : memref<512x288xf32, #tpu.memory_space<vmem>>, vector<16x32xf32>,
      %c18_i32_57 = arith.constant 18 : i32
      %82 = arith.addi %c18_i32_57, %arg10 : i32
      %c2_i32_58 = arith.constant 2 : i32
      %83 = arith.addi %82, %c2_i32_58 : i32
      %84 = arith.index_cast %83 : i32 to index
      %c2_59 = arith.constant 2 : index
      %c0_60 = arith.constant 0 : index
      %85 = vector.load %arg1[%84, %c2_59, %c0_60] : memref<36x18x32xf32, #tpu.memory_space<vmem>>, vector<1x16x32xf32>
      %86 = vector.shape_cast %85 : vector<1x16x32xf32> to vector<16x32xf32>
      %87 = arith.index_cast %25 : i32 to index
      %c256 = arith.constant 256 : index
      %88 = vector.load %arg8[%87, %c256] : memref<512x288xf32, #tpu.memory_space<vmem>>, vector<16x32xf32>
      tpu.vector_store %arg8[%87, %c256], %86 {strides = array<i32>} : memref<512x288xf32, #tpu.memory_space<vmem>>, vector<16x32xf32>,
    }
    %c16_i32_4 = arith.constant 16 : i32
    %c0 = arith.constant 0 : index
    %c0_5 = arith.constant 0 : index
    %2 = vector.load %arg2[%c0, %c0_5] : memref<288x128xbf16, #tpu.memory_space<vmem>>, vector<288x128xbf16>
    %c0_6 = arith.constant 0 : index
    %c0_7 = arith.constant 0 : index
    %3 = vector.load %arg3[%c0_6, %c0_7] : memref<1x128xf32, #tpu.memory_space<vmem>>, vector<1x128xf32>
    %cst = arith.constant 0.000000e+00 : f32
    %4 = vector.broadcast %cst : f32 to vector<1x128xf32>
    %cst_8 = arith.constant 0.000000e+00 : f32
    %5 = vector.broadcast %cst_8 : f32 to vector<1x128xf32>
    %c0_i32_9 = arith.constant 0 : i32
    %c4_i32 = arith.constant 4 : i32
    %6 = arith.addi %c0_i32_9, %c4_i32 : i32
    %c1_i32_10 = arith.constant 1 : i32
    %7:2 = scf.for %arg10 = %c0_i32_9 to %6 step %c1_i32_10 iter_args(%arg11 = %4, %arg12 = %5) -> (vector<1x128xf32>, vector<1x128xf32>)  : i32 {
      %c128_i32 = arith.constant 128 : i32
      %23 = arith.muli %arg10, %c128_i32 : i32
      %24 = tpu.assume_multiple %23, 128 : i32
      %25 = arith.index_cast %24 : i32 to index
      %c0_27 = arith.constant 0 : index
      %26 = vector.load %arg8[%25, %c0_27] : memref<512x288xf32, #tpu.memory_space<vmem>>, vector<128x288xf32>
      %27 = arith.truncf %26 : vector<128x288xf32> to vector<128x288xbf16>
      %cst_28 = arith.constant dense<0.000000e+00> : vector<128x128xf32>
      %28 = tpu.matmul %27, %2, %cst_28 {dimension_numbers = #tpu.dot_dimension_numbers<[1], [0], [0], [1], [0, 0, 1, 1], [], []>} : vector<128x288xbf16>, vector<288x128xbf16>, vector<128x128xf32> -> vector<128x128xf32>
      %29 = vector.broadcast %3 : vector<1x128xf32> to vector<128x128xf32>
      %30 = arith.addf %28, %29 : vector<128x128xf32>
      %31 = arith.index_cast %24 : i32 to index
      %c0_29 = arith.constant 0 : index
      %32 = vector.load %arg9[%31, %c0_29] : memref<512x128xf32, #tpu.memory_space<vmem>>, vector<128x128xf32>
      tpu.vector_store %arg9[%31, %c0_29], %30 {strides = array<i32>} : memref<512x128xf32, #tpu.memory_space<vmem>>, vector<128x128xf32>,
      %cst_30 = arith.constant dense<0.000000e+00> : vector<128xf32>
      %33 = vector.multi_reduction <add>, %30, %cst_30 [0] : vector<128x128xf32> to vector<128xf32>
      %34 = vector.shape_cast %33 : vector<128xf32> to vector<1x128xf32>
      %35 = arith.addf %arg11, %34 : vector<1x128xf32>
      %36 = arith.mulf %30, %30 : vector<128x128xf32>
      %cst_31 = arith.constant dense<0.000000e+00> : vector<128xf32>
      %37 = vector.multi_reduction <add>, %36, %cst_31 [0] : vector<128x128xf32> to vector<128xf32>
      %38 = vector.shape_cast %37 : vector<128xf32> to vector<1x128xf32>
      %39 = arith.addf %arg12, %38 : vector<1x128xf32>
      scf.yield %35, %39 : vector<1x128xf32>, vector<1x128xf32>
    }
    %c4_i32_11 = arith.constant 4 : i32
    %c0_12 = arith.constant 0 : index
    %c0_13 = arith.constant 0 : index
    %8 = vector.load %arg6[%c0_12, %c0_13] : memref<128x128xf32, #tpu.memory_space<vmem>>, vector<128x128xf32>
    %cst_14 = arith.constant dense<0.000000e+00> : vector<1x128xf32>
    %9 = tpu.matmul %7#0, %8, %cst_14 {dimension_numbers = #tpu.dot_dimension_numbers<[1], [0], [0], [1], [0, 0, 1, 1], [], []>} : vector<1x128xf32>, vector<128x128xf32>, vector<1x128xf32> -> vector<1x128xf32>
    %c0_15 = arith.constant 0 : index
    %c0_16 = arith.constant 0 : index
    %10 = vector.load %arg6[%c0_15, %c0_16] : memref<128x128xf32, #tpu.memory_space<vmem>>, vector<128x128xf32>
    %cst_17 = arith.constant dense<0.000000e+00> : vector<1x128xf32>
    %11 = tpu.matmul %7#1, %10, %cst_17 {dimension_numbers = #tpu.dot_dimension_numbers<[1], [0], [0], [1], [0, 0, 1, 1], [], []>} : vector<1x128xf32>, vector<128x128xf32>, vector<1x128xf32> -> vector<1x128xf32>
    %12 = arith.mulf %9, %9 : vector<1x128xf32>
    %13 = arith.subf %11, %12 : vector<1x128xf32>
    %c0_18 = arith.constant 0 : index
    %c0_19 = arith.constant 0 : index
    %14 = vector.load %arg4[%c0_18, %c0_19] : memref<1x128xf32, #tpu.memory_space<vmem>>, vector<1x128xf32>
    %cst_20 = arith.constant 9.99999974E-6 : f32
    %15 = vector.broadcast %cst_20 : f32 to vector<1x128xf32>
    %16 = arith.addf %13, %15 : vector<1x128xf32>
    %17 = math.rsqrt %16 : vector<1x128xf32>
    %18 = arith.mulf %14, %17 : vector<1x128xf32>
    %c0_21 = arith.constant 0 : index
    %c0_22 = arith.constant 0 : index
    %19 = vector.load %arg5[%c0_21, %c0_22] : memref<1x128xf32, #tpu.memory_space<vmem>>, vector<1x128xf32>
    %20 = arith.mulf %9, %18 : vector<1x128xf32>
    %21 = arith.subf %19, %20 : vector<1x128xf32>
    %c0_i32_23 = arith.constant 0 : i32
    %c4_i32_24 = arith.constant 4 : i32
    %22 = arith.addi %c0_i32_23, %c4_i32_24 : i32
    %c1_i32_25 = arith.constant 1 : i32
    scf.for %arg10 = %c0_i32_23 to %22 step %c1_i32_25  : i32 {
      %c128_i32 = arith.constant 128 : i32
      %23 = arith.muli %arg10, %c128_i32 : i32
      %24 = tpu.assume_multiple %23, 128 : i32
      %25 = arith.index_cast %24 : i32 to index
      %c0_27 = arith.constant 0 : index
      %26 = vector.load %arg9[%25, %c0_27] : memref<512x128xf32, #tpu.memory_space<vmem>>, vector<128x128xf32>
      %27 = vector.broadcast %18 : vector<1x128xf32> to vector<128x128xf32>
      %28 = arith.mulf %26, %27 : vector<128x128xf32>
      %29 = vector.broadcast %21 : vector<1x128xf32> to vector<128x128xf32>
      %30 = arith.addf %28, %29 : vector<128x128xf32>
      %cst_28 = arith.constant 0.000000e+00 : f32
      %31 = vector.broadcast %cst_28 : f32 to vector<128x128xf32>
      %32 = arith.cmpf oge, %30, %31 : vector<128x128xf32>
      %cst_29 = arith.constant 2.000000e-01 : f32
      %33 = vector.broadcast %cst_29 : f32 to vector<128x128xf32>
      %34 = arith.mulf %33, %30 : vector<128x128xf32>
      %35 = arith.select %32, %30, %34 : vector<128x128xi1>, vector<128x128xf32>
      %36 = arith.index_cast %24 : i32 to index
      %c0_30 = arith.constant 0 : index
      %37 = vector.load %arg7[%36, %c0_30] : memref<512x128xf32, #tpu.memory_space<vmem>>, vector<128x128xf32>
      tpu.vector_store %arg7[%36, %c0_30], %35 {strides = array<i32>} : memref<512x128xf32, #tpu.memory_space<vmem>>, vector<128x128xf32>,
    }
    %c4_i32_26 = arith.constant 4 : i32
    return
  }
  func.func @transform_0(%arg0: i32) -> (i32, i32, i32) {
    %c0_i32 = arith.constant 0 : i32
    %c0_i32_0 = arith.constant 0 : i32
    %c0_i32_1 = arith.constant 0 : i32
    %c0_i32_2 = arith.constant 0 : i32
    return %c0_i32, %c0_i32_0, %c0_i32_1 : i32, i32, i32
  }
  func.func @transform_1(%arg0: i32) -> (i32, i32) {
    %c0_i32 = arith.constant 0 : i32
    %c0_i32_0 = arith.constant 0 : i32
    %c0_i32_1 = arith.constant 0 : i32
    return %c0_i32, %c0_i32_0 : i32, i32
  }
  func.func @transform_2(%arg0: i32) -> (i32, i32) {
    %c0_i32 = arith.constant 0 : i32
    %c0_i32_0 = arith.constant 0 : i32
    %c0_i32_1 = arith.constant 0 : i32
    return %c0_i32, %c0_i32_0 : i32, i32
  }
  func.func @transform_3(%arg0: i32) -> (i32, i32) {
    %c0_i32 = arith.constant 0 : i32
    %c0_i32_0 = arith.constant 0 : i32
    %c0_i32_1 = arith.constant 0 : i32
    return %c0_i32, %c0_i32_0 : i32, i32
  }
  func.func @transform_4(%arg0: i32) -> (i32, i32) {
    %c0_i32 = arith.constant 0 : i32
    %c0_i32_0 = arith.constant 0 : i32
    %c0_i32_1 = arith.constant 0 : i32
    return %c0_i32, %c0_i32_0 : i32, i32
  }
  func.func @transform_5(%arg0: i32) -> (i32, i32) {
    %c0_i32 = arith.constant 0 : i32
    %c0_i32_0 = arith.constant 0 : i32
    %c0_i32_1 = arith.constant 0 : i32
    return %c0_i32, %c0_i32_0 : i32, i32
  }
  func.func @transform_6(%arg0: i32) -> (i32, i32) {
    %c0_i32 = arith.constant 0 : i32
    %c0_i32_0 = arith.constant 0 : i32
    %c0_i32_1 = arith.constant 0 : i32
    return %c0_i32, %c0_i32_0 : i32, i32
  }
}

module attributes {stable_mosaic.version = 11 : i64} {
  func.func @_deconv_bn_lrelu_kernel(%arg0: i32, %arg1: memref<68x34x32xf32, #tpu.memory_space<vmem>>, %arg2: memref<288x128xbf16, #tpu.memory_space<vmem>>, %arg3: memref<1x128xf32, #tpu.memory_space<vmem>>, %arg4: memref<1x128xf32, #tpu.memory_space<vmem>>, %arg5: memref<1x128xf32, #tpu.memory_space<vmem>>, %arg6: memref<128x128xf32, #tpu.memory_space<vmem>>, %arg7: memref<2048x128xf32, #tpu.memory_space<vmem>>, %arg8: memref<2048x288xf32, #tpu.memory_space<vmem>>, %arg9: memref<2048x128xf32, #tpu.memory_space<vmem>>) attributes {dimension_semantics = [#tpu.dimension_semantics<arbitrary>], iteration_bounds = array<i64: 1>, scalar_prefetch = 0 : i64, scratch_operands = 2 : i64, tpu.core_type = #tpu.core_type<tc>, window_params = [{pipeline_mode = #tpu.pipeline_mode<synchronous>, transform_indices = @transform_0, window_bounds = array<i64: 68, 34, 32>}, {pipeline_mode = #tpu.pipeline_mode<synchronous>, transform_indices = @transform_1, window_bounds = array<i64: 288, 128>}, {pipeline_mode = #tpu.pipeline_mode<synchronous>, transform_indices = @transform_2, window_bounds = array<i64: 1, 128>}, {pipeline_mode = #tpu.pipeline_mode<synchronous>, transform_indices = @transform_3, window_bounds = array<i64: 1, 128>}, {pipeline_mode = #tpu.pipeline_mode<synchronous>, transform_indices = @transform_4, window_bounds = array<i64: 1, 128>}, {pipeline_mode = #tpu.pipeline_mode<synchronous>, transform_indices = @transform_5, window_bounds = array<i64: 128, 128>}, {pipeline_mode = #tpu.pipeline_mode<synchronous>, transform_indices = @transform_6, window_bounds = array<i64: 2048, 128>}]} {
    %c0_i32 = arith.constant 0 : i32
    %c32_i32 = arith.constant 32 : i32
    %0 = arith.addi %c0_i32, %c32_i32 : i32
    %c1_i32 = arith.constant 1 : i32
    scf.for %arg10 = %c0_i32 to %0 step %c1_i32  : i32 {
      %c32_i32_27 = arith.constant 32 : i32
      %23 = arith.muli %arg10, %c32_i32_27 : i32
      %c0_i32_28 = arith.constant 0 : i32
      %24 = arith.addi %c0_i32_28, %23 : i32
      %25 = tpu.assume_multiple %24, 8 : i32
      %c0_i32_29 = arith.constant 0 : i32
      %26 = arith.addi %c0_i32_29, %arg10 : i32
      %c0_i32_30 = arith.constant 0 : i32
      %27 = arith.addi %26, %c0_i32_30 : i32
      %28 = arith.index_cast %27 : i32 to index
      %c0_31 = arith.constant 0 : index
      %c0_32 = arith.constant 0 : index
      %29 = vector.load %arg1[%28, %c0_31, %c0_32] : memref<68x34x32xf32, #tpu.memory_space<vmem>>, vector<1x32x32xf32>
      %30 = vector.shape_cast %29 : vector<1x32x32xf32> to vector<32x32xf32>
      %31 = arith.index_cast %25 : i32 to index
      %c0_33 = arith.constant 0 : index
      %32 = vector.load %arg8[%31, %c0_33] : memref<2048x288xf32, #tpu.memory_space<vmem>>, vector<32x32xf32>
      tpu.vector_store %arg8[%31, %c0_33], %30 {strides = array<i32>} : memref<2048x288xf32, #tpu.memory_space<vmem>>, vector<32x32xf32>,
      %c0_i32_34 = arith.constant 0 : i32
      %33 = arith.addi %c0_i32_34, %arg10 : i32
      %c0_i32_35 = arith.constant 0 : i32
      %34 = arith.addi %33, %c0_i32_35 : i32
      %35 = arith.index_cast %34 : i32 to index
      %c1 = arith.constant 1 : index
      %c0_36 = arith.constant 0 : index
      %36 = vector.load %arg1[%35, %c1, %c0_36] : memref<68x34x32xf32, #tpu.memory_space<vmem>>, vector<1x32x32xf32>
      %37 = vector.shape_cast %36 : vector<1x32x32xf32> to vector<32x32xf32>
      %38 = arith.index_cast %25 : i32 to index
      %c32 = arith.constant 32 : index
      %39 = vector.load %arg8[%38, %c32] : memref<2048x288xf32, #tpu.memory_space<vmem>>, vector<32x32xf32>
      tpu.vector_store %arg8[%38, %c32], %37 {strides = array<i32>} : memref<2048x288xf32, #tpu.memory_space<vmem>>, vector<32x32xf32>,
      %c0_i32_37 = arith.constant 0 : i32
      %40 = arith.addi %c0_i32_37, %arg10 : i32
      %c0_i32_38 = arith.constant 0 : i32
      %41 = arith.addi %40, %c0_i32_38 : i32
      %42 = arith.index_cast %41 : i32 to index
      %c2 = arith.constant 2 : index
      %c0_39 = arith.constant 0 : index
      %43 = vector.load %arg1[%42, %c2, %c0_39] : memref<68x34x32xf32, #tpu.memory_space<vmem>>, vector<1x32x32xf32>
      %44 = vector.shape_cast %43 : vector<1x32x32xf32> to vector<32x32xf32>
      %45 = arith.index_cast %25 : i32 to index
      %c64 = arith.constant 64 : index
      %46 = vector.load %arg8[%45, %c64] : memref<2048x288xf32, #tpu.memory_space<vmem>>, vector<32x32xf32>
      tpu.vector_store %arg8[%45, %c64], %44 {strides = array<i32>} : memref<2048x288xf32, #tpu.memory_space<vmem>>, vector<32x32xf32>,
      %c0_i32_40 = arith.constant 0 : i32
      %47 = arith.addi %c0_i32_40, %arg10 : i32
      %c1_i32_41 = arith.constant 1 : i32
      %48 = arith.addi %47, %c1_i32_41 : i32
      %49 = arith.index_cast %48 : i32 to index
      %c0_42 = arith.constant 0 : index
      %c0_43 = arith.constant 0 : index
      %50 = vector.load %arg1[%49, %c0_42, %c0_43] : memref<68x34x32xf32, #tpu.memory_space<vmem>>, vector<1x32x32xf32>
      %51 = vector.shape_cast %50 : vector<1x32x32xf32> to vector<32x32xf32>
      %52 = arith.index_cast %25 : i32 to index
      %c96 = arith.constant 96 : index
      %53 = vector.load %arg8[%52, %c96] : memref<2048x288xf32, #tpu.memory_space<vmem>>, vector<32x32xf32>
      tpu.vector_store %arg8[%52, %c96], %51 {strides = array<i32>} : memref<2048x288xf32, #tpu.memory_space<vmem>>, vector<32x32xf32>,
      %c0_i32_44 = arith.constant 0 : i32
      %54 = arith.addi %c0_i32_44, %arg10 : i32
      %c1_i32_45 = arith.constant 1 : i32
      %55 = arith.addi %54, %c1_i32_45 : i32
      %56 = arith.index_cast %55 : i32 to index
      %c1_46 = arith.constant 1 : index
      %c0_47 = arith.constant 0 : index
      %57 = vector.load %arg1[%56, %c1_46, %c0_47] : memref<68x34x32xf32, #tpu.memory_space<vmem>>, vector<1x32x32xf32>
      %58 = vector.shape_cast %57 : vector<1x32x32xf32> to vector<32x32xf32>
      %59 = arith.index_cast %25 : i32 to index
      %c128 = arith.constant 128 : index
      %60 = vector.load %arg8[%59, %c128] : memref<2048x288xf32, #tpu.memory_space<vmem>>, vector<32x32xf32>
      tpu.vector_store %arg8[%59, %c128], %58 {strides = array<i32>} : memref<2048x288xf32, #tpu.memory_space<vmem>>, vector<32x32xf32>,
      %c0_i32_48 = arith.constant 0 : i32
      %61 = arith.addi %c0_i32_48, %arg10 : i32
      %c1_i32_49 = arith.constant 1 : i32
      %62 = arith.addi %61, %c1_i32_49 : i32
      %63 = arith.index_cast %62 : i32 to index
      %c2_50 = arith.constant 2 : index
      %c0_51 = arith.constant 0 : index
      %64 = vector.load %arg1[%63, %c2_50, %c0_51] : memref<68x34x32xf32, #tpu.memory_space<vmem>>, vector<1x32x32xf32>
      %65 = vector.shape_cast %64 : vector<1x32x32xf32> to vector<32x32xf32>
      %66 = arith.index_cast %25 : i32 to index
      %c160 = arith.constant 160 : index
      %67 = vector.load %arg8[%66, %c160] : memref<2048x288xf32, #tpu.memory_space<vmem>>, vector<32x32xf32>
      tpu.vector_store %arg8[%66, %c160], %65 {strides = array<i32>} : memref<2048x288xf32, #tpu.memory_space<vmem>>, vector<32x32xf32>,
      %c0_i32_52 = arith.constant 0 : i32
      %68 = arith.addi %c0_i32_52, %arg10 : i32
      %c2_i32 = arith.constant 2 : i32
      %69 = arith.addi %68, %c2_i32 : i32
      %70 = arith.index_cast %69 : i32 to index
      %c0_53 = arith.constant 0 : index
      %c0_54 = arith.constant 0 : index
      %71 = vector.load %arg1[%70, %c0_53, %c0_54] : memref<68x34x32xf32, #tpu.memory_space<vmem>>, vector<1x32x32xf32>
      %72 = vector.shape_cast %71 : vector<1x32x32xf32> to vector<32x32xf32>
      %73 = arith.index_cast %25 : i32 to index
      %c192 = arith.constant 192 : index
      %74 = vector.load %arg8[%73, %c192] : memref<2048x288xf32, #tpu.memory_space<vmem>>, vector<32x32xf32>
      tpu.vector_store %arg8[%73, %c192], %72 {strides = array<i32>} : memref<2048x288xf32, #tpu.memory_space<vmem>>, vector<32x32xf32>,
      %c0_i32_55 = arith.constant 0 : i32
      %75 = arith.addi %c0_i32_55, %arg10 : i32
      %c2_i32_56 = arith.constant 2 : i32
      %76 = arith.addi %75, %c2_i32_56 : i32
      %77 = arith.index_cast %76 : i32 to index
      %c1_57 = arith.constant 1 : index
      %c0_58 = arith.constant 0 : index
      %78 = vector.load %arg1[%77, %c1_57, %c0_58] : memref<68x34x32xf32, #tpu.memory_space<vmem>>, vector<1x32x32xf32>
      %79 = vector.shape_cast %78 : vector<1x32x32xf32> to vector<32x32xf32>
      %80 = arith.index_cast %25 : i32 to index
      %c224 = arith.constant 224 : index
      %81 = vector.load %arg8[%80, %c224] : memref<2048x288xf32, #tpu.memory_space<vmem>>, vector<32x32xf32>
      tpu.vector_store %arg8[%80, %c224], %79 {strides = array<i32>} : memref<2048x288xf32, #tpu.memory_space<vmem>>, vector<32x32xf32>,
      %c0_i32_59 = arith.constant 0 : i32
      %82 = arith.addi %c0_i32_59, %arg10 : i32
      %c2_i32_60 = arith.constant 2 : i32
      %83 = arith.addi %82, %c2_i32_60 : i32
      %84 = arith.index_cast %83 : i32 to index
      %c2_61 = arith.constant 2 : index
      %c0_62 = arith.constant 0 : index
      %85 = vector.load %arg1[%84, %c2_61, %c0_62] : memref<68x34x32xf32, #tpu.memory_space<vmem>>, vector<1x32x32xf32>
      %86 = vector.shape_cast %85 : vector<1x32x32xf32> to vector<32x32xf32>
      %87 = arith.index_cast %25 : i32 to index
      %c256 = arith.constant 256 : index
      %88 = vector.load %arg8[%87, %c256] : memref<2048x288xf32, #tpu.memory_space<vmem>>, vector<32x32xf32>
      tpu.vector_store %arg8[%87, %c256], %86 {strides = array<i32>} : memref<2048x288xf32, #tpu.memory_space<vmem>>, vector<32x32xf32>,
    }
    %c32_i32_0 = arith.constant 32 : i32
    %c0_i32_1 = arith.constant 0 : i32
    %c32_i32_2 = arith.constant 32 : i32
    %1 = arith.addi %c0_i32_1, %c32_i32_2 : i32
    %c1_i32_3 = arith.constant 1 : i32
    scf.for %arg10 = %c0_i32_1 to %1 step %c1_i32_3  : i32 {
      %c32_i32_27 = arith.constant 32 : i32
      %23 = arith.muli %arg10, %c32_i32_27 : i32
      %c1024_i32 = arith.constant 1024 : i32
      %24 = arith.addi %c1024_i32, %23 : i32
      %25 = tpu.assume_multiple %24, 8 : i32
      %c34_i32 = arith.constant 34 : i32
      %26 = arith.addi %c34_i32, %arg10 : i32
      %c0_i32_28 = arith.constant 0 : i32
      %27 = arith.addi %26, %c0_i32_28 : i32
      %28 = arith.index_cast %27 : i32 to index
      %c0_29 = arith.constant 0 : index
      %c0_30 = arith.constant 0 : index
      %29 = vector.load %arg1[%28, %c0_29, %c0_30] : memref<68x34x32xf32, #tpu.memory_space<vmem>>, vector<1x32x32xf32>
      %30 = vector.shape_cast %29 : vector<1x32x32xf32> to vector<32x32xf32>
      %31 = arith.index_cast %25 : i32 to index
      %c0_31 = arith.constant 0 : index
      %32 = vector.load %arg8[%31, %c0_31] : memref<2048x288xf32, #tpu.memory_space<vmem>>, vector<32x32xf32>
      tpu.vector_store %arg8[%31, %c0_31], %30 {strides = array<i32>} : memref<2048x288xf32, #tpu.memory_space<vmem>>, vector<32x32xf32>,
      %c34_i32_32 = arith.constant 34 : i32
      %33 = arith.addi %c34_i32_32, %arg10 : i32
      %c0_i32_33 = arith.constant 0 : i32
      %34 = arith.addi %33, %c0_i32_33 : i32
      %35 = arith.index_cast %34 : i32 to index
      %c1 = arith.constant 1 : index
      %c0_34 = arith.constant 0 : index
      %36 = vector.load %arg1[%35, %c1, %c0_34] : memref<68x34x32xf32, #tpu.memory_space<vmem>>, vector<1x32x32xf32>
      %37 = vector.shape_cast %36 : vector<1x32x32xf32> to vector<32x32xf32>
      %38 = arith.index_cast %25 : i32 to index
      %c32 = arith.constant 32 : index
      %39 = vector.load %arg8[%38, %c32] : memref<2048x288xf32, #tpu.memory_space<vmem>>, vector<32x32xf32>
      tpu.vector_store %arg8[%38, %c32], %37 {strides = array<i32>} : memref<2048x288xf32, #tpu.memory_space<vmem>>, vector<32x32xf32>,
      %c34_i32_35 = arith.constant 34 : i32
      %40 = arith.addi %c34_i32_35, %arg10 : i32
      %c0_i32_36 = arith.constant 0 : i32
      %41 = arith.addi %40, %c0_i32_36 : i32
      %42 = arith.index_cast %41 : i32 to index
      %c2 = arith.constant 2 : index
      %c0_37 = arith.constant 0 : index
      %43 = vector.load %arg1[%42, %c2, %c0_37] : memref<68x34x32xf32, #tpu.memory_space<vmem>>, vector<1x32x32xf32>
      %44 = vector.shape_cast %43 : vector<1x32x32xf32> to vector<32x32xf32>
      %45 = arith.index_cast %25 : i32 to index
      %c64 = arith.constant 64 : index
      %46 = vector.load %arg8[%45, %c64] : memref<2048x288xf32, #tpu.memory_space<vmem>>, vector<32x32xf32>
      tpu.vector_store %arg8[%45, %c64], %44 {strides = array<i32>} : memref<2048x288xf32, #tpu.memory_space<vmem>>, vector<32x32xf32>,
      %c34_i32_38 = arith.constant 34 : i32
      %47 = arith.addi %c34_i32_38, %arg10 : i32
      %c1_i32_39 = arith.constant 1 : i32
      %48 = arith.addi %47, %c1_i32_39 : i32
      %49 = arith.index_cast %48 : i32 to index
      %c0_40 = arith.constant 0 : index
      %c0_41 = arith.constant 0 : index
      %50 = vector.load %arg1[%49, %c0_40, %c0_41] : memref<68x34x32xf32, #tpu.memory_space<vmem>>, vector<1x32x32xf32>
      %51 = vector.shape_cast %50 : vector<1x32x32xf32> to vector<32x32xf32>
      %52 = arith.index_cast %25 : i32 to index
      %c96 = arith.constant 96 : index
      %53 = vector.load %arg8[%52, %c96] : memref<2048x288xf32, #tpu.memory_space<vmem>>, vector<32x32xf32>
      tpu.vector_store %arg8[%52, %c96], %51 {strides = array<i32>} : memref<2048x288xf32, #tpu.memory_space<vmem>>, vector<32x32xf32>,
      %c34_i32_42 = arith.constant 34 : i32
      %54 = arith.addi %c34_i32_42, %arg10 : i32
      %c1_i32_43 = arith.constant 1 : i32
      %55 = arith.addi %54, %c1_i32_43 : i32
      %56 = arith.index_cast %55 : i32 to index
      %c1_44 = arith.constant 1 : index
      %c0_45 = arith.constant 0 : index
      %57 = vector.load %arg1[%56, %c1_44, %c0_45] : memref<68x34x32xf32, #tpu.memory_space<vmem>>, vector<1x32x32xf32>
      %58 = vector.shape_cast %57 : vector<1x32x32xf32> to vector<32x32xf32>
      %59 = arith.index_cast %25 : i32 to index
      %c128 = arith.constant 128 : index
      %60 = vector.load %arg8[%59, %c128] : memref<2048x288xf32, #tpu.memory_space<vmem>>, vector<32x32xf32>
      tpu.vector_store %arg8[%59, %c128], %58 {strides = array<i32>} : memref<2048x288xf32, #tpu.memory_space<vmem>>, vector<32x32xf32>,
      %c34_i32_46 = arith.constant 34 : i32
      %61 = arith.addi %c34_i32_46, %arg10 : i32
      %c1_i32_47 = arith.constant 1 : i32
      %62 = arith.addi %61, %c1_i32_47 : i32
      %63 = arith.index_cast %62 : i32 to index
      %c2_48 = arith.constant 2 : index
      %c0_49 = arith.constant 0 : index
      %64 = vector.load %arg1[%63, %c2_48, %c0_49] : memref<68x34x32xf32, #tpu.memory_space<vmem>>, vector<1x32x32xf32>
      %65 = vector.shape_cast %64 : vector<1x32x32xf32> to vector<32x32xf32>
      %66 = arith.index_cast %25 : i32 to index
      %c160 = arith.constant 160 : index
      %67 = vector.load %arg8[%66, %c160] : memref<2048x288xf32, #tpu.memory_space<vmem>>, vector<32x32xf32>
      tpu.vector_store %arg8[%66, %c160], %65 {strides = array<i32>} : memref<2048x288xf32, #tpu.memory_space<vmem>>, vector<32x32xf32>,
      %c34_i32_50 = arith.constant 34 : i32
      %68 = arith.addi %c34_i32_50, %arg10 : i32
      %c2_i32 = arith.constant 2 : i32
      %69 = arith.addi %68, %c2_i32 : i32
      %70 = arith.index_cast %69 : i32 to index
      %c0_51 = arith.constant 0 : index
      %c0_52 = arith.constant 0 : index
      %71 = vector.load %arg1[%70, %c0_51, %c0_52] : memref<68x34x32xf32, #tpu.memory_space<vmem>>, vector<1x32x32xf32>
      %72 = vector.shape_cast %71 : vector<1x32x32xf32> to vector<32x32xf32>
      %73 = arith.index_cast %25 : i32 to index
      %c192 = arith.constant 192 : index
      %74 = vector.load %arg8[%73, %c192] : memref<2048x288xf32, #tpu.memory_space<vmem>>, vector<32x32xf32>
      tpu.vector_store %arg8[%73, %c192], %72 {strides = array<i32>} : memref<2048x288xf32, #tpu.memory_space<vmem>>, vector<32x32xf32>,
      %c34_i32_53 = arith.constant 34 : i32
      %75 = arith.addi %c34_i32_53, %arg10 : i32
      %c2_i32_54 = arith.constant 2 : i32
      %76 = arith.addi %75, %c2_i32_54 : i32
      %77 = arith.index_cast %76 : i32 to index
      %c1_55 = arith.constant 1 : index
      %c0_56 = arith.constant 0 : index
      %78 = vector.load %arg1[%77, %c1_55, %c0_56] : memref<68x34x32xf32, #tpu.memory_space<vmem>>, vector<1x32x32xf32>
      %79 = vector.shape_cast %78 : vector<1x32x32xf32> to vector<32x32xf32>
      %80 = arith.index_cast %25 : i32 to index
      %c224 = arith.constant 224 : index
      %81 = vector.load %arg8[%80, %c224] : memref<2048x288xf32, #tpu.memory_space<vmem>>, vector<32x32xf32>
      tpu.vector_store %arg8[%80, %c224], %79 {strides = array<i32>} : memref<2048x288xf32, #tpu.memory_space<vmem>>, vector<32x32xf32>,
      %c34_i32_57 = arith.constant 34 : i32
      %82 = arith.addi %c34_i32_57, %arg10 : i32
      %c2_i32_58 = arith.constant 2 : i32
      %83 = arith.addi %82, %c2_i32_58 : i32
      %84 = arith.index_cast %83 : i32 to index
      %c2_59 = arith.constant 2 : index
      %c0_60 = arith.constant 0 : index
      %85 = vector.load %arg1[%84, %c2_59, %c0_60] : memref<68x34x32xf32, #tpu.memory_space<vmem>>, vector<1x32x32xf32>
      %86 = vector.shape_cast %85 : vector<1x32x32xf32> to vector<32x32xf32>
      %87 = arith.index_cast %25 : i32 to index
      %c256 = arith.constant 256 : index
      %88 = vector.load %arg8[%87, %c256] : memref<2048x288xf32, #tpu.memory_space<vmem>>, vector<32x32xf32>
      tpu.vector_store %arg8[%87, %c256], %86 {strides = array<i32>} : memref<2048x288xf32, #tpu.memory_space<vmem>>, vector<32x32xf32>,
    }
    %c32_i32_4 = arith.constant 32 : i32
    %c0 = arith.constant 0 : index
    %c0_5 = arith.constant 0 : index
    %2 = vector.load %arg2[%c0, %c0_5] : memref<288x128xbf16, #tpu.memory_space<vmem>>, vector<288x128xbf16>
    %c0_6 = arith.constant 0 : index
    %c0_7 = arith.constant 0 : index
    %3 = vector.load %arg3[%c0_6, %c0_7] : memref<1x128xf32, #tpu.memory_space<vmem>>, vector<1x128xf32>
    %cst = arith.constant 0.000000e+00 : f32
    %4 = vector.broadcast %cst : f32 to vector<1x128xf32>
    %cst_8 = arith.constant 0.000000e+00 : f32
    %5 = vector.broadcast %cst_8 : f32 to vector<1x128xf32>
    %c0_i32_9 = arith.constant 0 : i32
    %c16_i32 = arith.constant 16 : i32
    %6 = arith.addi %c0_i32_9, %c16_i32 : i32
    %c1_i32_10 = arith.constant 1 : i32
    %7:2 = scf.for %arg10 = %c0_i32_9 to %6 step %c1_i32_10 iter_args(%arg11 = %4, %arg12 = %5) -> (vector<1x128xf32>, vector<1x128xf32>)  : i32 {
      %c128_i32 = arith.constant 128 : i32
      %23 = arith.muli %arg10, %c128_i32 : i32
      %24 = tpu.assume_multiple %23, 128 : i32
      %25 = arith.index_cast %24 : i32 to index
      %c0_27 = arith.constant 0 : index
      %26 = vector.load %arg8[%25, %c0_27] : memref<2048x288xf32, #tpu.memory_space<vmem>>, vector<128x288xf32>
      %27 = arith.truncf %26 : vector<128x288xf32> to vector<128x288xbf16>
      %cst_28 = arith.constant dense<0.000000e+00> : vector<128x128xf32>
      %28 = tpu.matmul %27, %2, %cst_28 {dimension_numbers = #tpu.dot_dimension_numbers<[1], [0], [0], [1], [0, 0, 1, 1], [], []>} : vector<128x288xbf16>, vector<288x128xbf16>, vector<128x128xf32> -> vector<128x128xf32>
      %29 = vector.broadcast %3 : vector<1x128xf32> to vector<128x128xf32>
      %30 = arith.addf %28, %29 : vector<128x128xf32>
      %31 = arith.index_cast %24 : i32 to index
      %c0_29 = arith.constant 0 : index
      %32 = vector.load %arg9[%31, %c0_29] : memref<2048x128xf32, #tpu.memory_space<vmem>>, vector<128x128xf32>
      tpu.vector_store %arg9[%31, %c0_29], %30 {strides = array<i32>} : memref<2048x128xf32, #tpu.memory_space<vmem>>, vector<128x128xf32>,
      %cst_30 = arith.constant dense<0.000000e+00> : vector<128xf32>
      %33 = vector.multi_reduction <add>, %30, %cst_30 [0] : vector<128x128xf32> to vector<128xf32>
      %34 = vector.shape_cast %33 : vector<128xf32> to vector<1x128xf32>
      %35 = arith.addf %arg11, %34 : vector<1x128xf32>
      %36 = arith.mulf %30, %30 : vector<128x128xf32>
      %cst_31 = arith.constant dense<0.000000e+00> : vector<128xf32>
      %37 = vector.multi_reduction <add>, %36, %cst_31 [0] : vector<128x128xf32> to vector<128xf32>
      %38 = vector.shape_cast %37 : vector<128xf32> to vector<1x128xf32>
      %39 = arith.addf %arg12, %38 : vector<1x128xf32>
      scf.yield %35, %39 : vector<1x128xf32>, vector<1x128xf32>
    }
    %c16_i32_11 = arith.constant 16 : i32
    %c0_12 = arith.constant 0 : index
    %c0_13 = arith.constant 0 : index
    %8 = vector.load %arg6[%c0_12, %c0_13] : memref<128x128xf32, #tpu.memory_space<vmem>>, vector<128x128xf32>
    %cst_14 = arith.constant dense<0.000000e+00> : vector<1x128xf32>
    %9 = tpu.matmul %7#0, %8, %cst_14 {dimension_numbers = #tpu.dot_dimension_numbers<[1], [0], [0], [1], [0, 0, 1, 1], [], []>} : vector<1x128xf32>, vector<128x128xf32>, vector<1x128xf32> -> vector<1x128xf32>
    %c0_15 = arith.constant 0 : index
    %c0_16 = arith.constant 0 : index
    %10 = vector.load %arg6[%c0_15, %c0_16] : memref<128x128xf32, #tpu.memory_space<vmem>>, vector<128x128xf32>
    %cst_17 = arith.constant dense<0.000000e+00> : vector<1x128xf32>
    %11 = tpu.matmul %7#1, %10, %cst_17 {dimension_numbers = #tpu.dot_dimension_numbers<[1], [0], [0], [1], [0, 0, 1, 1], [], []>} : vector<1x128xf32>, vector<128x128xf32>, vector<1x128xf32> -> vector<1x128xf32>
    %12 = arith.mulf %9, %9 : vector<1x128xf32>
    %13 = arith.subf %11, %12 : vector<1x128xf32>
    %c0_18 = arith.constant 0 : index
    %c0_19 = arith.constant 0 : index
    %14 = vector.load %arg4[%c0_18, %c0_19] : memref<1x128xf32, #tpu.memory_space<vmem>>, vector<1x128xf32>
    %cst_20 = arith.constant 9.99999974E-6 : f32
    %15 = vector.broadcast %cst_20 : f32 to vector<1x128xf32>
    %16 = arith.addf %13, %15 : vector<1x128xf32>
    %17 = math.rsqrt %16 : vector<1x128xf32>
    %18 = arith.mulf %14, %17 : vector<1x128xf32>
    %c0_21 = arith.constant 0 : index
    %c0_22 = arith.constant 0 : index
    %19 = vector.load %arg5[%c0_21, %c0_22] : memref<1x128xf32, #tpu.memory_space<vmem>>, vector<1x128xf32>
    %20 = arith.mulf %9, %18 : vector<1x128xf32>
    %21 = arith.subf %19, %20 : vector<1x128xf32>
    %c0_i32_23 = arith.constant 0 : i32
    %c16_i32_24 = arith.constant 16 : i32
    %22 = arith.addi %c0_i32_23, %c16_i32_24 : i32
    %c1_i32_25 = arith.constant 1 : i32
    scf.for %arg10 = %c0_i32_23 to %22 step %c1_i32_25  : i32 {
      %c128_i32 = arith.constant 128 : i32
      %23 = arith.muli %arg10, %c128_i32 : i32
      %24 = tpu.assume_multiple %23, 128 : i32
      %25 = arith.index_cast %24 : i32 to index
      %c0_27 = arith.constant 0 : index
      %26 = vector.load %arg9[%25, %c0_27] : memref<2048x128xf32, #tpu.memory_space<vmem>>, vector<128x128xf32>
      %27 = vector.broadcast %18 : vector<1x128xf32> to vector<128x128xf32>
      %28 = arith.mulf %26, %27 : vector<128x128xf32>
      %29 = vector.broadcast %21 : vector<1x128xf32> to vector<128x128xf32>
      %30 = arith.addf %28, %29 : vector<128x128xf32>
      %cst_28 = arith.constant 0.000000e+00 : f32
      %31 = vector.broadcast %cst_28 : f32 to vector<128x128xf32>
      %32 = arith.cmpf oge, %30, %31 : vector<128x128xf32>
      %cst_29 = arith.constant 2.000000e-01 : f32
      %33 = vector.broadcast %cst_29 : f32 to vector<128x128xf32>
      %34 = arith.mulf %33, %30 : vector<128x128xf32>
      %35 = arith.select %32, %30, %34 : vector<128x128xi1>, vector<128x128xf32>
      %36 = arith.index_cast %24 : i32 to index
      %c0_30 = arith.constant 0 : index
      %37 = vector.load %arg7[%36, %c0_30] : memref<2048x128xf32, #tpu.memory_space<vmem>>, vector<128x128xf32>
      tpu.vector_store %arg7[%36, %c0_30], %35 {strides = array<i32>} : memref<2048x128xf32, #tpu.memory_space<vmem>>, vector<128x128xf32>,
    }
    %c16_i32_26 = arith.constant 16 : i32
    return
  }
  func.func @transform_0(%arg0: i32) -> (i32, i32, i32) {
    %c0_i32 = arith.constant 0 : i32
    %c0_i32_0 = arith.constant 0 : i32
    %c0_i32_1 = arith.constant 0 : i32
    %c0_i32_2 = arith.constant 0 : i32
    return %c0_i32, %c0_i32_0, %c0_i32_1 : i32, i32, i32
  }
  func.func @transform_1(%arg0: i32) -> (i32, i32) {
    %c0_i32 = arith.constant 0 : i32
    %c0_i32_0 = arith.constant 0 : i32
    %c0_i32_1 = arith.constant 0 : i32
    return %c0_i32, %c0_i32_0 : i32, i32
  }
  func.func @transform_2(%arg0: i32) -> (i32, i32) {
    %c0_i32 = arith.constant 0 : i32
    %c0_i32_0 = arith.constant 0 : i32
    %c0_i32_1 = arith.constant 0 : i32
    return %c0_i32, %c0_i32_0 : i32, i32
  }
  func.func @transform_3(%arg0: i32) -> (i32, i32) {
    %c0_i32 = arith.constant 0 : i32
    %c0_i32_0 = arith.constant 0 : i32
    %c0_i32_1 = arith.constant 0 : i32
    return %c0_i32, %c0_i32_0 : i32, i32
  }
  func.func @transform_4(%arg0: i32) -> (i32, i32) {
    %c0_i32 = arith.constant 0 : i32
    %c0_i32_0 = arith.constant 0 : i32
    %c0_i32_1 = arith.constant 0 : i32
    return %c0_i32, %c0_i32_0 : i32, i32
  }
  func.func @transform_5(%arg0: i32) -> (i32, i32) {
    %c0_i32 = arith.constant 0 : i32
    %c0_i32_0 = arith.constant 0 : i32
    %c0_i32_1 = arith.constant 0 : i32
    return %c0_i32, %c0_i32_0 : i32, i32
  }
  func.func @transform_6(%arg0: i32) -> (i32, i32) {
    %c0_i32 = arith.constant 0 : i32
    %c0_i32_0 = arith.constant 0 : i32
    %c0_i32_1 = arith.constant 0 : i32
    return %c0_i32, %c0_i32_0 : i32, i32
  }
}

module attributes {stable_mosaic.version = 11 : i64} {
  func.func @_deconv_bn_lrelu_kernel(%arg0: i32, %arg1: memref<132x66x32xf32, #tpu.memory_space<vmem>>, %arg2: memref<288x128xbf16, #tpu.memory_space<vmem>>, %arg3: memref<1x128xf32, #tpu.memory_space<vmem>>, %arg4: memref<1x128xf32, #tpu.memory_space<vmem>>, %arg5: memref<1x128xf32, #tpu.memory_space<vmem>>, %arg6: memref<128x128xf32, #tpu.memory_space<vmem>>, %arg7: memref<8192x4xf32, #tpu.memory_space<vmem>>, %arg8: memref<8192x288xf32, #tpu.memory_space<vmem>>, %arg9: memref<8192x128xf32, #tpu.memory_space<vmem>>) attributes {dimension_semantics = [#tpu.dimension_semantics<arbitrary>], iteration_bounds = array<i64: 1>, scalar_prefetch = 0 : i64, scratch_operands = 2 : i64, tpu.core_type = #tpu.core_type<tc>, window_params = [{pipeline_mode = #tpu.pipeline_mode<synchronous>, transform_indices = @transform_0, window_bounds = array<i64: 132, 66, 32>}, {pipeline_mode = #tpu.pipeline_mode<synchronous>, transform_indices = @transform_1, window_bounds = array<i64: 288, 128>}, {pipeline_mode = #tpu.pipeline_mode<synchronous>, transform_indices = @transform_2, window_bounds = array<i64: 1, 128>}, {pipeline_mode = #tpu.pipeline_mode<synchronous>, transform_indices = @transform_3, window_bounds = array<i64: 1, 128>}, {pipeline_mode = #tpu.pipeline_mode<synchronous>, transform_indices = @transform_4, window_bounds = array<i64: 1, 128>}, {pipeline_mode = #tpu.pipeline_mode<synchronous>, transform_indices = @transform_5, window_bounds = array<i64: 128, 128>}, {pipeline_mode = #tpu.pipeline_mode<synchronous>, transform_indices = @transform_6, window_bounds = array<i64: 8192, 4>}]} {
    %c0_i32 = arith.constant 0 : i32
    %c64_i32 = arith.constant 64 : i32
    %0 = arith.addi %c0_i32, %c64_i32 : i32
    %c1_i32 = arith.constant 1 : i32
    scf.for %arg10 = %c0_i32 to %0 step %c1_i32  : i32 {
      %c64_i32_28 = arith.constant 64 : i32
      %23 = arith.muli %arg10, %c64_i32_28 : i32
      %c0_i32_29 = arith.constant 0 : i32
      %24 = arith.addi %c0_i32_29, %23 : i32
      %25 = tpu.assume_multiple %24, 8 : i32
      %c0_i32_30 = arith.constant 0 : i32
      %26 = arith.addi %c0_i32_30, %arg10 : i32
      %c0_i32_31 = arith.constant 0 : i32
      %27 = arith.addi %26, %c0_i32_31 : i32
      %28 = arith.index_cast %27 : i32 to index
      %c0_32 = arith.constant 0 : index
      %c0_33 = arith.constant 0 : index
      %29 = vector.load %arg1[%28, %c0_32, %c0_33] : memref<132x66x32xf32, #tpu.memory_space<vmem>>, vector<1x64x32xf32>
      %30 = vector.shape_cast %29 : vector<1x64x32xf32> to vector<64x32xf32>
      %31 = arith.index_cast %25 : i32 to index
      %c0_34 = arith.constant 0 : index
      %32 = vector.load %arg8[%31, %c0_34] : memref<8192x288xf32, #tpu.memory_space<vmem>>, vector<64x32xf32>
      tpu.vector_store %arg8[%31, %c0_34], %30 {strides = array<i32>} : memref<8192x288xf32, #tpu.memory_space<vmem>>, vector<64x32xf32>,
      %c0_i32_35 = arith.constant 0 : i32
      %33 = arith.addi %c0_i32_35, %arg10 : i32
      %c0_i32_36 = arith.constant 0 : i32
      %34 = arith.addi %33, %c0_i32_36 : i32
      %35 = arith.index_cast %34 : i32 to index
      %c1 = arith.constant 1 : index
      %c0_37 = arith.constant 0 : index
      %36 = vector.load %arg1[%35, %c1, %c0_37] : memref<132x66x32xf32, #tpu.memory_space<vmem>>, vector<1x64x32xf32>
      %37 = vector.shape_cast %36 : vector<1x64x32xf32> to vector<64x32xf32>
      %38 = arith.index_cast %25 : i32 to index
      %c32 = arith.constant 32 : index
      %39 = vector.load %arg8[%38, %c32] : memref<8192x288xf32, #tpu.memory_space<vmem>>, vector<64x32xf32>
      tpu.vector_store %arg8[%38, %c32], %37 {strides = array<i32>} : memref<8192x288xf32, #tpu.memory_space<vmem>>, vector<64x32xf32>,
      %c0_i32_38 = arith.constant 0 : i32
      %40 = arith.addi %c0_i32_38, %arg10 : i32
      %c0_i32_39 = arith.constant 0 : i32
      %41 = arith.addi %40, %c0_i32_39 : i32
      %42 = arith.index_cast %41 : i32 to index
      %c2 = arith.constant 2 : index
      %c0_40 = arith.constant 0 : index
      %43 = vector.load %arg1[%42, %c2, %c0_40] : memref<132x66x32xf32, #tpu.memory_space<vmem>>, vector<1x64x32xf32>
      %44 = vector.shape_cast %43 : vector<1x64x32xf32> to vector<64x32xf32>
      %45 = arith.index_cast %25 : i32 to index
      %c64 = arith.constant 64 : index
      %46 = vector.load %arg8[%45, %c64] : memref<8192x288xf32, #tpu.memory_space<vmem>>, vector<64x32xf32>
      tpu.vector_store %arg8[%45, %c64], %44 {strides = array<i32>} : memref<8192x288xf32, #tpu.memory_space<vmem>>, vector<64x32xf32>,
      %c0_i32_41 = arith.constant 0 : i32
      %47 = arith.addi %c0_i32_41, %arg10 : i32
      %c1_i32_42 = arith.constant 1 : i32
      %48 = arith.addi %47, %c1_i32_42 : i32
      %49 = arith.index_cast %48 : i32 to index
      %c0_43 = arith.constant 0 : index
      %c0_44 = arith.constant 0 : index
      %50 = vector.load %arg1[%49, %c0_43, %c0_44] : memref<132x66x32xf32, #tpu.memory_space<vmem>>, vector<1x64x32xf32>
      %51 = vector.shape_cast %50 : vector<1x64x32xf32> to vector<64x32xf32>
      %52 = arith.index_cast %25 : i32 to index
      %c96 = arith.constant 96 : index
      %53 = vector.load %arg8[%52, %c96] : memref<8192x288xf32, #tpu.memory_space<vmem>>, vector<64x32xf32>
      tpu.vector_store %arg8[%52, %c96], %51 {strides = array<i32>} : memref<8192x288xf32, #tpu.memory_space<vmem>>, vector<64x32xf32>,
      %c0_i32_45 = arith.constant 0 : i32
      %54 = arith.addi %c0_i32_45, %arg10 : i32
      %c1_i32_46 = arith.constant 1 : i32
      %55 = arith.addi %54, %c1_i32_46 : i32
      %56 = arith.index_cast %55 : i32 to index
      %c1_47 = arith.constant 1 : index
      %c0_48 = arith.constant 0 : index
      %57 = vector.load %arg1[%56, %c1_47, %c0_48] : memref<132x66x32xf32, #tpu.memory_space<vmem>>, vector<1x64x32xf32>
      %58 = vector.shape_cast %57 : vector<1x64x32xf32> to vector<64x32xf32>
      %59 = arith.index_cast %25 : i32 to index
      %c128 = arith.constant 128 : index
      %60 = vector.load %arg8[%59, %c128] : memref<8192x288xf32, #tpu.memory_space<vmem>>, vector<64x32xf32>
      tpu.vector_store %arg8[%59, %c128], %58 {strides = array<i32>} : memref<8192x288xf32, #tpu.memory_space<vmem>>, vector<64x32xf32>,
      %c0_i32_49 = arith.constant 0 : i32
      %61 = arith.addi %c0_i32_49, %arg10 : i32
      %c1_i32_50 = arith.constant 1 : i32
      %62 = arith.addi %61, %c1_i32_50 : i32
      %63 = arith.index_cast %62 : i32 to index
      %c2_51 = arith.constant 2 : index
      %c0_52 = arith.constant 0 : index
      %64 = vector.load %arg1[%63, %c2_51, %c0_52] : memref<132x66x32xf32, #tpu.memory_space<vmem>>, vector<1x64x32xf32>
      %65 = vector.shape_cast %64 : vector<1x64x32xf32> to vector<64x32xf32>
      %66 = arith.index_cast %25 : i32 to index
      %c160 = arith.constant 160 : index
      %67 = vector.load %arg8[%66, %c160] : memref<8192x288xf32, #tpu.memory_space<vmem>>, vector<64x32xf32>
      tpu.vector_store %arg8[%66, %c160], %65 {strides = array<i32>} : memref<8192x288xf32, #tpu.memory_space<vmem>>, vector<64x32xf32>,
      %c0_i32_53 = arith.constant 0 : i32
      %68 = arith.addi %c0_i32_53, %arg10 : i32
      %c2_i32 = arith.constant 2 : i32
      %69 = arith.addi %68, %c2_i32 : i32
      %70 = arith.index_cast %69 : i32 to index
      %c0_54 = arith.constant 0 : index
      %c0_55 = arith.constant 0 : index
      %71 = vector.load %arg1[%70, %c0_54, %c0_55] : memref<132x66x32xf32, #tpu.memory_space<vmem>>, vector<1x64x32xf32>
      %72 = vector.shape_cast %71 : vector<1x64x32xf32> to vector<64x32xf32>
      %73 = arith.index_cast %25 : i32 to index
      %c192 = arith.constant 192 : index
      %74 = vector.load %arg8[%73, %c192] : memref<8192x288xf32, #tpu.memory_space<vmem>>, vector<64x32xf32>
      tpu.vector_store %arg8[%73, %c192], %72 {strides = array<i32>} : memref<8192x288xf32, #tpu.memory_space<vmem>>, vector<64x32xf32>,
      %c0_i32_56 = arith.constant 0 : i32
      %75 = arith.addi %c0_i32_56, %arg10 : i32
      %c2_i32_57 = arith.constant 2 : i32
      %76 = arith.addi %75, %c2_i32_57 : i32
      %77 = arith.index_cast %76 : i32 to index
      %c1_58 = arith.constant 1 : index
      %c0_59 = arith.constant 0 : index
      %78 = vector.load %arg1[%77, %c1_58, %c0_59] : memref<132x66x32xf32, #tpu.memory_space<vmem>>, vector<1x64x32xf32>
      %79 = vector.shape_cast %78 : vector<1x64x32xf32> to vector<64x32xf32>
      %80 = arith.index_cast %25 : i32 to index
      %c224 = arith.constant 224 : index
      %81 = vector.load %arg8[%80, %c224] : memref<8192x288xf32, #tpu.memory_space<vmem>>, vector<64x32xf32>
      tpu.vector_store %arg8[%80, %c224], %79 {strides = array<i32>} : memref<8192x288xf32, #tpu.memory_space<vmem>>, vector<64x32xf32>,
      %c0_i32_60 = arith.constant 0 : i32
      %82 = arith.addi %c0_i32_60, %arg10 : i32
      %c2_i32_61 = arith.constant 2 : i32
      %83 = arith.addi %82, %c2_i32_61 : i32
      %84 = arith.index_cast %83 : i32 to index
      %c2_62 = arith.constant 2 : index
      %c0_63 = arith.constant 0 : index
      %85 = vector.load %arg1[%84, %c2_62, %c0_63] : memref<132x66x32xf32, #tpu.memory_space<vmem>>, vector<1x64x32xf32>
      %86 = vector.shape_cast %85 : vector<1x64x32xf32> to vector<64x32xf32>
      %87 = arith.index_cast %25 : i32 to index
      %c256 = arith.constant 256 : index
      %88 = vector.load %arg8[%87, %c256] : memref<8192x288xf32, #tpu.memory_space<vmem>>, vector<64x32xf32>
      tpu.vector_store %arg8[%87, %c256], %86 {strides = array<i32>} : memref<8192x288xf32, #tpu.memory_space<vmem>>, vector<64x32xf32>,
    }
    %c64_i32_0 = arith.constant 64 : i32
    %c0_i32_1 = arith.constant 0 : i32
    %c64_i32_2 = arith.constant 64 : i32
    %1 = arith.addi %c0_i32_1, %c64_i32_2 : i32
    %c1_i32_3 = arith.constant 1 : i32
    scf.for %arg10 = %c0_i32_1 to %1 step %c1_i32_3  : i32 {
      %c64_i32_28 = arith.constant 64 : i32
      %23 = arith.muli %arg10, %c64_i32_28 : i32
      %c4096_i32 = arith.constant 4096 : i32
      %24 = arith.addi %c4096_i32, %23 : i32
      %25 = tpu.assume_multiple %24, 8 : i32
      %c66_i32 = arith.constant 66 : i32
      %26 = arith.addi %c66_i32, %arg10 : i32
      %c0_i32_29 = arith.constant 0 : i32
      %27 = arith.addi %26, %c0_i32_29 : i32
      %28 = arith.index_cast %27 : i32 to index
      %c0_30 = arith.constant 0 : index
      %c0_31 = arith.constant 0 : index
      %29 = vector.load %arg1[%28, %c0_30, %c0_31] : memref<132x66x32xf32, #tpu.memory_space<vmem>>, vector<1x64x32xf32>
      %30 = vector.shape_cast %29 : vector<1x64x32xf32> to vector<64x32xf32>
      %31 = arith.index_cast %25 : i32 to index
      %c0_32 = arith.constant 0 : index
      %32 = vector.load %arg8[%31, %c0_32] : memref<8192x288xf32, #tpu.memory_space<vmem>>, vector<64x32xf32>
      tpu.vector_store %arg8[%31, %c0_32], %30 {strides = array<i32>} : memref<8192x288xf32, #tpu.memory_space<vmem>>, vector<64x32xf32>,
      %c66_i32_33 = arith.constant 66 : i32
      %33 = arith.addi %c66_i32_33, %arg10 : i32
      %c0_i32_34 = arith.constant 0 : i32
      %34 = arith.addi %33, %c0_i32_34 : i32
      %35 = arith.index_cast %34 : i32 to index
      %c1 = arith.constant 1 : index
      %c0_35 = arith.constant 0 : index
      %36 = vector.load %arg1[%35, %c1, %c0_35] : memref<132x66x32xf32, #tpu.memory_space<vmem>>, vector<1x64x32xf32>
      %37 = vector.shape_cast %36 : vector<1x64x32xf32> to vector<64x32xf32>
      %38 = arith.index_cast %25 : i32 to index
      %c32 = arith.constant 32 : index
      %39 = vector.load %arg8[%38, %c32] : memref<8192x288xf32, #tpu.memory_space<vmem>>, vector<64x32xf32>
      tpu.vector_store %arg8[%38, %c32], %37 {strides = array<i32>} : memref<8192x288xf32, #tpu.memory_space<vmem>>, vector<64x32xf32>,
      %c66_i32_36 = arith.constant 66 : i32
      %40 = arith.addi %c66_i32_36, %arg10 : i32
      %c0_i32_37 = arith.constant 0 : i32
      %41 = arith.addi %40, %c0_i32_37 : i32
      %42 = arith.index_cast %41 : i32 to index
      %c2 = arith.constant 2 : index
      %c0_38 = arith.constant 0 : index
      %43 = vector.load %arg1[%42, %c2, %c0_38] : memref<132x66x32xf32, #tpu.memory_space<vmem>>, vector<1x64x32xf32>
      %44 = vector.shape_cast %43 : vector<1x64x32xf32> to vector<64x32xf32>
      %45 = arith.index_cast %25 : i32 to index
      %c64 = arith.constant 64 : index
      %46 = vector.load %arg8[%45, %c64] : memref<8192x288xf32, #tpu.memory_space<vmem>>, vector<64x32xf32>
      tpu.vector_store %arg8[%45, %c64], %44 {strides = array<i32>} : memref<8192x288xf32, #tpu.memory_space<vmem>>, vector<64x32xf32>,
      %c66_i32_39 = arith.constant 66 : i32
      %47 = arith.addi %c66_i32_39, %arg10 : i32
      %c1_i32_40 = arith.constant 1 : i32
      %48 = arith.addi %47, %c1_i32_40 : i32
      %49 = arith.index_cast %48 : i32 to index
      %c0_41 = arith.constant 0 : index
      %c0_42 = arith.constant 0 : index
      %50 = vector.load %arg1[%49, %c0_41, %c0_42] : memref<132x66x32xf32, #tpu.memory_space<vmem>>, vector<1x64x32xf32>
      %51 = vector.shape_cast %50 : vector<1x64x32xf32> to vector<64x32xf32>
      %52 = arith.index_cast %25 : i32 to index
      %c96 = arith.constant 96 : index
      %53 = vector.load %arg8[%52, %c96] : memref<8192x288xf32, #tpu.memory_space<vmem>>, vector<64x32xf32>
      tpu.vector_store %arg8[%52, %c96], %51 {strides = array<i32>} : memref<8192x288xf32, #tpu.memory_space<vmem>>, vector<64x32xf32>,
      %c66_i32_43 = arith.constant 66 : i32
      %54 = arith.addi %c66_i32_43, %arg10 : i32
      %c1_i32_44 = arith.constant 1 : i32
      %55 = arith.addi %54, %c1_i32_44 : i32
      %56 = arith.index_cast %55 : i32 to index
      %c1_45 = arith.constant 1 : index
      %c0_46 = arith.constant 0 : index
      %57 = vector.load %arg1[%56, %c1_45, %c0_46] : memref<132x66x32xf32, #tpu.memory_space<vmem>>, vector<1x64x32xf32>
      %58 = vector.shape_cast %57 : vector<1x64x32xf32> to vector<64x32xf32>
      %59 = arith.index_cast %25 : i32 to index
      %c128 = arith.constant 128 : index
      %60 = vector.load %arg8[%59, %c128] : memref<8192x288xf32, #tpu.memory_space<vmem>>, vector<64x32xf32>
      tpu.vector_store %arg8[%59, %c128], %58 {strides = array<i32>} : memref<8192x288xf32, #tpu.memory_space<vmem>>, vector<64x32xf32>,
      %c66_i32_47 = arith.constant 66 : i32
      %61 = arith.addi %c66_i32_47, %arg10 : i32
      %c1_i32_48 = arith.constant 1 : i32
      %62 = arith.addi %61, %c1_i32_48 : i32
      %63 = arith.index_cast %62 : i32 to index
      %c2_49 = arith.constant 2 : index
      %c0_50 = arith.constant 0 : index
      %64 = vector.load %arg1[%63, %c2_49, %c0_50] : memref<132x66x32xf32, #tpu.memory_space<vmem>>, vector<1x64x32xf32>
      %65 = vector.shape_cast %64 : vector<1x64x32xf32> to vector<64x32xf32>
      %66 = arith.index_cast %25 : i32 to index
      %c160 = arith.constant 160 : index
      %67 = vector.load %arg8[%66, %c160] : memref<8192x288xf32, #tpu.memory_space<vmem>>, vector<64x32xf32>
      tpu.vector_store %arg8[%66, %c160], %65 {strides = array<i32>} : memref<8192x288xf32, #tpu.memory_space<vmem>>, vector<64x32xf32>,
      %c66_i32_51 = arith.constant 66 : i32
      %68 = arith.addi %c66_i32_51, %arg10 : i32
      %c2_i32 = arith.constant 2 : i32
      %69 = arith.addi %68, %c2_i32 : i32
      %70 = arith.index_cast %69 : i32 to index
      %c0_52 = arith.constant 0 : index
      %c0_53 = arith.constant 0 : index
      %71 = vector.load %arg1[%70, %c0_52, %c0_53] : memref<132x66x32xf32, #tpu.memory_space<vmem>>, vector<1x64x32xf32>
      %72 = vector.shape_cast %71 : vector<1x64x32xf32> to vector<64x32xf32>
      %73 = arith.index_cast %25 : i32 to index
      %c192 = arith.constant 192 : index
      %74 = vector.load %arg8[%73, %c192] : memref<8192x288xf32, #tpu.memory_space<vmem>>, vector<64x32xf32>
      tpu.vector_store %arg8[%73, %c192], %72 {strides = array<i32>} : memref<8192x288xf32, #tpu.memory_space<vmem>>, vector<64x32xf32>,
      %c66_i32_54 = arith.constant 66 : i32
      %75 = arith.addi %c66_i32_54, %arg10 : i32
      %c2_i32_55 = arith.constant 2 : i32
      %76 = arith.addi %75, %c2_i32_55 : i32
      %77 = arith.index_cast %76 : i32 to index
      %c1_56 = arith.constant 1 : index
      %c0_57 = arith.constant 0 : index
      %78 = vector.load %arg1[%77, %c1_56, %c0_57] : memref<132x66x32xf32, #tpu.memory_space<vmem>>, vector<1x64x32xf32>
      %79 = vector.shape_cast %78 : vector<1x64x32xf32> to vector<64x32xf32>
      %80 = arith.index_cast %25 : i32 to index
      %c224 = arith.constant 224 : index
      %81 = vector.load %arg8[%80, %c224] : memref<8192x288xf32, #tpu.memory_space<vmem>>, vector<64x32xf32>
      tpu.vector_store %arg8[%80, %c224], %79 {strides = array<i32>} : memref<8192x288xf32, #tpu.memory_space<vmem>>, vector<64x32xf32>,
      %c66_i32_58 = arith.constant 66 : i32
      %82 = arith.addi %c66_i32_58, %arg10 : i32
      %c2_i32_59 = arith.constant 2 : i32
      %83 = arith.addi %82, %c2_i32_59 : i32
      %84 = arith.index_cast %83 : i32 to index
      %c2_60 = arith.constant 2 : index
      %c0_61 = arith.constant 0 : index
      %85 = vector.load %arg1[%84, %c2_60, %c0_61] : memref<132x66x32xf32, #tpu.memory_space<vmem>>, vector<1x64x32xf32>
      %86 = vector.shape_cast %85 : vector<1x64x32xf32> to vector<64x32xf32>
      %87 = arith.index_cast %25 : i32 to index
      %c256 = arith.constant 256 : index
      %88 = vector.load %arg8[%87, %c256] : memref<8192x288xf32, #tpu.memory_space<vmem>>, vector<64x32xf32>
      tpu.vector_store %arg8[%87, %c256], %86 {strides = array<i32>} : memref<8192x288xf32, #tpu.memory_space<vmem>>, vector<64x32xf32>,
    }
    %c64_i32_4 = arith.constant 64 : i32
    %c0 = arith.constant 0 : index
    %c0_5 = arith.constant 0 : index
    %2 = vector.load %arg2[%c0, %c0_5] : memref<288x128xbf16, #tpu.memory_space<vmem>>, vector<288x128xbf16>
    %c0_6 = arith.constant 0 : index
    %c0_7 = arith.constant 0 : index
    %3 = vector.load %arg3[%c0_6, %c0_7] : memref<1x128xf32, #tpu.memory_space<vmem>>, vector<1x128xf32>
    %cst = arith.constant 0.000000e+00 : f32
    %4 = vector.broadcast %cst : f32 to vector<1x128xf32>
    %cst_8 = arith.constant 0.000000e+00 : f32
    %5 = vector.broadcast %cst_8 : f32 to vector<1x128xf32>
    %c0_i32_9 = arith.constant 0 : i32
    %c64_i32_10 = arith.constant 64 : i32
    %6 = arith.addi %c0_i32_9, %c64_i32_10 : i32
    %c1_i32_11 = arith.constant 1 : i32
    %7:2 = scf.for %arg10 = %c0_i32_9 to %6 step %c1_i32_11 iter_args(%arg11 = %4, %arg12 = %5) -> (vector<1x128xf32>, vector<1x128xf32>)  : i32 {
      %c128_i32 = arith.constant 128 : i32
      %23 = arith.muli %arg10, %c128_i32 : i32
      %24 = tpu.assume_multiple %23, 128 : i32
      %25 = arith.index_cast %24 : i32 to index
      %c0_28 = arith.constant 0 : index
      %26 = vector.load %arg8[%25, %c0_28] : memref<8192x288xf32, #tpu.memory_space<vmem>>, vector<128x288xf32>
      %27 = arith.truncf %26 : vector<128x288xf32> to vector<128x288xbf16>
      %cst_29 = arith.constant dense<0.000000e+00> : vector<128x128xf32>
      %28 = tpu.matmul %27, %2, %cst_29 {dimension_numbers = #tpu.dot_dimension_numbers<[1], [0], [0], [1], [0, 0, 1, 1], [], []>} : vector<128x288xbf16>, vector<288x128xbf16>, vector<128x128xf32> -> vector<128x128xf32>
      %29 = vector.broadcast %3 : vector<1x128xf32> to vector<128x128xf32>
      %30 = arith.addf %28, %29 : vector<128x128xf32>
      %31 = arith.index_cast %24 : i32 to index
      %c0_30 = arith.constant 0 : index
      %32 = vector.load %arg9[%31, %c0_30] : memref<8192x128xf32, #tpu.memory_space<vmem>>, vector<128x128xf32>
      tpu.vector_store %arg9[%31, %c0_30], %30 {strides = array<i32>} : memref<8192x128xf32, #tpu.memory_space<vmem>>, vector<128x128xf32>,
      %cst_31 = arith.constant dense<0.000000e+00> : vector<128xf32>
      %33 = vector.multi_reduction <add>, %30, %cst_31 [0] : vector<128x128xf32> to vector<128xf32>
      %34 = vector.shape_cast %33 : vector<128xf32> to vector<1x128xf32>
      %35 = arith.addf %arg11, %34 : vector<1x128xf32>
      %36 = arith.mulf %30, %30 : vector<128x128xf32>
      %cst_32 = arith.constant dense<0.000000e+00> : vector<128xf32>
      %37 = vector.multi_reduction <add>, %36, %cst_32 [0] : vector<128x128xf32> to vector<128xf32>
      %38 = vector.shape_cast %37 : vector<128xf32> to vector<1x128xf32>
      %39 = arith.addf %arg12, %38 : vector<1x128xf32>
      scf.yield %35, %39 : vector<1x128xf32>, vector<1x128xf32>
    }
    %c64_i32_12 = arith.constant 64 : i32
    %c0_13 = arith.constant 0 : index
    %c0_14 = arith.constant 0 : index
    %8 = vector.load %arg6[%c0_13, %c0_14] : memref<128x128xf32, #tpu.memory_space<vmem>>, vector<128x128xf32>
    %cst_15 = arith.constant dense<0.000000e+00> : vector<1x128xf32>
    %9 = tpu.matmul %7#0, %8, %cst_15 {dimension_numbers = #tpu.dot_dimension_numbers<[1], [0], [0], [1], [0, 0, 1, 1], [], []>} : vector<1x128xf32>, vector<128x128xf32>, vector<1x128xf32> -> vector<1x128xf32>
    %c0_16 = arith.constant 0 : index
    %c0_17 = arith.constant 0 : index
    %10 = vector.load %arg6[%c0_16, %c0_17] : memref<128x128xf32, #tpu.memory_space<vmem>>, vector<128x128xf32>
    %cst_18 = arith.constant dense<0.000000e+00> : vector<1x128xf32>
    %11 = tpu.matmul %7#1, %10, %cst_18 {dimension_numbers = #tpu.dot_dimension_numbers<[1], [0], [0], [1], [0, 0, 1, 1], [], []>} : vector<1x128xf32>, vector<128x128xf32>, vector<1x128xf32> -> vector<1x128xf32>
    %12 = arith.mulf %9, %9 : vector<1x128xf32>
    %13 = arith.subf %11, %12 : vector<1x128xf32>
    %c0_19 = arith.constant 0 : index
    %c0_20 = arith.constant 0 : index
    %14 = vector.load %arg4[%c0_19, %c0_20] : memref<1x128xf32, #tpu.memory_space<vmem>>, vector<1x128xf32>
    %cst_21 = arith.constant 9.99999974E-6 : f32
    %15 = vector.broadcast %cst_21 : f32 to vector<1x128xf32>
    %16 = arith.addf %13, %15 : vector<1x128xf32>
    %17 = math.rsqrt %16 : vector<1x128xf32>
    %18 = arith.mulf %14, %17 : vector<1x128xf32>
    %c0_22 = arith.constant 0 : index
    %c0_23 = arith.constant 0 : index
    %19 = vector.load %arg5[%c0_22, %c0_23] : memref<1x128xf32, #tpu.memory_space<vmem>>, vector<1x128xf32>
    %20 = arith.mulf %9, %18 : vector<1x128xf32>
    %21 = arith.subf %19, %20 : vector<1x128xf32>
    %c0_i32_24 = arith.constant 0 : i32
    %c64_i32_25 = arith.constant 64 : i32
    %22 = arith.addi %c0_i32_24, %c64_i32_25 : i32
    %c1_i32_26 = arith.constant 1 : i32
    scf.for %arg10 = %c0_i32_24 to %22 step %c1_i32_26  : i32 {
      %c128_i32 = arith.constant 128 : i32
      %23 = arith.muli %arg10, %c128_i32 : i32
      %24 = tpu.assume_multiple %23, 128 : i32
      %25 = arith.index_cast %24 : i32 to index
      %c0_28 = arith.constant 0 : index
      %26 = vector.load %arg9[%25, %c0_28] : memref<8192x128xf32, #tpu.memory_space<vmem>>, vector<128x128xf32>
      %27 = vector.broadcast %18 : vector<1x128xf32> to vector<128x128xf32>
      %28 = arith.mulf %26, %27 : vector<128x128xf32>
      %29 = vector.broadcast %21 : vector<1x128xf32> to vector<128x128xf32>
      %30 = arith.addf %28, %29 : vector<128x128xf32>
      %cst_29 = arith.constant 0.000000e+00 : f32
      %31 = vector.broadcast %cst_29 : f32 to vector<128x128xf32>
      %32 = arith.cmpf oge, %30, %31 : vector<128x128xf32>
      %cst_30 = arith.constant 2.000000e-01 : f32
      %33 = vector.broadcast %cst_30 : f32 to vector<128x128xf32>
      %34 = arith.mulf %33, %30 : vector<128x128xf32>
      %35 = arith.select %32, %30, %34 : vector<128x128xi1>, vector<128x128xf32>
      %36 = vector.extract_strided_slice %35 {offsets = [0, 0], sizes = [128, 4], strides = [1, 1]} : vector<128x128xf32> to vector<128x4xf32>
      %37 = arith.index_cast %24 : i32 to index
      %c0_31 = arith.constant 0 : index
      %38 = vector.load %arg7[%37, %c0_31] : memref<8192x4xf32, #tpu.memory_space<vmem>>, vector<128x4xf32>
      tpu.vector_store %arg7[%37, %c0_31], %36 {strides = array<i32>} : memref<8192x4xf32, #tpu.memory_space<vmem>>, vector<128x4xf32>,
    }
    %c64_i32_27 = arith.constant 64 : i32
    return
  }
  func.func @transform_0(%arg0: i32) -> (i32, i32, i32) {
    %c0_i32 = arith.constant 0 : i32
    %c0_i32_0 = arith.constant 0 : i32
    %c0_i32_1 = arith.constant 0 : i32
    %c0_i32_2 = arith.constant 0 : i32
    return %c0_i32, %c0_i32_0, %c0_i32_1 : i32, i32, i32
  }
  func.func @transform_1(%arg0: i32) -> (i32, i32) {
    %c0_i32 = arith.constant 0 : i32
    %c0_i32_0 = arith.constant 0 : i32
    %c0_i32_1 = arith.constant 0 : i32
    return %c0_i32, %c0_i32_0 : i32, i32
  }
  func.func @transform_2(%arg0: i32) -> (i32, i32) {
    %c0_i32 = arith.constant 0 : i32
    %c0_i32_0 = arith.constant 0 : i32
    %c0_i32_1 = arith.constant 0 : i32
    return %c0_i32, %c0_i32_0 : i32, i32
  }
  func.func @transform_3(%arg0: i32) -> (i32, i32) {
    %c0_i32 = arith.constant 0 : i32
    %c0_i32_0 = arith.constant 0 : i32
    %c0_i32_1 = arith.constant 0 : i32
    return %c0_i32, %c0_i32_0 : i32, i32
  }
  func.func @transform_4(%arg0: i32) -> (i32, i32) {
    %c0_i32 = arith.constant 0 : i32
    %c0_i32_0 = arith.constant 0 : i32
    %c0_i32_1 = arith.constant 0 : i32
    return %c0_i32, %c0_i32_0 : i32, i32
  }
  func.func @transform_5(%arg0: i32) -> (i32, i32) {
    %c0_i32 = arith.constant 0 : i32
    %c0_i32_0 = arith.constant 0 : i32
    %c0_i32_1 = arith.constant 0 : i32
    return %c0_i32, %c0_i32_0 : i32, i32
  }
  func.func @transform_6(%arg0: i32) -> (i32, i32) {
    %c0_i32 = arith.constant 0 : i32
    %c0_i32_0 = arith.constant 0 : i32
    %c0_i32_1 = arith.constant 0 : i32
    return %c0_i32, %c0_i32_0 : i32, i32
  }
}

</mosaic_0001>

<llo_original>
// kernel: tile.78
$region0: #{tile.78}
  #allocation2 [shape = 's32[1]{0}', space=sflag, size = 0x4, scoped, tag = 'scoped memory for tile.78']
  %s0 = inlined_call_operand.hbm [shape: f32[32], index: 0, kind: input, shape index: {}]
  %s1 = inlined_call_operand.vmem [shape: f32[4,32], index: 1, kind: output, shape index: {}]
  $region1: #{tile.78} parent=0
    #allocation0 [shape = 'u8[512]{0}', space=vmem, size = 0x400, scoped, tag = 'operand span for operand 0']
    #allocation1 [shape = 's32[1]{0}', space=sflag, size = 0x4, scoped, tag = 'scoped memory for tile.78']
    %2 = vsyncpa [#allocation1], 0
    // Predicated region
    $region2: #{tile.78} parent=1 // pred_check
      _
    $region3: #{tile.78} parent=1 // pred_check_branch
      %4 = sbr.rel (0) target = $region5
    $region4: #{tile.78} parent=1 // pred_region
      %s6 = ssub.s32 16, 16
      %7 = vsyncadd [#allocation1], %s6
      %s9 = sshll.u32 [#allocation0], 4
      %s10 = int_to_ptr.vmem [resolvable:$true] %s9
      %12 = dma.hbm_to_vmem [thread:$0]  %s0, 16, %s10, [#allocation1]
    $region5: #{tile.78} parent=1 // pred_fallthru
      _
    // Predicated region
    $region6: #{tile.78} parent=1 // pred_check
      _
    $region7: #{tile.78} parent=1 // pred_check_branch
      %14 = sbr.rel (0) target = $region9
    $region8: #{tile.78} parent=1 // pred_region
      %15 = dma.done [#allocation1], 16
    $region9: #{tile.78} parent=1 // pred_fallthru
      _
    %v16 = vld [vmem:[#allocation0] ss:$0 sm:$0xff]
    %17 = vst [vmem:[%s1] sm:$0xf] %v16
    %18 = vsyncpa [#allocation1], 1

// kernel: depth_generator_forward.5
$region0: #{depth_generator_forward.5}
  #allocation0 [shape = 'u32[]', space=smem, size = 0x4, offset = 0x4, fixed_abs, tag = 'smem constant byte address 0x4 - core index']
  #allocation1 [shape = 'u32[144,128]{1,0:T(1,128)}', space=vmem, size = 0x12000, scoped, tag = 'internal scratch']
  #allocation2 [shape = 'f32[32,288]{1,0:T(8,128)}', space=vmem, size = 0xc000, scoped, tag = 'scratch operand']
  #allocation3 [shape = 'f32[32,128]{1,0:T(8,128)}', space=vmem, size = 0x4000, scoped, tag = 'scratch operand']
  %s0 = inlined_call_operand.vmem [shape: f32[12,6,32], index: 0, kind: input, shape index: {}]
  %s1 = inlined_call_operand.vmem [shape: bf16[288,128], index: 1, kind: input, shape index: {}]
  %s2 = inlined_call_operand.vmem [shape: f32[1,128], index: 2, kind: input, shape index: {}]
  %s3 = inlined_call_operand.vmem [shape: f32[1,128], index: 3, kind: input, shape index: {}]
  %s4 = inlined_call_operand.vmem [shape: f32[1,128], index: 4, kind: input, shape index: {}]
  %s5 = inlined_call_operand.vmem [shape: f32[128,128], index: 5, kind: input, shape index: {}]
  %s6 = inlined_call_operand.vmem [shape: f32[32,128], index: 6, kind: output, shape index: {}]
  %s7 = sld [smem:[#allocation0]]
  $region34: #{depth_generator_forward.5} parent=0
    _
  %s9 = ssub.s32 1, %s7
  %s10 = scalar_select 0, %s9, %s7
  // Predicated region
  $region2: #{depth_generator_forward.5} parent=0 // pred_check
    _
  $region3: #{depth_generator_forward.5} parent=0 // pred_check_branch
    %12 = sbr.rel (0) target = $region5
  $region4: #{depth_generator_forward.5} parent=0 // pred_region
    _
  $region5: #{depth_generator_forward.5} parent=0 // pred_fallthru
    _
  // Predicated region
  $region6: #{depth_generator_forward.5} parent=0 // pred_check
    _
  $region7: #{depth_generator_forward.5} parent=0 // pred_check_branch
    %14 = sbr.rel (0) target = $region9
  $region8: #{depth_generator_forward.5} parent=0 // pred_region
    _
  $region9: #{depth_generator_forward.5} parent=0 // pred_fallthru
    _
  // Predicated region
  $region10: #{depth_generator_forward.5} parent=0 // pred_check
    _
  $region11: #{depth_generator_forward.5} parent=0 // pred_check_branch
    %16 = sbr.rel (0) target = $region13
  $region12: #{depth_generator_forward.5} parent=0 // pred_region
    _
  $region13: #{depth_generator_forward.5} parent=0 // pred_fallthru
    _
  // Predicated region
  $region14: #{depth_generator_forward.5} parent=0 // pred_check
    _
  $region15: #{depth_generator_forward.5} parent=0 // pred_check_branch
    %18 = sbr.rel (0) target = $region17
  $region16: #{depth_generator_forward.5} parent=0 // pred_region
    _
  $region17: #{depth_generator_forward.5} parent=0 // pred_fallthru
    _
  // Predicated region
  $region18: #{depth_generator_forward.5} parent=0 // pred_check
    _
  $region19: #{depth_generator_forward.5} parent=0 // pred_check_branch
    %20 = sbr.rel (0) target = $region21
  $region20: #{depth_generator_forward.5} parent=0 // pred_region
    _
  $region21: #{depth_generator_forward.5} parent=0 // pred_fallthru
    _
  // Predicated region
  $region22: #{depth_generator_forward.5} parent=0 // pred_check
    _
  $region23: #{depth_generator_forward.5} parent=0 // pred_check_branch
    %22 = sbr.rel (0) target = $region25
  $region24: #{depth_generator_forward.5} parent=0 // pred_region
    _
  $region25: #{depth_generator_forward.5} parent=0 // pred_fallthru
    _
  %v24 = vld [vmem:[%s0] sm:$0xf]
  %vm25 = vcmask 257024
  %26 = vst.msk [vmem:[#allocation2] sm:$0xf] %vm25, %v24
  %v27 = vld [vmem:[%s0 + $0x1] sm:$0xf]
  %29 = vrot.lane.b32.xlu0 %v27, 32
  %v30 = vpop.permute.xlu0 %29
  %vm32 = vcmask 519424
  %33 = vst.msk [vmem:[#allocation2] sm:$0xf] %vm32, %v30
  %v34 = vld [vmem:[%s0 + $0x2] sm:$0xf]
  %36 = vrot.lane.b32.xlu0 %v34, 64
  %v37 = vpop.permute.xlu0 %36
  %vm39 = vcmask 781824
  %40 = vst.msk [vmem:[#allocation2] sm:$0xf] %vm39, %v37
  %s41 = scalar_lea.vmem %s0, 8
  %v42 = vld [vmem:[%s41] sm:$0xf]
  %44 = vrot.lane.b32.xlu0 %v42, 96
  %v45 = vpop.permute.xlu0 %44
  %vm47 = vcmask 1044224
  %48 = vst.msk [vmem:[#allocation2] sm:$0xf] %vm47, %v45
  %v49 = vld [vmem:[%s41 + $0x1] sm:$0xf]
  %50 = vst.msk [vmem:[#allocation2 + $0x8] sm:$0xf] %vm25, %v49
  %v51 = vld [vmem:[%s41 + $0x2] sm:$0xf]
  %53 = vrot.lane.b32.xlu0 %v51, 32
  %v54 = vpop.permute.xlu0 %53
  %56 = vst.msk [vmem:[#allocation2 + $0x8] sm:$0xf] %vm32, %v54
  %s57 = scalar_lea.vmem %s0, 16
  %v58 = vld [vmem:[%s57] sm:$0xf]
  %60 = vrot.lane.b32.xlu0 %v58, 64
  %v61 = vpop.permute.xlu0 %60
  %63 = vst.msk [vmem:[#allocation2 + $0x8] sm:$0xf] %vm39, %v61
  %v64 = vld [vmem:[%s57 + $0x1] sm:$0xf]
  %66 = vrot.lane.b32.xlu0 %v64, 96
  %v67 = vpop.permute.xlu0 %66
  %69 = vst.msk [vmem:[#allocation2 + $0x8] sm:$0xf] %vm47, %v67
  %v70 = vld [vmem:[%s57 + $0x2] sm:$0xf]
  %71 = vst.msk [vmem:[#allocation2 + $0x10] sm:$0xf] %vm25, %v70
  %v72 = vld [vmem:[%s41] sm:$0xf]
  %v74 = vrot.slane %v72, 4
  %vm76 = vcmask 261124
  %77 = vst.msk [vmem:[#allocation2] sm:$0xf0] %vm76, %v74
  %v78 = vld [vmem:[%s41 + $0x1] sm:$0xf]
  %v80 = vrot.slane %v78, 4
  %81 = vrot.lane.b32.xlu0 %v80, 32
  %v82 = vpop.permute.xlu0 %81
  %vm84 = vcmask 523524
  %85 = vst.msk [vmem:[#allocation2] sm:$0xf0] %vm84, %v82
  %v86 = vld [vmem:[%s41 + $0x2] sm:$0xf]
  %v88 = vrot.slane %v86, 4
  %89 = vrot.lane.b32.xlu0 %v88, 64
  %v90 = vpop.permute.xlu0 %89
  %vm92 = vcmask 785924
  %93 = vst.msk [vmem:[#allocation2] sm:$0xf0] %vm92, %v90
  %v94 = vld [vmem:[%s57] sm:$0xf]
  %v96 = vrot.slane %v94, 4
  %97 = vrot.lane.b32.xlu0 %v96, 96
  %v98 = vpop.permute.xlu0 %97
  %vm100 = vcmask 1048324
  %101 = vst.msk [vmem:[#allocation2] sm:$0xf0] %vm100, %v98
  %v102 = vld [vmem:[%s57 + $0x1] sm:$0xf]
  %v104 = vrot.slane %v102, 4
  %106 = vst.msk [vmem:[#allocation2 + $0x8] sm:$0xf0] %vm76, %v104
  %v107 = vld [vmem:[%s57 + $0x2] sm:$0xf]
  %v109 = vrot.slane %v107, 4
  %110 = vrot.lane.b32.xlu0 %v109, 32
  %v111 = vpop.permute.xlu0 %110
  %113 = vst.msk [vmem:[#allocation2 + $0x8] sm:$0xf0] %vm84, %v111
  %s114 = scalar_lea.vmem %s0, 24
  %v115 = vld [vmem:[%s114] sm:$0xf]
  %v117 = vrot.slane %v115, 4
  %118 = vrot.lane.b32.xlu0 %v117, 64
  %v119 = vpop.permute.xlu0 %118
  %121 = vst.msk [vmem:[#allocation2 + $0x8] sm:$0xf0] %vm92, %v119
  %v122 = vld [vmem:[%s114 + $0x1] sm:$0xf]
  %v124 = vrot.slane %v122, 4
  %125 = vrot.lane.b32.xlu0 %v124, 96
  %v126 = vpop.permute.xlu0 %125
  %128 = vst.msk [vmem:[#allocation2 + $0x8] sm:$0xf0] %vm100, %v126
  %v129 = vld [vmem:[%s114 + $0x2] sm:$0xf]
  %v131 = vrot.slane %v129, 4
  %133 = vst.msk [vmem:[#allocation2 + $0x10] sm:$0xf0] %vm76, %v131
  %v134 = vld [vmem:[%s57] sm:$0xf]
  %135 = vst.msk [vmem:[#allocation2 + $0x18] sm:$0xf] %vm25, %v134
  %v136 = vld [vmem:[%s57 + $0x1] sm:$0xf]
  %138 = vrot.lane.b32.xlu0 %v136, 32
  %v139 = vpop.permute.xlu0 %138
  %141 = vst.msk [vmem:[#allocation2 + $0x18] sm:$0xf] %vm32, %v139
  %v142 = vld [vmem:[%s57 + $0x2] sm:$0xf]
  %144 = vrot.lane.b32.xlu0 %v142, 64
  %v145 = vpop.permute.xlu0 %144
  %147 = vst.msk [vmem:[#allocation2 + $0x18] sm:$0xf] %vm39, %v145
  %v148 = vld [vmem:[%s114] sm:$0xf]
  %150 = vrot.lane.b32.xlu0 %v148, 96
  %v151 = vpop.permute.xlu0 %150
  %153 = vst.msk [vmem:[#allocation2 + $0x18] sm:$0xf] %vm47, %v151
  %v154 = vld [vmem:[%s114 + $0x1] sm:$0xf]
  %155 = vst.msk [vmem:[#allocation2 + $0x20] sm:$0xf] %vm25, %v154
  %v156 = vld [vmem:[%s114 + $0x2] sm:$0xf]
  %158 = vrot.lane.b32.xlu0 %v156, 32
  %v159 = vpop.permute.xlu0 %158
  %161 = vst.msk [vmem:[#allocation2 + $0x20] sm:$0xf] %vm32, %v159
  %s162 = scalar_lea.vmem %s0, 32
  %v163 = vld [vmem:[%s162] sm:$0xf]
  %165 = vrot.lane.b32.xlu0 %v163, 64
  %v166 = vpop.permute.xlu0 %165
  %168 = vst.msk [vmem:[#allocation2 + $0x20] sm:$0xf] %vm39, %v166
  %v169 = vld [vmem:[%s162 + $0x1] sm:$0xf]
  %171 = vrot.lane.b32.xlu0 %v169, 96
  %v172 = vpop.permute.xlu0 %171
  %174 = vst.msk [vmem:[#allocation2 + $0x20] sm:$0xf] %vm47, %v172
  %v175 = vld [vmem:[%s162 + $0x2] sm:$0xf]
  %176 = vst.msk [vmem:[#allocation2 + $0x28] sm:$0xf] %vm25, %v175
  %v177 = vld [vmem:[%s114] sm:$0xf]
  %v179 = vrot.slane %v177, 4
  %181 = vst.msk [vmem:[#allocation2 + $0x18] sm:$0xf0] %vm76, %v179
  %v182 = vld [vmem:[%s114 + $0x1] sm:$0xf]
  %v184 = vrot.slane %v182, 4
  %185 = vrot.lane.b32.xlu0 %v184, 32
  %v186 = vpop.permute.xlu0 %185
  %188 = vst.msk [vmem:[#allocation2 + $0x18] sm:$0xf0] %vm84, %v186
  %v189 = vld [vmem:[%s114 + $0x2] sm:$0xf]
  %v191 = vrot.slane %v189, 4
  %192 = vrot.lane.b32.xlu0 %v191, 64
  %v193 = vpop.permute.xlu0 %192
  %195 = vst.msk [vmem:[#allocation2 + $0x18] sm:$0xf0] %vm92, %v193
  %v196 = vld [vmem:[%s162] sm:$0xf]
  %v198 = vrot.slane %v196, 4
  %199 = vrot.lane.b32.xlu0 %v198, 96
  %v200 = vpop.permute.xlu0 %199
  %202 = vst.msk [vmem:[#allocation2 + $0x18] sm:$0xf0] %vm100, %v200
  %v203 = vld [vmem:[%s162 + $0x1] sm:$0xf]
  %v205 = vrot.slane %v203, 4
  %207 = vst.msk [vmem:[#allocation2 + $0x20] sm:$0xf0] %vm76, %v205
  %v208 = vld [vmem:[%s162 + $0x2] sm:$0xf]
  %v210 = vrot.slane %v208, 4
  %211 = vrot.lane.b32.xlu0 %v210, 32
  %v212 = vpop.permute.xlu0 %211
  %214 = vst.msk [vmem:[#allocation2 + $0x20] sm:$0xf0] %vm84, %v212
  %s215 = scalar_lea.vmem %s0, 40
  %v216 = vld [vmem:[%s215] sm:$0xf]
  %v218 = vrot.slane %v216, 4
  %219 = vrot.lane.b32.xlu0 %v218, 64
  %v220 = vpop.permute.xlu0 %219
  %222 = vst.msk [vmem:[#allocation2 + $0x20] sm:$0xf0] %vm92, %v220
  %v223 = vld [vmem:[%s215 + $0x1] sm:$0xf]
  %v225 = vrot.slane %v223, 4
  %226 = vrot.lane.b32.xlu0 %v225, 96
  %v227 = vpop.permute.xlu0 %226
  %229 = vst.msk [vmem:[#allocation2 + $0x20] sm:$0xf0] %vm100, %v227
  %v230 = vld [vmem:[%s215 + $0x2] sm:$0xf]
  %v232 = vrot.slane %v230, 4
  %234 = vst.msk [vmem:[#allocation2 + $0x28] sm:$0xf0] %vm76, %v232
  %s235 = scalar_lea.vmem %s0, 48
  %v236 = vld [vmem:[%s235] sm:$0xf]
  %237 = vst.msk [vmem:[#allocation2 + $0x30] sm:$0xf] %vm25, %v236
  %v238 = vld [vmem:[%s235 + $0x1] sm:$0xf]
  %240 = vrot.lane.b32.xlu0 %v238, 32
  %v241 = vpop.permute.xlu0 %240
  %243 = vst.msk [vmem:[#allocation2 + $0x30] sm:$0xf] %vm32, %v241
  %v244 = vld [vmem:[%s235 + $0x2] sm:$0xf]
  %246 = vrot.lane.b32.xlu0 %v244, 64
  %v247 = vpop.permute.xlu0 %246
  %249 = vst.msk [vmem:[#allocation2 + $0x30] sm:$0xf] %vm39, %v247
  %s250 = scalar_lea.vmem %s0, 56
  %v251 = vld [vmem:[%s250] sm:$0xf]
  %253 = vrot.lane.b32.xlu0 %v251, 96
  %v254 = vpop.permute.xlu0 %253
  %256 = vst.msk [vmem:[#allocation2 + $0x30] sm:$0xf] %vm47, %v254
  %v257 = vld [vmem:[%s250 + $0x1] sm:$0xf]
  %258 = vst.msk [vmem:[#allocation2 + $0x38] sm:$0xf] %vm25, %v257
  %v259 = vld [vmem:[%s250 + $0x2] sm:$0xf]
  %261 = vrot.lane.b32.xlu0 %v259, 32
  %v262 = vpop.permute.xlu0 %261
  %264 = vst.msk [vmem:[#allocation2 + $0x38] sm:$0xf] %vm32, %v262
  %s265 = scalar_lea.vmem %s0, 64
  %v266 = vld [vmem:[%s265] sm:$0xf]
  %268 = vrot.lane.b32.xlu0 %v266, 64
  %v269 = vpop.permute.xlu0 %268
  %271 = vst.msk [vmem:[#allocation2 + $0x38] sm:$0xf] %vm39, %v269
  %v272 = vld [vmem:[%s265 + $0x1] sm:$0xf]
  %274 = vrot.lane.b32.xlu0 %v272, 96
  %v275 = vpop.permute.xlu0 %274
  %277 = vst.msk [vmem:[#allocation2 + $0x38] sm:$0xf] %vm47, %v275
  %v278 = vld [vmem:[%s265 + $0x2] sm:$0xf]
  %279 = vst.msk [vmem:[#allocation2 + $0x40] sm:$0xf] %vm25, %v278
  %v280 = vld [vmem:[%s250] sm:$0xf]
  %v282 = vrot.slane %v280, 4
  %284 = vst.msk [vmem:[#allocation2 + $0x30] sm:$0xf0] %vm76, %v282
  %v285 = vld [vmem:[%s250 + $0x1] sm:$0xf]
  %v287 = vrot.slane %v285, 4
  %288 = vrot.lane.b32.xlu0 %v287, 32
  %v289 = vpop.permute.xlu0 %288
  %291 = vst.msk [vmem:[#allocation2 + $0x30] sm:$0xf0] %vm84, %v289
  %v292 = vld [vmem:[%s250 + $0x2] sm:$0xf]
  %v294 = vrot.slane %v292, 4
  %295 = vrot.lane.b32.xlu0 %v294, 64
  %v296 = vpop.permute.xlu0 %295
  %298 = vst.msk [vmem:[#allocation2 + $0x30] sm:$0xf0] %vm92, %v296
  %v299 = vld [vmem:[%s265] sm:$0xf]
  %v301 = vrot.slane %v299, 4
  %302 = vrot.lane.b32.xlu0 %v301, 96
  %v303 = vpop.permute.xlu0 %302
  %305 = vst.msk [vmem:[#allocation2 + $0x30] sm:$0xf0] %vm100, %v303
  %v306 = vld [vmem:[%s265 + $0x1] sm:$0xf]
  %v308 = vrot.slane %v306, 4
  %310 = vst.msk [vmem:[#allocation2 + $0x38] sm:$0xf0] %vm76, %v308
  %v311 = vld [vmem:[%s265 + $0x2] sm:$0xf]
  %v313 = vrot.slane %v311, 4
  %314 = vrot.lane.b32.xlu0 %v313, 32
  %v315 = vpop.permute.xlu0 %314
  %317 = vst.msk [vmem:[#allocation2 + $0x38] sm:$0xf0] %vm84, %v315
  %s318 = scalar_lea.vmem %s0, 72
  %v319 = vld [vmem:[%s318] sm:$0xf]
  %v321 = vrot.slane %v319, 4
  %322 = vrot.lane.b32.xlu0 %v321, 64
  %v323 = vpop.permute.xlu0 %322
  %325 = vst.msk [vmem:[#allocation2 + $0x38] sm:$0xf0] %vm92, %v323
  %v326 = vld [vmem:[%s318 + $0x1] sm:$0xf]
  %v328 = vrot.slane %v326, 4
  %329 = vrot.lane.b32.xlu0 %v328, 96
  %v330 = vpop.permute.xlu0 %329
  %332 = vst.msk [vmem:[#allocation2 + $0x38] sm:$0xf0] %vm100, %v330
  %v333 = vld [vmem:[%s318 + $0x2] sm:$0xf]
  %v335 = vrot.slane %v333, 4
  %337 = vst.msk [vmem:[#allocation2 + $0x40] sm:$0xf0] %vm76, %v335
  %v338 = vld [vmem:[%s265] sm:$0xf]
  %339 = vst.msk [vmem:[#allocation2 + $0x48] sm:$0xf] %vm25, %v338
  %v340 = vld [vmem:[%s265 + $0x1] sm:$0xf]
  %342 = vrot.lane.b32.xlu0 %v340, 32
  %v343 = vpop.permute.xlu0 %342
  %345 = vst.msk [vmem:[#allocation2 + $0x48] sm:$0xf] %vm32, %v343
  %v346 = vld [vmem:[%s265 + $0x2] sm:$0xf]
  %348 = vrot.lane.b32.xlu0 %v346, 64
  %v349 = vpop.permute.xlu0 %348
  %351 = vst.msk [vmem:[#allocation2 + $0x48] sm:$0xf] %vm39, %v349
  %v352 = vld [vmem:[%s318] sm:$0xf]
  %354 = vrot.lane.b32.xlu0 %v352, 96
  %v355 = vpop.permute.xlu0 %354
  %357 = vst.msk [vmem:[#allocation2 + $0x48] sm:$0xf] %vm47, %v355
  %v358 = vld [vmem:[%s318 + $0x1] sm:$0xf]
  %359 = vst.msk [vmem:[#allocation2 + $0x50] sm:$0xf] %vm25, %v358
  %v360 = vld [vmem:[%s318 + $0x2] sm:$0xf]
  %362 = vrot.lane.b32.xlu0 %v360, 32
  %v363 = vpop.permute.xlu0 %362
  %365 = vst.msk [vmem:[#allocation2 + $0x50] sm:$0xf] %vm32, %v363
  %s366 = scalar_lea.vmem %s0, 80
  %v367 = vld [vmem:[%s366] sm:$0xf]
  %369 = vrot.lane.b32.xlu0 %v367, 64
  %v370 = vpop.permute.xlu0 %369
  %372 = vst.msk [vmem:[#allocation2 + $0x50] sm:$0xf] %vm39, %v370
  %v373 = vld [vmem:[%s366 + $0x1] sm:$0xf]
  %375 = vrot.lane.b32.xlu0 %v373, 96
  %v376 = vpop.permute.xlu0 %375
  %378 = vst.msk [vmem:[#allocation2 + $0x50] sm:$0xf] %vm47, %v376
  %v379 = vld [vmem:[%s366 + $0x2] sm:$0xf]
  %380 = vst.msk [vmem:[#allocation2 + $0x58] sm:$0xf] %vm25, %v379
  %v381 = vld [vmem:[%s318] sm:$0xf]
  %v383 = vrot.slane %v381, 4
  %385 = vst.msk [vmem:[#allocation2 + $0x48] sm:$0xf0] %vm76, %v383
  %v386 = vld [vmem:[%s318 + $0x1] sm:$0xf]
  %v388 = vrot.slane %v386, 4
  %389 = vrot.lane.b32.xlu0 %v388, 32
  %v390 = vpop.permute.xlu0 %389
  %392 = vst.msk [vmem:[#allocation2 + $0x48] sm:$0xf0] %vm84, %v390
  %v393 = vld [vmem:[%s318 + $0x2] sm:$0xf]
  %v395 = vrot.slane %v393, 4
  %396 = vrot.lane.b32.xlu0 %v395, 64
  %v397 = vpop.permute.xlu0 %396
  %399 = vst.msk [vmem:[#allocation2 + $0x48] sm:$0xf0] %vm92, %v397
  %v400 = vld [vmem:[%s366] sm:$0xf]
  %v402 = vrot.slane %v400, 4
  %403 = vrot.lane.b32.xlu0 %v402, 96
  %v404 = vpop.permute.xlu0 %403
  %406 = vst.msk [vmem:[#allocation2 + $0x48] sm:$0xf0] %vm100, %v404
  %v407 = vld [vmem:[%s366 + $0x1] sm:$0xf]
  %v409 = vrot.slane %v407, 4
  %411 = vst.msk [vmem:[#allocation2 + $0x50] sm:$0xf0] %vm76, %v409
  %v412 = vld [vmem:[%s366 + $0x2] sm:$0xf]
  %v414 = vrot.slane %v412, 4
  %415 = vrot.lane.b32.xlu0 %v414, 32
  %v416 = vpop.permute.xlu0 %415
  %418 = vst.msk [vmem:[#allocation2 + $0x50] sm:$0xf0] %vm84, %v416
  %s419 = scalar_lea.vmem %s0, 88
  %v420 = vld [vmem:[%s419] sm:$0xf]
  %v422 = vrot.slane %v420, 4
  %423 = vrot.lane.b32.xlu0 %v422, 64
  %v424 = vpop.permute.xlu0 %423
  %426 = vst.msk [vmem:[#allocation2 + $0x50] sm:$0xf0] %vm92, %v424
  %v427 = vld [vmem:[%s419 + $0x1] sm:$0xf]
  %v429 = vrot.slane %v427, 4
  %430 = vrot.lane.b32.xlu0 %v429, 96
  %v431 = vpop.permute.xlu0 %430
  %433 = vst.msk [vmem:[#allocation2 + $0x50] sm:$0xf0] %vm100, %v431
  %v434 = vld [vmem:[%s419 + $0x2] sm:$0xf]
  %v436 = vrot.slane %v434, 4
  %438 = vst.msk [vmem:[#allocation2 + $0x58] sm:$0xf0] %vm76, %v436
  %v439 = vld [vmem:[%s1] sm:$0xf]
  %v440 = vld [vmem:[%s1 + $0x4] sm:$0xf]
  %v441 = vld [vmem:[%s1 + $0x8] sm:$0xf]
  %v442 = vld [vmem:[%s1 + $0xc] sm:$0xf]
  %v443 = vld [vmem:[%s1 + $0x10] sm:$0xf]
  %v444 = vld [vmem:[%s1 + $0x14] sm:$0xf]
  %v445 = vld [vmem:[%s1 + $0x18] sm:$0xf]
  %v446 = vld [vmem:[%s1 + $0x1c] sm:$0xf]
  %v447 = vld [vmem:[%s1 + $0x20] sm:$0xf]
  %v448 = vld [vmem:[%s1 + $0x24] sm:$0xf]
  %v449 = vld [vmem:[%s1 + $0x28] sm:$0xf]
  %v450 = vld [vmem:[%s1 + $0x2c] sm:$0xf]
  %v451 = vld [vmem:[%s1 + $0x30] sm:$0xf]
  %v452 = vld [vmem:[%s1 + $0x34] sm:$0xf]
  %v453 = vld [vmem:[%s1 + $0x38] sm:$0xf]
  %v454 = vld [vmem:[%s1 + $0x3c] sm:$0xf]
  %v455 = vld [vmem:[%s1 + $0x40] sm:$0xf]
  %v456 = vld [vmem:[%s1 + $0x44] sm:$0xf]
  %v457 = vld [vmem:[%s1 + $0x48] sm:$0xf]
  %v458 = vld [vmem:[%s1 + $0x4c] sm:$0xf]
  %v459 = vld [vmem:[%s1 + $0x50] sm:$0xf]
  %v460 = vld [vmem:[%s1 + $0x54] sm:$0xf]
  %v461 = vld [vmem:[%s1 + $0x58] sm:$0xf]
  %v462 = vld [vmem:[%s1 + $0x5c] sm:$0xf]
  %v463 = vld [vmem:[%s1 + $0x60] sm:$0xf]
  %v464 = vld [vmem:[%s1 + $0x64] sm:$0xf]
  %v465 = vld [vmem:[%s1 + $0x68] sm:$0xf]
  %v466 = vld [vmem:[%s1 + $0x6c] sm:$0xf]
  %v467 = vld [vmem:[%s1 + $0x70] sm:$0xf]
  %v468 = vld [vmem:[%s1 + $0x74] sm:$0xf]
  %v469 = vld [vmem:[%s1 + $0x78] sm:$0xf]
  %v470 = vld [vmem:[%s1 + $0x7c] sm:$0xf]
  %v471 = vld [vmem:[%s1 + $0x80] sm:$0xf]
  %v472 = vld [vmem:[%s1 + $0x84] sm:$0xf]
  %v473 = vld [vmem:[%s1 + $0x88] sm:$0xf]
  %v474 = vld [vmem:[%s1 + $0x8c] sm:$0xf]
  %v475 = vld [vmem:[%s2] sm:$0x1]
  %s476 = smul.u32 0, 3
  %s477 = smul.addr %s476, 8
  %s478 = scalar_lea.vmem [#allocation2], %s477
  %v479 = vld [vmem:[%s478] sm:$0xff]
  %v480 = vld [vmem:[%s478 + $0x8] sm:$0xff]
  %v481 = vld [vmem:[%s478 + $0x10] sm:$0xff]
  %v482 = vld [vmem:[%s478 + $0x18] sm:$0xff]
  %v483 = vld [vmem:[%s478 + $0x20] sm:$0xff]
  %v484 = vld [vmem:[%s478 + $0x28] sm:$0xff]
  %v485 = vld [vmem:[%s478 + $0x30] sm:$0xff]
  %v486 = vld [vmem:[%s478 + $0x38] sm:$0xff]
  %v487 = vld [vmem:[%s478 + $0x40] sm:$0xff]
  %v488 = vld [vmem:[%s478 + $0x48] sm:$0xff]
  %v489 = vld [vmem:[%s478 + $0x50] sm:$0xff]
  %v490 = vld [vmem:[%s478 + $0x58] sm:$0xff]
  %v491 = vpack.c.bf16 %v482, %v479
  %v492 = vpack.c.bf16 %v483, %v480
  %v493 = vpack.c.bf16 %v484, %v481
  %v494 = vpack.c.bf16 %v488, %v485
  %v495 = vpack.c.bf16 %v489, %v486
  %v496 = vpack.c.bf16 %v490, %v487
  %v498 = vlaneseq
  %v499 = vshrl.u32 %v498, 7
  %v500 = vsub.s32 0, %v499
  %v501 = vrot.slane %v475, %v500
  %v539 = vunpack.c.l.b16 %v439
  %v540 = vunpack.c.l.b16 %v440
  %v541 = vunpack.c.l.b16 %v441
  %v542 = vunpack.c.l.b16 %v442
  %v543 = vunpack.c.l.b16 %v443
  %v544 = vunpack.c.l.b16 %v444
  %v545 = vunpack.c.l.b16 %v445
  %v546 = vunpack.c.l.b16 %v446
  %v547 = vunpack.c.l.b16 %v447
  %v548 = vunpack.c.l.b16 %v448
  %v549 = vunpack.c.l.b16 %v449
  %v550 = vunpack.c.l.b16 %v450
  %v551 = vunpack.c.l.b16 %v451
  %v552 = vunpack.c.l.b16 %v452
  %v553 = vunpack.c.l.b16 %v453
  %v554 = vunpack.c.l.b16 %v454
  %v555 = vunpack.c.l.b16 %v455
  %v556 = vunpack.c.l.b16 %v456
  %v557 = vunpack.c.l.b16 %v457
  %v558 = vunpack.c.l.b16 %v458
  %v559 = vunpack.c.l.b16 %v459
  %v560 = vunpack.c.l.b16 %v460
  %v561 = vunpack.c.l.b16 %v461
  %v562 = vunpack.c.l.b16 %v462
  %v563 = vunpack.c.l.b16 %v463
  %v564 = vunpack.c.l.b16 %v464
  %v565 = vunpack.c.l.b16 %v465
  %v566 = vunpack.c.l.b16 %v466
  %v567 = vunpack.c.l.b16 %v467
  %v568 = vunpack.c.l.b16 %v468
  %v569 = vunpack.c.l.b16 %v469
  %v570 = vunpack.c.l.b16 %v470
  %v571 = vunpack.c.l.b16 %v471
  %v572 = vunpack.c.l.b16 %v472
  %v573 = vunpack.c.l.b16 %v473
  %v574 = vunpack.c.l.b16 %v474
  %v575 = vpack.c.b16 %v540, %v539
  %v576 = vpack.c.b16 %v542, %v541
  %v577 = vpack.c.b16 %v544, %v543
  %v578 = vpack.c.b16 %v546, %v545
  %v579 = vpack.c.b16 %v548, %v547
  %v580 = vpack.c.b16 %v550, %v549
  %v581 = vpack.c.b16 %v552, %v551
  %v582 = vpack.c.b16 %v554, %v553
  %v583 = vpack.c.b16 %v556, %v555
  %v584 = vpack.c.b16 %v558, %v557
  %v585 = vpack.c.b16 %v560, %v559
  %v586 = vpack.c.b16 %v562, %v561
  %v587 = vpack.c.b16 %v564, %v563
  %v588 = vpack.c.b16 %v566, %v565
  %v589 = vpack.c.b16 %v568, %v567
  %v590 = vpack.c.b16 %v570, %v569
  %v591 = vpack.c.b16 %v572, %v571
  %v592 = vpack.c.b16 %v574, %v573
  %vm611 = vcmask 261120
  %v613 = vsel %vm611, %v493, 0
  %v616 = vsel %vm611, %v496, 0
  %618 = vmatprep.subr.bf16.mxu0 0
  %619 = vmatpush1.bf16.msra.mxu0 %v575
  %620 = vmatprep.subr.bf16.mxu0 0
  %621 = vmatpush1.bf16.msra.mxu0 %v576
  %622 = vmatprep.subr.bf16.mxu0 0
  %623 = vmatpush1.bf16.msra.mxu0 %v577
  %624 = vmatprep.subr.bf16.mxu0 0
  %625 = vmatpush1.bf16.msra.mxu0 %v578
  %626 = vmatprep.subr.bf16.mxu0 0
  %627 = vmatpush1.bf16.msra.mxu0 %v579
  %628 = vmatprep.subr.bf16.mxu0 0
  %629 = vmatpush1.bf16.msra.mxu0 %v580
  %630 = vmatprep.subr.bf16.mxu0 0
  %631 = vmatpush1.bf16.msra.mxu0 %v581
  %632 = vmatprep.subr.bf16.mxu0 0
  %633 = vmatpush1.bf16.msra.mxu0 %v582
  %634 = vmatprep.subr.bf16.mxu0 0
  %635 = vmatpush1.bf16.msra.mxu0 %v583
  %636 = vmatprep.subr.bf16.mxu0 0
  %637 = vmatpush1.bf16.msra.mxu0 %v584
  %638 = vmatprep.subr.bf16.mxu0 0
  %639 = vmatpush1.bf16.msra.mxu0 %v585
  %640 = vmatprep.subr.bf16.mxu0 0
  %641 = vmatpush1.bf16.msra.mxu0 %v586
  %642 = vmatprep.subr.bf16.mxu0 0
  %643 = vmatpush1.bf16.msra.mxu0 %v587
  %644 = vmatprep.subr.bf16.mxu0 0
  %645 = vmatpush1.bf16.msra.mxu0 %v588
  %646 = vmatprep.subr.bf16.mxu0 0
  %647 = vmatpush1.bf16.msra.mxu0 %v589
  %648 = vmatprep.subr.bf16.mxu0 0
  %649 = vmatpush1.bf16.msra.mxu0 %v590
  %650 = vmatprep.mubr.bf16.mxu0 %v492
  %651 = vmatmul.mubr.bf16.gmra.mrb[0].mxu0 %v491
  %v652 = vpop.f32.mrb[0].mxu0
  %v653 = vadd.f32 %v501, %v652
  %v654 = vpop.f32.mrb[0].mxu0
  %v655 = vpop.f32.mrb[0].mxu0
  %v656 = vadd.f32 %v501, %v655
  %v657 = vpop.f32.mrb[0].mxu0
  %658 = vmatprep.mubr.bf16.mxu0 %v495
  %659 = vmatmul.mubr.bf16.gmra.mrb[0].mxu0 %v494
  %v660 = vpop.f32.mrb[0].mxu0
  %v661 = vadd.f32 %v501, %v660
  %v662 = vpop.f32.mrb[0].mxu0
  %v663 = vpop.f32.mrb[0].mxu0
  %v664 = vadd.f32 %v501, %v663
  %v665 = vpop.f32.mrb[0].mxu0
  %666 = vdwg.mxu0
  %667 = vmatprep.subr.bf16.mxu0 0
  %668 = vmatpush1.bf16.msra.mxu0 %v591
  %669 = vmatprep.subr.bf16.mxu0 0
  %670 = vmatpush1.bf16.msra.mxu0 %v592
  %671 = vmatprep.subr.bf16.mxu0 0
  %672 = vmatpush1.bf16.msra.mxu0 0
  %673 = vmatprep.subr.bf16.mxu0 0
  %674 = vmatpush1.bf16.msra.mxu0 0
  %675 = vmatprep.subr.bf16.mxu0 0
  %676 = vmatpush1.bf16.msra.mxu0 0
  %677 = vmatprep.subr.bf16.mxu0 0
  %678 = vmatpush1.bf16.msra.mxu0 0
  %679 = vmatprep.subr.bf16.mxu0 0
  %680 = vmatpush1.bf16.msra.mxu0 0
  %681 = vmatprep.subr.bf16.mxu0 0
  %682 = vmatpush1.bf16.msra.mxu0 0
  %683 = vmatprep.subr.bf16.mxu0 0
  %684 = vmatpush1.bf16.msra.mxu0 0
  %685 = vmatprep.subr.bf16.mxu0 0
  %686 = vmatpush1.bf16.msra.mxu0 0
  %687 = vmatprep.subr.bf16.mxu0 0
  %688 = vmatpush1.bf16.msra.mxu0 0
  %689 = vmatprep.subr.bf16.mxu0 0
  %690 = vmatpush1.bf16.msra.mxu0 0
  %691 = vmatprep.subr.bf16.mxu0 0
  %692 = vmatpush1.bf16.msra.mxu0 0
  %693 = vmatprep.subr.bf16.mxu0 0
  %694 = vmatpush1.bf16.msra.mxu0 0
  %695 = vmatprep.subr.bf16.mxu0 0
  %696 = vmatpush1.bf16.msra.mxu0 0
  %697 = vmatprep.subr.bf16.mxu0 0
  %698 = vmatpush1.bf16.msra.mxu0 0
  %699 = vmatprep.mubr.bf16.mxu0 0
  %700 = vmatmul.mubr.bf16.gmra.mrb[0].mxu0 %v613
  %v701 = vpop.f32.mrb[0].mxu0
  %v702 = vadd.f32 %v653, %v701
  %v703 = vpop.f32.mrb[0].mxu0
  %v704 = vpop.f32.mrb[0].mxu0
  %v705 = vadd.f32 %v656, %v704
  %v706 = vpop.f32.mrb[0].mxu0
  %707 = vmatprep.mubr.bf16.mxu0 0
  %708 = vmatmul.mubr.bf16.gmra.mrb[0].mxu0 %v616
  %v709 = vpop.f32.mrb[0].mxu0
  %v710 = vadd.f32 %v661, %v709
  %v711 = vpop.f32.mrb[0].mxu0
  %v712 = vpop.f32.mrb[0].mxu0
  %v713 = vadd.f32 %v664, %v712
  %v714 = vpop.f32.mrb[0].mxu0
  %715 = vdwg.mxu0
  %716 = vst [vmem:[#allocation3] sm:$0xff] %v702
  %717 = vst [vmem:[#allocation3 + $0x8] sm:$0xff] %v705
  %718 = vst [vmem:[#allocation3 + $0x10] sm:$0xff] %v710
  %719 = vst [vmem:[#allocation3 + $0x18] sm:$0xff] %v713
  %v720 = vadd.f32 %v702, %v705
  %v721 = vadd.f32 %v720, %v710
  %v722 = vadd.f32 %v721, %v713
  %v723 = vrot.slane %v722, 4
  %v724 = vadd.f32 %v722, %v723
  %v725 = vrot.slane %v724, 2
  %v726 = vadd.f32 %v724, %v725
  %v727 = vrot.slane %v726, 1
  %v728 = vadd.f32 %v726, %v727
  %v729 = vadd.f32 %v728, 0.0
  %v730 = vmul.f32 %v702, %v702
  %v731 = vmul.f32 %v705, %v705
  %v732 = vmul.f32 %v710, %v710
  %v733 = vmul.f32 %v713, %v713
  %v734 = vadd.f32 %v730, %v731
  %v735 = vadd.f32 %v734, %v732
  %v736 = vadd.f32 %v735, %v733
  %v737 = vrot.slane %v736, 4
  %v738 = vadd.f32 %v736, %v737
  %v739 = vrot.slane %v738, 2
  %v740 = vadd.f32 %v738, %v739
  %v741 = vrot.slane %v740, 1
  %v742 = vadd.f32 %v740, %v741
  %v743 = vadd.f32 %v742, 0.0
  %v744 = vld [vmem:[%s5] sm:$0xff]
  %v745 = vld [vmem:[%s5 + $0x8] sm:$0xff]
  %v746 = vld [vmem:[%s5 + $0x10] sm:$0xff]
  %v747 = vld [vmem:[%s5 + $0x18] sm:$0xff]
  %v748 = vld [vmem:[%s5 + $0x20] sm:$0xff]
  %v749 = vld [vmem:[%s5 + $0x28] sm:$0xff]
  %v750 = vld [vmem:[%s5 + $0x30] sm:$0xff]
  %v751 = vld [vmem:[%s5 + $0x38] sm:$0xff]
  %v752 = vld [vmem:[%s5 + $0x40] sm:$0xff]
  %v753 = vld [vmem:[%s5 + $0x48] sm:$0xff]
  %v754 = vld [vmem:[%s5 + $0x50] sm:$0xff]
  %v755 = vld [vmem:[%s5 + $0x58] sm:$0xff]
  %v756 = vld [vmem:[%s5 + $0x60] sm:$0xff]
  %v757 = vld [vmem:[%s5 + $0x68] sm:$0xff]
  %v758 = vld [vmem:[%s5 + $0x70] sm:$0xff]
  %v759 = vld [vmem:[%s5 + $0x78] sm:$0xff]
  %760 = vmatprep.subr.mxu0 0.0
  %761 = vmatpush1.msra.mxu0 %v744
  %762 = vmatprep.subr.mxu0 0.0
  %763 = vmatpush1.msra.mxu0 %v745
  %764 = vmatprep.subr.mxu0 0.0
  %765 = vmatpush1.msra.mxu0 %v746
  %766 = vmatprep.subr.mxu0 0.0
  %767 = vmatpush1.msra.mxu0 %v747
  %768 = vmatprep.subr.mxu0 0.0
  %769 = vmatpush1.msra.mxu0 %v748
  %770 = vmatprep.subr.mxu0 0.0
  %771 = vmatpush1.msra.mxu0 %v749
  %772 = vmatprep.subr.mxu0 0.0
  %773 = vmatpush1.msra.mxu0 %v750
  %774 = vmatprep.subr.mxu0 0.0
  %775 = vmatpush1.msra.mxu0 %v751
  %776 = vmatprep.subr.mxu0 0.0
  %777 = vmatpush1.msra.mxu0 %v752
  %778 = vmatprep.subr.mxu0 0.0
  %779 = vmatpush1.msra.mxu0 %v753
  %780 = vmatprep.subr.mxu0 0.0
  %781 = vmatpush1.msra.mxu0 %v754
  %782 = vmatprep.subr.mxu0 0.0
  %783 = vmatpush1.msra.mxu0 %v755
  %784 = vmatprep.subr.mxu0 0.0
  %785 = vmatpush1.msra.mxu0 %v756
  %786 = vmatprep.subr.mxu0 0.0
  %787 = vmatpush1.msra.mxu0 %v757
  %788 = vmatprep.subr.mxu0 0.0
  %789 = vmatpush1.msra.mxu0 %v758
  %790 = vmatprep.subr.mxu0 0.0
  %791 = vmatpush1.msra.mxu0 %v759
  %792 = vmatprep.subr.mxu0 0.0
  %793 = vmatpush1.msra.mxu0 0.0
  %794 = vmatprep.subr.mxu0 0.0
  %795 = vmatpush1.msra.mxu0 0.0
  %796 = vmatprep.subr.mxu0 0.0
  %797 = vmatpush1.msra.mxu0 0.0
  %798 = vmatprep.subr.mxu0 0.0
  %799 = vmatpush1.msra.mxu0 0.0
  %800 = vmatprep.subr.mxu0 0.0
  %801 = vmatpush1.msra.mxu0 0.0
  %802 = vmatprep.subr.mxu0 0.0
  %803 = vmatpush1.msra.mxu0 0.0
  %804 = vmatprep.subr.mxu0 0.0
  %805 = vmatpush1.msra.mxu0 0.0
  %806 = vmatprep.subr.mxu0 0.0
  %807 = vmatpush1.msra.mxu0 0.0
  %808 = vmatprep.subr.mxu0 0.0
  %809 = vmatpush1.msra.mxu0 0.0
  %810 = vmatprep.subr.mxu0 0.0
  %811 = vmatpush1.msra.mxu0 0.0
  %812 = vmatprep.subr.mxu0 0.0
  %813 = vmatpush1.msra.mxu0 0.0
  %814 = vmatprep.subr.mxu0 0.0
  %815 = vmatpush1.msra.mxu0 0.0
  %816 = vmatprep.subr.mxu0 0.0
  %817 = vmatpush1.msra.mxu0 0.0
  %818 = vmatprep.subr.mxu0 0.0
  %819 = vmatpush1.msra.mxu0 0.0
  %820 = vmatprep.subr.mxu0 0.0
  %821 = vmatpush1.msra.mxu0 0.0
  %822 = vmatprep.subr.mxu0 0.0
  %823 = vmatpush1.msra.mxu0 0.0
  %824 = vmatprep.mubr.f32.mxu0 0.0
  %825 = vmatmul.mubr.f32.gmra.mrb[0].mxu0 %v729
  %v826 = vpop.f32.mrb[0].mxu0
  %v827 = vadd.f32 0.0, %v826
  %v828 = vpop.f32.mrb[0].mxu0
  %829 = vdwg.mxu0
  %830 = vmatprep.subr.mxu0 0.0
  %831 = vmatpush1.msra.mxu0 %v744
  %832 = vmatprep.subr.mxu0 0.0
  %833 = vmatpush1.msra.mxu0 %v745
  %834 = vmatprep.subr.mxu0 0.0
  %835 = vmatpush1.msra.mxu0 %v746
  %836 = vmatprep.subr.mxu0 0.0
  %837 = vmatpush1.msra.mxu0 %v747
  %838 = vmatprep.subr.mxu0 0.0
  %839 = vmatpush1.msra.mxu0 %v748
  %840 = vmatprep.subr.mxu0 0.0
  %841 = vmatpush1.msra.mxu0 %v749
  %842 = vmatprep.subr.mxu0 0.0
  %843 = vmatpush1.msra.mxu0 %v750
  %844 = vmatprep.subr.mxu0 0.0
  %845 = vmatpush1.msra.mxu0 %v751
  %846 = vmatprep.subr.mxu0 0.0
  %847 = vmatpush1.msra.mxu0 %v752
  %848 = vmatprep.subr.mxu0 0.0
  %849 = vmatpush1.msra.mxu0 %v753
  %850 = vmatprep.subr.mxu0 0.0
  %851 = vmatpush1.msra.mxu0 %v754
  %852 = vmatprep.subr.mxu0 0.0
  %853 = vmatpush1.msra.mxu0 %v755
  %854 = vmatprep.subr.mxu0 0.0
  %855 = vmatpush1.msra.mxu0 %v756
  %856 = vmatprep.subr.mxu0 0.0
  %857 = vmatpush1.msra.mxu0 %v757
  %858 = vmatprep.subr.mxu0 0.0
  %859 = vmatpush1.msra.mxu0 %v758
  %860 = vmatprep.subr.mxu0 0.0
  %861 = vmatpush1.msra.mxu0 %v759
  %862 = vmatprep.subr.mxu0 0.0
  %863 = vmatpush1.msra.mxu0 0.0
  %864 = vmatprep.subr.mxu0 0.0
  %865 = vmatpush1.msra.mxu0 0.0
  %866 = vmatprep.subr.mxu0 0.0
  %867 = vmatpush1.msra.mxu0 0.0
  %868 = vmatprep.subr.mxu0 0.0
  %869 = vmatpush1.msra.mxu0 0.0
  %870 = vmatprep.subr.mxu0 0.0
  %871 = vmatpush1.msra.mxu0 0.0
  %872 = vmatprep.subr.mxu0 0.0
  %873 = vmatpush1.msra.mxu0 0.0
  %874 = vmatprep.subr.mxu0 0.0
  %875 = vmatpush1.msra.mxu0 0.0
  %876 = vmatprep.subr.mxu0 0.0
  %877 = vmatpush1.msra.mxu0 0.0
  %878 = vmatprep.subr.mxu0 0.0
  %879 = vmatpush1.msra.mxu0 0.0
  %880 = vmatprep.subr.mxu0 0.0
  %881 = vmatpush1.msra.mxu0 0.0
  %882 = vmatprep.subr.mxu0 0.0
  %883 = vmatpush1.msra.mxu0 0.0
  %884 = vmatprep.subr.mxu0 0.0
  %885 = vmatpush1.msra.mxu0 0.0
  %886 = vmatprep.subr.mxu0 0.0
  %887 = vmatpush1.msra.mxu0 0.0
  %888 = vmatprep.subr.mxu0 0.0
  %889 = vmatpush1.msra.mxu0 0.0
  %890 = vmatprep.subr.mxu0 0.0
  %891 = vmatpush1.msra.mxu0 0.0
  %892 = vmatprep.subr.mxu0 0.0
  %893 = vmatpush1.msra.mxu0 0.0
  %894 = vmatprep.mubr.f32.mxu0 0.0
  %895 = vmatmul.mubr.f32.gmra.mrb[0].mxu0 %v743
  %v896 = vpop.f32.mrb[0].mxu0
  %v897 = vadd.f32 0.0, %v896
  %v898 = vpop.f32.mrb[0].mxu0
  %899 = vdwg.mxu0
  %v900 = vmul.f32 %v827, %v827
  %v901 = vsub.f32 %v897, %v900
  %v902 = vld [vmem:[%s3] sm:$0x1]
  %v903 = vadd.f32 %v901, 1e-05
  %v904 = vrsqrt.pop %v903
  %v905 = vmul.f32 %v902, %v904
  %v906 = vld [vmem:[%s4] sm:$0x1]
  %v907 = vmul.f32 %v827, %v905
  %v908 = vsub.f32 %v906, %v907
  %v909 = vld [vmem:[#allocation3] sm:$0xff]
  %v910 = vld [vmem:[#allocation3 + $0x8] sm:$0xff]
  %v911 = vld [vmem:[#allocation3 + $0x10] sm:$0xff]
  %v912 = vld [vmem:[#allocation3 + $0x18] sm:$0xff]
  %v914 = vlaneseq
  %v915 = vshrl.u32 %v914, 7
  %v916 = vsub.s32 0, %v915
  %v917 = vrot.slane %v905, %v916
  %v919 = vmul.f32 %v909, %v917
  %v920 = vmul.f32 %v910, %v917
  %v921 = vmul.f32 %v911, %v917
  %v922 = vmul.f32 %v912, %v917
  %v924 = vlaneseq
  %v925 = vshrl.u32 %v924, 7
  %v926 = vsub.s32 0, %v925
  %v927 = vrot.slane %v908, %v926
  %v929 = vadd.f32 %v919, %v927
  %v930 = vadd.f32 %v920, %v927
  %v931 = vadd.f32 %v921, %v927
  %v932 = vadd.f32 %v922, %v927
  %vm933 = vcmp.ge.f32.partialorder %v929, 0.0
  %vm934 = vcmp.ge.f32.partialorder %v930, 0.0
  %vm935 = vcmp.ge.f32.partialorder %v931, 0.0
  %vm936 = vcmp.ge.f32.partialorder %v932, 0.0
  %v937 = vmul.f32 %v929, 0.2
  %v938 = vmul.f32 %v930, 0.2
  %v939 = vmul.f32 %v931, 0.2
  %v940 = vmul.f32 %v932, 0.2
  %v941 = vsel %vm933, %v929, %v937
  %v942 = vsel %vm934, %v930, %v938
  %v943 = vsel %vm935, %v931, %v939
  %v944 = vsel %vm936, %v932, %v940
  %945 = vst [vmem:[%s6] sm:$0xff] %v941
  %946 = vst [vmem:[%s6 + $0x8] sm:$0xff] %v942
  %947 = vst [vmem:[%s6 + $0x10] sm:$0xff] %v943
  %948 = vst [vmem:[%s6 + $0x18] sm:$0xff] %v944
  // Predicated region
  $region26: #{depth_generator_forward.5} parent=0 // pred_check
    _
  $region27: #{depth_generator_forward.5} parent=0 // pred_check_branch
    %950 = sbr.rel (0) target = $region29
  $region28: #{depth_generator_forward.5} parent=0 // pred_region
    _
  $region29: #{depth_generator_forward.5} parent=0 // pred_fallthru
    _
  // Predicated region
  $region30: #{depth_generator_forward.5} parent=0 // pred_check
    _
  $region31: #{depth_generator_forward.5} parent=0 // pred_check_branch
    %952 = sbr.rel (0) target = $region33
  $region32: #{depth_generator_forward.5} parent=0 // pred_region
    _
  $region33: #{depth_generator_forward.5} parent=0 // pred_fallthru
    _

// kernel: depth_generator_forward.7
$region0: #{depth_generator_forward.7}
  #allocation0 [shape = 'u32[]', space=smem, size = 0x4, offset = 0x4, fixed_abs, tag = 'smem constant byte address 0x4 - core index']
  #allocation1 [shape = 'u32[144,128]{1,0:T(1,128)}', space=vmem, size = 0x12000, scoped, tag = 'internal scratch']
  #allocation2 [shape = 'f32[512,288]{1,0:T(8,128)}', space=vmem, size = 0xc0000, scoped, tag = 'scratch operand']
  #allocation3 [shape = 'f32[512,128]{1,0:T(8,128)}', space=vmem, size = 0x40000, scoped, tag = 'scratch operand']
  %s0 = inlined_call_operand.vmem [shape: f32[36,18,32], index: 0, kind: input, shape index: {}]
  %s1 = inlined_call_operand.vmem [shape: bf16[288,128], index: 1, kind: input, shape index: {}]
  %s2 = inlined_call_operand.vmem [shape: f32[1,128], index: 2, kind: input, shape index: {}]
  %s3 = inlined_call_operand.vmem [shape: f32[1,128], index: 3, kind: input, shape index: {}]
  %s4 = inlined_call_operand.vmem [shape: f32[1,128], index: 4, kind: input, shape index: {}]
  %s5 = inlined_call_operand.vmem [shape: f32[128,128], index: 5, kind: input, shape index: {}]
  %s6 = inlined_call_operand.vmem [shape: f32[512,128], index: 6, kind: output, shape index: {}]
  %s7 = sld [smem:[#allocation0]]
  $region62: #{depth_generator_forward.7} parent=0
    _
  %s9 = ssub.s32 1, %s7
  %s10 = scalar_select 0, %s9, %s7
  // Predicated region
  $region2: #{depth_generator_forward.7} parent=0 // pred_check
    _
  $region3: #{depth_generator_forward.7} parent=0 // pred_check_branch
    %12 = sbr.rel (0) target = $region5
  $region4: #{depth_generator_forward.7} parent=0 // pred_region
    _
  $region5: #{depth_generator_forward.7} parent=0 // pred_fallthru
    _
  // Predicated region
  $region6: #{depth_generator_forward.7} parent=0 // pred_check
    _
  $region7: #{depth_generator_forward.7} parent=0 // pred_check_branch
    %14 = sbr.rel (0) target = $region9
  $region8: #{depth_generator_forward.7} parent=0 // pred_region
    _
  $region9: #{depth_generator_forward.7} parent=0 // pred_fallthru
    _
  // Predicated region
  $region10: #{depth_generator_forward.7} parent=0 // pred_check
    _
  $region11: #{depth_generator_forward.7} parent=0 // pred_check_branch
    %16 = sbr.rel (0) target = $region13
  $region12: #{depth_generator_forward.7} parent=0 // pred_region
    _
  $region13: #{depth_generator_forward.7} parent=0 // pred_fallthru
    _
  // Predicated region
  $region14: #{depth_generator_forward.7} parent=0 // pred_check
    _
  $region15: #{depth_generator_forward.7} parent=0 // pred_check_branch
    %18 = sbr.rel (0) target = $region17
  $region16: #{depth_generator_forward.7} parent=0 // pred_region
    _
  $region17: #{depth_generator_forward.7} parent=0 // pred_fallthru
    _
  // Predicated region
  $region18: #{depth_generator_forward.7} parent=0 // pred_check
    _
  $region19: #{depth_generator_forward.7} parent=0 // pred_check_branch
    %20 = sbr.rel (0) target = $region21
  $region20: #{depth_generator_forward.7} parent=0 // pred_region
    _
  $region21: #{depth_generator_forward.7} parent=0 // pred_fallthru
    _
  // Predicated region
  $region22: #{depth_generator_forward.7} parent=0 // pred_check
    _
  $region23: #{depth_generator_forward.7} parent=0 // pred_check_branch
    %22 = sbr.rel (0) target = $region25
  $region24: #{depth_generator_forward.7} parent=0 // pred_region
    _
  $region25: #{depth_generator_forward.7} parent=0 // pred_fallthru
    _
  loop: start=0, step=1, limit=16
  $region26: #{depth_generator_forward.7} parent=0 // loop_pre_header
    _
  $region27: #{depth_generator_forward.7} parent=0 // loop_header
    %s25 = sphi 0, %s29
    %p26 = scmp.ge.s32.totalorder %s25, 16
  $region28: #{depth_generator_forward.7} parent=0 // loop_header_branch
    %28 = sbr.rel (%p26) target = $region32
  $region29: #{depth_generator_forward.7} parent=0 // loop_body
    %s30 = smul.u32 %s25, 16
    %s31 = smul.u32 %s25, 24
    %s32 = scalar_lea.vmem %s0, %s31
    %v33 = vld [vmem:[%s32] sm:$0xff]
    %v34 = vld [vmem:[%s32 + $0x8] sm:$0xff]
    %s35 = sshra.s32 %s30, 3
    %s36 = sand.u32 %s30, 7
    %s37 = smul.u32 %s35, 3
    %s38 = smul.addr %s37, 8
    %s39 = scalar_lea.vmem [#allocation2], %s38
    %vm40 = vcmask 261120
    %41 = vst.msk [vmem:[%s39] sm:$0xff] %vm40, %v33
    %42 = vst.msk [vmem:[%s39 + $0x18] sm:$0xff] %vm40, %v34
    %v43 = vld [vmem:[%s32 + $0x1] sm:$0xff]
    %v44 = vld [vmem:[%s32 + $0x9] sm:$0xff]
    %47 = vrot.lane.b32.xlu0 %v43, 32
    %v48 = vpop.permute.xlu0 %47
    %49 = vrot.lane.b32.xlu0 %v44, 32
    %v50 = vpop.permute.xlu0 %49
    %vm53 = vcmask 523520
    %54 = vst.msk [vmem:[%s39] sm:$0xff] %vm53, %v48
    %55 = vst.msk [vmem:[%s39 + $0x18] sm:$0xff] %vm53, %v50
    %v56 = vld [vmem:[%s32 + $0x2] sm:$0xff]
    %v57 = vld [vmem:[%s32 + $0xa] sm:$0xff]
    %60 = vrot.lane.b32.xlu0 %v56, 64
    %v61 = vpop.permute.xlu0 %60
    %62 = vrot.lane.b32.xlu0 %v57, 64
    %v63 = vpop.permute.xlu0 %62
    %vm66 = vcmask 785920
    %67 = vst.msk [vmem:[%s39] sm:$0xff] %vm66, %v61
    %68 = vst.msk [vmem:[%s39 + $0x18] sm:$0xff] %vm66, %v63
    %s69 = sadd.s32 %s25, 1
    %s70 = smul.u32 %s69, 24
    %s71 = scalar_lea.vmem %s0, %s70
    %v72 = vld [vmem:[%s71] sm:$0xff]
    %v73 = vld [vmem:[%s71 + $0x8] sm:$0xff]
    %76 = vrot.lane.b32.xlu0 %v72, 96
    %v77 = vpop.permute.xlu0 %76
    %78 = vrot.lane.b32.xlu0 %v73, 96
    %v79 = vpop.permute.xlu0 %78
    %vm82 = vcmask 1048320
    %83 = vst.msk [vmem:[%s39] sm:$0xff] %vm82, %v77
    %84 = vst.msk [vmem:[%s39 + $0x18] sm:$0xff] %vm82, %v79
    %v85 = vld [vmem:[%s71 + $0x1] sm:$0xff]
    %v86 = vld [vmem:[%s71 + $0x9] sm:$0xff]
    %87 = vst.msk [vmem:[%s39 + $0x8] sm:$0xff] %vm40, %v85
    %88 = vst.msk [vmem:[%s39 + $0x20] sm:$0xff] %vm40, %v86
    %v89 = vld [vmem:[%s71 + $0x2] sm:$0xff]
    %v90 = vld [vmem:[%s71 + $0xa] sm:$0xff]
    %93 = vrot.lane.b32.xlu0 %v89, 32
    %v94 = vpop.permute.xlu0 %93
    %95 = vrot.lane.b32.xlu0 %v90, 32
    %v96 = vpop.permute.xlu0 %95
    %99 = vst.msk [vmem:[%s39 + $0x8] sm:$0xff] %vm53, %v94
    %100 = vst.msk [vmem:[%s39 + $0x20] sm:$0xff] %vm53, %v96
    %s101 = sadd.s32 %s25, 2
    %s102 = smul.u32 %s101, 24
    %s103 = scalar_lea.vmem %s0, %s102
    %v104 = vld [vmem:[%s103] sm:$0xff]
    %v105 = vld [vmem:[%s103 + $0x8] sm:$0xff]
    %108 = vrot.lane.b32.xlu0 %v104, 64
    %v109 = vpop.permute.xlu0 %108
    %110 = vrot.lane.b32.xlu0 %v105, 64
    %v111 = vpop.permute.xlu0 %110
    %114 = vst.msk [vmem:[%s39 + $0x8] sm:$0xff] %vm66, %v109
    %115 = vst.msk [vmem:[%s39 + $0x20] sm:$0xff] %vm66, %v111
    %v116 = vld [vmem:[%s103 + $0x1] sm:$0xff]
    %v117 = vld [vmem:[%s103 + $0x9] sm:$0xff]
    %120 = vrot.lane.b32.xlu0 %v116, 96
    %v121 = vpop.permute.xlu0 %120
    %122 = vrot.lane.b32.xlu0 %v117, 96
    %v123 = vpop.permute.xlu0 %122
    %126 = vst.msk [vmem:[%s39 + $0x8] sm:$0xff] %vm82, %v121
    %127 = vst.msk [vmem:[%s39 + $0x20] sm:$0xff] %vm82, %v123
    %v128 = vld [vmem:[%s103 + $0x2] sm:$0xff]
    %v129 = vld [vmem:[%s103 + $0xa] sm:$0xff]
    %130 = vst.msk [vmem:[%s39 + $0x10] sm:$0xff] %vm40, %v128
    %131 = vst.msk [vmem:[%s39 + $0x28] sm:$0xff] %vm40, %v129
  $region30: #{depth_generator_forward.7} parent=0 // loop_footer
    %s29 = sadd.s32 1, %s25
  $region31: #{depth_generator_forward.7} parent=0 // loop_footer_branch
    %24 = sbr.rel target = $region27
  $region32: #{depth_generator_forward.7} parent=0 // loop_exit
    _
  loop: start=0, step=1, limit=16
  $region33: #{depth_generator_forward.7} parent=0 // loop_pre_header
    _
  $region34: #{depth_generator_forward.7} parent=0 // loop_header
    %s133 = sphi 0, %s137
    %p134 = scmp.ge.s32.totalorder %s133, 16
  $region35: #{depth_generator_forward.7} parent=0 // loop_header_branch
    %136 = sbr.rel (%p134) target = $region39
  $region36: #{depth_generator_forward.7} parent=0 // loop_body
    %s138 = smul.u32 %s133, 16
    %s139 = sadd.s32 %s138, 256
    %s140 = sadd.s32 %s133, 18
    %s141 = smul.u32 %s140, 24
    %s142 = scalar_lea.vmem %s0, %s141
    %v143 = vld [vmem:[%s142] sm:$0xff]
    %v144 = vld [vmem:[%s142 + $0x8] sm:$0xff]
    %s145 = sshra.s32 %s139, 3
    %s146 = sand.u32 %s139, 7
    %s147 = smul.u32 %s145, 3
    %s148 = smul.addr %s147, 8
    %s149 = scalar_lea.vmem [#allocation2], %s148
    %vm150 = vcmask 261120
    %151 = vst.msk [vmem:[%s149] sm:$0xff] %vm150, %v143
    %152 = vst.msk [vmem:[%s149 + $0x18] sm:$0xff] %vm150, %v144
    %v153 = vld [vmem:[%s142 + $0x1] sm:$0xff]
    %v154 = vld [vmem:[%s142 + $0x9] sm:$0xff]
    %157 = vrot.lane.b32.xlu0 %v153, 32
    %v158 = vpop.permute.xlu0 %157
    %159 = vrot.lane.b32.xlu0 %v154, 32
    %v160 = vpop.permute.xlu0 %159
    %vm163 = vcmask 523520
    %164 = vst.msk [vmem:[%s149] sm:$0xff] %vm163, %v158
    %165 = vst.msk [vmem:[%s149 + $0x18] sm:$0xff] %vm163, %v160
    %v166 = vld [vmem:[%s142 + $0x2] sm:$0xff]
    %v167 = vld [vmem:[%s142 + $0xa] sm:$0xff]
    %170 = vrot.lane.b32.xlu0 %v166, 64
    %v171 = vpop.permute.xlu0 %170
    %172 = vrot.lane.b32.xlu0 %v167, 64
    %v173 = vpop.permute.xlu0 %172
    %vm176 = vcmask 785920
    %177 = vst.msk [vmem:[%s149] sm:$0xff] %vm176, %v171
    %178 = vst.msk [vmem:[%s149 + $0x18] sm:$0xff] %vm176, %v173
    %s179 = sadd.s32 %s133, 19
    %s180 = smul.u32 %s179, 24
    %s181 = scalar_lea.vmem %s0, %s180
    %v182 = vld [vmem:[%s181] sm:$0xff]
    %v183 = vld [vmem:[%s181 + $0x8] sm:$0xff]
    %186 = vrot.lane.b32.xlu0 %v182, 96
    %v187 = vpop.permute.xlu0 %186
    %188 = vrot.lane.b32.xlu0 %v183, 96
    %v189 = vpop.permute.xlu0 %188
    %vm192 = vcmask 1048320
    %193 = vst.msk [vmem:[%s149] sm:$0xff] %vm192, %v187
    %194 = vst.msk [vmem:[%s149 + $0x18] sm:$0xff] %vm192, %v189
    %v195 = vld [vmem:[%s181 + $0x1] sm:$0xff]
    %v196 = vld [vmem:[%s181 + $0x9] sm:$0xff]
    %197 = vst.msk [vmem:[%s149 + $0x8] sm:$0xff] %vm150, %v195
    %198 = vst.msk [vmem:[%s149 + $0x20] sm:$0xff] %vm150, %v196
    %v199 = vld [vmem:[%s181 + $0x2] sm:$0xff]
    %v200 = vld [vmem:[%s181 + $0xa] sm:$0xff]
    %203 = vrot.lane.b32.xlu0 %v199, 32
    %v204 = vpop.permute.xlu0 %203
    %205 = vrot.lane.b32.xlu0 %v200, 32
    %v206 = vpop.permute.xlu0 %205
    %209 = vst.msk [vmem:[%s149 + $0x8] sm:$0xff] %vm163, %v204
    %210 = vst.msk [vmem:[%s149 + $0x20] sm:$0xff] %vm163, %v206
    %s211 = sadd.s32 %s133, 20
    %s212 = smul.u32 %s211, 24
    %s213 = scalar_lea.vmem %s0, %s212
    %v214 = vld [vmem:[%s213] sm:$0xff]
    %v215 = vld [vmem:[%s213 + $0x8] sm:$0xff]
    %218 = vrot.lane.b32.xlu0 %v214, 64
    %v219 = vpop.permute.xlu0 %218
    %220 = vrot.lane.b32.xlu0 %v215, 64
    %v221 = vpop.permute.xlu0 %220
    %224 = vst.msk [vmem:[%s149 + $0x8] sm:$0xff] %vm176, %v219
    %225 = vst.msk [vmem:[%s149 + $0x20] sm:$0xff] %vm176, %v221
    %v226 = vld [vmem:[%s213 + $0x1] sm:$0xff]
    %v227 = vld [vmem:[%s213 + $0x9] sm:$0xff]
    %230 = vrot.lane.b32.xlu0 %v226, 96
    %v231 = vpop.permute.xlu0 %230
    %232 = vrot.lane.b32.xlu0 %v227, 96
    %v233 = vpop.permute.xlu0 %232
    %236 = vst.msk [vmem:[%s149 + $0x8] sm:$0xff] %vm192, %v231
    %237 = vst.msk [vmem:[%s149 + $0x20] sm:$0xff] %vm192, %v233
    %v238 = vld [vmem:[%s213 + $0x2] sm:$0xff]
    %v239 = vld [vmem:[%s213 + $0xa] sm:$0xff]
    %240 = vst.msk [vmem:[%s149 + $0x10] sm:$0xff] %vm150, %v238
    %241 = vst.msk [vmem:[%s149 + $0x28] sm:$0xff] %vm150, %v239
  $region37: #{depth_generator_forward.7} parent=0 // loop_footer
    %s137 = sadd.s32 1, %s133
  $region38: #{depth_generator_forward.7} parent=0 // loop_footer_branch
    %132 = sbr.rel target = $region34
  $region39: #{depth_generator_forward.7} parent=0 // loop_exit
    _
  %v242 = vld [vmem:[%s1] sm:$0xf]
  %v243 = vld [vmem:[%s1 + $0x4] sm:$0xf]
  %v244 = vld [vmem:[%s1 + $0x8] sm:$0xf]
  %v245 = vld [vmem:[%s1 + $0xc] sm:$0xf]
  %v246 = vld [vmem:[%s1 + $0x10] sm:$0xf]
  %v247 = vld [vmem:[%s1 + $0x14] sm:$0xf]
  %v248 = vld [vmem:[%s1 + $0x18] sm:$0xf]
  %v249 = vld [vmem:[%s1 + $0x1c] sm:$0xf]
  %v250 = vld [vmem:[%s1 + $0x20] sm:$0xf]
  %v251 = vld [vmem:[%s1 + $0x24] sm:$0xf]
  %v252 = vld [vmem:[%s1 + $0x28] sm:$0xf]
  %v253 = vld [vmem:[%s1 + $0x2c] sm:$0xf]
  %v254 = vld [vmem:[%s1 + $0x30] sm:$0xf]
  %v255 = vld [vmem:[%s1 + $0x34] sm:$0xf]
  %v256 = vld [vmem:[%s1 + $0x38] sm:$0xf]
  %v257 = vld [vmem:[%s1 + $0x3c] sm:$0xf]
  %v258 = vld [vmem:[%s1 + $0x40] sm:$0xf]
  %v259 = vld [vmem:[%s1 + $0x44] sm:$0xf]
  %v260 = vld [vmem:[%s1 + $0x48] sm:$0xf]
  %v261 = vld [vmem:[%s1 + $0x4c] sm:$0xf]
  %v262 = vld [vmem:[%s1 + $0x50] sm:$0xf]
  %v263 = vld [vmem:[%s1 + $0x54] sm:$0xf]
  %v264 = vld [vmem:[%s1 + $0x58] sm:$0xf]
  %v265 = vld [vmem:[%s1 + $0x5c] sm:$0xf]
  %v266 = vld [vmem:[%s1 + $0x60] sm:$0xf]
  %v267 = vld [vmem:[%s1 + $0x64] sm:$0xf]
  %v268 = vld [vmem:[%s1 + $0x68] sm:$0xf]
  %v269 = vld [vmem:[%s1 + $0x6c] sm:$0xf]
  %v270 = vld [vmem:[%s1 + $0x70] sm:$0xf]
  %v271 = vld [vmem:[%s1 + $0x74] sm:$0xf]
  %v272 = vld [vmem:[%s1 + $0x78] sm:$0xf]
  %v273 = vld [vmem:[%s1 + $0x7c] sm:$0xf]
  %v274 = vld [vmem:[%s1 + $0x80] sm:$0xf]
  %v275 = vld [vmem:[%s1 + $0x84] sm:$0xf]
  %v276 = vld [vmem:[%s1 + $0x88] sm:$0xf]
  %v277 = vld [vmem:[%s1 + $0x8c] sm:$0xf]
  %v278 = vld [vmem:[%s2] sm:$0x1]
  loop: start=0, step=1, limit=4
  $region40: #{depth_generator_forward.7} parent=0 // loop_pre_header
    _
  $region41: #{depth_generator_forward.7} parent=0 // loop_header
    %s280 = sphi 0, %s284
    %p281 = scmp.ge.s32.totalorder %s280, 4
    %v285 = vphi 0.0, %v736
    %v286 = vphi 0.0, %v774
  $region42: #{depth_generator_forward.7} parent=0 // loop_header_branch
    %283 = sbr.rel (%p281) target = $region46
  $region43: #{depth_generator_forward.7} parent=0 // loop_body
    %s287 = smul.u32 %s280, 128
    %s288 = sshra.s32 %s287, 3
    %s289 = sand.u32 %s287, 7
    %s290 = smul.u32 %s288, 3
    %s291 = smul.addr %s290, 8
    %s292 = scalar_lea.vmem [#allocation2], %s291
    %v293 = vld [vmem:[%s292] sm:$0xff]
    %v294 = vld [vmem:[%s292 + $0x8] sm:$0xff]
    %v295 = vld [vmem:[%s292 + $0x10] sm:$0xff]
    %v296 = vld [vmem:[%s292 + $0x18] sm:$0xff]
    %v297 = vld [vmem:[%s292 + $0x20] sm:$0xff]
    %v298 = vld [vmem:[%s292 + $0x28] sm:$0xff]
    %v299 = vld [vmem:[%s292 + $0x30] sm:$0xff]
    %v300 = vld [vmem:[%s292 + $0x38] sm:$0xff]
    %v301 = vld [vmem:[%s292 + $0x40] sm:$0xff]
    %v302 = vld [vmem:[%s292 + $0x48] sm:$0xff]
    %v303 = vld [vmem:[%s292 + $0x50] sm:$0xff]
    %v304 = vld [vmem:[%s292 + $0x58] sm:$0xff]
    %v305 = vld [vmem:[%s292 + $0x60] sm:$0xff]
    %v306 = vld [vmem:[%s292 + $0x68] sm:$0xff]
    %v307 = vld [vmem:[%s292 + $0x70] sm:$0xff]
    %v308 = vld [vmem:[%s292 + $0x78] sm:$0xff]
    %v309 = vld [vmem:[%s292 + $0x80] sm:$0xff]
    %v310 = vld [vmem:[%s292 + $0x88] sm:$0xff]
    %v311 = vld [vmem:[%s292 + $0x90] sm:$0xff]
    %v312 = vld [vmem:[%s292 + $0x98] sm:$0xff]
    %v313 = vld [vmem:[%s292 + $0xa0] sm:$0xff]
    %v314 = vld [vmem:[%s292 + $0xa8] sm:$0xff]
    %v315 = vld [vmem:[%s292 + $0xb0] sm:$0xff]
    %v316 = vld [vmem:[%s292 + $0xb8] sm:$0xff]
    %v317 = vld [vmem:[%s292 + $0xc0] sm:$0xff]
    %v318 = vld [vmem:[%s292 + $0xc8] sm:$0xff]
    %v319 = vld [vmem:[%s292 + $0xd0] sm:$0xff]
    %v320 = vld [vmem:[%s292 + $0xd8] sm:$0xff]
    %v321 = vld [vmem:[%s292 + $0xe0] sm:$0xff]
    %v322 = vld [vmem:[%s292 + $0xe8] sm:$0xff]
    %v323 = vld [vmem:[%s292 + $0xf0] sm:$0xff]
    %v324 = vld [vmem:[%s292 + $0xf8] sm:$0xff]
    %v325 = vld [vmem:[%s292 + $0x100] sm:$0xff]
    %v326 = vld [vmem:[%s292 + $0x108] sm:$0xff]
    %v327 = vld [vmem:[%s292 + $0x110] sm:$0xff]
    %v328 = vld [vmem:[%s292 + $0x118] sm:$0xff]
    %v329 = vld [vmem:[%s292 + $0x120] sm:$0xff]
    %v330 = vld [vmem:[%s292 + $0x128] sm:$0xff]
    %v331 = vld [vmem:[%s292 + $0x130] sm:$0xff]
    %v332 = vld [vmem:[%s292 + $0x138] sm:$0xff]
    %v333 = vld [vmem:[%s292 + $0x140] sm:$0xff]
    %v334 = vld [vmem:[%s292 + $0x148] sm:$0xff]
    %v335 = vld [vmem:[%s292 + $0x150] sm:$0xff]
    %v336 = vld [vmem:[%s292 + $0x158] sm:$0xff]
    %v337 = vld [vmem:[%s292 + $0x160] sm:$0xff]
    %v338 = vld [vmem:[%s292 + $0x168] sm:$0xff]
    %v339 = vld [vmem:[%s292 + $0x170] sm:$0xff]
    %v340 = vld [vmem:[%s292 + $0x178] sm:$0xff]
    %v341 = vpack.c.bf16 %v296, %v293
    %v342 = vpack.c.bf16 %v297, %v294
    %v343 = vpack.c.bf16 %v298, %v295
    %v344 = vpack.c.bf16 %v302, %v299
    %v345 = vpack.c.bf16 %v303, %v300
    %v346 = vpack.c.bf16 %v304, %v301
    %v347 = vpack.c.bf16 %v308, %v305
    %v348 = vpack.c.bf16 %v309, %v306
    %v349 = vpack.c.bf16 %v310, %v307
    %v350 = vpack.c.bf16 %v314, %v311
    %v351 = vpack.c.bf16 %v315, %v312
    %v352 = vpack.c.bf16 %v316, %v313
    %v353 = vpack.c.bf16 %v320, %v317
    %v354 = vpack.c.bf16 %v321, %v318
    %v355 = vpack.c.bf16 %v322, %v319
    %v356 = vpack.c.bf16 %v326, %v323
    %v357 = vpack.c.bf16 %v327, %v324
    %v358 = vpack.c.bf16 %v328, %v325
    %v359 = vpack.c.bf16 %v332, %v329
    %v360 = vpack.c.bf16 %v333, %v330
    %v361 = vpack.c.bf16 %v334, %v331
    %v362 = vpack.c.bf16 %v338, %v335
    %v363 = vpack.c.bf16 %v339, %v336
    %v364 = vpack.c.bf16 %v340, %v337
    %v366 = vlaneseq
    %v367 = vshrl.u32 %v366, 7
    %v368 = vsub.s32 0, %v367
    %v369 = vrot.slane %v278, %v368
    %v407 = vunpack.c.l.b16 %v242
    %v408 = vunpack.c.l.b16 %v243
    %v409 = vunpack.c.l.b16 %v244
    %v410 = vunpack.c.l.b16 %v245
    %v411 = vunpack.c.l.b16 %v246
    %v412 = vunpack.c.l.b16 %v247
    %v413 = vunpack.c.l.b16 %v248
    %v414 = vunpack.c.l.b16 %v249
    %v415 = vunpack.c.l.b16 %v250
    %v416 = vunpack.c.l.b16 %v251
    %v417 = vunpack.c.l.b16 %v252
    %v418 = vunpack.c.l.b16 %v253
    %v419 = vunpack.c.l.b16 %v254
    %v420 = vunpack.c.l.b16 %v255
    %v421 = vunpack.c.l.b16 %v256
    %v422 = vunpack.c.l.b16 %v257
    %v423 = vunpack.c.l.b16 %v258
    %v424 = vunpack.c.l.b16 %v259
    %v425 = vunpack.c.l.b16 %v260
    %v426 = vunpack.c.l.b16 %v261
    %v427 = vunpack.c.l.b16 %v262
    %v428 = vunpack.c.l.b16 %v263
    %v429 = vunpack.c.l.b16 %v264
    %v430 = vunpack.c.l.b16 %v265
    %v431 = vunpack.c.l.b16 %v266
    %v432 = vunpack.c.l.b16 %v267
    %v433 = vunpack.c.l.b16 %v268
    %v434 = vunpack.c.l.b16 %v269
    %v435 = vunpack.c.l.b16 %v270
    %v436 = vunpack.c.l.b16 %v271
    %v437 = vunpack.c.l.b16 %v272
    %v438 = vunpack.c.l.b16 %v273
    %v439 = vunpack.c.l.b16 %v274
    %v440 = vunpack.c.l.b16 %v275
    %v441 = vunpack.c.l.b16 %v276
    %v442 = vunpack.c.l.b16 %v277
    %v443 = vpack.c.b16 %v408, %v407
    %v444 = vpack.c.b16 %v410, %v409
    %v445 = vpack.c.b16 %v412, %v411
    %v446 = vpack.c.b16 %v414, %v413
    %v447 = vpack.c.b16 %v416, %v415
    %v448 = vpack.c.b16 %v418, %v417
    %v449 = vpack.c.b16 %v420, %v419
    %v450 = vpack.c.b16 %v422, %v421
    %v451 = vpack.c.b16 %v424, %v423
    %v452 = vpack.c.b16 %v426, %v425
    %v453 = vpack.c.b16 %v428, %v427
    %v454 = vpack.c.b16 %v430, %v429
    %v455 = vpack.c.b16 %v432, %v431
    %v456 = vpack.c.b16 %v434, %v433
    %v457 = vpack.c.b16 %v436, %v435
    %v458 = vpack.c.b16 %v438, %v437
    %v459 = vpack.c.b16 %v440, %v439
    %v460 = vpack.c.b16 %v442, %v441
    %vm479 = vcmask 261120
    %v481 = vsel %vm479, %v343, 0
    %v484 = vsel %vm479, %v346, 0
    %v487 = vsel %vm479, %v349, 0
    %v490 = vsel %vm479, %v352, 0
    %v493 = vsel %vm479, %v355, 0
    %v496 = vsel %vm479, %v358, 0
    %v499 = vsel %vm479, %v361, 0
    %v502 = vsel %vm479, %v364, 0
    %504 = vmatprep.subr.bf16.mxu0 0
    %505 = vmatpush1.bf16.msra.mxu0 %v443
    %506 = vmatprep.subr.bf16.mxu0 0
    %507 = vmatpush1.bf16.msra.mxu0 %v444
    %508 = vmatprep.subr.bf16.mxu0 0
    %509 = vmatpush1.bf16.msra.mxu0 %v445
    %510 = vmatprep.subr.bf16.mxu0 0
    %511 = vmatpush1.bf16.msra.mxu0 %v446
    %512 = vmatprep.subr.bf16.mxu0 0
    %513 = vmatpush1.bf16.msra.mxu0 %v447
    %514 = vmatprep.subr.bf16.mxu0 0
    %515 = vmatpush1.bf16.msra.mxu0 %v448
    %516 = vmatprep.subr.bf16.mxu0 0
    %517 = vmatpush1.bf16.msra.mxu0 %v449
    %518 = vmatprep.subr.bf16.mxu0 0
    %519 = vmatpush1.bf16.msra.mxu0 %v450
    %520 = vmatprep.subr.bf16.mxu0 0
    %521 = vmatpush1.bf16.msra.mxu0 %v451
    %522 = vmatprep.subr.bf16.mxu0 0
    %523 = vmatpush1.bf16.msra.mxu0 %v452
    %524 = vmatprep.subr.bf16.mxu0 0
    %525 = vmatpush1.bf16.msra.mxu0 %v453
    %526 = vmatprep.subr.bf16.mxu0 0
    %527 = vmatpush1.bf16.msra.mxu0 %v454
    %528 = vmatprep.subr.bf16.mxu0 0
    %529 = vmatpush1.bf16.msra.mxu0 %v455
    %530 = vmatprep.subr.bf16.mxu0 0
    %531 = vmatpush1.bf16.msra.mxu0 %v456
    %532 = vmatprep.subr.bf16.mxu0 0
    %533 = vmatpush1.bf16.msra.mxu0 %v457
    %534 = vmatprep.subr.bf16.mxu0 0
    %535 = vmatpush1.bf16.msra.mxu0 %v458
    %536 = vmatprep.mubr.bf16.mxu0 %v342
    %537 = vmatmul.mubr.bf16.gmra.mrb[0].mxu0 %v341
    %v538 = vpop.f32.mrb[0].mxu0
    %v539 = vadd.f32 %v369, %v538
    %v540 = vpop.f32.mrb[0].mxu0
    %v541 = vpop.f32.mrb[0].mxu0
    %v542 = vadd.f32 %v369, %v541
    %v543 = vpop.f32.mrb[0].mxu0
    %544 = vmatprep.mubr.bf16.mxu0 %v345
    %545 = vmatmul.mubr.bf16.gmra.mrb[0].mxu0 %v344
    %v546 = vpop.f32.mrb[0].mxu0
    %v547 = vadd.f32 %v369, %v546
    %v548 = vpop.f32.mrb[0].mxu0
    %v549 = vpop.f32.mrb[0].mxu0
    %v550 = vadd.f32 %v369, %v549
    %v551 = vpop.f32.mrb[0].mxu0
    %552 = vmatprep.mubr.bf16.mxu0 %v348
    %553 = vmatmul.mubr.bf16.gmra.mrb[0].mxu0 %v347
    %v554 = vpop.f32.mrb[0].mxu0
    %v555 = vadd.f32 %v369, %v554
    %v556 = vpop.f32.mrb[0].mxu0
    %v557 = vpop.f32.mrb[0].mxu0
    %v558 = vadd.f32 %v369, %v557
    %v559 = vpop.f32.mrb[0].mxu0
    %560 = vmatprep.mubr.bf16.mxu0 %v351
    %561 = vmatmul.mubr.bf16.gmra.mrb[0].mxu0 %v350
    %v562 = vpop.f32.mrb[0].mxu0
    %v563 = vadd.f32 %v369, %v562
    %v564 = vpop.f32.mrb[0].mxu0
    %v565 = vpop.f32.mrb[0].mxu0
    %v566 = vadd.f32 %v369, %v565
    %v567 = vpop.f32.mrb[0].mxu0
    %568 = vmatprep.mubr.bf16.mxu0 %v354
    %569 = vmatmul.mubr.bf16.gmra.mrb[0].mxu0 %v353
    %v570 = vpop.f32.mrb[0].mxu0
    %v571 = vadd.f32 %v369, %v570
    %v572 = vpop.f32.mrb[0].mxu0
    %v573 = vpop.f32.mrb[0].mxu0
    %v574 = vadd.f32 %v369, %v573
    %v575 = vpop.f32.mrb[0].mxu0
    %576 = vmatprep.mubr.bf16.mxu0 %v357
    %577 = vmatmul.mubr.bf16.gmra.mrb[0].mxu0 %v356
    %v578 = vpop.f32.mrb[0].mxu0
    %v579 = vadd.f32 %v369, %v578
    %v580 = vpop.f32.mrb[0].mxu0
    %v581 = vpop.f32.mrb[0].mxu0
    %v582 = vadd.f32 %v369, %v581
    %v583 = vpop.f32.mrb[0].mxu0
    %584 = vmatprep.mubr.bf16.mxu0 %v360
    %585 = vmatmul.mubr.bf16.gmra.mrb[0].mxu0 %v359
    %v586 = vpop.f32.mrb[0].mxu0
    %v587 = vadd.f32 %v369, %v586
    %v588 = vpop.f32.mrb[0].mxu0
    %v589 = vpop.f32.mrb[0].mxu0
    %v590 = vadd.f32 %v369, %v589
    %v591 = vpop.f32.mrb[0].mxu0
    %592 = vmatprep.mubr.bf16.mxu0 %v363
    %593 = vmatmul.mubr.bf16.gmra.mrb[0].mxu0 %v362
    %v594 = vpop.f32.mrb[0].mxu0
    %v595 = vadd.f32 %v369, %v594
    %v596 = vpop.f32.mrb[0].mxu0
    %v597 = vpop.f32.mrb[0].mxu0
    %v598 = vadd.f32 %v369, %v597
    %v599 = vpop.f32.mrb[0].mxu0
    %600 = vdwg.mxu0
    %601 = vmatprep.subr.bf16.mxu0 0
    %602 = vmatpush1.bf16.msra.mxu0 %v459
    %603 = vmatprep.subr.bf16.mxu0 0
    %604 = vmatpush1.bf16.msra.mxu0 %v460
    %605 = vmatprep.subr.bf16.mxu0 0
    %606 = vmatpush1.bf16.msra.mxu0 0
    %607 = vmatprep.subr.bf16.mxu0 0
    %608 = vmatpush1.bf16.msra.mxu0 0
    %609 = vmatprep.subr.bf16.mxu0 0
    %610 = vmatpush1.bf16.msra.mxu0 0
    %611 = vmatprep.subr.bf16.mxu0 0
    %612 = vmatpush1.bf16.msra.mxu0 0
    %613 = vmatprep.subr.bf16.mxu0 0
    %614 = vmatpush1.bf16.msra.mxu0 0
    %615 = vmatprep.subr.bf16.mxu0 0
    %616 = vmatpush1.bf16.msra.mxu0 0
    %617 = vmatprep.subr.bf16.mxu0 0
    %618 = vmatpush1.bf16.msra.mxu0 0
    %619 = vmatprep.subr.bf16.mxu0 0
    %620 = vmatpush1.bf16.msra.mxu0 0
    %621 = vmatprep.subr.bf16.mxu0 0
    %622 = vmatpush1.bf16.msra.mxu0 0
    %623 = vmatprep.subr.bf16.mxu0 0
    %624 = vmatpush1.bf16.msra.mxu0 0
    %625 = vmatprep.subr.bf16.mxu0 0
    %626 = vmatpush1.bf16.msra.mxu0 0
    %627 = vmatprep.subr.bf16.mxu0 0
    %628 = vmatpush1.bf16.msra.mxu0 0
    %629 = vmatprep.subr.bf16.mxu0 0
    %630 = vmatpush1.bf16.msra.mxu0 0
    %631 = vmatprep.subr.bf16.mxu0 0
    %632 = vmatpush1.bf16.msra.mxu0 0
    %633 = vmatprep.mubr.bf16.mxu0 0
    %634 = vmatmul.mubr.bf16.gmra.mrb[0].mxu0 %v481
    %v635 = vpop.f32.mrb[0].mxu0
    %v636 = vadd.f32 %v539, %v635
    %v637 = vpop.f32.mrb[0].mxu0
    %v638 = vpop.f32.mrb[0].mxu0
    %v639 = vadd.f32 %v542, %v638
    %v640 = vpop.f32.mrb[0].mxu0
    %641 = vmatprep.mubr.bf16.mxu0 0
    %642 = vmatmul.mubr.bf16.gmra.mrb[0].mxu0 %v484
    %v643 = vpop.f32.mrb[0].mxu0
    %v644 = vadd.f32 %v547, %v643
    %v645 = vpop.f32.mrb[0].mxu0
    %v646 = vpop.f32.mrb[0].mxu0
    %v647 = vadd.f32 %v550, %v646
    %v648 = vpop.f32.mrb[0].mxu0
    %649 = vmatprep.mubr.bf16.mxu0 0
    %650 = vmatmul.mubr.bf16.gmra.mrb[0].mxu0 %v487
    %v651 = vpop.f32.mrb[0].mxu0
    %v652 = vadd.f32 %v555, %v651
    %v653 = vpop.f32.mrb[0].mxu0
    %v654 = vpop.f32.mrb[0].mxu0
    %v655 = vadd.f32 %v558, %v654
    %v656 = vpop.f32.mrb[0].mxu0
    %657 = vmatprep.mubr.bf16.mxu0 0
    %658 = vmatmul.mubr.bf16.gmra.mrb[0].mxu0 %v490
    %v659 = vpop.f32.mrb[0].mxu0
    %v660 = vadd.f32 %v563, %v659
    %v661 = vpop.f32.mrb[0].mxu0
    %v662 = vpop.f32.mrb[0].mxu0
    %v663 = vadd.f32 %v566, %v662
    %v664 = vpop.f32.mrb[0].mxu0
    %665 = vmatprep.mubr.bf16.mxu0 0
    %666 = vmatmul.mubr.bf16.gmra.mrb[0].mxu0 %v493
    %v667 = vpop.f32.mrb[0].mxu0
    %v668 = vadd.f32 %v571, %v667
    %v669 = vpop.f32.mrb[0].mxu0
    %v670 = vpop.f32.mrb[0].mxu0
    %v671 = vadd.f32 %v574, %v670
    %v672 = vpop.f32.mrb[0].mxu0
    %673 = vmatprep.mubr.bf16.mxu0 0
    %674 = vmatmul.mubr.bf16.gmra.mrb[0].mxu0 %v496
    %v675 = vpop.f32.mrb[0].mxu0
    %v676 = vadd.f32 %v579, %v675
    %v677 = vpop.f32.mrb[0].mxu0
    %v678 = vpop.f32.mrb[0].mxu0
    %v679 = vadd.f32 %v582, %v678
    %v680 = vpop.f32.mrb[0].mxu0
    %681 = vmatprep.mubr.bf16.mxu0 0
    %682 = vmatmul.mubr.bf16.gmra.mrb[0].mxu0 %v499
    %v683 = vpop.f32.mrb[0].mxu0
    %v684 = vadd.f32 %v587, %v683
    %v685 = vpop.f32.mrb[0].mxu0
    %v686 = vpop.f32.mrb[0].mxu0
    %v687 = vadd.f32 %v590, %v686
    %v688 = vpop.f32.mrb[0].mxu0
    %689 = vmatprep.mubr.bf16.mxu0 0
    %690 = vmatmul.mubr.bf16.gmra.mrb[0].mxu0 %v502
    %v691 = vpop.f32.mrb[0].mxu0
    %v692 = vadd.f32 %v595, %v691
    %v693 = vpop.f32.mrb[0].mxu0
    %v694 = vpop.f32.mrb[0].mxu0
    %v695 = vadd.f32 %v598, %v694
    %v696 = vpop.f32.mrb[0].mxu0
    %697 = vdwg.mxu0
    %s698 = scalar_lea.vmem [#allocation3], %s287
    %699 = vst [vmem:[%s698] sm:$0xff] %v636
    %700 = vst [vmem:[%s698 + $0x8] sm:$0xff] %v639
    %701 = vst [vmem:[%s698 + $0x10] sm:$0xff] %v644
    %702 = vst [vmem:[%s698 + $0x18] sm:$0xff] %v647
    %703 = vst [vmem:[%s698 + $0x20] sm:$0xff] %v652
    %704 = vst [vmem:[%s698 + $0x28] sm:$0xff] %v655
    %705 = vst [vmem:[%s698 + $0x30] sm:$0xff] %v660
    %706 = vst [vmem:[%s698 + $0x38] sm:$0xff] %v663
    %707 = vst [vmem:[%s698 + $0x40] sm:$0xff] %v668
    %708 = vst [vmem:[%s698 + $0x48] sm:$0xff] %v671
    %709 = vst [vmem:[%s698 + $0x50] sm:$0xff] %v676
    %710 = vst [vmem:[%s698 + $0x58] sm:$0xff] %v679
    %711 = vst [vmem:[%s698 + $0x60] sm:$0xff] %v684
    %712 = vst [vmem:[%s698 + $0x68] sm:$0xff] %v687
    %713 = vst [vmem:[%s698 + $0x70] sm:$0xff] %v692
    %714 = vst [vmem:[%s698 + $0x78] sm:$0xff] %v695
    %v715 = vadd.f32 %v636, %v639
    %v716 = vadd.f32 %v715, %v644
    %v717 = vadd.f32 %v716, %v647
    %v718 = vadd.f32 %v717, %v652
    %v719 = vadd.f32 %v718, %v655
    %v720 = vadd.f32 %v719, %v660
    %v721 = vadd.f32 %v720, %v663
    %v722 = vadd.f32 %v721, %v668
    %v723 = vadd.f32 %v722, %v671
    %v724 = vadd.f32 %v723, %v676
    %v725 = vadd.f32 %v724, %v679
    %v726 = vadd.f32 %v725, %v684
    %v727 = vadd.f32 %v726, %v687
    %v728 = vadd.f32 %v727, %v692
    %v729 = vadd.f32 %v728, %v695
    %v730 = vrot.slane %v729, 4
    %v731 = vadd.f32 %v729, %v730
    %v732 = vrot.slane %v731, 2
    %v733 = vadd.f32 %v731, %v732
    %v734 = vrot.slane %v733, 1
    %v735 = vadd.f32 %v733, %v734
    %v736 = vadd.f32 %v285, %v735
    %v737 = vmul.f32 %v636, %v636
    %v738 = vmul.f32 %v639, %v639
    %v739 = vmul.f32 %v644, %v644
    %v740 = vmul.f32 %v647, %v647
    %v741 = vmul.f32 %v652, %v652
    %v742 = vmul.f32 %v655, %v655
    %v743 = vmul.f32 %v660, %v660
    %v744 = vmul.f32 %v663, %v663
    %v745 = vmul.f32 %v668, %v668
    %v746 = vmul.f32 %v671, %v671
    %v747 = vmul.f32 %v676, %v676
    %v748 = vmul.f32 %v679, %v679
    %v749 = vmul.f32 %v684, %v684
    %v750 = vmul.f32 %v687, %v687
    %v751 = vmul.f32 %v692, %v692
    %v752 = vmul.f32 %v695, %v695
    %v753 = vadd.f32 %v737, %v738
    %v754 = vadd.f32 %v753, %v739
    %v755 = vadd.f32 %v754, %v740
    %v756 = vadd.f32 %v755, %v741
    %v757 = vadd.f32 %v756, %v742
    %v758 = vadd.f32 %v757, %v743
    %v759 = vadd.f32 %v758, %v744
    %v760 = vadd.f32 %v759, %v745
    %v761 = vadd.f32 %v760, %v746
    %v762 = vadd.f32 %v761, %v747
    %v763 = vadd.f32 %v762, %v748
    %v764 = vadd.f32 %v763, %v749
    %v765 = vadd.f32 %v764, %v750
    %v766 = vadd.f32 %v765, %v751
    %v767 = vadd.f32 %v766, %v752
    %v768 = vrot.slane %v767, 4
    %v769 = vadd.f32 %v767, %v768
    %v770 = vrot.slane %v769, 2
    %v771 = vadd.f32 %v769, %v770
    %v772 = vrot.slane %v771, 1
    %v773 = vadd.f32 %v771, %v772
    %v774 = vadd.f32 %v286, %v773
  $region44: #{depth_generator_forward.7} parent=0 // loop_footer
    %s284 = sadd.s32 1, %s280
  $region45: #{depth_generator_forward.7} parent=0 // loop_footer_branch
    %279 = sbr.rel target = $region41
  $region46: #{depth_generator_forward.7} parent=0 // loop_exit
    _
  %v775 = vld [vmem:[%s5] sm:$0xff]
  %v776 = vld [vmem:[%s5 + $0x8] sm:$0xff]
  %v777 = vld [vmem:[%s5 + $0x10] sm:$0xff]
  %v778 = vld [vmem:[%s5 + $0x18] sm:$0xff]
  %v779 = vld [vmem:[%s5 + $0x20] sm:$0xff]
  %v780 = vld [vmem:[%s5 + $0x28] sm:$0xff]
  %v781 = vld [vmem:[%s5 + $0x30] sm:$0xff]
  %v782 = vld [vmem:[%s5 + $0x38] sm:$0xff]
  %v783 = vld [vmem:[%s5 + $0x40] sm:$0xff]
  %v784 = vld [vmem:[%s5 + $0x48] sm:$0xff]
  %v785 = vld [vmem:[%s5 + $0x50] sm:$0xff]
  %v786 = vld [vmem:[%s5 + $0x58] sm:$0xff]
  %v787 = vld [vmem:[%s5 + $0x60] sm:$0xff]
  %v788 = vld [vmem:[%s5 + $0x68] sm:$0xff]
  %v789 = vld [vmem:[%s5 + $0x70] sm:$0xff]
  %v790 = vld [vmem:[%s5 + $0x78] sm:$0xff]
  %791 = vmatprep.subr.mxu0 0.0
  %792 = vmatpush1.msra.mxu0 %v775
  %793 = vmatprep.subr.mxu0 0.0
  %794 = vmatpush1.msra.mxu0 %v776
  %795 = vmatprep.subr.mxu0 0.0
  %796 = vmatpush1.msra.mxu0 %v777
  %797 = vmatprep.subr.mxu0 0.0
  %798 = vmatpush1.msra.mxu0 %v778
  %799 = vmatprep.subr.mxu0 0.0
  %800 = vmatpush1.msra.mxu0 %v779
  %801 = vmatprep.subr.mxu0 0.0
  %802 = vmatpush1.msra.mxu0 %v780
  %803 = vmatprep.subr.mxu0 0.0
  %804 = vmatpush1.msra.mxu0 %v781
  %805 = vmatprep.subr.mxu0 0.0
  %806 = vmatpush1.msra.mxu0 %v782
  %807 = vmatprep.subr.mxu0 0.0
  %808 = vmatpush1.msra.mxu0 %v783
  %809 = vmatprep.subr.mxu0 0.0
  %810 = vmatpush1.msra.mxu0 %v784
  %811 = vmatprep.subr.mxu0 0.0
  %812 = vmatpush1.msra.mxu0 %v785
  %813 = vmatprep.subr.mxu0 0.0
  %814 = vmatpush1.msra.mxu0 %v786
  %815 = vmatprep.subr.mxu0 0.0
  %816 = vmatpush1.msra.mxu0 %v787
  %817 = vmatprep.subr.mxu0 0.0
  %818 = vmatpush1.msra.mxu0 %v788
  %819 = vmatprep.subr.mxu0 0.0
  %820 = vmatpush1.msra.mxu0 %v789
  %821 = vmatprep.subr.mxu0 0.0
  %822 = vmatpush1.msra.mxu0 %v790
  %823 = vmatprep.subr.mxu0 0.0
  %824 = vmatpush1.msra.mxu0 0.0
  %825 = vmatprep.subr.mxu0 0.0
  %826 = vmatpush1.msra.mxu0 0.0
  %827 = vmatprep.subr.mxu0 0.0
  %828 = vmatpush1.msra.mxu0 0.0
  %829 = vmatprep.subr.mxu0 0.0
  %830 = vmatpush1.msra.mxu0 0.0
  %831 = vmatprep.subr.mxu0 0.0
  %832 = vmatpush1.msra.mxu0 0.0
  %833 = vmatprep.subr.mxu0 0.0
  %834 = vmatpush1.msra.mxu0 0.0
  %835 = vmatprep.subr.mxu0 0.0
  %836 = vmatpush1.msra.mxu0 0.0
  %837 = vmatprep.subr.mxu0 0.0
  %838 = vmatpush1.msra.mxu0 0.0
  %839 = vmatprep.subr.mxu0 0.0
  %840 = vmatpush1.msra.mxu0 0.0
  %841 = vmatprep.subr.mxu0 0.0
  %842 = vmatpush1.msra.mxu0 0.0
  %843 = vmatprep.subr.mxu0 0.0
  %844 = vmatpush1.msra.mxu0 0.0
  %845 = vmatprep.subr.mxu0 0.0
  %846 = vmatpush1.msra.mxu0 0.0
  %847 = vmatprep.subr.mxu0 0.0
  %848 = vmatpush1.msra.mxu0 0.0
  %849 = vmatprep.subr.mxu0 0.0
  %850 = vmatpush1.msra.mxu0 0.0
  %851 = vmatprep.subr.mxu0 0.0
  %852 = vmatpush1.msra.mxu0 0.0
  %853 = vmatprep.subr.mxu0 0.0
  %854 = vmatpush1.msra.mxu0 0.0
  %855 = vmatprep.mubr.f32.mxu0 0.0
  %856 = vmatmul.mubr.f32.gmra.mrb[0].mxu0 %v285
  %v857 = vpop.f32.mrb[0].mxu0
  %v858 = vadd.f32 0.0, %v857
  %v859 = vpop.f32.mrb[0].mxu0
  %860 = vdwg.mxu0
  %861 = vmatprep.subr.mxu0 0.0
  %862 = vmatpush1.msra.mxu0 %v775
  %863 = vmatprep.subr.mxu0 0.0
  %864 = vmatpush1.msra.mxu0 %v776
  %865 = vmatprep.subr.mxu0 0.0
  %866 = vmatpush1.msra.mxu0 %v777
  %867 = vmatprep.subr.mxu0 0.0
  %868 = vmatpush1.msra.mxu0 %v778
  %869 = vmatprep.subr.mxu0 0.0
  %870 = vmatpush1.msra.mxu0 %v779
  %871 = vmatprep.subr.mxu0 0.0
  %872 = vmatpush1.msra.mxu0 %v780
  %873 = vmatprep.subr.mxu0 0.0
  %874 = vmatpush1.msra.mxu0 %v781
  %875 = vmatprep.subr.mxu0 0.0
  %876 = vmatpush1.msra.mxu0 %v782
  %877 = vmatprep.subr.mxu0 0.0
  %878 = vmatpush1.msra.mxu0 %v783
  %879 = vmatprep.subr.mxu0 0.0
  %880 = vmatpush1.msra.mxu0 %v784
  %881 = vmatprep.subr.mxu0 0.0
  %882 = vmatpush1.msra.mxu0 %v785
  %883 = vmatprep.subr.mxu0 0.0
  %884 = vmatpush1.msra.mxu0 %v786
  %885 = vmatprep.subr.mxu0 0.0
  %886 = vmatpush1.msra.mxu0 %v787
  %887 = vmatprep.subr.mxu0 0.0
  %888 = vmatpush1.msra.mxu0 %v788
  %889 = vmatprep.subr.mxu0 0.0
  %890 = vmatpush1.msra.mxu0 %v789
  %891 = vmatprep.subr.mxu0 0.0
  %892 = vmatpush1.msra.mxu0 %v790
  %893 = vmatprep.subr.mxu0 0.0
  %894 = vmatpush1.msra.mxu0 0.0
  %895 = vmatprep.subr.mxu0 0.0
  %896 = vmatpush1.msra.mxu0 0.0
  %897 = vmatprep.subr.mxu0 0.0
  %898 = vmatpush1.msra.mxu0 0.0
  %899 = vmatprep.subr.mxu0 0.0
  %900 = vmatpush1.msra.mxu0 0.0
  %901 = vmatprep.subr.mxu0 0.0
  %902 = vmatpush1.msra.mxu0 0.0
  %903 = vmatprep.subr.mxu0 0.0
  %904 = vmatpush1.msra.mxu0 0.0
  %905 = vmatprep.subr.mxu0 0.0
  %906 = vmatpush1.msra.mxu0 0.0
  %907 = vmatprep.subr.mxu0 0.0
  %908 = vmatpush1.msra.mxu0 0.0
  %909 = vmatprep.subr.mxu0 0.0
  %910 = vmatpush1.msra.mxu0 0.0
  %911 = vmatprep.subr.mxu0 0.0
  %912 = vmatpush1.msra.mxu0 0.0
  %913 = vmatprep.subr.mxu0 0.0
  %914 = vmatpush1.msra.mxu0 0.0
  %915 = vmatprep.subr.mxu0 0.0
  %916 = vmatpush1.msra.mxu0 0.0
  %917 = vmatprep.subr.mxu0 0.0
  %918 = vmatpush1.msra.mxu0 0.0
  %919 = vmatprep.subr.mxu0 0.0
  %920 = vmatpush1.msra.mxu0 0.0
  %921 = vmatprep.subr.mxu0 0.0
  %922 = vmatpush1.msra.mxu0 0.0
  %923 = vmatprep.subr.mxu0 0.0
  %924 = vmatpush1.msra.mxu0 0.0
  %925 = vmatprep.mubr.f32.mxu0 0.0
  %926 = vmatmul.mubr.f32.gmra.mrb[0].mxu0 %v286
  %v927 = vpop.f32.mrb[0].mxu0
  %v928 = vadd.f32 0.0, %v927
  %v929 = vpop.f32.mrb[0].mxu0
  %930 = vdwg.mxu0
  %v931 = vmul.f32 %v858, %v858
  %v932 = vsub.f32 %v928, %v931
  %v933 = vld [vmem:[%s3] sm:$0x1]
  %v934 = vadd.f32 %v932, 1e-05
  %v935 = vrsqrt.pop %v934
  %v936 = vmul.f32 %v933, %v935
  %v937 = vld [vmem:[%s4] sm:$0x1]
  %v938 = vmul.f32 %v858, %v936
  %v939 = vsub.f32 %v937, %v938
  loop: start=0, step=1, limit=4
  $region47: #{depth_generator_forward.7} parent=0 // loop_pre_header
    _
  $region48: #{depth_generator_forward.7} parent=0 // loop_header
    %s941 = sphi 0, %s945
    %p942 = scmp.ge.s32.totalorder %s941, 4
  $region49: #{depth_generator_forward.7} parent=0 // loop_header_branch
    %944 = sbr.rel (%p942) target = $region53
  $region50: #{depth_generator_forward.7} parent=0 // loop_body
    %s946 = smul.u32 %s941, 128
    %s947 = scalar_lea.vmem [#allocation3], %s946
    %v948 = vld [vmem:[%s947] sm:$0xff]
    %v949 = vld [vmem:[%s947 + $0x8] sm:$0xff]
    %v950 = vld [vmem:[%s947 + $0x10] sm:$0xff]
    %v951 = vld [vmem:[%s947 + $0x18] sm:$0xff]
    %v952 = vld [vmem:[%s947 + $0x20] sm:$0xff]
    %v953 = vld [vmem:[%s947 + $0x28] sm:$0xff]
    %v954 = vld [vmem:[%s947 + $0x30] sm:$0xff]
    %v955 = vld [vmem:[%s947 + $0x38] sm:$0xff]
    %v956 = vld [vmem:[%s947 + $0x40] sm:$0xff]
    %v957 = vld [vmem:[%s947 + $0x48] sm:$0xff]
    %v958 = vld [vmem:[%s947 + $0x50] sm:$0xff]
    %v959 = vld [vmem:[%s947 + $0x58] sm:$0xff]
    %v960 = vld [vmem:[%s947 + $0x60] sm:$0xff]
    %v961 = vld [vmem:[%s947 + $0x68] sm:$0xff]
    %v962 = vld [vmem:[%s947 + $0x70] sm:$0xff]
    %v963 = vld [vmem:[%s947 + $0x78] sm:$0xff]
    %v965 = vlaneseq
    %v966 = vshrl.u32 %v965, 7
    %v967 = vsub.s32 0, %v966
    %v968 = vrot.slane %v936, %v967
    %v970 = vmul.f32 %v948, %v968
    %v971 = vmul.f32 %v949, %v968
    %v972 = vmul.f32 %v950, %v968
    %v973 = vmul.f32 %v951, %v968
    %v974 = vmul.f32 %v952, %v968
    %v975 = vmul.f32 %v953, %v968
    %v976 = vmul.f32 %v954, %v968
    %v977 = vmul.f32 %v955, %v968
    %v978 = vmul.f32 %v956, %v968
    %v979 = vmul.f32 %v957, %v968
    %v980 = vmul.f32 %v958, %v968
    %v981 = vmul.f32 %v959, %v968
    %v982 = vmul.f32 %v960, %v968
    %v983 = vmul.f32 %v961, %v968
    %v984 = vmul.f32 %v962, %v968
    %v985 = vmul.f32 %v963, %v968
    %v987 = vlaneseq
    %v988 = vshrl.u32 %v987, 7
    %v989 = vsub.s32 0, %v988
    %v990 = vrot.slane %v939, %v989
    %v992 = vadd.f32 %v970, %v990
    %v993 = vadd.f32 %v971, %v990
    %v994 = vadd.f32 %v972, %v990
    %v995 = vadd.f32 %v973, %v990
    %v996 = vadd.f32 %v974, %v990
    %v997 = vadd.f32 %v975, %v990
    %v998 = vadd.f32 %v976, %v990
    %v999 = vadd.f32 %v977, %v990
    %v1000 = vadd.f32 %v978, %v990
    %v1001 = vadd.f32 %v979, %v990
    %v1002 = vadd.f32 %v980, %v990
    %v1003 = vadd.f32 %v981, %v990
    %v1004 = vadd.f32 %v982, %v990
    %v1005 = vadd.f32 %v983, %v990
    %v1006 = vadd.f32 %v984, %v990
    %v1007 = vadd.f32 %v985, %v990
    %vm1008 = vcmp.ge.f32.partialorder %v992, 0.0
    %vm1009 = vcmp.ge.f32.partialorder %v993, 0.0
    %vm1010 = vcmp.ge.f32.partialorder %v994, 0.0
    %vm1011 = vcmp.ge.f32.partialorder %v995, 0.0
    %vm1012 = vcmp.ge.f32.partialorder %v996, 0.0
    %vm1013 = vcmp.ge.f32.partialorder %v997, 0.0
    %vm1014 = vcmp.ge.f32.partialorder %v998, 0.0
    %vm1015 = vcmp.ge.f32.partialorder %v999, 0.0
    %vm1016 = vcmp.ge.f32.partialorder %v1000, 0.0
    %vm1017 = vcmp.ge.f32.partialorder %v1001, 0.0
    %vm1018 = vcmp.ge.f32.partialorder %v1002, 0.0
    %vm1019 = vcmp.ge.f32.partialorder %v1003, 0.0
    %vm1020 = vcmp.ge.f32.partialorder %v1004, 0.0
    %vm1021 = vcmp.ge.f32.partialorder %v1005, 0.0
    %vm1022 = vcmp.ge.f32.partialorder %v1006, 0.0
    %vm1023 = vcmp.ge.f32.partialorder %v1007, 0.0
    %v1024 = vmul.f32 %v992, 0.2
    %v1025 = vmul.f32 %v993, 0.2
    %v1026 = vmul.f32 %v994, 0.2
    %v1027 = vmul.f32 %v995, 0.2
    %v1028 = vmul.f32 %v996, 0.2
    %v1029 = vmul.f32 %v997, 0.2
    %v1030 = vmul.f32 %v998, 0.2
    %v1031 = vmul.f32 %v999, 0.2
    %v1032 = vmul.f32 %v1000, 0.2
    %v1033 = vmul.f32 %v1001, 0.2
    %v1034 = vmul.f32 %v1002, 0.2
    %v1035 = vmul.f32 %v1003, 0.2
    %v1036 = vmul.f32 %v1004, 0.2
    %v1037 = vmul.f32 %v1005, 0.2
    %v1038 = vmul.f32 %v1006, 0.2
    %v1039 = vmul.f32 %v1007, 0.2
    %v1040 = vsel %vm1008, %v992, %v1024
    %v1041 = vsel %vm1009, %v993, %v1025
    %v1042 = vsel %vm1010, %v994, %v1026
    %v1043 = vsel %vm1011, %v995, %v1027
    %v1044 = vsel %vm1012, %v996, %v1028
    %v1045 = vsel %vm1013, %v997, %v1029
    %v1046 = vsel %vm1014, %v998, %v1030
    %v1047 = vsel %vm1015, %v999, %v1031
    %v1048 = vsel %vm1016, %v1000, %v1032
    %v1049 = vsel %vm1017, %v1001, %v1033
    %v1050 = vsel %vm1018, %v1002, %v1034
    %v1051 = vsel %vm1019, %v1003, %v1035
    %v1052 = vsel %vm1020, %v1004, %v1036
    %v1053 = vsel %vm1021, %v1005, %v1037
    %v1054 = vsel %vm1022, %v1006, %v1038
    %v1055 = vsel %vm1023, %v1007, %v1039
    %s1056 = scalar_lea.vmem %s6, %s946
    %1057 = vst [vmem:[%s1056] sm:$0xff] %v1040
    %1058 = vst [vmem:[%s1056 + $0x8] sm:$0xff] %v1041
    %1059 = vst [vmem:[%s1056 + $0x10] sm:$0xff] %v1042
    %1060 = vst [vmem:[%s1056 + $0x18] sm:$0xff] %v1043
    %1061 = vst [vmem:[%s1056 + $0x20] sm:$0xff] %v1044
    %1062 = vst [vmem:[%s1056 + $0x28] sm:$0xff] %v1045
    %1063 = vst [vmem:[%s1056 + $0x30] sm:$0xff] %v1046
    %1064 = vst [vmem:[%s1056 + $0x38] sm:$0xff] %v1047
    %1065 = vst [vmem:[%s1056 + $0x40] sm:$0xff] %v1048
    %1066 = vst [vmem:[%s1056 + $0x48] sm:$0xff] %v1049
    %1067 = vst [vmem:[%s1056 + $0x50] sm:$0xff] %v1050
    %1068 = vst [vmem:[%s1056 + $0x58] sm:$0xff] %v1051
    %1069 = vst [vmem:[%s1056 + $0x60] sm:$0xff] %v1052
    %1070 = vst [vmem:[%s1056 + $0x68] sm:$0xff] %v1053
    %1071 = vst [vmem:[%s1056 + $0x70] sm:$0xff] %v1054
    %1072 = vst [vmem:[%s1056 + $0x78] sm:$0xff] %v1055
  $region51: #{depth_generator_forward.7} parent=0 // loop_footer
    %s945 = sadd.s32 1, %s941
  $region52: #{depth_generator_forward.7} parent=0 // loop_footer_branch
    %940 = sbr.rel target = $region48
  $region53: #{depth_generator_forward.7} parent=0 // loop_exit
    _
  // Predicated region
  $region54: #{depth_generator_forward.7} parent=0 // pred_check
    _
  $region55: #{depth_generator_forward.7} parent=0 // pred_check_branch
    %1074 = sbr.rel (0) target = $region57
  $region56: #{depth_generator_forward.7} parent=0 // pred_region
    _
  $region57: #{depth_generator_forward.7} parent=0 // pred_fallthru
    _
  // Predicated region
  $region58: #{depth_generator_forward.7} parent=0 // pred_check
    _
  $region59: #{depth_generator_forward.7} parent=0 // pred_check_branch
    %1076 = sbr.rel (0) target = $region61
  $region60: #{depth_generator_forward.7} parent=0 // pred_region
    _
  $region61: #{depth_generator_forward.7} parent=0 // pred_fallthru
    _

// kernel: depth_generator_forward.6
$region0: #{depth_generator_forward.6}
  #allocation0 [shape = 'u32[]', space=smem, size = 0x4, offset = 0x4, fixed_abs, tag = 'smem constant byte address 0x4 - core index']
  #allocation1 [shape = 'u32[144,128]{1,0:T(1,128)}', space=vmem, size = 0x12000, scoped, tag = 'internal scratch']
  #allocation2 [shape = 'f32[128,288]{1,0:T(8,128)}', space=vmem, size = 0x30000, scoped, tag = 'scratch operand']
  #allocation3 [shape = 'f32[128,128]{1,0:T(8,128)}', space=vmem, size = 0x10000, scoped, tag = 'scratch operand']
  %s0 = inlined_call_operand.vmem [shape: f32[20,10,32], index: 0, kind: input, shape index: {}]
  %s1 = inlined_call_operand.vmem [shape: bf16[288,128], index: 1, kind: input, shape index: {}]
  %s2 = inlined_call_operand.vmem [shape: f32[1,128], index: 2, kind: input, shape index: {}]
  %s3 = inlined_call_operand.vmem [shape: f32[1,128], index: 3, kind: input, shape index: {}]
  %s4 = inlined_call_operand.vmem [shape: f32[1,128], index: 4, kind: input, shape index: {}]
  %s5 = inlined_call_operand.vmem [shape: f32[128,128], index: 5, kind: input, shape index: {}]
  %s6 = inlined_call_operand.vmem [shape: f32[128,128], index: 6, kind: output, shape index: {}]
  %s7 = sld [smem:[#allocation0]]
  $region34: #{depth_generator_forward.6} parent=0
    _
  %s9 = ssub.s32 1, %s7
  %s10 = scalar_select 0, %s9, %s7
  // Predicated region
  $region2: #{depth_generator_forward.6} parent=0 // pred_check
    _
  $region3: #{depth_generator_forward.6} parent=0 // pred_check_branch
    %12 = sbr.rel (0) target = $region5
  $region4: #{depth_generator_forward.6} parent=0 // pred_region
    _
  $region5: #{depth_generator_forward.6} parent=0 // pred_fallthru
    _
  // Predicated region
  $region6: #{depth_generator_forward.6} parent=0 // pred_check
    _
  $region7: #{depth_generator_forward.6} parent=0 // pred_check_branch
    %14 = sbr.rel (0) target = $region9
  $region8: #{depth_generator_forward.6} parent=0 // pred_region
    _
  $region9: #{depth_generator_forward.6} parent=0 // pred_fallthru
    _
  // Predicated region
  $region10: #{depth_generator_forward.6} parent=0 // pred_check
    _
  $region11: #{depth_generator_forward.6} parent=0 // pred_check_branch
    %16 = sbr.rel (0) target = $region13
  $region12: #{depth_generator_forward.6} parent=0 // pred_region
    _
  $region13: #{depth_generator_forward.6} parent=0 // pred_fallthru
    _
  // Predicated region
  $region14: #{depth_generator_forward.6} parent=0 // pred_check
    _
  $region15: #{depth_generator_forward.6} parent=0 // pred_check_branch
    %18 = sbr.rel (0) target = $region17
  $region16: #{depth_generator_forward.6} parent=0 // pred_region
    _
  $region17: #{depth_generator_forward.6} parent=0 // pred_fallthru
    _
  // Predicated region
  $region18: #{depth_generator_forward.6} parent=0 // pred_check
    _
  $region19: #{depth_generator_forward.6} parent=0 // pred_check_branch
    %20 = sbr.rel (0) target = $region21
  $region20: #{depth_generator_forward.6} parent=0 // pred_region
    _
  $region21: #{depth_generator_forward.6} parent=0 // pred_fallthru
    _
  // Predicated region
  $region22: #{depth_generator_forward.6} parent=0 // pred_check
    _
  $region23: #{depth_generator_forward.6} parent=0 // pred_check_branch
    %22 = sbr.rel (0) target = $region25
  $region24: #{depth_generator_forward.6} parent=0 // pred_region
    _
  $region25: #{depth_generator_forward.6} parent=0 // pred_fallthru
    _
  %v24 = vld [vmem:[%s0] sm:$0xff]
  %vm25 = vcmask 261120
  %26 = vst.msk [vmem:[#allocation2] sm:$0xff] %vm25, %v24
  %v27 = vld [vmem:[%s0 + $0x1] sm:$0xff]
  %29 = vrot.lane.b32.xlu0 %v27, 32
  %v30 = vpop.permute.xlu0 %29
  %vm32 = vcmask 523520
  %33 = vst.msk [vmem:[#allocation2] sm:$0xff] %vm32, %v30
  %v34 = vld [vmem:[%s0 + $0x2] sm:$0xff]
  %36 = vrot.lane.b32.xlu0 %v34, 64
  %v37 = vpop.permute.xlu0 %36
  %vm39 = vcmask 785920
  %40 = vst.msk [vmem:[#allocation2] sm:$0xff] %vm39, %v37
  %s41 = scalar_lea.vmem %s0, 16
  %v42 = vld [vmem:[%s41] sm:$0xff]
  %44 = vrot.lane.b32.xlu0 %v42, 96
  %v45 = vpop.permute.xlu0 %44
  %vm47 = vcmask 1048320
  %48 = vst.msk [vmem:[#allocation2] sm:$0xff] %vm47, %v45
  %v49 = vld [vmem:[%s41 + $0x1] sm:$0xff]
  %50 = vst.msk [vmem:[#allocation2 + $0x8] sm:$0xff] %vm25, %v49
  %v51 = vld [vmem:[%s41 + $0x2] sm:$0xff]
  %53 = vrot.lane.b32.xlu0 %v51, 32
  %v54 = vpop.permute.xlu0 %53
  %56 = vst.msk [vmem:[#allocation2 + $0x8] sm:$0xff] %vm32, %v54
  %s57 = scalar_lea.vmem %s0, 32
  %v58 = vld [vmem:[%s57] sm:$0xff]
  %60 = vrot.lane.b32.xlu0 %v58, 64
  %v61 = vpop.permute.xlu0 %60
  %63 = vst.msk [vmem:[#allocation2 + $0x8] sm:$0xff] %vm39, %v61
  %v64 = vld [vmem:[%s57 + $0x1] sm:$0xff]
  %66 = vrot.lane.b32.xlu0 %v64, 96
  %v67 = vpop.permute.xlu0 %66
  %69 = vst.msk [vmem:[#allocation2 + $0x8] sm:$0xff] %vm47, %v67
  %v70 = vld [vmem:[%s57 + $0x2] sm:$0xff]
  %71 = vst.msk [vmem:[#allocation2 + $0x10] sm:$0xff] %vm25, %v70
  %v72 = vld [vmem:[%s41] sm:$0xff]
  %73 = vst.msk [vmem:[#allocation2 + $0x18] sm:$0xff] %vm25, %v72
  %v74 = vld [vmem:[%s41 + $0x1] sm:$0xff]
  %76 = vrot.lane.b32.xlu0 %v74, 32
  %v77 = vpop.permute.xlu0 %76
  %79 = vst.msk [vmem:[#allocation2 + $0x18] sm:$0xff] %vm32, %v77
  %v80 = vld [vmem:[%s41 + $0x2] sm:$0xff]
  %82 = vrot.lane.b32.xlu0 %v80, 64
  %v83 = vpop.permute.xlu0 %82
  %85 = vst.msk [vmem:[#allocation2 + $0x18] sm:$0xff] %vm39, %v83
  %v86 = vld [vmem:[%s57] sm:$0xff]
  %88 = vrot.lane.b32.xlu0 %v86, 96
  %v89 = vpop.permute.xlu0 %88
  %91 = vst.msk [vmem:[#allocation2 + $0x18] sm:$0xff] %vm47, %v89
  %v92 = vld [vmem:[%s57 + $0x1] sm:$0xff]
  %93 = vst.msk [vmem:[#allocation2 + $0x20] sm:$0xff] %vm25, %v92
  %v94 = vld [vmem:[%s57 + $0x2] sm:$0xff]
  %96 = vrot.lane.b32.xlu0 %v94, 32
  %v97 = vpop.permute.xlu0 %96
  %99 = vst.msk [vmem:[#allocation2 + $0x20] sm:$0xff] %vm32, %v97
  %s100 = scalar_lea.vmem %s0, 48
  %v101 = vld [vmem:[%s100] sm:$0xff]
  %103 = vrot.lane.b32.xlu0 %v101, 64
  %v104 = vpop.permute.xlu0 %103
  %106 = vst.msk [vmem:[#allocation2 + $0x20] sm:$0xff] %vm39, %v104
  %v107 = vld [vmem:[%s100 + $0x1] sm:$0xff]
  %109 = vrot.lane.b32.xlu0 %v107, 96
  %v110 = vpop.permute.xlu0 %109
  %112 = vst.msk [vmem:[#allocation2 + $0x20] sm:$0xff] %vm47, %v110
  %v113 = vld [vmem:[%s100 + $0x2] sm:$0xff]
  %114 = vst.msk [vmem:[#allocation2 + $0x28] sm:$0xff] %vm25, %v113
  %v115 = vld [vmem:[%s57] sm:$0xff]
  %116 = vst.msk [vmem:[#allocation2 + $0x30] sm:$0xff] %vm25, %v115
  %v117 = vld [vmem:[%s57 + $0x1] sm:$0xff]
  %119 = vrot.lane.b32.xlu0 %v117, 32
  %v120 = vpop.permute.xlu0 %119
  %122 = vst.msk [vmem:[#allocation2 + $0x30] sm:$0xff] %vm32, %v120
  %v123 = vld [vmem:[%s57 + $0x2] sm:$0xff]
  %125 = vrot.lane.b32.xlu0 %v123, 64
  %v126 = vpop.permute.xlu0 %125
  %128 = vst.msk [vmem:[#allocation2 + $0x30] sm:$0xff] %vm39, %v126
  %v129 = vld [vmem:[%s100] sm:$0xff]
  %131 = vrot.lane.b32.xlu0 %v129, 96
  %v132 = vpop.permute.xlu0 %131
  %134 = vst.msk [vmem:[#allocation2 + $0x30] sm:$0xff] %vm47, %v132
  %v135 = vld [vmem:[%s100 + $0x1] sm:$0xff]
  %136 = vst.msk [vmem:[#allocation2 + $0x38] sm:$0xff] %vm25, %v135
  %v137 = vld [vmem:[%s100 + $0x2] sm:$0xff]
  %139 = vrot.lane.b32.xlu0 %v137, 32
  %v140 = vpop.permute.xlu0 %139
  %142 = vst.msk [vmem:[#allocation2 + $0x38] sm:$0xff] %vm32, %v140
  %s143 = scalar_lea.vmem %s0, 64
  %v144 = vld [vmem:[%s143] sm:$0xff]
  %146 = vrot.lane.b32.xlu0 %v144, 64
  %v147 = vpop.permute.xlu0 %146
  %149 = vst.msk [vmem:[#allocation2 + $0x38] sm:$0xff] %vm39, %v147
  %v150 = vld [vmem:[%s143 + $0x1] sm:$0xff]
  %152 = vrot.lane.b32.xlu0 %v150, 96
  %v153 = vpop.permute.xlu0 %152
  %155 = vst.msk [vmem:[#allocation2 + $0x38] sm:$0xff] %vm47, %v153
  %v156 = vld [vmem:[%s143 + $0x2] sm:$0xff]
  %157 = vst.msk [vmem:[#allocation2 + $0x40] sm:$0xff] %vm25, %v156
  %v158 = vld [vmem:[%s100] sm:$0xff]
  %159 = vst.msk [vmem:[#allocation2 + $0x48] sm:$0xff] %vm25, %v158
  %v160 = vld [vmem:[%s100 + $0x1] sm:$0xff]
  %162 = vrot.lane.b32.xlu0 %v160, 32
  %v163 = vpop.permute.xlu0 %162
  %165 = vst.msk [vmem:[#allocation2 + $0x48] sm:$0xff] %vm32, %v163
  %v166 = vld [vmem:[%s100 + $0x2] sm:$0xff]
  %168 = vrot.lane.b32.xlu0 %v166, 64
  %v169 = vpop.permute.xlu0 %168
  %171 = vst.msk [vmem:[#allocation2 + $0x48] sm:$0xff] %vm39, %v169
  %v172 = vld [vmem:[%s143] sm:$0xff]
  %174 = vrot.lane.b32.xlu0 %v172, 96
  %v175 = vpop.permute.xlu0 %174
  %177 = vst.msk [vmem:[#allocation2 + $0x48] sm:$0xff] %vm47, %v175
  %v178 = vld [vmem:[%s143 + $0x1] sm:$0xff]
  %179 = vst.msk [vmem:[#allocation2 + $0x50] sm:$0xff] %vm25, %v178
  %v180 = vld [vmem:[%s143 + $0x2] sm:$0xff]
  %182 = vrot.lane.b32.xlu0 %v180, 32
  %v183 = vpop.permute.xlu0 %182
  %185 = vst.msk [vmem:[#allocation2 + $0x50] sm:$0xff] %vm32, %v183
  %s186 = scalar_lea.vmem %s0, 80
  %v187 = vld [vmem:[%s186] sm:$0xff]
  %189 = vrot.lane.b32.xlu0 %v187, 64
  %v190 = vpop.permute.xlu0 %189
  %192 = vst.msk [vmem:[#allocation2 + $0x50] sm:$0xff] %vm39, %v190
  %v193 = vld [vmem:[%s186 + $0x1] sm:$0xff]
  %195 = vrot.lane.b32.xlu0 %v193, 96
  %v196 = vpop.permute.xlu0 %195
  %198 = vst.msk [vmem:[#allocation2 + $0x50] sm:$0xff] %vm47, %v196
  %v199 = vld [vmem:[%s186 + $0x2] sm:$0xff]
  %200 = vst.msk [vmem:[#allocation2 + $0x58] sm:$0xff] %vm25, %v199
  %v201 = vld [vmem:[%s143] sm:$0xff]
  %202 = vst.msk [vmem:[#allocation2 + $0x60] sm:$0xff] %vm25, %v201
  %v203 = vld [vmem:[%s143 + $0x1] sm:$0xff]
  %205 = vrot.lane.b32.xlu0 %v203, 32
  %v206 = vpop.permute.xlu0 %205
  %208 = vst.msk [vmem:[#allocation2 + $0x60] sm:$0xff] %vm32, %v206
  %v209 = vld [vmem:[%s143 + $0x2] sm:$0xff]
  %211 = vrot.lane.b32.xlu0 %v209, 64
  %v212 = vpop.permute.xlu0 %211
  %214 = vst.msk [vmem:[#allocation2 + $0x60] sm:$0xff] %vm39, %v212
  %v215 = vld [vmem:[%s186] sm:$0xff]
  %217 = vrot.lane.b32.xlu0 %v215, 96
  %v218 = vpop.permute.xlu0 %217
  %220 = vst.msk [vmem:[#allocation2 + $0x60] sm:$0xff] %vm47, %v218
  %v221 = vld [vmem:[%s186 + $0x1] sm:$0xff]
  %222 = vst.msk [vmem:[#allocation2 + $0x68] sm:$0xff] %vm25, %v221
  %v223 = vld [vmem:[%s186 + $0x2] sm:$0xff]
  %225 = vrot.lane.b32.xlu0 %v223, 32
  %v226 = vpop.permute.xlu0 %225
  %228 = vst.msk [vmem:[#allocation2 + $0x68] sm:$0xff] %vm32, %v226
  %s229 = scalar_lea.vmem %s0, 96
  %v230 = vld [vmem:[%s229] sm:$0xff]
  %232 = vrot.lane.b32.xlu0 %v230, 64
  %v233 = vpop.permute.xlu0 %232
  %235 = vst.msk [vmem:[#allocation2 + $0x68] sm:$0xff] %vm39, %v233
  %v236 = vld [vmem:[%s229 + $0x1] sm:$0xff]
  %238 = vrot.lane.b32.xlu0 %v236, 96
  %v239 = vpop.permute.xlu0 %238
  %241 = vst.msk [vmem:[#allocation2 + $0x68] sm:$0xff] %vm47, %v239
  %v242 = vld [vmem:[%s229 + $0x2] sm:$0xff]
  %243 = vst.msk [vmem:[#allocation2 + $0x70] sm:$0xff] %vm25, %v242
  %v244 = vld [vmem:[%s186] sm:$0xff]
  %245 = vst.msk [vmem:[#allocation2 + $0x78] sm:$0xff] %vm25, %v244
  %v246 = vld [vmem:[%s186 + $0x1] sm:$0xff]
  %248 = vrot.lane.b32.xlu0 %v246, 32
  %v249 = vpop.permute.xlu0 %248
  %251 = vst.msk [vmem:[#allocation2 + $0x78] sm:$0xff] %vm32, %v249
  %v252 = vld [vmem:[%s186 + $0x2] sm:$0xff]
  %254 = vrot.lane.b32.xlu0 %v252, 64
  %v255 = vpop.permute.xlu0 %254
  %257 = vst.msk [vmem:[#allocation2 + $0x78] sm:$0xff] %vm39, %v255
  %v258 = vld [vmem:[%s229] sm:$0xff]
  %260 = vrot.lane.b32.xlu0 %v258, 96
  %v261 = vpop.permute.xlu0 %260
  %263 = vst.msk [vmem:[#allocation2 + $0x78] sm:$0xff] %vm47, %v261
  %v264 = vld [vmem:[%s229 + $0x1] sm:$0xff]
  %265 = vst.msk [vmem:[#allocation2 + $0x80] sm:$0xff] %vm25, %v264
  %v266 = vld [vmem:[%s229 + $0x2] sm:$0xff]
  %268 = vrot.lane.b32.xlu0 %v266, 32
  %v269 = vpop.permute.xlu0 %268
  %271 = vst.msk [vmem:[#allocation2 + $0x80] sm:$0xff] %vm32, %v269
  %s272 = scalar_lea.vmem %s0, 112
  %v273 = vld [vmem:[%s272] sm:$0xff]
  %275 = vrot.lane.b32.xlu0 %v273, 64
  %v276 = vpop.permute.xlu0 %275
  %278 = vst.msk [vmem:[#allocation2 + $0x80] sm:$0xff] %vm39, %v276
  %v279 = vld [vmem:[%s272 + $0x1] sm:$0xff]
  %281 = vrot.lane.b32.xlu0 %v279, 96
  %v282 = vpop.permute.xlu0 %281
  %284 = vst.msk [vmem:[#allocation2 + $0x80] sm:$0xff] %vm47, %v282
  %v285 = vld [vmem:[%s272 + $0x2] sm:$0xff]
  %286 = vst.msk [vmem:[#allocation2 + $0x88] sm:$0xff] %vm25, %v285
  %v287 = vld [vmem:[%s229] sm:$0xff]
  %288 = vst.msk [vmem:[#allocation2 + $0x90] sm:$0xff] %vm25, %v287
  %v289 = vld [vmem:[%s229 + $0x1] sm:$0xff]
  %291 = vrot.lane.b32.xlu0 %v289, 32
  %v292 = vpop.permute.xlu0 %291
  %294 = vst.msk [vmem:[#allocation2 + $0x90] sm:$0xff] %vm32, %v292
  %v295 = vld [vmem:[%s229 + $0x2] sm:$0xff]
  %297 = vrot.lane.b32.xlu0 %v295, 64
  %v298 = vpop.permute.xlu0 %297
  %300 = vst.msk [vmem:[#allocation2 + $0x90] sm:$0xff] %vm39, %v298
  %v301 = vld [vmem:[%s272] sm:$0xff]
  %303 = vrot.lane.b32.xlu0 %v301, 96
  %v304 = vpop.permute.xlu0 %303
  %306 = vst.msk [vmem:[#allocation2 + $0x90] sm:$0xff] %vm47, %v304
  %v307 = vld [vmem:[%s272 + $0x1] sm:$0xff]
  %308 = vst.msk [vmem:[#allocation2 + $0x98] sm:$0xff] %vm25, %v307
  %v309 = vld [vmem:[%s272 + $0x2] sm:$0xff]
  %311 = vrot.lane.b32.xlu0 %v309, 32
  %v312 = vpop.permute.xlu0 %311
  %314 = vst.msk [vmem:[#allocation2 + $0x98] sm:$0xff] %vm32, %v312
  %s315 = scalar_lea.vmem %s0, 128
  %v316 = vld [vmem:[%s315] sm:$0xff]
  %318 = vrot.lane.b32.xlu0 %v316, 64
  %v319 = vpop.permute.xlu0 %318
  %321 = vst.msk [vmem:[#allocation2 + $0x98] sm:$0xff] %vm39, %v319
  %v322 = vld [vmem:[%s315 + $0x1] sm:$0xff]
  %324 = vrot.lane.b32.xlu0 %v322, 96
  %v325 = vpop.permute.xlu0 %324
  %327 = vst.msk [vmem:[#allocation2 + $0x98] sm:$0xff] %vm47, %v325
  %v328 = vld [vmem:[%s315 + $0x2] sm:$0xff]
  %329 = vst.msk [vmem:[#allocation2 + $0xa0] sm:$0xff] %vm25, %v328
  %v330 = vld [vmem:[%s272] sm:$0xff]
  %331 = vst.msk [vmem:[#allocation2 + $0xa8] sm:$0xff] %vm25, %v330
  %v332 = vld [vmem:[%s272 + $0x1] sm:$0xff]
  %334 = vrot.lane.b32.xlu0 %v332, 32
  %v335 = vpop.permute.xlu0 %334
  %337 = vst.msk [vmem:[#allocation2 + $0xa8] sm:$0xff] %vm32, %v335
  %v338 = vld [vmem:[%s272 + $0x2] sm:$0xff]
  %340 = vrot.lane.b32.xlu0 %v338, 64
  %v341 = vpop.permute.xlu0 %340
  %343 = vst.msk [vmem:[#allocation2 + $0xa8] sm:$0xff] %vm39, %v341
  %v344 = vld [vmem:[%s315] sm:$0xff]
  %346 = vrot.lane.b32.xlu0 %v344, 96
  %v347 = vpop.permute.xlu0 %346
  %349 = vst.msk [vmem:[#allocation2 + $0xa8] sm:$0xff] %vm47, %v347
  %v350 = vld [vmem:[%s315 + $0x1] sm:$0xff]
  %351 = vst.msk [vmem:[#allocation2 + $0xb0] sm:$0xff] %vm25, %v350
  %v352 = vld [vmem:[%s315 + $0x2] sm:$0xff]
  %354 = vrot.lane.b32.xlu0 %v352, 32
  %v355 = vpop.permute.xlu0 %354
  %357 = vst.msk [vmem:[#allocation2 + $0xb0] sm:$0xff] %vm32, %v355
  %s358 = scalar_lea.vmem %s0, 144
  %v359 = vld [vmem:[%s358] sm:$0xff]
  %361 = vrot.lane.b32.xlu0 %v359, 64
  %v362 = vpop.permute.xlu0 %361
  %364 = vst.msk [vmem:[#allocation2 + $0xb0] sm:$0xff] %vm39, %v362
  %v365 = vld [vmem:[%s358 + $0x1] sm:$0xff]
  %367 = vrot.lane.b32.xlu0 %v365, 96
  %v368 = vpop.permute.xlu0 %367
  %370 = vst.msk [vmem:[#allocation2 + $0xb0] sm:$0xff] %vm47, %v368
  %v371 = vld [vmem:[%s358 + $0x2] sm:$0xff]
  %372 = vst.msk [vmem:[#allocation2 + $0xb8] sm:$0xff] %vm25, %v371
  %s373 = scalar_lea.vmem %s0, 160
  %v374 = vld [vmem:[%s373] sm:$0xff]
  %375 = vst.msk [vmem:[#allocation2 + $0xc0] sm:$0xff] %vm25, %v374
  %v376 = vld [vmem:[%s373 + $0x1] sm:$0xff]
  %378 = vrot.lane.b32.xlu0 %v376, 32
  %v379 = vpop.permute.xlu0 %378
  %381 = vst.msk [vmem:[#allocation2 + $0xc0] sm:$0xff] %vm32, %v379
  %v382 = vld [vmem:[%s373 + $0x2] sm:$0xff]
  %384 = vrot.lane.b32.xlu0 %v382, 64
  %v385 = vpop.permute.xlu0 %384
  %387 = vst.msk [vmem:[#allocation2 + $0xc0] sm:$0xff] %vm39, %v385
  %s388 = scalar_lea.vmem %s0, 176
  %v389 = vld [vmem:[%s388] sm:$0xff]
  %391 = vrot.lane.b32.xlu0 %v389, 96
  %v392 = vpop.permute.xlu0 %391
  %394 = vst.msk [vmem:[#allocation2 + $0xc0] sm:$0xff] %vm47, %v392
  %v395 = vld [vmem:[%s388 + $0x1] sm:$0xff]
  %396 = vst.msk [vmem:[#allocation2 + $0xc8] sm:$0xff] %vm25, %v395
  %v397 = vld [vmem:[%s388 + $0x2] sm:$0xff]
  %399 = vrot.lane.b32.xlu0 %v397, 32
  %v400 = vpop.permute.xlu0 %399
  %402 = vst.msk [vmem:[#allocation2 + $0xc8] sm:$0xff] %vm32, %v400
  %s403 = scalar_lea.vmem %s0, 192
  %v404 = vld [vmem:[%s403] sm:$0xff]
  %406 = vrot.lane.b32.xlu0 %v404, 64
  %v407 = vpop.permute.xlu0 %406
  %409 = vst.msk [vmem:[#allocation2 + $0xc8] sm:$0xff] %vm39, %v407
  %v410 = vld [vmem:[%s403 + $0x1] sm:$0xff]
  %412 = vrot.lane.b32.xlu0 %v410, 96
  %v413 = vpop.permute.xlu0 %412
  %415 = vst.msk [vmem:[#allocation2 + $0xc8] sm:$0xff] %vm47, %v413
  %v416 = vld [vmem:[%s403 + $0x2] sm:$0xff]
  %417 = vst.msk [vmem:[#allocation2 + $0xd0] sm:$0xff] %vm25, %v416
  %v418 = vld [vmem:[%s388] sm:$0xff]
  %419 = vst.msk [vmem:[#allocation2 + $0xd8] sm:$0xff] %vm25, %v418
  %v420 = vld [vmem:[%s388 + $0x1] sm:$0xff]
  %422 = vrot.lane.b32.xlu0 %v420, 32
  %v423 = vpop.permute.xlu0 %422
  %425 = vst.msk [vmem:[#allocation2 + $0xd8] sm:$0xff] %vm32, %v423
  %v426 = vld [vmem:[%s388 + $0x2] sm:$0xff]
  %428 = vrot.lane.b32.xlu0 %v426, 64
  %v429 = vpop.permute.xlu0 %428
  %431 = vst.msk [vmem:[#allocation2 + $0xd8] sm:$0xff] %vm39, %v429
  %v432 = vld [vmem:[%s403] sm:$0xff]
  %434 = vrot.lane.b32.xlu0 %v432, 96
  %v435 = vpop.permute.xlu0 %434
  %437 = vst.msk [vmem:[#allocation2 + $0xd8] sm:$0xff] %vm47, %v435
  %v438 = vld [vmem:[%s403 + $0x1] sm:$0xff]
  %439 = vst.msk [vmem:[#allocation2 + $0xe0] sm:$0xff] %vm25, %v438
  %v440 = vld [vmem:[%s403 + $0x2] sm:$0xff]
  %442 = vrot.lane.b32.xlu0 %v440, 32
  %v443 = vpop.permute.xlu0 %442
  %445 = vst.msk [vmem:[#allocation2 + $0xe0] sm:$0xff] %vm32, %v443
  %s446 = scalar_lea.vmem %s0, 208
  %v447 = vld [vmem:[%s446] sm:$0xff]
  %449 = vrot.lane.b32.xlu0 %v447, 64
  %v450 = vpop.permute.xlu0 %449
  %452 = vst.msk [vmem:[#allocation2 + $0xe0] sm:$0xff] %vm39, %v450
  %v453 = vld [vmem:[%s446 + $0x1] sm:$0xff]
  %455 = vrot.lane.b32.xlu0 %v453, 96
  %v456 = vpop.permute.xlu0 %455
  %458 = vst.msk [vmem:[#allocation2 + $0xe0] sm:$0xff] %vm47, %v456
  %v459 = vld [vmem:[%s446 + $0x2] sm:$0xff]
  %460 = vst.msk [vmem:[#allocation2 + $0xe8] sm:$0xff] %vm25, %v459
  %v461 = vld [vmem:[%s403] sm:$0xff]
  %462 = vst.msk [vmem:[#allocation2 + $0xf0] sm:$0xff] %vm25, %v461
  %v463 = vld [vmem:[%s403 + $0x1] sm:$0xff]
  %465 = vrot.lane.b32.xlu0 %v463, 32
  %v466 = vpop.permute.xlu0 %465
  %468 = vst.msk [vmem:[#allocation2 + $0xf0] sm:$0xff] %vm32, %v466
  %v469 = vld [vmem:[%s403 + $0x2] sm:$0xff]
  %471 = vrot.lane.b32.xlu0 %v469, 64
  %v472 = vpop.permute.xlu0 %471
  %474 = vst.msk [vmem:[#allocation2 + $0xf0] sm:$0xff] %vm39, %v472
  %v475 = vld [vmem:[%s446] sm:$0xff]
  %477 = vrot.lane.b32.xlu0 %v475, 96
  %v478 = vpop.permute.xlu0 %477
  %480 = vst.msk [vmem:[#allocation2 + $0xf0] sm:$0xff] %vm47, %v478
  %v481 = vld [vmem:[%s446 + $0x1] sm:$0xff]
  %482 = vst.msk [vmem:[#allocation2 + $0xf8] sm:$0xff] %vm25, %v481
  %v483 = vld [vmem:[%s446 + $0x2] sm:$0xff]
  %485 = vrot.lane.b32.xlu0 %v483, 32
  %v486 = vpop.permute.xlu0 %485
  %488 = vst.msk [vmem:[#allocation2 + $0xf8] sm:$0xff] %vm32, %v486
  %s489 = scalar_lea.vmem %s0, 224
  %v490 = vld [vmem:[%s489] sm:$0xff]
  %492 = vrot.lane.b32.xlu0 %v490, 64
  %v493 = vpop.permute.xlu0 %492
  %495 = vst.msk [vmem:[#allocation2 + $0xf8] sm:$0xff] %vm39, %v493
  %v496 = vld [vmem:[%s489 + $0x1] sm:$0xff]
  %498 = vrot.lane.b32.xlu0 %v496, 96
  %v499 = vpop.permute.xlu0 %498
  %501 = vst.msk [vmem:[#allocation2 + $0xf8] sm:$0xff] %vm47, %v499
  %v502 = vld [vmem:[%s489 + $0x2] sm:$0xff]
  %503 = vst.msk [vmem:[#allocation2 + $0x100] sm:$0xff] %vm25, %v502
  %v504 = vld [vmem:[%s446] sm:$0xff]
  %505 = vst.msk [vmem:[#allocation2 + $0x108] sm:$0xff] %vm25, %v504
  %v506 = vld [vmem:[%s446 + $0x1] sm:$0xff]
  %508 = vrot.lane.b32.xlu0 %v506, 32
  %v509 = vpop.permute.xlu0 %508
  %511 = vst.msk [vmem:[#allocation2 + $0x108] sm:$0xff] %vm32, %v509
  %v512 = vld [vmem:[%s446 + $0x2] sm:$0xff]
  %514 = vrot.lane.b32.xlu0 %v512, 64
  %v515 = vpop.permute.xlu0 %514
  %517 = vst.msk [vmem:[#allocation2 + $0x108] sm:$0xff] %vm39, %v515
  %v518 = vld [vmem:[%s489] sm:$0xff]
  %520 = vrot.lane.b32.xlu0 %v518, 96
  %v521 = vpop.permute.xlu0 %520
  %523 = vst.msk [vmem:[#allocation2 + $0x108] sm:$0xff] %vm47, %v521
  %v524 = vld [vmem:[%s489 + $0x1] sm:$0xff]
  %525 = vst.msk [vmem:[#allocation2 + $0x110] sm:$0xff] %vm25, %v524
  %v526 = vld [vmem:[%s489 + $0x2] sm:$0xff]
  %528 = vrot.lane.b32.xlu0 %v526, 32
  %v529 = vpop.permute.xlu0 %528
  %531 = vst.msk [vmem:[#allocation2 + $0x110] sm:$0xff] %vm32, %v529
  %s532 = scalar_lea.vmem %s0, 240
  %v533 = vld [vmem:[%s532] sm:$0xff]
  %535 = vrot.lane.b32.xlu0 %v533, 64
  %v536 = vpop.permute.xlu0 %535
  %538 = vst.msk [vmem:[#allocation2 + $0x110] sm:$0xff] %vm39, %v536
  %v539 = vld [vmem:[%s532 + $0x1] sm:$0xff]
  %541 = vrot.lane.b32.xlu0 %v539, 96
  %v542 = vpop.permute.xlu0 %541
  %544 = vst.msk [vmem:[#allocation2 + $0x110] sm:$0xff] %vm47, %v542
  %v545 = vld [vmem:[%s532 + $0x2] sm:$0xff]
  %546 = vst.msk [vmem:[#allocation2 + $0x118] sm:$0xff] %vm25, %v545
  %v547 = vld [vmem:[%s489] sm:$0xff]
  %548 = vst.msk [vmem:[#allocation2 + $0x120] sm:$0xff] %vm25, %v547
  %v549 = vld [vmem:[%s489 + $0x1] sm:$0xff]
  %551 = vrot.lane.b32.xlu0 %v549, 32
  %v552 = vpop.permute.xlu0 %551
  %554 = vst.msk [vmem:[#allocation2 + $0x120] sm:$0xff] %vm32, %v552
  %v555 = vld [vmem:[%s489 + $0x2] sm:$0xff]
  %557 = vrot.lane.b32.xlu0 %v555, 64
  %v558 = vpop.permute.xlu0 %557
  %560 = vst.msk [vmem:[#allocation2 + $0x120] sm:$0xff] %vm39, %v558
  %v561 = vld [vmem:[%s532] sm:$0xff]
  %563 = vrot.lane.b32.xlu0 %v561, 96
  %v564 = vpop.permute.xlu0 %563
  %566 = vst.msk [vmem:[#allocation2 + $0x120] sm:$0xff] %vm47, %v564
  %v567 = vld [vmem:[%s532 + $0x1] sm:$0xff]
  %568 = vst.msk [vmem:[#allocation2 + $0x128] sm:$0xff] %vm25, %v567
  %v569 = vld [vmem:[%s532 + $0x2] sm:$0xff]
  %571 = vrot.lane.b32.xlu0 %v569, 32
  %v572 = vpop.permute.xlu0 %571
  %574 = vst.msk [vmem:[#allocation2 + $0x128] sm:$0xff] %vm32, %v572
  %s575 = scalar_lea.vmem %s0, 256
  %v576 = vld [vmem:[%s575] sm:$0xff]
  %578 = vrot.lane.b32.xlu0 %v576, 64
  %v579 = vpop.permute.xlu0 %578
  %581 = vst.msk [vmem:[#allocation2 + $0x128] sm:$0xff] %vm39, %v579
  %v582 = vld [vmem:[%s575 + $0x1] sm:$0xff]
  %584 = vrot.lane.b32.xlu0 %v582, 96
  %v585 = vpop.permute.xlu0 %584
  %587 = vst.msk [vmem:[#allocation2 + $0x128] sm:$0xff] %vm47, %v585
  %v588 = vld [vmem:[%s575 + $0x2] sm:$0xff]
  %589 = vst.msk [vmem:[#allocation2 + $0x130] sm:$0xff] %vm25, %v588
  %v590 = vld [vmem:[%s532] sm:$0xff]
  %591 = vst.msk [vmem:[#allocation2 + $0x138] sm:$0xff] %vm25, %v590
  %v592 = vld [vmem:[%s532 + $0x1] sm:$0xff]
  %594 = vrot.lane.b32.xlu0 %v592, 32
  %v595 = vpop.permute.xlu0 %594
  %597 = vst.msk [vmem:[#allocation2 + $0x138] sm:$0xff] %vm32, %v595
  %v598 = vld [vmem:[%s532 + $0x2] sm:$0xff]
  %600 = vrot.lane.b32.xlu0 %v598, 64
  %v601 = vpop.permute.xlu0 %600
  %603 = vst.msk [vmem:[#allocation2 + $0x138] sm:$0xff] %vm39, %v601
  %v604 = vld [vmem:[%s575] sm:$0xff]
  %606 = vrot.lane.b32.xlu0 %v604, 96
  %v607 = vpop.permute.xlu0 %606
  %609 = vst.msk [vmem:[#allocation2 + $0x138] sm:$0xff] %vm47, %v607
  %v610 = vld [vmem:[%s575 + $0x1] sm:$0xff]
  %611 = vst.msk [vmem:[#allocation2 + $0x140] sm:$0xff] %vm25, %v610
  %v612 = vld [vmem:[%s575 + $0x2] sm:$0xff]
  %614 = vrot.lane.b32.xlu0 %v612, 32
  %v615 = vpop.permute.xlu0 %614
  %617 = vst.msk [vmem:[#allocation2 + $0x140] sm:$0xff] %vm32, %v615
  %s618 = scalar_lea.vmem %s0, 272
  %v619 = vld [vmem:[%s618] sm:$0xff]
  %621 = vrot.lane.b32.xlu0 %v619, 64
  %v622 = vpop.permute.xlu0 %621
  %624 = vst.msk [vmem:[#allocation2 + $0x140] sm:$0xff] %vm39, %v622
  %v625 = vld [vmem:[%s618 + $0x1] sm:$0xff]
  %627 = vrot.lane.b32.xlu0 %v625, 96
  %v628 = vpop.permute.xlu0 %627
  %630 = vst.msk [vmem:[#allocation2 + $0x140] sm:$0xff] %vm47, %v628
  %v631 = vld [vmem:[%s618 + $0x2] sm:$0xff]
  %632 = vst.msk [vmem:[#allocation2 + $0x148] sm:$0xff] %vm25, %v631
  %v633 = vld [vmem:[%s575] sm:$0xff]
  %634 = vst.msk [vmem:[#allocation2 + $0x150] sm:$0xff] %vm25, %v633
  %v635 = vld [vmem:[%s575 + $0x1] sm:$0xff]
  %637 = vrot.lane.b32.xlu0 %v635, 32
  %v638 = vpop.permute.xlu0 %637
  %640 = vst.msk [vmem:[#allocation2 + $0x150] sm:$0xff] %vm32, %v638
  %v641 = vld [vmem:[%s575 + $0x2] sm:$0xff]
  %643 = vrot.lane.b32.xlu0 %v641, 64
  %v644 = vpop.permute.xlu0 %643
  %646 = vst.msk [vmem:[#allocation2 + $0x150] sm:$0xff] %vm39, %v644
  %v647 = vld [vmem:[%s618] sm:$0xff]
  %649 = vrot.lane.b32.xlu0 %v647, 96
  %v650 = vpop.permute.xlu0 %649
  %652 = vst.msk [vmem:[#allocation2 + $0x150] sm:$0xff] %vm47, %v650
  %v653 = vld [vmem:[%s618 + $0x1] sm:$0xff]
  %654 = vst.msk [vmem:[#allocation2 + $0x158] sm:$0xff] %vm25, %v653
  %v655 = vld [vmem:[%s618 + $0x2] sm:$0xff]
  %657 = vrot.lane.b32.xlu0 %v655, 32
  %v658 = vpop.permute.xlu0 %657
  %660 = vst.msk [vmem:[#allocation2 + $0x158] sm:$0xff] %vm32, %v658
  %s661 = scalar_lea.vmem %s0, 288
  %v662 = vld [vmem:[%s661] sm:$0xff]
  %664 = vrot.lane.b32.xlu0 %v662, 64
  %v665 = vpop.permute.xlu0 %664
  %667 = vst.msk [vmem:[#allocation2 + $0x158] sm:$0xff] %vm39, %v665
  %v668 = vld [vmem:[%s661 + $0x1] sm:$0xff]
  %670 = vrot.lane.b32.xlu0 %v668, 96
  %v671 = vpop.permute.xlu0 %670
  %673 = vst.msk [vmem:[#allocation2 + $0x158] sm:$0xff] %vm47, %v671
  %v674 = vld [vmem:[%s661 + $0x2] sm:$0xff]
  %675 = vst.msk [vmem:[#allocation2 + $0x160] sm:$0xff] %vm25, %v674
  %v676 = vld [vmem:[%s618] sm:$0xff]
  %677 = vst.msk [vmem:[#allocation2 + $0x168] sm:$0xff] %vm25, %v676
  %v678 = vld [vmem:[%s618 + $0x1] sm:$0xff]
  %680 = vrot.lane.b32.xlu0 %v678, 32
  %v681 = vpop.permute.xlu0 %680
  %683 = vst.msk [vmem:[#allocation2 + $0x168] sm:$0xff] %vm32, %v681
  %v684 = vld [vmem:[%s618 + $0x2] sm:$0xff]
  %686 = vrot.lane.b32.xlu0 %v684, 64
  %v687 = vpop.permute.xlu0 %686
  %689 = vst.msk [vmem:[#allocation2 + $0x168] sm:$0xff] %vm39, %v687
  %v690 = vld [vmem:[%s661] sm:$0xff]
  %692 = vrot.lane.b32.xlu0 %v690, 96
  %v693 = vpop.permute.xlu0 %692
  %695 = vst.msk [vmem:[#allocation2 + $0x168] sm:$0xff] %vm47, %v693
  %v696 = vld [vmem:[%s661 + $0x1] sm:$0xff]
  %697 = vst.msk [vmem:[#allocation2 + $0x170] sm:$0xff] %vm25, %v696
  %v698 = vld [vmem:[%s661 + $0x2] sm:$0xff]
  %700 = vrot.lane.b32.xlu0 %v698, 32
  %v701 = vpop.permute.xlu0 %700
  %703 = vst.msk [vmem:[#allocation2 + $0x170] sm:$0xff] %vm32, %v701
  %s704 = scalar_lea.vmem %s0, 304
  %v705 = vld [vmem:[%s704] sm:$0xff]
  %707 = vrot.lane.b32.xlu0 %v705, 64
  %v708 = vpop.permute.xlu0 %707
  %710 = vst.msk [vmem:[#allocation2 + $0x170] sm:$0xff] %vm39, %v708
  %v711 = vld [vmem:[%s704 + $0x1] sm:$0xff]
  %713 = vrot.lane.b32.xlu0 %v711, 96
  %v714 = vpop.permute.xlu0 %713
  %716 = vst.msk [vmem:[#allocation2 + $0x170] sm:$0xff] %vm47, %v714
  %v717 = vld [vmem:[%s704 + $0x2] sm:$0xff]
  %718 = vst.msk [vmem:[#allocation2 + $0x178] sm:$0xff] %vm25, %v717
  %v719 = vld [vmem:[%s1] sm:$0xf]
  %v720 = vld [vmem:[%s1 + $0x4] sm:$0xf]
  %v721 = vld [vmem:[%s1 + $0x8] sm:$0xf]
  %v722 = vld [vmem:[%s1 + $0xc] sm:$0xf]
  %v723 = vld [vmem:[%s1 + $0x10] sm:$0xf]
  %v724 = vld [vmem:[%s1 + $0x14] sm:$0xf]
  %v725 = vld [vmem:[%s1 + $0x18] sm:$0xf]
  %v726 = vld [vmem:[%s1 + $0x1c] sm:$0xf]
  %v727 = vld [vmem:[%s1 + $0x20] sm:$0xf]
  %v728 = vld [vmem:[%s1 + $0x24] sm:$0xf]
  %v729 = vld [vmem:[%s1 + $0x28] sm:$0xf]
  %v730 = vld [vmem:[%s1 + $0x2c] sm:$0xf]
  %v731 = vld [vmem:[%s1 + $0x30] sm:$0xf]
  %v732 = vld [vmem:[%s1 + $0x34] sm:$0xf]
  %v733 = vld [vmem:[%s1 + $0x38] sm:$0xf]
  %v734 = vld [vmem:[%s1 + $0x3c] sm:$0xf]
  %v735 = vld [vmem:[%s1 + $0x40] sm:$0xf]
  %v736 = vld [vmem:[%s1 + $0x44] sm:$0xf]
  %v737 = vld [vmem:[%s1 + $0x48] sm:$0xf]
  %v738 = vld [vmem:[%s1 + $0x4c] sm:$0xf]
  %v739 = vld [vmem:[%s1 + $0x50] sm:$0xf]
  %v740 = vld [vmem:[%s1 + $0x54] sm:$0xf]
  %v741 = vld [vmem:[%s1 + $0x58] sm:$0xf]
  %v742 = vld [vmem:[%s1 + $0x5c] sm:$0xf]
  %v743 = vld [vmem:[%s1 + $0x60] sm:$0xf]
  %v744 = vld [vmem:[%s1 + $0x64] sm:$0xf]
  %v745 = vld [vmem:[%s1 + $0x68] sm:$0xf]
  %v746 = vld [vmem:[%s1 + $0x6c] sm:$0xf]
  %v747 = vld [vmem:[%s1 + $0x70] sm:$0xf]
  %v748 = vld [vmem:[%s1 + $0x74] sm:$0xf]
  %v749 = vld [vmem:[%s1 + $0x78] sm:$0xf]
  %v750 = vld [vmem:[%s1 + $0x7c] sm:$0xf]
  %v751 = vld [vmem:[%s1 + $0x80] sm:$0xf]
  %v752 = vld [vmem:[%s1 + $0x84] sm:$0xf]
  %v753 = vld [vmem:[%s1 + $0x88] sm:$0xf]
  %v754 = vld [vmem:[%s1 + $0x8c] sm:$0xf]
  %v755 = vld [vmem:[%s2] sm:$0x1]
  %s756 = smul.u32 0, 3
  %s757 = smul.addr %s756, 8
  %s758 = scalar_lea.vmem [#allocation2], %s757
  %v759 = vld [vmem:[%s758] sm:$0xff]
  %v760 = vld [vmem:[%s758 + $0x8] sm:$0xff]
  %v761 = vld [vmem:[%s758 + $0x10] sm:$0xff]
  %v762 = vld [vmem:[%s758 + $0x18] sm:$0xff]
  %v763 = vld [vmem:[%s758 + $0x20] sm:$0xff]
  %v764 = vld [vmem:[%s758 + $0x28] sm:$0xff]
  %v765 = vld [vmem:[%s758 + $0x30] sm:$0xff]
  %v766 = vld [vmem:[%s758 + $0x38] sm:$0xff]
  %v767 = vld [vmem:[%s758 + $0x40] sm:$0xff]
  %v768 = vld [vmem:[%s758 + $0x48] sm:$0xff]
  %v769 = vld [vmem:[%s758 + $0x50] sm:$0xff]
  %v770 = vld [vmem:[%s758 + $0x58] sm:$0xff]
  %v771 = vld [vmem:[%s758 + $0x60] sm:$0xff]
  %v772 = vld [vmem:[%s758 + $0x68] sm:$0xff]
  %v773 = vld [vmem:[%s758 + $0x70] sm:$0xff]
  %v774 = vld [vmem:[%s758 + $0x78] sm:$0xff]
  %v775 = vld [vmem:[%s758 + $0x80] sm:$0xff]
  %v776 = vld [vmem:[%s758 + $0x88] sm:$0xff]
  %v777 = vld [vmem:[%s758 + $0x90] sm:$0xff]
  %v778 = vld [vmem:[%s758 + $0x98] sm:$0xff]
  %v779 = vld [vmem:[%s758 + $0xa0] sm:$0xff]
  %v780 = vld [vmem:[%s758 + $0xa8] sm:$0xff]
  %v781 = vld [vmem:[%s758 + $0xb0] sm:$0xff]
  %v782 = vld [vmem:[%s758 + $0xb8] sm:$0xff]
  %v783 = vld [vmem:[%s758 + $0xc0] sm:$0xff]
  %v784 = vld [vmem:[%s758 + $0xc8] sm:$0xff]
  %v785 = vld [vmem:[%s758 + $0xd0] sm:$0xff]
  %v786 = vld [vmem:[%s758 + $0xd8] sm:$0xff]
  %v787 = vld [vmem:[%s758 + $0xe0] sm:$0xff]
  %v788 = vld [vmem:[%s758 + $0xe8] sm:$0xff]
  %v789 = vld [vmem:[%s758 + $0xf0] sm:$0xff]
  %v790 = vld [vmem:[%s758 + $0xf8] sm:$0xff]
  %v791 = vld [vmem:[%s758 + $0x100] sm:$0xff]
  %v792 = vld [vmem:[%s758 + $0x108] sm:$0xff]
  %v793 = vld [vmem:[%s758 + $0x110] sm:$0xff]
  %v794 = vld [vmem:[%s758 + $0x118] sm:$0xff]
  %v795 = vld [vmem:[%s758 + $0x120] sm:$0xff]
  %v796 = vld [vmem:[%s758 + $0x128] sm:$0xff]
  %v797 = vld [vmem:[%s758 + $0x130] sm:$0xff]
  %v798 = vld [vmem:[%s758 + $0x138] sm:$0xff]
  %v799 = vld [vmem:[%s758 + $0x140] sm:$0xff]
  %v800 = vld [vmem:[%s758 + $0x148] sm:$0xff]
  %v801 = vld [vmem:[%s758 + $0x150] sm:$0xff]
  %v802 = vld [vmem:[%s758 + $0x158] sm:$0xff]
  %v803 = vld [vmem:[%s758 + $0x160] sm:$0xff]
  %v804 = vld [vmem:[%s758 + $0x168] sm:$0xff]
  %v805 = vld [vmem:[%s758 + $0x170] sm:$0xff]
  %v806 = vld [vmem:[%s758 + $0x178] sm:$0xff]
  %v807 = vpack.c.bf16 %v762, %v759
  %v808 = vpack.c.bf16 %v763, %v760
  %v809 = vpack.c.bf16 %v764, %v761
  %v810 = vpack.c.bf16 %v768, %v765
  %v811 = vpack.c.bf16 %v769, %v766
  %v812 = vpack.c.bf16 %v770, %v767
  %v813 = vpack.c.bf16 %v774, %v771
  %v814 = vpack.c.bf16 %v775, %v772
  %v815 = vpack.c.bf16 %v776, %v773
  %v816 = vpack.c.bf16 %v780, %v777
  %v817 = vpack.c.bf16 %v781, %v778
  %v818 = vpack.c.bf16 %v782, %v779
  %v819 = vpack.c.bf16 %v786, %v783
  %v820 = vpack.c.bf16 %v787, %v784
  %v821 = vpack.c.bf16 %v788, %v785
  %v822 = vpack.c.bf16 %v792, %v789
  %v823 = vpack.c.bf16 %v793, %v790
  %v824 = vpack.c.bf16 %v794, %v791
  %v825 = vpack.c.bf16 %v798, %v795
  %v826 = vpack.c.bf16 %v799, %v796
  %v827 = vpack.c.bf16 %v800, %v797
  %v828 = vpack.c.bf16 %v804, %v801
  %v829 = vpack.c.bf16 %v805, %v802
  %v830 = vpack.c.bf16 %v806, %v803
  %v832 = vlaneseq
  %v833 = vshrl.u32 %v832, 7
  %v834 = vsub.s32 0, %v833
  %v835 = vrot.slane %v755, %v834
  %v873 = vunpack.c.l.b16 %v719
  %v874 = vunpack.c.l.b16 %v720
  %v875 = vunpack.c.l.b16 %v721
  %v876 = vunpack.c.l.b16 %v722
  %v877 = vunpack.c.l.b16 %v723
  %v878 = vunpack.c.l.b16 %v724
  %v879 = vunpack.c.l.b16 %v725
  %v880 = vunpack.c.l.b16 %v726
  %v881 = vunpack.c.l.b16 %v727
  %v882 = vunpack.c.l.b16 %v728
  %v883 = vunpack.c.l.b16 %v729
  %v884 = vunpack.c.l.b16 %v730
  %v885 = vunpack.c.l.b16 %v731
  %v886 = vunpack.c.l.b16 %v732
  %v887 = vunpack.c.l.b16 %v733
  %v888 = vunpack.c.l.b16 %v734
  %v889 = vunpack.c.l.b16 %v735
  %v890 = vunpack.c.l.b16 %v736
  %v891 = vunpack.c.l.b16 %v737
  %v892 = vunpack.c.l.b16 %v738
  %v893 = vunpack.c.l.b16 %v739
  %v894 = vunpack.c.l.b16 %v740
  %v895 = vunpack.c.l.b16 %v741
  %v896 = vunpack.c.l.b16 %v742
  %v897 = vunpack.c.l.b16 %v743
  %v898 = vunpack.c.l.b16 %v744
  %v899 = vunpack.c.l.b16 %v745
  %v900 = vunpack.c.l.b16 %v746
  %v901 = vunpack.c.l.b16 %v747
  %v902 = vunpack.c.l.b16 %v748
  %v903 = vunpack.c.l.b16 %v749
  %v904 = vunpack.c.l.b16 %v750
  %v905 = vunpack.c.l.b16 %v751
  %v906 = vunpack.c.l.b16 %v752
  %v907 = vunpack.c.l.b16 %v753
  %v908 = vunpack.c.l.b16 %v754
  %v909 = vpack.c.b16 %v874, %v873
  %v910 = vpack.c.b16 %v876, %v875
  %v911 = vpack.c.b16 %v878, %v877
  %v912 = vpack.c.b16 %v880, %v879
  %v913 = vpack.c.b16 %v882, %v881
  %v914 = vpack.c.b16 %v884, %v883
  %v915 = vpack.c.b16 %v886, %v885
  %v916 = vpack.c.b16 %v888, %v887
  %v917 = vpack.c.b16 %v890, %v889
  %v918 = vpack.c.b16 %v892, %v891
  %v919 = vpack.c.b16 %v894, %v893
  %v920 = vpack.c.b16 %v896, %v895
  %v921 = vpack.c.b16 %v898, %v897
  %v922 = vpack.c.b16 %v900, %v899
  %v923 = vpack.c.b16 %v902, %v901
  %v924 = vpack.c.b16 %v904, %v903
  %v925 = vpack.c.b16 %v906, %v905
  %v926 = vpack.c.b16 %v908, %v907
  %v946 = vsel %vm25, %v809, 0
  %v949 = vsel %vm25, %v812, 0
  %v952 = vsel %vm25, %v815, 0
  %v955 = vsel %vm25, %v818, 0
  %v958 = vsel %vm25, %v821, 0
  %v961 = vsel %vm25, %v824, 0
  %v964 = vsel %vm25, %v827, 0
  %v967 = vsel %vm25, %v830, 0
  %969 = vmatprep.subr.bf16.mxu0 0
  %970 = vmatpush1.bf16.msra.mxu0 %v909
  %971 = vmatprep.subr.bf16.mxu0 0
  %972 = vmatpush1.bf16.msra.mxu0 %v910
  %973 = vmatprep.subr.bf16.mxu0 0
  %974 = vmatpush1.bf16.msra.mxu0 %v911
  %975 = vmatprep.subr.bf16.mxu0 0
  %976 = vmatpush1.bf16.msra.mxu0 %v912
  %977 = vmatprep.subr.bf16.mxu0 0
  %978 = vmatpush1.bf16.msra.mxu0 %v913
  %979 = vmatprep.subr.bf16.mxu0 0
  %980 = vmatpush1.bf16.msra.mxu0 %v914
  %981 = vmatprep.subr.bf16.mxu0 0
  %982 = vmatpush1.bf16.msra.mxu0 %v915
  %983 = vmatprep.subr.bf16.mxu0 0
  %984 = vmatpush1.bf16.msra.mxu0 %v916
  %985 = vmatprep.subr.bf16.mxu0 0
  %986 = vmatpush1.bf16.msra.mxu0 %v917
  %987 = vmatprep.subr.bf16.mxu0 0
  %988 = vmatpush1.bf16.msra.mxu0 %v918
  %989 = vmatprep.subr.bf16.mxu0 0
  %990 = vmatpush1.bf16.msra.mxu0 %v919
  %991 = vmatprep.subr.bf16.mxu0 0
  %992 = vmatpush1.bf16.msra.mxu0 %v920
  %993 = vmatprep.subr.bf16.mxu0 0
  %994 = vmatpush1.bf16.msra.mxu0 %v921
  %995 = vmatprep.subr.bf16.mxu0 0
  %996 = vmatpush1.bf16.msra.mxu0 %v922
  %997 = vmatprep.subr.bf16.mxu0 0
  %998 = vmatpush1.bf16.msra.mxu0 %v923
  %999 = vmatprep.subr.bf16.mxu0 0
  %1000 = vmatpush1.bf16.msra.mxu0 %v924
  %1001 = vmatprep.mubr.bf16.mxu0 %v808
  %1002 = vmatmul.mubr.bf16.gmra.mrb[0].mxu0 %v807
  %v1003 = vpop.f32.mrb[0].mxu0
  %v1004 = vadd.f32 %v835, %v1003
  %v1005 = vpop.f32.mrb[0].mxu0
  %v1006 = vpop.f32.mrb[0].mxu0
  %v1007 = vadd.f32 %v835, %v1006
  %v1008 = vpop.f32.mrb[0].mxu0
  %1009 = vmatprep.mubr.bf16.mxu0 %v811
  %1010 = vmatmul.mubr.bf16.gmra.mrb[0].mxu0 %v810
  %v1011 = vpop.f32.mrb[0].mxu0
  %v1012 = vadd.f32 %v835, %v1011
  %v1013 = vpop.f32.mrb[0].mxu0
  %v1014 = vpop.f32.mrb[0].mxu0
  %v1015 = vadd.f32 %v835, %v1014
  %v1016 = vpop.f32.mrb[0].mxu0
  %1017 = vmatprep.mubr.bf16.mxu0 %v814
  %1018 = vmatmul.mubr.bf16.gmra.mrb[0].mxu0 %v813
  %v1019 = vpop.f32.mrb[0].mxu0
  %v1020 = vadd.f32 %v835, %v1019
  %v1021 = vpop.f32.mrb[0].mxu0
  %v1022 = vpop.f32.mrb[0].mxu0
  %v1023 = vadd.f32 %v835, %v1022
  %v1024 = vpop.f32.mrb[0].mxu0
  %1025 = vmatprep.mubr.bf16.mxu0 %v817
  %1026 = vmatmul.mubr.bf16.gmra.mrb[0].mxu0 %v816
  %v1027 = vpop.f32.mrb[0].mxu0
  %v1028 = vadd.f32 %v835, %v1027
  %v1029 = vpop.f32.mrb[0].mxu0
  %v1030 = vpop.f32.mrb[0].mxu0
  %v1031 = vadd.f32 %v835, %v1030
  %v1032 = vpop.f32.mrb[0].mxu0
  %1033 = vmatprep.mubr.bf16.mxu0 %v820
  %1034 = vmatmul.mubr.bf16.gmra.mrb[0].mxu0 %v819
  %v1035 = vpop.f32.mrb[0].mxu0
  %v1036 = vadd.f32 %v835, %v1035
  %v1037 = vpop.f32.mrb[0].mxu0
  %v1038 = vpop.f32.mrb[0].mxu0
  %v1039 = vadd.f32 %v835, %v1038
  %v1040 = vpop.f32.mrb[0].mxu0
  %1041 = vmatprep.mubr.bf16.mxu0 %v823
  %1042 = vmatmul.mubr.bf16.gmra.mrb[0].mxu0 %v822
  %v1043 = vpop.f32.mrb[0].mxu0
  %v1044 = vadd.f32 %v835, %v1043
  %v1045 = vpop.f32.mrb[0].mxu0
  %v1046 = vpop.f32.mrb[0].mxu0
  %v1047 = vadd.f32 %v835, %v1046
  %v1048 = vpop.f32.mrb[0].mxu0
  %1049 = vmatprep.mubr.bf16.mxu0 %v826
  %1050 = vmatmul.mubr.bf16.gmra.mrb[0].mxu0 %v825
  %v1051 = vpop.f32.mrb[0].mxu0
  %v1052 = vadd.f32 %v835, %v1051
  %v1053 = vpop.f32.mrb[0].mxu0
  %v1054 = vpop.f32.mrb[0].mxu0
  %v1055 = vadd.f32 %v835, %v1054
  %v1056 = vpop.f32.mrb[0].mxu0
  %1057 = vmatprep.mubr.bf16.mxu0 %v829
  %1058 = vmatmul.mubr.bf16.gmra.mrb[0].mxu0 %v828
  %v1059 = vpop.f32.mrb[0].mxu0
  %v1060 = vadd.f32 %v835, %v1059
  %v1061 = vpop.f32.mrb[0].mxu0
  %v1062 = vpop.f32.mrb[0].mxu0
  %v1063 = vadd.f32 %v835, %v1062
  %v1064 = vpop.f32.mrb[0].mxu0
  %1065 = vdwg.mxu0
  %1066 = vmatprep.subr.bf16.mxu0 0
  %1067 = vmatpush1.bf16.msra.mxu0 %v925
  %1068 = vmatprep.subr.bf16.mxu0 0
  %1069 = vmatpush1.bf16.msra.mxu0 %v926
  %1070 = vmatprep.subr.bf16.mxu0 0
  %1071 = vmatpush1.bf16.msra.mxu0 0
  %1072 = vmatprep.subr.bf16.mxu0 0
  %1073 = vmatpush1.bf16.msra.mxu0 0
  %1074 = vmatprep.subr.bf16.mxu0 0
  %1075 = vmatpush1.bf16.msra.mxu0 0
  %1076 = vmatprep.subr.bf16.mxu0 0
  %1077 = vmatpush1.bf16.msra.mxu0 0
  %1078 = vmatprep.subr.bf16.mxu0 0
  %1079 = vmatpush1.bf16.msra.mxu0 0
  %1080 = vmatprep.subr.bf16.mxu0 0
  %1081 = vmatpush1.bf16.msra.mxu0 0
  %1082 = vmatprep.subr.bf16.mxu0 0
  %1083 = vmatpush1.bf16.msra.mxu0 0
  %1084 = vmatprep.subr.bf16.mxu0 0
  %1085 = vmatpush1.bf16.msra.mxu0 0
  %1086 = vmatprep.subr.bf16.mxu0 0
  %1087 = vmatpush1.bf16.msra.mxu0 0
  %1088 = vmatprep.subr.bf16.mxu0 0
  %1089 = vmatpush1.bf16.msra.mxu0 0
  %1090 = vmatprep.subr.bf16.mxu0 0
  %1091 = vmatpush1.bf16.msra.mxu0 0
  %1092 = vmatprep.subr.bf16.mxu0 0
  %1093 = vmatpush1.bf16.msra.mxu0 0
  %1094 = vmatprep.subr.bf16.mxu0 0
  %1095 = vmatpush1.bf16.msra.mxu0 0
  %1096 = vmatprep.subr.bf16.mxu0 0
  %1097 = vmatpush1.bf16.msra.mxu0 0
  %1098 = vmatprep.mubr.bf16.mxu0 0
  %1099 = vmatmul.mubr.bf16.gmra.mrb[0].mxu0 %v946
  %v1100 = vpop.f32.mrb[0].mxu0
  %v1101 = vadd.f32 %v1004, %v1100
  %v1102 = vpop.f32.mrb[0].mxu0
  %v1103 = vpop.f32.mrb[0].mxu0
  %v1104 = vadd.f32 %v1007, %v1103
  %v1105 = vpop.f32.mrb[0].mxu0
  %1106 = vmatprep.mubr.bf16.mxu0 0
  %1107 = vmatmul.mubr.bf16.gmra.mrb[0].mxu0 %v949
  %v1108 = vpop.f32.mrb[0].mxu0
  %v1109 = vadd.f32 %v1012, %v1108
  %v1110 = vpop.f32.mrb[0].mxu0
  %v1111 = vpop.f32.mrb[0].mxu0
  %v1112 = vadd.f32 %v1015, %v1111
  %v1113 = vpop.f32.mrb[0].mxu0
  %1114 = vmatprep.mubr.bf16.mxu0 0
  %1115 = vmatmul.mubr.bf16.gmra.mrb[0].mxu0 %v952
  %v1116 = vpop.f32.mrb[0].mxu0
  %v1117 = vadd.f32 %v1020, %v1116
  %v1118 = vpop.f32.mrb[0].mxu0
  %v1119 = vpop.f32.mrb[0].mxu0
  %v1120 = vadd.f32 %v1023, %v1119
  %v1121 = vpop.f32.mrb[0].mxu0
  %1122 = vmatprep.mubr.bf16.mxu0 0
  %1123 = vmatmul.mubr.bf16.gmra.mrb[0].mxu0 %v955
  %v1124 = vpop.f32.mrb[0].mxu0
  %v1125 = vadd.f32 %v1028, %v1124
  %v1126 = vpop.f32.mrb[0].mxu0
  %v1127 = vpop.f32.mrb[0].mxu0
  %v1128 = vadd.f32 %v1031, %v1127
  %v1129 = vpop.f32.mrb[0].mxu0
  %1130 = vmatprep.mubr.bf16.mxu0 0
  %1131 = vmatmul.mubr.bf16.gmra.mrb[0].mxu0 %v958
  %v1132 = vpop.f32.mrb[0].mxu0
  %v1133 = vadd.f32 %v1036, %v1132
  %v1134 = vpop.f32.mrb[0].mxu0
  %v1135 = vpop.f32.mrb[0].mxu0
  %v1136 = vadd.f32 %v1039, %v1135
  %v1137 = vpop.f32.mrb[0].mxu0
  %1138 = vmatprep.mubr.bf16.mxu0 0
  %1139 = vmatmul.mubr.bf16.gmra.mrb[0].mxu0 %v961
  %v1140 = vpop.f32.mrb[0].mxu0
  %v1141 = vadd.f32 %v1044, %v1140
  %v1142 = vpop.f32.mrb[0].mxu0
  %v1143 = vpop.f32.mrb[0].mxu0
  %v1144 = vadd.f32 %v1047, %v1143
  %v1145 = vpop.f32.mrb[0].mxu0
  %1146 = vmatprep.mubr.bf16.mxu0 0
  %1147 = vmatmul.mubr.bf16.gmra.mrb[0].mxu0 %v964
  %v1148 = vpop.f32.mrb[0].mxu0
  %v1149 = vadd.f32 %v1052, %v1148
  %v1150 = vpop.f32.mrb[0].mxu0
  %v1151 = vpop.f32.mrb[0].mxu0
  %v1152 = vadd.f32 %v1055, %v1151
  %v1153 = vpop.f32.mrb[0].mxu0
  %1154 = vmatprep.mubr.bf16.mxu0 0
  %1155 = vmatmul.mubr.bf16.gmra.mrb[0].mxu0 %v967
  %v1156 = vpop.f32.mrb[0].mxu0
  %v1157 = vadd.f32 %v1060, %v1156
  %v1158 = vpop.f32.mrb[0].mxu0
  %v1159 = vpop.f32.mrb[0].mxu0
  %v1160 = vadd.f32 %v1063, %v1159
  %v1161 = vpop.f32.mrb[0].mxu0
  %1162 = vdwg.mxu0
  %1163 = vst [vmem:[#allocation3] sm:$0xff] %v1101
  %1164 = vst [vmem:[#allocation3 + $0x8] sm:$0xff] %v1104
  %1165 = vst [vmem:[#allocation3 + $0x10] sm:$0xff] %v1109
  %1166 = vst [vmem:[#allocation3 + $0x18] sm:$0xff] %v1112
  %1167 = vst [vmem:[#allocation3 + $0x20] sm:$0xff] %v1117
  %1168 = vst [vmem:[#allocation3 + $0x28] sm:$0xff] %v1120
  %1169 = vst [vmem:[#allocation3 + $0x30] sm:$0xff] %v1125
  %1170 = vst [vmem:[#allocation3 + $0x38] sm:$0xff] %v1128
  %1171 = vst [vmem:[#allocation3 + $0x40] sm:$0xff] %v1133
  %1172 = vst [vmem:[#allocation3 + $0x48] sm:$0xff] %v1136
  %1173 = vst [vmem:[#allocation3 + $0x50] sm:$0xff] %v1141
  %1174 = vst [vmem:[#allocation3 + $0x58] sm:$0xff] %v1144
  %1175 = vst [vmem:[#allocation3 + $0x60] sm:$0xff] %v1149
  %1176 = vst [vmem:[#allocation3 + $0x68] sm:$0xff] %v1152
  %1177 = vst [vmem:[#allocation3 + $0x70] sm:$0xff] %v1157
  %1178 = vst [vmem:[#allocation3 + $0x78] sm:$0xff] %v1160
  %v1179 = vadd.f32 %v1101, %v1104
  %v1180 = vadd.f32 %v1179, %v1109
  %v1181 = vadd.f32 %v1180, %v1112
  %v1182 = vadd.f32 %v1181, %v1117
  %v1183 = vadd.f32 %v1182, %v1120
  %v1184 = vadd.f32 %v1183, %v1125
  %v1185 = vadd.f32 %v1184, %v1128
  %v1186 = vadd.f32 %v1185, %v1133
  %v1187 = vadd.f32 %v1186, %v1136
  %v1188 = vadd.f32 %v1187, %v1141
  %v1189 = vadd.f32 %v1188, %v1144
  %v1190 = vadd.f32 %v1189, %v1149
  %v1191 = vadd.f32 %v1190, %v1152
  %v1192 = vadd.f32 %v1191, %v1157
  %v1193 = vadd.f32 %v1192, %v1160
  %v1194 = vrot.slane %v1193, 4
  %v1195 = vadd.f32 %v1193, %v1194
  %v1196 = vrot.slane %v1195, 2
  %v1197 = vadd.f32 %v1195, %v1196
  %v1198 = vrot.slane %v1197, 1
  %v1199 = vadd.f32 %v1197, %v1198
  %v1200 = vadd.f32 %v1199, 0.0
  %v1201 = vmul.f32 %v1101, %v1101
  %v1202 = vmul.f32 %v1104, %v1104
  %v1203 = vmul.f32 %v1109, %v1109
  %v1204 = vmul.f32 %v1112, %v1112
  %v1205 = vmul.f32 %v1117, %v1117
  %v1206 = vmul.f32 %v1120, %v1120
  %v1207 = vmul.f32 %v1125, %v1125
  %v1208 = vmul.f32 %v1128, %v1128
  %v1209 = vmul.f32 %v1133, %v1133
  %v1210 = vmul.f32 %v1136, %v1136
  %v1211 = vmul.f32 %v1141, %v1141
  %v1212 = vmul.f32 %v1144, %v1144
  %v1213 = vmul.f32 %v1149, %v1149
  %v1214 = vmul.f32 %v1152, %v1152
  %v1215 = vmul.f32 %v1157, %v1157
  %v1216 = vmul.f32 %v1160, %v1160
  %v1217 = vadd.f32 %v1201, %v1202
  %v1218 = vadd.f32 %v1217, %v1203
  %v1219 = vadd.f32 %v1218, %v1204
  %v1220 = vadd.f32 %v1219, %v1205
  %v1221 = vadd.f32 %v1220, %v1206
  %v1222 = vadd.f32 %v1221, %v1207
  %v1223 = vadd.f32 %v1222, %v1208
  %v1224 = vadd.f32 %v1223, %v1209
  %v1225 = vadd.f32 %v1224, %v1210
  %v1226 = vadd.f32 %v1225, %v1211
  %v1227 = vadd.f32 %v1226, %v1212
  %v1228 = vadd.f32 %v1227, %v1213
  %v1229 = vadd.f32 %v1228, %v1214
  %v1230 = vadd.f32 %v1229, %v1215
  %v1231 = vadd.f32 %v1230, %v1216
  %v1232 = vrot.slane %v1231, 4
  %v1233 = vadd.f32 %v1231, %v1232
  %v1234 = vrot.slane %v1233, 2
  %v1235 = vadd.f32 %v1233, %v1234
  %v1236 = vrot.slane %v1235, 1
  %v1237 = vadd.f32 %v1235, %v1236
  %v1238 = vadd.f32 %v1237, 0.0
  %v1239 = vld [vmem:[%s5] sm:$0xff]
  %v1240 = vld [vmem:[%s5 + $0x8] sm:$0xff]
  %v1241 = vld [vmem:[%s5 + $0x10] sm:$0xff]
  %v1242 = vld [vmem:[%s5 + $0x18] sm:$0xff]
  %v1243 = vld [vmem:[%s5 + $0x20] sm:$0xff]
  %v1244 = vld [vmem:[%s5 + $0x28] sm:$0xff]
  %v1245 = vld [vmem:[%s5 + $0x30] sm:$0xff]
  %v1246 = vld [vmem:[%s5 + $0x38] sm:$0xff]
  %v1247 = vld [vmem:[%s5 + $0x40] sm:$0xff]
  %v1248 = vld [vmem:[%s5 + $0x48] sm:$0xff]
  %v1249 = vld [vmem:[%s5 + $0x50] sm:$0xff]
  %v1250 = vld [vmem:[%s5 + $0x58] sm:$0xff]
  %v1251 = vld [vmem:[%s5 + $0x60] sm:$0xff]
  %v1252 = vld [vmem:[%s5 + $0x68] sm:$0xff]
  %v1253 = vld [vmem:[%s5 + $0x70] sm:$0xff]
  %v1254 = vld [vmem:[%s5 + $0x78] sm:$0xff]
  %1255 = vmatprep.subr.mxu0 0.0
  %1256 = vmatpush1.msra.mxu0 %v1239
  %1257 = vmatprep.subr.mxu0 0.0
  %1258 = vmatpush1.msra.mxu0 %v1240
  %1259 = vmatprep.subr.mxu0 0.0
  %1260 = vmatpush1.msra.mxu0 %v1241
  %1261 = vmatprep.subr.mxu0 0.0
  %1262 = vmatpush1.msra.mxu0 %v1242
  %1263 = vmatprep.subr.mxu0 0.0
  %1264 = vmatpush1.msra.mxu0 %v1243
  %1265 = vmatprep.subr.mxu0 0.0
  %1266 = vmatpush1.msra.mxu0 %v1244
  %1267 = vmatprep.subr.mxu0 0.0
  %1268 = vmatpush1.msra.mxu0 %v1245
  %1269 = vmatprep.subr.mxu0 0.0
  %1270 = vmatpush1.msra.mxu0 %v1246
  %1271 = vmatprep.subr.mxu0 0.0
  %1272 = vmatpush1.msra.mxu0 %v1247
  %1273 = vmatprep.subr.mxu0 0.0
  %1274 = vmatpush1.msra.mxu0 %v1248
  %1275 = vmatprep.subr.mxu0 0.0
  %1276 = vmatpush1.msra.mxu0 %v1249
  %1277 = vmatprep.subr.mxu0 0.0
  %1278 = vmatpush1.msra.mxu0 %v1250
  %1279 = vmatprep.subr.mxu0 0.0
  %1280 = vmatpush1.msra.mxu0 %v1251
  %1281 = vmatprep.subr.mxu0 0.0
  %1282 = vmatpush1.msra.mxu0 %v1252
  %1283 = vmatprep.subr.mxu0 0.0
  %1284 = vmatpush1.msra.mxu0 %v1253
  %1285 = vmatprep.subr.mxu0 0.0
  %1286 = vmatpush1.msra.mxu0 %v1254
  %1287 = vmatprep.subr.mxu0 0.0
  %1288 = vmatpush1.msra.mxu0 0.0
  %1289 = vmatprep.subr.mxu0 0.0
  %1290 = vmatpush1.msra.mxu0 0.0
  %1291 = vmatprep.subr.mxu0 0.0
  %1292 = vmatpush1.msra.mxu0 0.0
  %1293 = vmatprep.subr.mxu0 0.0
  %1294 = vmatpush1.msra.mxu0 0.0
  %1295 = vmatprep.subr.mxu0 0.0
  %1296 = vmatpush1.msra.mxu0 0.0
  %1297 = vmatprep.subr.mxu0 0.0
  %1298 = vmatpush1.msra.mxu0 0.0
  %1299 = vmatprep.subr.mxu0 0.0
  %1300 = vmatpush1.msra.mxu0 0.0
  %1301 = vmatprep.subr.mxu0 0.0
  %1302 = vmatpush1.msra.mxu0 0.0
  %1303 = vmatprep.subr.mxu0 0.0
  %1304 = vmatpush1.msra.mxu0 0.0
  %1305 = vmatprep.subr.mxu0 0.0
  %1306 = vmatpush1.msra.mxu0 0.0
  %1307 = vmatprep.subr.mxu0 0.0
  %1308 = vmatpush1.msra.mxu0 0.0
  %1309 = vmatprep.subr.mxu0 0.0
  %1310 = vmatpush1.msra.mxu0 0.0
  %1311 = vmatprep.subr.mxu0 0.0
  %1312 = vmatpush1.msra.mxu0 0.0
  %1313 = vmatprep.subr.mxu0 0.0
  %1314 = vmatpush1.msra.mxu0 0.0
  %1315 = vmatprep.subr.mxu0 0.0
  %1316 = vmatpush1.msra.mxu0 0.0
  %1317 = vmatprep.subr.mxu0 0.0
  %1318 = vmatpush1.msra.mxu0 0.0
  %1319 = vmatprep.mubr.f32.mxu0 0.0
  %1320 = vmatmul.mubr.f32.gmra.mrb[0].mxu0 %v1200
  %v1321 = vpop.f32.mrb[0].mxu0
  %v1322 = vadd.f32 0.0, %v1321
  %v1323 = vpop.f32.mrb[0].mxu0
  %1324 = vdwg.mxu0
  %1325 = vmatprep.subr.mxu0 0.0
  %1326 = vmatpush1.msra.mxu0 %v1239
  %1327 = vmatprep.subr.mxu0 0.0
  %1328 = vmatpush1.msra.mxu0 %v1240
  %1329 = vmatprep.subr.mxu0 0.0
  %1330 = vmatpush1.msra.mxu0 %v1241
  %1331 = vmatprep.subr.mxu0 0.0
  %1332 = vmatpush1.msra.mxu0 %v1242
  %1333 = vmatprep.subr.mxu0 0.0
  %1334 = vmatpush1.msra.mxu0 %v1243
  %1335 = vmatprep.subr.mxu0 0.0
  %1336 = vmatpush1.msra.mxu0 %v1244
  %1337 = vmatprep.subr.mxu0 0.0
  %1338 = vmatpush1.msra.mxu0 %v1245
  %1339 = vmatprep.subr.mxu0 0.0
  %1340 = vmatpush1.msra.mxu0 %v1246
  %1341 = vmatprep.subr.mxu0 0.0
  %1342 = vmatpush1.msra.mxu0 %v1247
  %1343 = vmatprep.subr.mxu0 0.0
  %1344 = vmatpush1.msra.mxu0 %v1248
  %1345 = vmatprep.subr.mxu0 0.0
  %1346 = vmatpush1.msra.mxu0 %v1249
  %1347 = vmatprep.subr.mxu0 0.0
  %1348 = vmatpush1.msra.mxu0 %v1250
  %1349 = vmatprep.subr.mxu0 0.0
  %1350 = vmatpush1.msra.mxu0 %v1251
  %1351 = vmatprep.subr.mxu0 0.0
  %1352 = vmatpush1.msra.mxu0 %v1252
  %1353 = vmatprep.subr.mxu0 0.0
  %1354 = vmatpush1.msra.mxu0 %v1253
  %1355 = vmatprep.subr.mxu0 0.0
  %1356 = vmatpush1.msra.mxu0 %v1254
  %1357 = vmatprep.subr.mxu0 0.0
  %1358 = vmatpush1.msra.mxu0 0.0
  %1359 = vmatprep.subr.mxu0 0.0
  %1360 = vmatpush1.msra.mxu0 0.0
  %1361 = vmatprep.subr.mxu0 0.0
  %1362 = vmatpush1.msra.mxu0 0.0
  %1363 = vmatprep.subr.mxu0 0.0
  %1364 = vmatpush1.msra.mxu0 0.0
  %1365 = vmatprep.subr.mxu0 0.0
  %1366 = vmatpush1.msra.mxu0 0.0
  %1367 = vmatprep.subr.mxu0 0.0
  %1368 = vmatpush1.msra.mxu0 0.0
  %1369 = vmatprep.subr.mxu0 0.0
  %1370 = vmatpush1.msra.mxu0 0.0
  %1371 = vmatprep.subr.mxu0 0.0
  %1372 = vmatpush1.msra.mxu0 0.0
  %1373 = vmatprep.subr.mxu0 0.0
  %1374 = vmatpush1.msra.mxu0 0.0
  %1375 = vmatprep.subr.mxu0 0.0
  %1376 = vmatpush1.msra.mxu0 0.0
  %1377 = vmatprep.subr.mxu0 0.0
  %1378 = vmatpush1.msra.mxu0 0.0
  %1379 = vmatprep.subr.mxu0 0.0
  %1380 = vmatpush1.msra.mxu0 0.0
  %1381 = vmatprep.subr.mxu0 0.0
  %1382 = vmatpush1.msra.mxu0 0.0
  %1383 = vmatprep.subr.mxu0 0.0
  %1384 = vmatpush1.msra.mxu0 0.0
  %1385 = vmatprep.subr.mxu0 0.0
  %1386 = vmatpush1.msra.mxu0 0.0
  %1387 = vmatprep.subr.mxu0 0.0
  %1388 = vmatpush1.msra.mxu0 0.0
  %1389 = vmatprep.mubr.f32.mxu0 0.0
  %1390 = vmatmul.mubr.f32.gmra.mrb[0].mxu0 %v1238
  %v1391 = vpop.f32.mrb[0].mxu0
  %v1392 = vadd.f32 0.0, %v1391
  %v1393 = vpop.f32.mrb[0].mxu0
  %1394 = vdwg.mxu0
  %v1395 = vmul.f32 %v1322, %v1322
  %v1396 = vsub.f32 %v1392, %v1395
  %v1397 = vld [vmem:[%s3] sm:$0x1]
  %v1398 = vadd.f32 %v1396, 1e-05
  %v1399 = vrsqrt.pop %v1398
  %v1400 = vmul.f32 %v1397, %v1399
  %v1401 = vld [vmem:[%s4] sm:$0x1]
  %v1402 = vmul.f32 %v1322, %v1400
  %v1403 = vsub.f32 %v1401, %v1402
  %v1404 = vld [vmem:[#allocation3] sm:$0xff]
  %v1405 = vld [vmem:[#allocation3 + $0x8] sm:$0xff]
  %v1406 = vld [vmem:[#allocation3 + $0x10] sm:$0xff]
  %v1407 = vld [vmem:[#allocation3 + $0x18] sm:$0xff]
  %v1408 = vld [vmem:[#allocation3 + $0x20] sm:$0xff]
  %v1409 = vld [vmem:[#allocation3 + $0x28] sm:$0xff]
  %v1410 = vld [vmem:[#allocation3 + $0x30] sm:$0xff]
  %v1411 = vld [vmem:[#allocation3 + $0x38] sm:$0xff]
  %v1412 = vld [vmem:[#allocation3 + $0x40] sm:$0xff]
  %v1413 = vld [vmem:[#allocation3 + $0x48] sm:$0xff]
  %v1414 = vld [vmem:[#allocation3 + $0x50] sm:$0xff]
  %v1415 = vld [vmem:[#allocation3 + $0x58] sm:$0xff]
  %v1416 = vld [vmem:[#allocation3 + $0x60] sm:$0xff]
  %v1417 = vld [vmem:[#allocation3 + $0x68] sm:$0xff]
  %v1418 = vld [vmem:[#allocation3 + $0x70] sm:$0xff]
  %v1419 = vld [vmem:[#allocation3 + $0x78] sm:$0xff]
  %v1421 = vlaneseq
  %v1422 = vshrl.u32 %v1421, 7
  %v1423 = vsub.s32 0, %v1422
  %v1424 = vrot.slane %v1400, %v1423
  %v1426 = vmul.f32 %v1404, %v1424
  %v1427 = vmul.f32 %v1405, %v1424
  %v1428 = vmul.f32 %v1406, %v1424
  %v1429 = vmul.f32 %v1407, %v1424
  %v1430 = vmul.f32 %v1408, %v1424
  %v1431 = vmul.f32 %v1409, %v1424
  %v1432 = vmul.f32 %v1410, %v1424
  %v1433 = vmul.f32 %v1411, %v1424
  %v1434 = vmul.f32 %v1412, %v1424
  %v1435 = vmul.f32 %v1413, %v1424
  %v1436 = vmul.f32 %v1414, %v1424
  %v1437 = vmul.f32 %v1415, %v1424
  %v1438 = vmul.f32 %v1416, %v1424
  %v1439 = vmul.f32 %v1417, %v1424
  %v1440 = vmul.f32 %v1418, %v1424
  %v1441 = vmul.f32 %v1419, %v1424
  %v1443 = vlaneseq
  %v1444 = vshrl.u32 %v1443, 7
  %v1445 = vsub.s32 0, %v1444
  %v1446 = vrot.slane %v1403, %v1445
  %v1448 = vadd.f32 %v1426, %v1446
  %v1449 = vadd.f32 %v1427, %v1446
  %v1450 = vadd.f32 %v1428, %v1446
  %v1451 = vadd.f32 %v1429, %v1446
  %v1452 = vadd.f32 %v1430, %v1446
  %v1453 = vadd.f32 %v1431, %v1446
  %v1454 = vadd.f32 %v1432, %v1446
  %v1455 = vadd.f32 %v1433, %v1446
  %v1456 = vadd.f32 %v1434, %v1446
  %v1457 = vadd.f32 %v1435, %v1446
  %v1458 = vadd.f32 %v1436, %v1446
  %v1459 = vadd.f32 %v1437, %v1446
  %v1460 = vadd.f32 %v1438, %v1446
  %v1461 = vadd.f32 %v1439, %v1446
  %v1462 = vadd.f32 %v1440, %v1446
  %v1463 = vadd.f32 %v1441, %v1446
  %vm1464 = vcmp.ge.f32.partialorder %v1448, 0.0
  %vm1465 = vcmp.ge.f32.partialorder %v1449, 0.0
  %vm1466 = vcmp.ge.f32.partialorder %v1450, 0.0
  %vm1467 = vcmp.ge.f32.partialorder %v1451, 0.0
  %vm1468 = vcmp.ge.f32.partialorder %v1452, 0.0
  %vm1469 = vcmp.ge.f32.partialorder %v1453, 0.0
  %vm1470 = vcmp.ge.f32.partialorder %v1454, 0.0
  %vm1471 = vcmp.ge.f32.partialorder %v1455, 0.0
  %vm1472 = vcmp.ge.f32.partialorder %v1456, 0.0
  %vm1473 = vcmp.ge.f32.partialorder %v1457, 0.0
  %vm1474 = vcmp.ge.f32.partialorder %v1458, 0.0
  %vm1475 = vcmp.ge.f32.partialorder %v1459, 0.0
  %vm1476 = vcmp.ge.f32.partialorder %v1460, 0.0
  %vm1477 = vcmp.ge.f32.partialorder %v1461, 0.0
  %vm1478 = vcmp.ge.f32.partialorder %v1462, 0.0
  %vm1479 = vcmp.ge.f32.partialorder %v1463, 0.0
  %v1480 = vmul.f32 %v1448, 0.2
  %v1481 = vmul.f32 %v1449, 0.2
  %v1482 = vmul.f32 %v1450, 0.2
  %v1483 = vmul.f32 %v1451, 0.2
  %v1484 = vmul.f32 %v1452, 0.2
  %v1485 = vmul.f32 %v1453, 0.2
  %v1486 = vmul.f32 %v1454, 0.2
  %v1487 = vmul.f32 %v1455, 0.2
  %v1488 = vmul.f32 %v1456, 0.2
  %v1489 = vmul.f32 %v1457, 0.2
  %v1490 = vmul.f32 %v1458, 0.2
  %v1491 = vmul.f32 %v1459, 0.2
  %v1492 = vmul.f32 %v1460, 0.2
  %v1493 = vmul.f32 %v1461, 0.2
  %v1494 = vmul.f32 %v1462, 0.2
  %v1495 = vmul.f32 %v1463, 0.2
  %v1496 = vsel %vm1464, %v1448, %v1480
  %v1497 = vsel %vm1465, %v1449, %v1481
  %v1498 = vsel %vm1466, %v1450, %v1482
  %v1499 = vsel %vm1467, %v1451, %v1483
  %v1500 = vsel %vm1468, %v1452, %v1484
  %v1501 = vsel %vm1469, %v1453, %v1485
  %v1502 = vsel %vm1470, %v1454, %v1486
  %v1503 = vsel %vm1471, %v1455, %v1487
  %v1504 = vsel %vm1472, %v1456, %v1488
  %v1505 = vsel %vm1473, %v1457, %v1489
  %v1506 = vsel %vm1474, %v1458, %v1490
  %v1507 = vsel %vm1475, %v1459, %v1491
  %v1508 = vsel %vm1476, %v1460, %v1492
  %v1509 = vsel %vm1477, %v1461, %v1493
  %v1510 = vsel %vm1478, %v1462, %v1494
  %v1511 = vsel %vm1479, %v1463, %v1495
  %1512 = vst [vmem:[%s6] sm:$0xff] %v1496
  %1513 = vst [vmem:[%s6 + $0x8] sm:$0xff] %v1497
  %1514 = vst [vmem:[%s6 + $0x10] sm:$0xff] %v1498
  %1515 = vst [vmem:[%s6 + $0x18] sm:$0xff] %v1499
  %1516 = vst [vmem:[%s6 + $0x20] sm:$0xff] %v1500
  %1517 = vst [vmem:[%s6 + $0x28] sm:$0xff] %v1501
  %1518 = vst [vmem:[%s6 + $0x30] sm:$0xff] %v1502
  %1519 = vst [vmem:[%s6 + $0x38] sm:$0xff] %v1503
  %1520 = vst [vmem:[%s6 + $0x40] sm:$0xff] %v1504
  %1521 = vst [vmem:[%s6 + $0x48] sm:$0xff] %v1505
  %1522 = vst [vmem:[%s6 + $0x50] sm:$0xff] %v1506
  %1523 = vst [vmem:[%s6 + $0x58] sm:$0xff] %v1507
  %1524 = vst [vmem:[%s6 + $0x60] sm:$0xff] %v1508
  %1525 = vst [vmem:[%s6 + $0x68] sm:$0xff] %v1509
  %1526 = vst [vmem:[%s6 + $0x70] sm:$0xff] %v1510
  %1527 = vst [vmem:[%s6 + $0x78] sm:$0xff] %v1511
  // Predicated region
  $region26: #{depth_generator_forward.6} parent=0 // pred_check
    _
  $region27: #{depth_generator_forward.6} parent=0 // pred_check_branch
    %1529 = sbr.rel (0) target = $region29
  $region28: #{depth_generator_forward.6} parent=0 // pred_region
    _
  $region29: #{depth_generator_forward.6} parent=0 // pred_fallthru
    _
  // Predicated region
  $region30: #{depth_generator_forward.6} parent=0 // pred_check
    _
  $region31: #{depth_generator_forward.6} parent=0 // pred_check_branch
    %1531 = sbr.rel (0) target = $region33
  $region32: #{depth_generator_forward.6} parent=0 // pred_region
    _
  $region33: #{depth_generator_forward.6} parent=0 // pred_fallthru
    _

// kernel: depth_generator_forward.8
$region0: #{depth_generator_forward.8}
  #allocation0 [shape = 'u32[]', space=smem, size = 0x4, offset = 0x4, fixed_abs, tag = 'smem constant byte address 0x4 - core index']
  #allocation1 [shape = 'u32[144,128]{1,0:T(1,128)}', space=vmem, size = 0x12000, scoped, tag = 'internal scratch']
  #allocation2 [shape = 'f32[2048,288]{1,0:T(8,128)}', space=vmem, size = 0x300000, scoped, tag = 'scratch operand']
  #allocation3 [shape = 'f32[2048,128]{1,0:T(8,128)}', space=vmem, size = 0x100000, scoped, tag = 'scratch operand']
  %s0 = inlined_call_operand.vmem [shape: f32[68,34,32], index: 0, kind: input, shape index: {}]
  %s1 = inlined_call_operand.vmem [shape: bf16[288,128], index: 1, kind: input, shape index: {}]
  %s2 = inlined_call_operand.vmem [shape: f32[1,128], index: 2, kind: input, shape index: {}]
  %s3 = inlined_call_operand.vmem [shape: f32[1,128], index: 3, kind: input, shape index: {}]
  %s4 = inlined_call_operand.vmem [shape: f32[1,128], index: 4, kind: input, shape index: {}]
  %s5 = inlined_call_operand.vmem [shape: f32[128,128], index: 5, kind: input, shape index: {}]
  %s6 = inlined_call_operand.vmem [shape: f32[2048,128], index: 6, kind: output, shape index: {}]
  %s7 = sld [smem:[#allocation0]]
  $region62: #{depth_generator_forward.8} parent=0
    _
  %s9 = ssub.s32 1, %s7
  %s10 = scalar_select 0, %s9, %s7
  // Predicated region
  $region2: #{depth_generator_forward.8} parent=0 // pred_check
    _
  $region3: #{depth_generator_forward.8} parent=0 // pred_check_branch
    %12 = sbr.rel (0) target = $region5
  $region4: #{depth_generator_forward.8} parent=0 // pred_region
    _
  $region5: #{depth_generator_forward.8} parent=0 // pred_fallthru
    _
  // Predicated region
  $region6: #{depth_generator_forward.8} parent=0 // pred_check
    _
  $region7: #{depth_generator_forward.8} parent=0 // pred_check_branch
    %14 = sbr.rel (0) target = $region9
  $region8: #{depth_generator_forward.8} parent=0 // pred_region
    _
  $region9: #{depth_generator_forward.8} parent=0 // pred_fallthru
    _
  // Predicated region
  $region10: #{depth_generator_forward.8} parent=0 // pred_check
    _
  $region11: #{depth_generator_forward.8} parent=0 // pred_check_branch
    %16 = sbr.rel (0) target = $region13
  $region12: #{depth_generator_forward.8} parent=0 // pred_region
    _
  $region13: #{depth_generator_forward.8} parent=0 // pred_fallthru
    _
  // Predicated region
  $region14: #{depth_generator_forward.8} parent=0 // pred_check
    _
  $region15: #{depth_generator_forward.8} parent=0 // pred_check_branch
    %18 = sbr.rel (0) target = $region17
  $region16: #{depth_generator_forward.8} parent=0 // pred_region
    _
  $region17: #{depth_generator_forward.8} parent=0 // pred_fallthru
    _
  // Predicated region
  $region18: #{depth_generator_forward.8} parent=0 // pred_check
    _
  $region19: #{depth_generator_forward.8} parent=0 // pred_check_branch
    %20 = sbr.rel (0) target = $region21
  $region20: #{depth_generator_forward.8} parent=0 // pred_region
    _
  $region21: #{depth_generator_forward.8} parent=0 // pred_fallthru
    _
  // Predicated region
  $region22: #{depth_generator_forward.8} parent=0 // pred_check
    _
  $region23: #{depth_generator_forward.8} parent=0 // pred_check_branch
    %22 = sbr.rel (0) target = $region25
  $region24: #{depth_generator_forward.8} parent=0 // pred_region
    _
  $region25: #{depth_generator_forward.8} parent=0 // pred_fallthru
    _
  loop: start=0, step=1, limit=32
  $region26: #{depth_generator_forward.8} parent=0 // loop_pre_header
    _
  $region27: #{depth_generator_forward.8} parent=0 // loop_header
    %s25 = sphi 0, %s29
    %p26 = scmp.ge.s32.totalorder %s25, 32
  $region28: #{depth_generator_forward.8} parent=0 // loop_header_branch
    %28 = sbr.rel (%p26) target = $region32
  $region29: #{depth_generator_forward.8} parent=0 // loop_body
    %s30 = smul.u32 %s25, 32
    %s31 = smul.u32 %s25, 40
    %s32 = scalar_lea.vmem %s0, %s31
    %v33 = vld [vmem:[%s32] sm:$0xff]
    %v34 = vld [vmem:[%s32 + $0x8] sm:$0xff]
    %v35 = vld [vmem:[%s32 + $0x10] sm:$0xff]
    %v36 = vld [vmem:[%s32 + $0x18] sm:$0xff]
    %s37 = sshra.s32 %s30, 3
    %s38 = sand.u32 %s30, 7
    %s39 = smul.u32 %s37, 3
    %s40 = smul.addr %s39, 8
    %s41 = scalar_lea.vmem [#allocation2], %s40
    %vm42 = vcmask 261120
    %43 = vst.msk [vmem:[%s41] sm:$0xff] %vm42, %v33
    %44 = vst.msk [vmem:[%s41 + $0x18] sm:$0xff] %vm42, %v34
    %45 = vst.msk [vmem:[%s41 + $0x30] sm:$0xff] %vm42, %v35
    %46 = vst.msk [vmem:[%s41 + $0x48] sm:$0xff] %vm42, %v36
    %v47 = vld [vmem:[%s32 + $0x1] sm:$0xff]
    %v48 = vld [vmem:[%s32 + $0x9] sm:$0xff]
    %v49 = vld [vmem:[%s32 + $0x11] sm:$0xff]
    %v50 = vld [vmem:[%s32 + $0x19] sm:$0xff]
    %55 = vrot.lane.b32.xlu0 %v47, 32
    %v56 = vpop.permute.xlu0 %55
    %57 = vrot.lane.b32.xlu0 %v48, 32
    %v58 = vpop.permute.xlu0 %57
    %59 = vrot.lane.b32.xlu0 %v49, 32
    %v60 = vpop.permute.xlu0 %59
    %61 = vrot.lane.b32.xlu0 %v50, 32
    %v62 = vpop.permute.xlu0 %61
    %vm67 = vcmask 523520
    %68 = vst.msk [vmem:[%s41] sm:$0xff] %vm67, %v56
    %69 = vst.msk [vmem:[%s41 + $0x18] sm:$0xff] %vm67, %v58
    %70 = vst.msk [vmem:[%s41 + $0x30] sm:$0xff] %vm67, %v60
    %71 = vst.msk [vmem:[%s41 + $0x48] sm:$0xff] %vm67, %v62
    %v72 = vld [vmem:[%s32 + $0x2] sm:$0xff]
    %v73 = vld [vmem:[%s32 + $0xa] sm:$0xff]
    %v74 = vld [vmem:[%s32 + $0x12] sm:$0xff]
    %v75 = vld [vmem:[%s32 + $0x1a] sm:$0xff]
    %80 = vrot.lane.b32.xlu0 %v72, 64
    %v81 = vpop.permute.xlu0 %80
    %82 = vrot.lane.b32.xlu0 %v73, 64
    %v83 = vpop.permute.xlu0 %82
    %84 = vrot.lane.b32.xlu0 %v74, 64
    %v85 = vpop.permute.xlu0 %84
    %86 = vrot.lane.b32.xlu0 %v75, 64
    %v87 = vpop.permute.xlu0 %86
    %vm92 = vcmask 785920
    %93 = vst.msk [vmem:[%s41] sm:$0xff] %vm92, %v81
    %94 = vst.msk [vmem:[%s41 + $0x18] sm:$0xff] %vm92, %v83
    %95 = vst.msk [vmem:[%s41 + $0x30] sm:$0xff] %vm92, %v85
    %96 = vst.msk [vmem:[%s41 + $0x48] sm:$0xff] %vm92, %v87
    %s97 = sadd.s32 %s25, 1
    %s98 = smul.u32 %s97, 40
    %s99 = scalar_lea.vmem %s0, %s98
    %v100 = vld [vmem:[%s99] sm:$0xff]
    %v101 = vld [vmem:[%s99 + $0x8] sm:$0xff]
    %v102 = vld [vmem:[%s99 + $0x10] sm:$0xff]
    %v103 = vld [vmem:[%s99 + $0x18] sm:$0xff]
    %108 = vrot.lane.b32.xlu0 %v100, 96
    %v109 = vpop.permute.xlu0 %108
    %110 = vrot.lane.b32.xlu0 %v101, 96
    %v111 = vpop.permute.xlu0 %110
    %112 = vrot.lane.b32.xlu0 %v102, 96
    %v113 = vpop.permute.xlu0 %112
    %114 = vrot.lane.b32.xlu0 %v103, 96
    %v115 = vpop.permute.xlu0 %114
    %vm120 = vcmask 1048320
    %121 = vst.msk [vmem:[%s41] sm:$0xff] %vm120, %v109
    %122 = vst.msk [vmem:[%s41 + $0x18] sm:$0xff] %vm120, %v111
    %123 = vst.msk [vmem:[%s41 + $0x30] sm:$0xff] %vm120, %v113
    %124 = vst.msk [vmem:[%s41 + $0x48] sm:$0xff] %vm120, %v115
    %v125 = vld [vmem:[%s99 + $0x1] sm:$0xff]
    %v126 = vld [vmem:[%s99 + $0x9] sm:$0xff]
    %v127 = vld [vmem:[%s99 + $0x11] sm:$0xff]
    %v128 = vld [vmem:[%s99 + $0x19] sm:$0xff]
    %129 = vst.msk [vmem:[%s41 + $0x8] sm:$0xff] %vm42, %v125
    %130 = vst.msk [vmem:[%s41 + $0x20] sm:$0xff] %vm42, %v126
    %131 = vst.msk [vmem:[%s41 + $0x38] sm:$0xff] %vm42, %v127
    %132 = vst.msk [vmem:[%s41 + $0x50] sm:$0xff] %vm42, %v128
    %v133 = vld [vmem:[%s99 + $0x2] sm:$0xff]
    %v134 = vld [vmem:[%s99 + $0xa] sm:$0xff]
    %v135 = vld [vmem:[%s99 + $0x12] sm:$0xff]
    %v136 = vld [vmem:[%s99 + $0x1a] sm:$0xff]
    %141 = vrot.lane.b32.xlu0 %v133, 32
    %v142 = vpop.permute.xlu0 %141
    %143 = vrot.lane.b32.xlu0 %v134, 32
    %v144 = vpop.permute.xlu0 %143
    %145 = vrot.lane.b32.xlu0 %v135, 32
    %v146 = vpop.permute.xlu0 %145
    %147 = vrot.lane.b32.xlu0 %v136, 32
    %v148 = vpop.permute.xlu0 %147
    %153 = vst.msk [vmem:[%s41 + $0x8] sm:$0xff] %vm67, %v142
    %154 = vst.msk [vmem:[%s41 + $0x20] sm:$0xff] %vm67, %v144
    %155 = vst.msk [vmem:[%s41 + $0x38] sm:$0xff] %vm67, %v146
    %156 = vst.msk [vmem:[%s41 + $0x50] sm:$0xff] %vm67, %v148
    %s157 = sadd.s32 %s25, 2
    %s158 = smul.u32 %s157, 40
    %s159 = scalar_lea.vmem %s0, %s158
    %v160 = vld [vmem:[%s159] sm:$0xff]
    %v161 = vld [vmem:[%s159 + $0x8] sm:$0xff]
    %v162 = vld [vmem:[%s159 + $0x10] sm:$0xff]
    %v163 = vld [vmem:[%s159 + $0x18] sm:$0xff]
    %168 = vrot.lane.b32.xlu0 %v160, 64
    %v169 = vpop.permute.xlu0 %168
    %170 = vrot.lane.b32.xlu0 %v161, 64
    %v171 = vpop.permute.xlu0 %170
    %172 = vrot.lane.b32.xlu0 %v162, 64
    %v173 = vpop.permute.xlu0 %172
    %174 = vrot.lane.b32.xlu0 %v163, 64
    %v175 = vpop.permute.xlu0 %174
    %180 = vst.msk [vmem:[%s41 + $0x8] sm:$0xff] %vm92, %v169
    %181 = vst.msk [vmem:[%s41 + $0x20] sm:$0xff] %vm92, %v171
    %182 = vst.msk [vmem:[%s41 + $0x38] sm:$0xff] %vm92, %v173
    %183 = vst.msk [vmem:[%s41 + $0x50] sm:$0xff] %vm92, %v175
    %v184 = vld [vmem:[%s159 + $0x1] sm:$0xff]
    %v185 = vld [vmem:[%s159 + $0x9] sm:$0xff]
    %v186 = vld [vmem:[%s159 + $0x11] sm:$0xff]
    %v187 = vld [vmem:[%s159 + $0x19] sm:$0xff]
    %192 = vrot.lane.b32.xlu0 %v184, 96
    %v193 = vpop.permute.xlu0 %192
    %194 = vrot.lane.b32.xlu0 %v185, 96
    %v195 = vpop.permute.xlu0 %194
    %196 = vrot.lane.b32.xlu0 %v186, 96
    %v197 = vpop.permute.xlu0 %196
    %198 = vrot.lane.b32.xlu0 %v187, 96
    %v199 = vpop.permute.xlu0 %198
    %204 = vst.msk [vmem:[%s41 + $0x8] sm:$0xff] %vm120, %v193
    %205 = vst.msk [vmem:[%s41 + $0x20] sm:$0xff] %vm120, %v195
    %206 = vst.msk [vmem:[%s41 + $0x38] sm:$0xff] %vm120, %v197
    %207 = vst.msk [vmem:[%s41 + $0x50] sm:$0xff] %vm120, %v199
    %v208 = vld [vmem:[%s159 + $0x2] sm:$0xff]
    %v209 = vld [vmem:[%s159 + $0xa] sm:$0xff]
    %v210 = vld [vmem:[%s159 + $0x12] sm:$0xff]
    %v211 = vld [vmem:[%s159 + $0x1a] sm:$0xff]
    %212 = vst.msk [vmem:[%s41 + $0x10] sm:$0xff] %vm42, %v208
    %213 = vst.msk [vmem:[%s41 + $0x28] sm:$0xff] %vm42, %v209
    %214 = vst.msk [vmem:[%s41 + $0x40] sm:$0xff] %vm42, %v210
    %215 = vst.msk [vmem:[%s41 + $0x58] sm:$0xff] %vm42, %v211
  $region30: #{depth_generator_forward.8} parent=0 // loop_footer
    %s29 = sadd.s32 1, %s25
  $region31: #{depth_generator_forward.8} parent=0 // loop_footer_branch
    %24 = sbr.rel target = $region27
  $region32: #{depth_generator_forward.8} parent=0 // loop_exit
    _
  loop: start=0, step=1, limit=32
  $region33: #{depth_generator_forward.8} parent=0 // loop_pre_header
    _
  $region34: #{depth_generator_forward.8} parent=0 // loop_header
    %s217 = sphi 0, %s221
    %p218 = scmp.ge.s32.totalorder %s217, 32
  $region35: #{depth_generator_forward.8} parent=0 // loop_header_branch
    %220 = sbr.rel (%p218) target = $region39
  $region36: #{depth_generator_forward.8} parent=0 // loop_body
    %s222 = smul.u32 %s217, 32
    %s223 = sadd.s32 %s222, 1024
    %s224 = sadd.s32 %s217, 34
    %s225 = smul.u32 %s224, 40
    %s226 = scalar_lea.vmem %s0, %s225
    %v227 = vld [vmem:[%s226] sm:$0xff]
    %v228 = vld [vmem:[%s226 + $0x8] sm:$0xff]
    %v229 = vld [vmem:[%s226 + $0x10] sm:$0xff]
    %v230 = vld [vmem:[%s226 + $0x18] sm:$0xff]
    %s231 = sshra.s32 %s223, 3
    %s232 = sand.u32 %s223, 7
    %s233 = smul.u32 %s231, 3
    %s234 = smul.addr %s233, 8
    %s235 = scalar_lea.vmem [#allocation2], %s234
    %vm236 = vcmask 261120
    %237 = vst.msk [vmem:[%s235] sm:$0xff] %vm236, %v227
    %238 = vst.msk [vmem:[%s235 + $0x18] sm:$0xff] %vm236, %v228
    %239 = vst.msk [vmem:[%s235 + $0x30] sm:$0xff] %vm236, %v229
    %240 = vst.msk [vmem:[%s235 + $0x48] sm:$0xff] %vm236, %v230
    %v241 = vld [vmem:[%s226 + $0x1] sm:$0xff]
    %v242 = vld [vmem:[%s226 + $0x9] sm:$0xff]
    %v243 = vld [vmem:[%s226 + $0x11] sm:$0xff]
    %v244 = vld [vmem:[%s226 + $0x19] sm:$0xff]
    %249 = vrot.lane.b32.xlu0 %v241, 32
    %v250 = vpop.permute.xlu0 %249
    %251 = vrot.lane.b32.xlu0 %v242, 32
    %v252 = vpop.permute.xlu0 %251
    %253 = vrot.lane.b32.xlu0 %v243, 32
    %v254 = vpop.permute.xlu0 %253
    %255 = vrot.lane.b32.xlu0 %v244, 32
    %v256 = vpop.permute.xlu0 %255
    %vm261 = vcmask 523520
    %262 = vst.msk [vmem:[%s235] sm:$0xff] %vm261, %v250
    %263 = vst.msk [vmem:[%s235 + $0x18] sm:$0xff] %vm261, %v252
    %264 = vst.msk [vmem:[%s235 + $0x30] sm:$0xff] %vm261, %v254
    %265 = vst.msk [vmem:[%s235 + $0x48] sm:$0xff] %vm261, %v256
    %v266 = vld [vmem:[%s226 + $0x2] sm:$0xff]
    %v267 = vld [vmem:[%s226 + $0xa] sm:$0xff]
    %v268 = vld [vmem:[%s226 + $0x12] sm:$0xff]
    %v269 = vld [vmem:[%s226 + $0x1a] sm:$0xff]
    %274 = vrot.lane.b32.xlu0 %v266, 64
    %v275 = vpop.permute.xlu0 %274
    %276 = vrot.lane.b32.xlu0 %v267, 64
    %v277 = vpop.permute.xlu0 %276
    %278 = vrot.lane.b32.xlu0 %v268, 64
    %v279 = vpop.permute.xlu0 %278
    %280 = vrot.lane.b32.xlu0 %v269, 64
    %v281 = vpop.permute.xlu0 %280
    %vm286 = vcmask 785920
    %287 = vst.msk [vmem:[%s235] sm:$0xff] %vm286, %v275
    %288 = vst.msk [vmem:[%s235 + $0x18] sm:$0xff] %vm286, %v277
    %289 = vst.msk [vmem:[%s235 + $0x30] sm:$0xff] %vm286, %v279
    %290 = vst.msk [vmem:[%s235 + $0x48] sm:$0xff] %vm286, %v281
    %s291 = sadd.s32 %s217, 35
    %s292 = smul.u32 %s291, 40
    %s293 = scalar_lea.vmem %s0, %s292
    %v294 = vld [vmem:[%s293] sm:$0xff]
    %v295 = vld [vmem:[%s293 + $0x8] sm:$0xff]
    %v296 = vld [vmem:[%s293 + $0x10] sm:$0xff]
    %v297 = vld [vmem:[%s293 + $0x18] sm:$0xff]
    %302 = vrot.lane.b32.xlu0 %v294, 96
    %v303 = vpop.permute.xlu0 %302
    %304 = vrot.lane.b32.xlu0 %v295, 96
    %v305 = vpop.permute.xlu0 %304
    %306 = vrot.lane.b32.xlu0 %v296, 96
    %v307 = vpop.permute.xlu0 %306
    %308 = vrot.lane.b32.xlu0 %v297, 96
    %v309 = vpop.permute.xlu0 %308
    %vm314 = vcmask 1048320
    %315 = vst.msk [vmem:[%s235] sm:$0xff] %vm314, %v303
    %316 = vst.msk [vmem:[%s235 + $0x18] sm:$0xff] %vm314, %v305
    %317 = vst.msk [vmem:[%s235 + $0x30] sm:$0xff] %vm314, %v307
    %318 = vst.msk [vmem:[%s235 + $0x48] sm:$0xff] %vm314, %v309
    %v319 = vld [vmem:[%s293 + $0x1] sm:$0xff]
    %v320 = vld [vmem:[%s293 + $0x9] sm:$0xff]
    %v321 = vld [vmem:[%s293 + $0x11] sm:$0xff]
    %v322 = vld [vmem:[%s293 + $0x19] sm:$0xff]
    %323 = vst.msk [vmem:[%s235 + $0x8] sm:$0xff] %vm236, %v319
    %324 = vst.msk [vmem:[%s235 + $0x20] sm:$0xff] %vm236, %v320
    %325 = vst.msk [vmem:[%s235 + $0x38] sm:$0xff] %vm236, %v321
    %326 = vst.msk [vmem:[%s235 + $0x50] sm:$0xff] %vm236, %v322
    %v327 = vld [vmem:[%s293 + $0x2] sm:$0xff]
    %v328 = vld [vmem:[%s293 + $0xa] sm:$0xff]
    %v329 = vld [vmem:[%s293 + $0x12] sm:$0xff]
    %v330 = vld [vmem:[%s293 + $0x1a] sm:$0xff]
    %335 = vrot.lane.b32.xlu0 %v327, 32
    %v336 = vpop.permute.xlu0 %335
    %337 = vrot.lane.b32.xlu0 %v328, 32
    %v338 = vpop.permute.xlu0 %337
    %339 = vrot.lane.b32.xlu0 %v329, 32
    %v340 = vpop.permute.xlu0 %339
    %341 = vrot.lane.b32.xlu0 %v330, 32
    %v342 = vpop.permute.xlu0 %341
    %347 = vst.msk [vmem:[%s235 + $0x8] sm:$0xff] %vm261, %v336
    %348 = vst.msk [vmem:[%s235 + $0x20] sm:$0xff] %vm261, %v338
    %349 = vst.msk [vmem:[%s235 + $0x38] sm:$0xff] %vm261, %v340
    %350 = vst.msk [vmem:[%s235 + $0x50] sm:$0xff] %vm261, %v342
    %s351 = sadd.s32 %s217, 36
    %s352 = smul.u32 %s351, 40
    %s353 = scalar_lea.vmem %s0, %s352
    %v354 = vld [vmem:[%s353] sm:$0xff]
    %v355 = vld [vmem:[%s353 + $0x8] sm:$0xff]
    %v356 = vld [vmem:[%s353 + $0x10] sm:$0xff]
    %v357 = vld [vmem:[%s353 + $0x18] sm:$0xff]
    %362 = vrot.lane.b32.xlu0 %v354, 64
    %v363 = vpop.permute.xlu0 %362
    %364 = vrot.lane.b32.xlu0 %v355, 64
    %v365 = vpop.permute.xlu0 %364
    %366 = vrot.lane.b32.xlu0 %v356, 64
    %v367 = vpop.permute.xlu0 %366
    %368 = vrot.lane.b32.xlu0 %v357, 64
    %v369 = vpop.permute.xlu0 %368
    %374 = vst.msk [vmem:[%s235 + $0x8] sm:$0xff] %vm286, %v363
    %375 = vst.msk [vmem:[%s235 + $0x20] sm:$0xff] %vm286, %v365
    %376 = vst.msk [vmem:[%s235 + $0x38] sm:$0xff] %vm286, %v367
    %377 = vst.msk [vmem:[%s235 + $0x50] sm:$0xff] %vm286, %v369
    %v378 = vld [vmem:[%s353 + $0x1] sm:$0xff]
    %v379 = vld [vmem:[%s353 + $0x9] sm:$0xff]
    %v380 = vld [vmem:[%s353 + $0x11] sm:$0xff]
    %v381 = vld [vmem:[%s353 + $0x19] sm:$0xff]
    %386 = vrot.lane.b32.xlu0 %v378, 96
    %v387 = vpop.permute.xlu0 %386
    %388 = vrot.lane.b32.xlu0 %v379, 96
    %v389 = vpop.permute.xlu0 %388
    %390 = vrot.lane.b32.xlu0 %v380, 96
    %v391 = vpop.permute.xlu0 %390
    %392 = vrot.lane.b32.xlu0 %v381, 96
    %v393 = vpop.permute.xlu0 %392
    %398 = vst.msk [vmem:[%s235 + $0x8] sm:$0xff] %vm314, %v387
    %399 = vst.msk [vmem:[%s235 + $0x20] sm:$0xff] %vm314, %v389
    %400 = vst.msk [vmem:[%s235 + $0x38] sm:$0xff] %vm314, %v391
    %401 = vst.msk [vmem:[%s235 + $0x50] sm:$0xff] %vm314, %v393
    %v402 = vld [vmem:[%s353 + $0x2] sm:$0xff]
    %v403 = vld [vmem:[%s353 + $0xa] sm:$0xff]
    %v404 = vld [vmem:[%s353 + $0x12] sm:$0xff]
    %v405 = vld [vmem:[%s353 + $0x1a] sm:$0xff]
    %406 = vst.msk [vmem:[%s235 + $0x10] sm:$0xff] %vm236, %v402
    %407 = vst.msk [vmem:[%s235 + $0x28] sm:$0xff] %vm236, %v403
    %408 = vst.msk [vmem:[%s235 + $0x40] sm:$0xff] %vm236, %v404
    %409 = vst.msk [vmem:[%s235 + $0x58] sm:$0xff] %vm236, %v405
  $region37: #{depth_generator_forward.8} parent=0 // loop_footer
    %s221 = sadd.s32 1, %s217
  $region38: #{depth_generator_forward.8} parent=0 // loop_footer_branch
    %216 = sbr.rel target = $region34
  $region39: #{depth_generator_forward.8} parent=0 // loop_exit
    _
  %v410 = vld [vmem:[%s1] sm:$0xf]
  %v411 = vld [vmem:[%s1 + $0x4] sm:$0xf]
  %v412 = vld [vmem:[%s1 + $0x8] sm:$0xf]
  %v413 = vld [vmem:[%s1 + $0xc] sm:$0xf]
  %v414 = vld [vmem:[%s1 + $0x10] sm:$0xf]
  %v415 = vld [vmem:[%s1 + $0x14] sm:$0xf]
  %v416 = vld [vmem:[%s1 + $0x18] sm:$0xf]
  %v417 = vld [vmem:[%s1 + $0x1c] sm:$0xf]
  %v418 = vld [vmem:[%s1 + $0x20] sm:$0xf]
  %v419 = vld [vmem:[%s1 + $0x24] sm:$0xf]
  %v420 = vld [vmem:[%s1 + $0x28] sm:$0xf]
  %v421 = vld [vmem:[%s1 + $0x2c] sm:$0xf]
  %v422 = vld [vmem:[%s1 + $0x30] sm:$0xf]
  %v423 = vld [vmem:[%s1 + $0x34] sm:$0xf]
  %v424 = vld [vmem:[%s1 + $0x38] sm:$0xf]
  %v425 = vld [vmem:[%s1 + $0x3c] sm:$0xf]
  %v426 = vld [vmem:[%s1 + $0x40] sm:$0xf]
  %v427 = vld [vmem:[%s1 + $0x44] sm:$0xf]
  %v428 = vld [vmem:[%s1 + $0x48] sm:$0xf]
  %v429 = vld [vmem:[%s1 + $0x4c] sm:$0xf]
  %v430 = vld [vmem:[%s1 + $0x50] sm:$0xf]
  %v431 = vld [vmem:[%s1 + $0x54] sm:$0xf]
  %v432 = vld [vmem:[%s1 + $0x58] sm:$0xf]
  %v433 = vld [vmem:[%s1 + $0x5c] sm:$0xf]
  %v434 = vld [vmem:[%s1 + $0x60] sm:$0xf]
  %v435 = vld [vmem:[%s1 + $0x64] sm:$0xf]
  %v436 = vld [vmem:[%s1 + $0x68] sm:$0xf]
  %v437 = vld [vmem:[%s1 + $0x6c] sm:$0xf]
  %v438 = vld [vmem:[%s1 + $0x70] sm:$0xf]
  %v439 = vld [vmem:[%s1 + $0x74] sm:$0xf]
  %v440 = vld [vmem:[%s1 + $0x78] sm:$0xf]
  %v441 = vld [vmem:[%s1 + $0x7c] sm:$0xf]
  %v442 = vld [vmem:[%s1 + $0x80] sm:$0xf]
  %v443 = vld [vmem:[%s1 + $0x84] sm:$0xf]
  %v444 = vld [vmem:[%s1 + $0x88] sm:$0xf]
  %v445 = vld [vmem:[%s1 + $0x8c] sm:$0xf]
  %v446 = vld [vmem:[%s2] sm:$0x1]
  loop: start=0, step=1, limit=16
  $region40: #{depth_generator_forward.8} parent=0 // loop_pre_header
    _
  $region41: #{depth_generator_forward.8} parent=0 // loop_header
    %s448 = sphi 0, %s452
    %p449 = scmp.ge.s32.totalorder %s448, 16
    %v453 = vphi 0.0, %v904
    %v454 = vphi 0.0, %v942
  $region42: #{depth_generator_forward.8} parent=0 // loop_header_branch
    %451 = sbr.rel (%p449) target = $region46
  $region43: #{depth_generator_forward.8} parent=0 // loop_body
    %s455 = smul.u32 %s448, 128
    %s456 = sshra.s32 %s455, 3
    %s457 = sand.u32 %s455, 7
    %s458 = smul.u32 %s456, 3
    %s459 = smul.addr %s458, 8
    %s460 = scalar_lea.vmem [#allocation2], %s459
    %v461 = vld [vmem:[%s460] sm:$0xff]
    %v462 = vld [vmem:[%s460 + $0x8] sm:$0xff]
    %v463 = vld [vmem:[%s460 + $0x10] sm:$0xff]
    %v464 = vld [vmem:[%s460 + $0x18] sm:$0xff]
    %v465 = vld [vmem:[%s460 + $0x20] sm:$0xff]
    %v466 = vld [vmem:[%s460 + $0x28] sm:$0xff]
    %v467 = vld [vmem:[%s460 + $0x30] sm:$0xff]
    %v468 = vld [vmem:[%s460 + $0x38] sm:$0xff]
    %v469 = vld [vmem:[%s460 + $0x40] sm:$0xff]
    %v470 = vld [vmem:[%s460 + $0x48] sm:$0xff]
    %v471 = vld [vmem:[%s460 + $0x50] sm:$0xff]
    %v472 = vld [vmem:[%s460 + $0x58] sm:$0xff]
    %v473 = vld [vmem:[%s460 + $0x60] sm:$0xff]
    %v474 = vld [vmem:[%s460 + $0x68] sm:$0xff]
    %v475 = vld [vmem:[%s460 + $0x70] sm:$0xff]
    %v476 = vld [vmem:[%s460 + $0x78] sm:$0xff]
    %v477 = vld [vmem:[%s460 + $0x80] sm:$0xff]
    %v478 = vld [vmem:[%s460 + $0x88] sm:$0xff]
    %v479 = vld [vmem:[%s460 + $0x90] sm:$0xff]
    %v480 = vld [vmem:[%s460 + $0x98] sm:$0xff]
    %v481 = vld [vmem:[%s460 + $0xa0] sm:$0xff]
    %v482 = vld [vmem:[%s460 + $0xa8] sm:$0xff]
    %v483 = vld [vmem:[%s460 + $0xb0] sm:$0xff]
    %v484 = vld [vmem:[%s460 + $0xb8] sm:$0xff]
    %v485 = vld [vmem:[%s460 + $0xc0] sm:$0xff]
    %v486 = vld [vmem:[%s460 + $0xc8] sm:$0xff]
    %v487 = vld [vmem:[%s460 + $0xd0] sm:$0xff]
    %v488 = vld [vmem:[%s460 + $0xd8] sm:$0xff]
    %v489 = vld [vmem:[%s460 + $0xe0] sm:$0xff]
    %v490 = vld [vmem:[%s460 + $0xe8] sm:$0xff]
    %v491 = vld [vmem:[%s460 + $0xf0] sm:$0xff]
    %v492 = vld [vmem:[%s460 + $0xf8] sm:$0xff]
    %v493 = vld [vmem:[%s460 + $0x100] sm:$0xff]
    %v494 = vld [vmem:[%s460 + $0x108] sm:$0xff]
    %v495 = vld [vmem:[%s460 + $0x110] sm:$0xff]
    %v496 = vld [vmem:[%s460 + $0x118] sm:$0xff]
    %v497 = vld [vmem:[%s460 + $0x120] sm:$0xff]
    %v498 = vld [vmem:[%s460 + $0x128] sm:$0xff]
    %v499 = vld [vmem:[%s460 + $0x130] sm:$0xff]
    %v500 = vld [vmem:[%s460 + $0x138] sm:$0xff]
    %v501 = vld [vmem:[%s460 + $0x140] sm:$0xff]
    %v502 = vld [vmem:[%s460 + $0x148] sm:$0xff]
    %v503 = vld [vmem:[%s460 + $0x150] sm:$0xff]
    %v504 = vld [vmem:[%s460 + $0x158] sm:$0xff]
    %v505 = vld [vmem:[%s460 + $0x160] sm:$0xff]
    %v506 = vld [vmem:[%s460 + $0x168] sm:$0xff]
    %v507 = vld [vmem:[%s460 + $0x170] sm:$0xff]
    %v508 = vld [vmem:[%s460 + $0x178] sm:$0xff]
    %v509 = vpack.c.bf16 %v464, %v461
    %v510 = vpack.c.bf16 %v465, %v462
    %v511 = vpack.c.bf16 %v466, %v463
    %v512 = vpack.c.bf16 %v470, %v467
    %v513 = vpack.c.bf16 %v471, %v468
    %v514 = vpack.c.bf16 %v472, %v469
    %v515 = vpack.c.bf16 %v476, %v473
    %v516 = vpack.c.bf16 %v477, %v474
    %v517 = vpack.c.bf16 %v478, %v475
    %v518 = vpack.c.bf16 %v482, %v479
    %v519 = vpack.c.bf16 %v483, %v480
    %v520 = vpack.c.bf16 %v484, %v481
    %v521 = vpack.c.bf16 %v488, %v485
    %v522 = vpack.c.bf16 %v489, %v486
    %v523 = vpack.c.bf16 %v490, %v487
    %v524 = vpack.c.bf16 %v494, %v491
    %v525 = vpack.c.bf16 %v495, %v492
    %v526 = vpack.c.bf16 %v496, %v493
    %v527 = vpack.c.bf16 %v500, %v497
    %v528 = vpack.c.bf16 %v501, %v498
    %v529 = vpack.c.bf16 %v502, %v499
    %v530 = vpack.c.bf16 %v506, %v503
    %v531 = vpack.c.bf16 %v507, %v504
    %v532 = vpack.c.bf16 %v508, %v505
    %v534 = vlaneseq
    %v535 = vshrl.u32 %v534, 7
    %v536 = vsub.s32 0, %v535
    %v537 = vrot.slane %v446, %v536
    %v575 = vunpack.c.l.b16 %v410
    %v576 = vunpack.c.l.b16 %v411
    %v577 = vunpack.c.l.b16 %v412
    %v578 = vunpack.c.l.b16 %v413
    %v579 = vunpack.c.l.b16 %v414
    %v580 = vunpack.c.l.b16 %v415
    %v581 = vunpack.c.l.b16 %v416
    %v582 = vunpack.c.l.b16 %v417
    %v583 = vunpack.c.l.b16 %v418
    %v584 = vunpack.c.l.b16 %v419
    %v585 = vunpack.c.l.b16 %v420
    %v586 = vunpack.c.l.b16 %v421
    %v587 = vunpack.c.l.b16 %v422
    %v588 = vunpack.c.l.b16 %v423
    %v589 = vunpack.c.l.b16 %v424
    %v590 = vunpack.c.l.b16 %v425
    %v591 = vunpack.c.l.b16 %v426
    %v592 = vunpack.c.l.b16 %v427
    %v593 = vunpack.c.l.b16 %v428
    %v594 = vunpack.c.l.b16 %v429
    %v595 = vunpack.c.l.b16 %v430
    %v596 = vunpack.c.l.b16 %v431
    %v597 = vunpack.c.l.b16 %v432
    %v598 = vunpack.c.l.b16 %v433
    %v599 = vunpack.c.l.b16 %v434
    %v600 = vunpack.c.l.b16 %v435
    %v601 = vunpack.c.l.b16 %v436
    %v602 = vunpack.c.l.b16 %v437
    %v603 = vunpack.c.l.b16 %v438
    %v604 = vunpack.c.l.b16 %v439
    %v605 = vunpack.c.l.b16 %v440
    %v606 = vunpack.c.l.b16 %v441
    %v607 = vunpack.c.l.b16 %v442
    %v608 = vunpack.c.l.b16 %v443
    %v609 = vunpack.c.l.b16 %v444
    %v610 = vunpack.c.l.b16 %v445
    %v611 = vpack.c.b16 %v576, %v575
    %v612 = vpack.c.b16 %v578, %v577
    %v613 = vpack.c.b16 %v580, %v579
    %v614 = vpack.c.b16 %v582, %v581
    %v615 = vpack.c.b16 %v584, %v583
    %v616 = vpack.c.b16 %v586, %v585
    %v617 = vpack.c.b16 %v588, %v587
    %v618 = vpack.c.b16 %v590, %v589
    %v619 = vpack.c.b16 %v592, %v591
    %v620 = vpack.c.b16 %v594, %v593
    %v621 = vpack.c.b16 %v596, %v595
    %v622 = vpack.c.b16 %v598, %v597
    %v623 = vpack.c.b16 %v600, %v599
    %v624 = vpack.c.b16 %v602, %v601
    %v625 = vpack.c.b16 %v604, %v603
    %v626 = vpack.c.b16 %v606, %v605
    %v627 = vpack.c.b16 %v608, %v607
    %v628 = vpack.c.b16 %v610, %v609
    %vm647 = vcmask 261120
    %v649 = vsel %vm647, %v511, 0
    %v652 = vsel %vm647, %v514, 0
    %v655 = vsel %vm647, %v517, 0
    %v658 = vsel %vm647, %v520, 0
    %v661 = vsel %vm647, %v523, 0
    %v664 = vsel %vm647, %v526, 0
    %v667 = vsel %vm647, %v529, 0
    %v670 = vsel %vm647, %v532, 0
    %672 = vmatprep.subr.bf16.mxu0 0
    %673 = vmatpush1.bf16.msra.mxu0 %v611
    %674 = vmatprep.subr.bf16.mxu0 0
    %675 = vmatpush1.bf16.msra.mxu0 %v612
    %676 = vmatprep.subr.bf16.mxu0 0
    %677 = vmatpush1.bf16.msra.mxu0 %v613
    %678 = vmatprep.subr.bf16.mxu0 0
    %679 = vmatpush1.bf16.msra.mxu0 %v614
    %680 = vmatprep.subr.bf16.mxu0 0
    %681 = vmatpush1.bf16.msra.mxu0 %v615
    %682 = vmatprep.subr.bf16.mxu0 0
    %683 = vmatpush1.bf16.msra.mxu0 %v616
    %684 = vmatprep.subr.bf16.mxu0 0
    %685 = vmatpush1.bf16.msra.mxu0 %v617
    %686 = vmatprep.subr.bf16.mxu0 0
    %687 = vmatpush1.bf16.msra.mxu0 %v618
    %688 = vmatprep.subr.bf16.mxu0 0
    %689 = vmatpush1.bf16.msra.mxu0 %v619
    %690 = vmatprep.subr.bf16.mxu0 0
    %691 = vmatpush1.bf16.msra.mxu0 %v620
    %692 = vmatprep.subr.bf16.mxu0 0
    %693 = vmatpush1.bf16.msra.mxu0 %v621
    %694 = vmatprep.subr.bf16.mxu0 0
    %695 = vmatpush1.bf16.msra.mxu0 %v622
    %696 = vmatprep.subr.bf16.mxu0 0
    %697 = vmatpush1.bf16.msra.mxu0 %v623
    %698 = vmatprep.subr.bf16.mxu0 0
    %699 = vmatpush1.bf16.msra.mxu0 %v624
    %700 = vmatprep.subr.bf16.mxu0 0
    %701 = vmatpush1.bf16.msra.mxu0 %v625
    %702 = vmatprep.subr.bf16.mxu0 0
    %703 = vmatpush1.bf16.msra.mxu0 %v626
    %704 = vmatprep.mubr.bf16.mxu0 %v510
    %705 = vmatmul.mubr.bf16.gmra.mrb[0].mxu0 %v509
    %v706 = vpop.f32.mrb[0].mxu0
    %v707 = vadd.f32 %v537, %v706
    %v708 = vpop.f32.mrb[0].mxu0
    %v709 = vpop.f32.mrb[0].mxu0
    %v710 = vadd.f32 %v537, %v709
    %v711 = vpop.f32.mrb[0].mxu0
    %712 = vmatprep.mubr.bf16.mxu0 %v513
    %713 = vmatmul.mubr.bf16.gmra.mrb[0].mxu0 %v512
    %v714 = vpop.f32.mrb[0].mxu0
    %v715 = vadd.f32 %v537, %v714
    %v716 = vpop.f32.mrb[0].mxu0
    %v717 = vpop.f32.mrb[0].mxu0
    %v718 = vadd.f32 %v537, %v717
    %v719 = vpop.f32.mrb[0].mxu0
    %720 = vmatprep.mubr.bf16.mxu0 %v516
    %721 = vmatmul.mubr.bf16.gmra.mrb[0].mxu0 %v515
    %v722 = vpop.f32.mrb[0].mxu0
    %v723 = vadd.f32 %v537, %v722
    %v724 = vpop.f32.mrb[0].mxu0
    %v725 = vpop.f32.mrb[0].mxu0
    %v726 = vadd.f32 %v537, %v725
    %v727 = vpop.f32.mrb[0].mxu0
    %728 = vmatprep.mubr.bf16.mxu0 %v519
    %729 = vmatmul.mubr.bf16.gmra.mrb[0].mxu0 %v518
    %v730 = vpop.f32.mrb[0].mxu0
    %v731 = vadd.f32 %v537, %v730
    %v732 = vpop.f32.mrb[0].mxu0
    %v733 = vpop.f32.mrb[0].mxu0
    %v734 = vadd.f32 %v537, %v733
    %v735 = vpop.f32.mrb[0].mxu0
    %736 = vmatprep.mubr.bf16.mxu0 %v522
    %737 = vmatmul.mubr.bf16.gmra.mrb[0].mxu0 %v521
    %v738 = vpop.f32.mrb[0].mxu0
    %v739 = vadd.f32 %v537, %v738
    %v740 = vpop.f32.mrb[0].mxu0
    %v741 = vpop.f32.mrb[0].mxu0
    %v742 = vadd.f32 %v537, %v741
    %v743 = vpop.f32.mrb[0].mxu0
    %744 = vmatprep.mubr.bf16.mxu0 %v525
    %745 = vmatmul.mubr.bf16.gmra.mrb[0].mxu0 %v524
    %v746 = vpop.f32.mrb[0].mxu0
    %v747 = vadd.f32 %v537, %v746
    %v748 = vpop.f32.mrb[0].mxu0
    %v749 = vpop.f32.mrb[0].mxu0
    %v750 = vadd.f32 %v537, %v749
    %v751 = vpop.f32.mrb[0].mxu0
    %752 = vmatprep.mubr.bf16.mxu0 %v528
    %753 = vmatmul.mubr.bf16.gmra.mrb[0].mxu0 %v527
    %v754 = vpop.f32.mrb[0].mxu0
    %v755 = vadd.f32 %v537, %v754
    %v756 = vpop.f32.mrb[0].mxu0
    %v757 = vpop.f32.mrb[0].mxu0
    %v758 = vadd.f32 %v537, %v757
    %v759 = vpop.f32.mrb[0].mxu0
    %760 = vmatprep.mubr.bf16.mxu0 %v531
    %761 = vmatmul.mubr.bf16.gmra.mrb[0].mxu0 %v530
    %v762 = vpop.f32.mrb[0].mxu0
    %v763 = vadd.f32 %v537, %v762
    %v764 = vpop.f32.mrb[0].mxu0
    %v765 = vpop.f32.mrb[0].mxu0
    %v766 = vadd.f32 %v537, %v765
    %v767 = vpop.f32.mrb[0].mxu0
    %768 = vdwg.mxu0
    %769 = vmatprep.subr.bf16.mxu0 0
    %770 = vmatpush1.bf16.msra.mxu0 %v627
    %771 = vmatprep.subr.bf16.mxu0 0
    %772 = vmatpush1.bf16.msra.mxu0 %v628
    %773 = vmatprep.subr.bf16.mxu0 0
    %774 = vmatpush1.bf16.msra.mxu0 0
    %775 = vmatprep.subr.bf16.mxu0 0
    %776 = vmatpush1.bf16.msra.mxu0 0
    %777 = vmatprep.subr.bf16.mxu0 0
    %778 = vmatpush1.bf16.msra.mxu0 0
    %779 = vmatprep.subr.bf16.mxu0 0
    %780 = vmatpush1.bf16.msra.mxu0 0
    %781 = vmatprep.subr.bf16.mxu0 0
    %782 = vmatpush1.bf16.msra.mxu0 0
    %783 = vmatprep.subr.bf16.mxu0 0
    %784 = vmatpush1.bf16.msra.mxu0 0
    %785 = vmatprep.subr.bf16.mxu0 0
    %786 = vmatpush1.bf16.msra.mxu0 0
    %787 = vmatprep.subr.bf16.mxu0 0
    %788 = vmatpush1.bf16.msra.mxu0 0
    %789 = vmatprep.subr.bf16.mxu0 0
    %790 = vmatpush1.bf16.msra.mxu0 0
    %791 = vmatprep.subr.bf16.mxu0 0
    %792 = vmatpush1.bf16.msra.mxu0 0
    %793 = vmatprep.subr.bf16.mxu0 0
    %794 = vmatpush1.bf16.msra.mxu0 0
    %795 = vmatprep.subr.bf16.mxu0 0
    %796 = vmatpush1.bf16.msra.mxu0 0
    %797 = vmatprep.subr.bf16.mxu0 0
    %798 = vmatpush1.bf16.msra.mxu0 0
    %799 = vmatprep.subr.bf16.mxu0 0
    %800 = vmatpush1.bf16.msra.mxu0 0
    %801 = vmatprep.mubr.bf16.mxu0 0
    %802 = vmatmul.mubr.bf16.gmra.mrb[0].mxu0 %v649
    %v803 = vpop.f32.mrb[0].mxu0
    %v804 = vadd.f32 %v707, %v803
    %v805 = vpop.f32.mrb[0].mxu0
    %v806 = vpop.f32.mrb[0].mxu0
    %v807 = vadd.f32 %v710, %v806
    %v808 = vpop.f32.mrb[0].mxu0
    %809 = vmatprep.mubr.bf16.mxu0 0
    %810 = vmatmul.mubr.bf16.gmra.mrb[0].mxu0 %v652
    %v811 = vpop.f32.mrb[0].mxu0
    %v812 = vadd.f32 %v715, %v811
    %v813 = vpop.f32.mrb[0].mxu0
    %v814 = vpop.f32.mrb[0].mxu0
    %v815 = vadd.f32 %v718, %v814
    %v816 = vpop.f32.mrb[0].mxu0
    %817 = vmatprep.mubr.bf16.mxu0 0
    %818 = vmatmul.mubr.bf16.gmra.mrb[0].mxu0 %v655
    %v819 = vpop.f32.mrb[0].mxu0
    %v820 = vadd.f32 %v723, %v819
    %v821 = vpop.f32.mrb[0].mxu0
    %v822 = vpop.f32.mrb[0].mxu0
    %v823 = vadd.f32 %v726, %v822
    %v824 = vpop.f32.mrb[0].mxu0
    %825 = vmatprep.mubr.bf16.mxu0 0
    %826 = vmatmul.mubr.bf16.gmra.mrb[0].mxu0 %v658
    %v827 = vpop.f32.mrb[0].mxu0
    %v828 = vadd.f32 %v731, %v827
    %v829 = vpop.f32.mrb[0].mxu0
    %v830 = vpop.f32.mrb[0].mxu0
    %v831 = vadd.f32 %v734, %v830
    %v832 = vpop.f32.mrb[0].mxu0
    %833 = vmatprep.mubr.bf16.mxu0 0
    %834 = vmatmul.mubr.bf16.gmra.mrb[0].mxu0 %v661
    %v835 = vpop.f32.mrb[0].mxu0
    %v836 = vadd.f32 %v739, %v835
    %v837 = vpop.f32.mrb[0].mxu0
    %v838 = vpop.f32.mrb[0].mxu0
    %v839 = vadd.f32 %v742, %v838
    %v840 = vpop.f32.mrb[0].mxu0
    %841 = vmatprep.mubr.bf16.mxu0 0
    %842 = vmatmul.mubr.bf16.gmra.mrb[0].mxu0 %v664
    %v843 = vpop.f32.mrb[0].mxu0
    %v844 = vadd.f32 %v747, %v843
    %v845 = vpop.f32.mrb[0].mxu0
    %v846 = vpop.f32.mrb[0].mxu0
    %v847 = vadd.f32 %v750, %v846
    %v848 = vpop.f32.mrb[0].mxu0
    %849 = vmatprep.mubr.bf16.mxu0 0
    %850 = vmatmul.mubr.bf16.gmra.mrb[0].mxu0 %v667
    %v851 = vpop.f32.mrb[0].mxu0
    %v852 = vadd.f32 %v755, %v851
    %v853 = vpop.f32.mrb[0].mxu0
    %v854 = vpop.f32.mrb[0].mxu0
    %v855 = vadd.f32 %v758, %v854
    %v856 = vpop.f32.mrb[0].mxu0
    %857 = vmatprep.mubr.bf16.mxu0 0
    %858 = vmatmul.mubr.bf16.gmra.mrb[0].mxu0 %v670
    %v859 = vpop.f32.mrb[0].mxu0
    %v860 = vadd.f32 %v763, %v859
    %v861 = vpop.f32.mrb[0].mxu0
    %v862 = vpop.f32.mrb[0].mxu0
    %v863 = vadd.f32 %v766, %v862
    %v864 = vpop.f32.mrb[0].mxu0
    %865 = vdwg.mxu0
    %s866 = scalar_lea.vmem [#allocation3], %s455
    %867 = vst [vmem:[%s866] sm:$0xff] %v804
    %868 = vst [vmem:[%s866 + $0x8] sm:$0xff] %v807
    %869 = vst [vmem:[%s866 + $0x10] sm:$0xff] %v812
    %870 = vst [vmem:[%s866 + $0x18] sm:$0xff] %v815
    %871 = vst [vmem:[%s866 + $0x20] sm:$0xff] %v820
    %872 = vst [vmem:[%s866 + $0x28] sm:$0xff] %v823
    %873 = vst [vmem:[%s866 + $0x30] sm:$0xff] %v828
    %874 = vst [vmem:[%s866 + $0x38] sm:$0xff] %v831
    %875 = vst [vmem:[%s866 + $0x40] sm:$0xff] %v836
    %876 = vst [vmem:[%s866 + $0x48] sm:$0xff] %v839
    %877 = vst [vmem:[%s866 + $0x50] sm:$0xff] %v844
    %878 = vst [vmem:[%s866 + $0x58] sm:$0xff] %v847
    %879 = vst [vmem:[%s866 + $0x60] sm:$0xff] %v852
    %880 = vst [vmem:[%s866 + $0x68] sm:$0xff] %v855
    %881 = vst [vmem:[%s866 + $0x70] sm:$0xff] %v860
    %882 = vst [vmem:[%s866 + $0x78] sm:$0xff] %v863
    %v883 = vadd.f32 %v804, %v807
    %v884 = vadd.f32 %v883, %v812
    %v885 = vadd.f32 %v884, %v815
    %v886 = vadd.f32 %v885, %v820
    %v887 = vadd.f32 %v886, %v823
    %v888 = vadd.f32 %v887, %v828
    %v889 = vadd.f32 %v888, %v831
    %v890 = vadd.f32 %v889, %v836
    %v891 = vadd.f32 %v890, %v839
    %v892 = vadd.f32 %v891, %v844
    %v893 = vadd.f32 %v892, %v847
    %v894 = vadd.f32 %v893, %v852
    %v895 = vadd.f32 %v894, %v855
    %v896 = vadd.f32 %v895, %v860
    %v897 = vadd.f32 %v896, %v863
    %v898 = vrot.slane %v897, 4
    %v899 = vadd.f32 %v897, %v898
    %v900 = vrot.slane %v899, 2
    %v901 = vadd.f32 %v899, %v900
    %v902 = vrot.slane %v901, 1
    %v903 = vadd.f32 %v901, %v902
    %v904 = vadd.f32 %v453, %v903
    %v905 = vmul.f32 %v804, %v804
    %v906 = vmul.f32 %v807, %v807
    %v907 = vmul.f32 %v812, %v812
    %v908 = vmul.f32 %v815, %v815
    %v909 = vmul.f32 %v820, %v820
    %v910 = vmul.f32 %v823, %v823
    %v911 = vmul.f32 %v828, %v828
    %v912 = vmul.f32 %v831, %v831
    %v913 = vmul.f32 %v836, %v836
    %v914 = vmul.f32 %v839, %v839
    %v915 = vmul.f32 %v844, %v844
    %v916 = vmul.f32 %v847, %v847
    %v917 = vmul.f32 %v852, %v852
    %v918 = vmul.f32 %v855, %v855
    %v919 = vmul.f32 %v860, %v860
    %v920 = vmul.f32 %v863, %v863
    %v921 = vadd.f32 %v905, %v906
    %v922 = vadd.f32 %v921, %v907
    %v923 = vadd.f32 %v922, %v908
    %v924 = vadd.f32 %v923, %v909
    %v925 = vadd.f32 %v924, %v910
    %v926 = vadd.f32 %v925, %v911
    %v927 = vadd.f32 %v926, %v912
    %v928 = vadd.f32 %v927, %v913
    %v929 = vadd.f32 %v928, %v914
    %v930 = vadd.f32 %v929, %v915
    %v931 = vadd.f32 %v930, %v916
    %v932 = vadd.f32 %v931, %v917
    %v933 = vadd.f32 %v932, %v918
    %v934 = vadd.f32 %v933, %v919
    %v935 = vadd.f32 %v934, %v920
    %v936 = vrot.slane %v935, 4
    %v937 = vadd.f32 %v935, %v936
    %v938 = vrot.slane %v937, 2
    %v939 = vadd.f32 %v937, %v938
    %v940 = vrot.slane %v939, 1
    %v941 = vadd.f32 %v939, %v940
    %v942 = vadd.f32 %v454, %v941
  $region44: #{depth_generator_forward.8} parent=0 // loop_footer
    %s452 = sadd.s32 1, %s448
  $region45: #{depth_generator_forward.8} parent=0 // loop_footer_branch
    %447 = sbr.rel target = $region41
  $region46: #{depth_generator_forward.8} parent=0 // loop_exit
    _
  %v943 = vld [vmem:[%s5] sm:$0xff]
  %v944 = vld [vmem:[%s5 + $0x8] sm:$0xff]
  %v945 = vld [vmem:[%s5 + $0x10] sm:$0xff]
  %v946 = vld [vmem:[%s5 + $0x18] sm:$0xff]
  %v947 = vld [vmem:[%s5 + $0x20] sm:$0xff]
  %v948 = vld [vmem:[%s5 + $0x28] sm:$0xff]
  %v949 = vld [vmem:[%s5 + $0x30] sm:$0xff]
  %v950 = vld [vmem:[%s5 + $0x38] sm:$0xff]
  %v951 = vld [vmem:[%s5 + $0x40] sm:$0xff]
  %v952 = vld [vmem:[%s5 + $0x48] sm:$0xff]
  %v953 = vld [vmem:[%s5 + $0x50] sm:$0xff]
  %v954 = vld [vmem:[%s5 + $0x58] sm:$0xff]
  %v955 = vld [vmem:[%s5 + $0x60] sm:$0xff]
  %v956 = vld [vmem:[%s5 + $0x68] sm:$0xff]
  %v957 = vld [vmem:[%s5 + $0x70] sm:$0xff]
  %v958 = vld [vmem:[%s5 + $0x78] sm:$0xff]
  %959 = vmatprep.subr.mxu0 0.0
  %960 = vmatpush1.msra.mxu0 %v943
  %961 = vmatprep.subr.mxu0 0.0
  %962 = vmatpush1.msra.mxu0 %v944
  %963 = vmatprep.subr.mxu0 0.0
  %964 = vmatpush1.msra.mxu0 %v945
  %965 = vmatprep.subr.mxu0 0.0
  %966 = vmatpush1.msra.mxu0 %v946
  %967 = vmatprep.subr.mxu0 0.0
  %968 = vmatpush1.msra.mxu0 %v947
  %969 = vmatprep.subr.mxu0 0.0
  %970 = vmatpush1.msra.mxu0 %v948
  %971 = vmatprep.subr.mxu0 0.0
  %972 = vmatpush1.msra.mxu0 %v949
  %973 = vmatprep.subr.mxu0 0.0
  %974 = vmatpush1.msra.mxu0 %v950
  %975 = vmatprep.subr.mxu0 0.0
  %976 = vmatpush1.msra.mxu0 %v951
  %977 = vmatprep.subr.mxu0 0.0
  %978 = vmatpush1.msra.mxu0 %v952
  %979 = vmatprep.subr.mxu0 0.0
  %980 = vmatpush1.msra.mxu0 %v953
  %981 = vmatprep.subr.mxu0 0.0
  %982 = vmatpush1.msra.mxu0 %v954
  %983 = vmatprep.subr.mxu0 0.0
  %984 = vmatpush1.msra.mxu0 %v955
  %985 = vmatprep.subr.mxu0 0.0
  %986 = vmatpush1.msra.mxu0 %v956
  %987 = vmatprep.subr.mxu0 0.0
  %988 = vmatpush1.msra.mxu0 %v957
  %989 = vmatprep.subr.mxu0 0.0
  %990 = vmatpush1.msra.mxu0 %v958
  %991 = vmatprep.subr.mxu0 0.0
  %992 = vmatpush1.msra.mxu0 0.0
  %993 = vmatprep.subr.mxu0 0.0
  %994 = vmatpush1.msra.mxu0 0.0
  %995 = vmatprep.subr.mxu0 0.0
  %996 = vmatpush1.msra.mxu0 0.0
  %997 = vmatprep.subr.mxu0 0.0
  %998 = vmatpush1.msra.mxu0 0.0
  %999 = vmatprep.subr.mxu0 0.0
  %1000 = vmatpush1.msra.mxu0 0.0
  %1001 = vmatprep.subr.mxu0 0.0
  %1002 = vmatpush1.msra.mxu0 0.0
  %1003 = vmatprep.subr.mxu0 0.0
  %1004 = vmatpush1.msra.mxu0 0.0
  %1005 = vmatprep.subr.mxu0 0.0
  %1006 = vmatpush1.msra.mxu0 0.0
  %1007 = vmatprep.subr.mxu0 0.0
  %1008 = vmatpush1.msra.mxu0 0.0
  %1009 = vmatprep.subr.mxu0 0.0
  %1010 = vmatpush1.msra.mxu0 0.0
  %1011 = vmatprep.subr.mxu0 0.0
  %1012 = vmatpush1.msra.mxu0 0.0
  %1013 = vmatprep.subr.mxu0 0.0
  %1014 = vmatpush1.msra.mxu0 0.0
  %1015 = vmatprep.subr.mxu0 0.0
  %1016 = vmatpush1.msra.mxu0 0.0
  %1017 = vmatprep.subr.mxu0 0.0
  %1018 = vmatpush1.msra.mxu0 0.0
  %1019 = vmatprep.subr.mxu0 0.0
  %1020 = vmatpush1.msra.mxu0 0.0
  %1021 = vmatprep.subr.mxu0 0.0
  %1022 = vmatpush1.msra.mxu0 0.0
  %1023 = vmatprep.mubr.f32.mxu0 0.0
  %1024 = vmatmul.mubr.f32.gmra.mrb[0].mxu0 %v453
  %v1025 = vpop.f32.mrb[0].mxu0
  %v1026 = vadd.f32 0.0, %v1025
  %v1027 = vpop.f32.mrb[0].mxu0
  %1028 = vdwg.mxu0
  %1029 = vmatprep.subr.mxu0 0.0
  %1030 = vmatpush1.msra.mxu0 %v943
  %1031 = vmatprep.subr.mxu0 0.0
  %1032 = vmatpush1.msra.mxu0 %v944
  %1033 = vmatprep.subr.mxu0 0.0
  %1034 = vmatpush1.msra.mxu0 %v945
  %1035 = vmatprep.subr.mxu0 0.0
  %1036 = vmatpush1.msra.mxu0 %v946
  %1037 = vmatprep.subr.mxu0 0.0
  %1038 = vmatpush1.msra.mxu0 %v947
  %1039 = vmatprep.subr.mxu0 0.0
  %1040 = vmatpush1.msra.mxu0 %v948
  %1041 = vmatprep.subr.mxu0 0.0
  %1042 = vmatpush1.msra.mxu0 %v949
  %1043 = vmatprep.subr.mxu0 0.0
  %1044 = vmatpush1.msra.mxu0 %v950
  %1045 = vmatprep.subr.mxu0 0.0
  %1046 = vmatpush1.msra.mxu0 %v951
  %1047 = vmatprep.subr.mxu0 0.0
  %1048 = vmatpush1.msra.mxu0 %v952
  %1049 = vmatprep.subr.mxu0 0.0
  %1050 = vmatpush1.msra.mxu0 %v953
  %1051 = vmatprep.subr.mxu0 0.0
  %1052 = vmatpush1.msra.mxu0 %v954
  %1053 = vmatprep.subr.mxu0 0.0
  %1054 = vmatpush1.msra.mxu0 %v955
  %1055 = vmatprep.subr.mxu0 0.0
  %1056 = vmatpush1.msra.mxu0 %v956
  %1057 = vmatprep.subr.mxu0 0.0
  %1058 = vmatpush1.msra.mxu0 %v957
  %1059 = vmatprep.subr.mxu0 0.0
  %1060 = vmatpush1.msra.mxu0 %v958
  %1061 = vmatprep.subr.mxu0 0.0
  %1062 = vmatpush1.msra.mxu0 0.0
  %1063 = vmatprep.subr.mxu0 0.0
  %1064 = vmatpush1.msra.mxu0 0.0
  %1065 = vmatprep.subr.mxu0 0.0
  %1066 = vmatpush1.msra.mxu0 0.0
  %1067 = vmatprep.subr.mxu0 0.0
  %1068 = vmatpush1.msra.mxu0 0.0
  %1069 = vmatprep.subr.mxu0 0.0
  %1070 = vmatpush1.msra.mxu0 0.0
  %1071 = vmatprep.subr.mxu0 0.0
  %1072 = vmatpush1.msra.mxu0 0.0
  %1073 = vmatprep.subr.mxu0 0.0
  %1074 = vmatpush1.msra.mxu0 0.0
  %1075 = vmatprep.subr.mxu0 0.0
  %1076 = vmatpush1.msra.mxu0 0.0
  %1077 = vmatprep.subr.mxu0 0.0
  %1078 = vmatpush1.msra.mxu0 0.0
  %1079 = vmatprep.subr.mxu0 0.0
  %1080 = vmatpush1.msra.mxu0 0.0
  %1081 = vmatprep.subr.mxu0 0.0
  %1082 = vmatpush1.msra.mxu0 0.0
  %1083 = vmatprep.subr.mxu0 0.0
  %1084 = vmatpush1.msra.mxu0 0.0
  %1085 = vmatprep.subr.mxu0 0.0
  %1086 = vmatpush1.msra.mxu0 0.0
  %1087 = vmatprep.subr.mxu0 0.0
  %1088 = vmatpush1.msra.mxu0 0.0
  %1089 = vmatprep.subr.mxu0 0.0
  %1090 = vmatpush1.msra.mxu0 0.0
  %1091 = vmatprep.subr.mxu0 0.0
  %1092 = vmatpush1.msra.mxu0 0.0
  %1093 = vmatprep.mubr.f32.mxu0 0.0
  %1094 = vmatmul.mubr.f32.gmra.mrb[0].mxu0 %v454
  %v1095 = vpop.f32.mrb[0].mxu0
  %v1096 = vadd.f32 0.0, %v1095
  %v1097 = vpop.f32.mrb[0].mxu0
  %1098 = vdwg.mxu0
  %v1099 = vmul.f32 %v1026, %v1026
  %v1100 = vsub.f32 %v1096, %v1099
  %v1101 = vld [vmem:[%s3] sm:$0x1]
  %v1102 = vadd.f32 %v1100, 1e-05
  %v1103 = vrsqrt.pop %v1102
  %v1104 = vmul.f32 %v1101, %v1103
  %v1105 = vld [vmem:[%s4] sm:$0x1]
  %v1106 = vmul.f32 %v1026, %v1104
  %v1107 = vsub.f32 %v1105, %v1106
  loop: start=0, step=1, limit=16
  $region47: #{depth_generator_forward.8} parent=0 // loop_pre_header
    _
  $region48: #{depth_generator_forward.8} parent=0 // loop_header
    %s1109 = sphi 0, %s1113
    %p1110 = scmp.ge.s32.totalorder %s1109, 16
  $region49: #{depth_generator_forward.8} parent=0 // loop_header_branch
    %1112 = sbr.rel (%p1110) target = $region53
  $region50: #{depth_generator_forward.8} parent=0 // loop_body
    %s1114 = smul.u32 %s1109, 128
    %s1115 = scalar_lea.vmem [#allocation3], %s1114
    %v1116 = vld [vmem:[%s1115] sm:$0xff]
    %v1117 = vld [vmem:[%s1115 + $0x8] sm:$0xff]
    %v1118 = vld [vmem:[%s1115 + $0x10] sm:$0xff]
    %v1119 = vld [vmem:[%s1115 + $0x18] sm:$0xff]
    %v1120 = vld [vmem:[%s1115 + $0x20] sm:$0xff]
    %v1121 = vld [vmem:[%s1115 + $0x28] sm:$0xff]
    %v1122 = vld [vmem:[%s1115 + $0x30] sm:$0xff]
    %v1123 = vld [vmem:[%s1115 + $0x38] sm:$0xff]
    %v1124 = vld [vmem:[%s1115 + $0x40] sm:$0xff]
    %v1125 = vld [vmem:[%s1115 + $0x48] sm:$0xff]
    %v1126 = vld [vmem:[%s1115 + $0x50] sm:$0xff]
    %v1127 = vld [vmem:[%s1115 + $0x58] sm:$0xff]
    %v1128 = vld [vmem:[%s1115 + $0x60] sm:$0xff]
    %v1129 = vld [vmem:[%s1115 + $0x68] sm:$0xff]
    %v1130 = vld [vmem:[%s1115 + $0x70] sm:$0xff]
    %v1131 = vld [vmem:[%s1115 + $0x78] sm:$0xff]
    %v1133 = vlaneseq
    %v1134 = vshrl.u32 %v1133, 7
    %v1135 = vsub.s32 0, %v1134
    %v1136 = vrot.slane %v1104, %v1135
    %v1138 = vmul.f32 %v1116, %v1136
    %v1139 = vmul.f32 %v1117, %v1136
    %v1140 = vmul.f32 %v1118, %v1136
    %v1141 = vmul.f32 %v1119, %v1136
    %v1142 = vmul.f32 %v1120, %v1136
    %v1143 = vmul.f32 %v1121, %v1136
    %v1144 = vmul.f32 %v1122, %v1136
    %v1145 = vmul.f32 %v1123, %v1136
    %v1146 = vmul.f32 %v1124, %v1136
    %v1147 = vmul.f32 %v1125, %v1136
    %v1148 = vmul.f32 %v1126, %v1136
    %v1149 = vmul.f32 %v1127, %v1136
    %v1150 = vmul.f32 %v1128, %v1136
    %v1151 = vmul.f32 %v1129, %v1136
    %v1152 = vmul.f32 %v1130, %v1136
    %v1153 = vmul.f32 %v1131, %v1136
    %v1155 = vlaneseq
    %v1156 = vshrl.u32 %v1155, 7
    %v1157 = vsub.s32 0, %v1156
    %v1158 = vrot.slane %v1107, %v1157
    %v1160 = vadd.f32 %v1138, %v1158
    %v1161 = vadd.f32 %v1139, %v1158
    %v1162 = vadd.f32 %v1140, %v1158
    %v1163 = vadd.f32 %v1141, %v1158
    %v1164 = vadd.f32 %v1142, %v1158
    %v1165 = vadd.f32 %v1143, %v1158
    %v1166 = vadd.f32 %v1144, %v1158
    %v1167 = vadd.f32 %v1145, %v1158
    %v1168 = vadd.f32 %v1146, %v1158
    %v1169 = vadd.f32 %v1147, %v1158
    %v1170 = vadd.f32 %v1148, %v1158
    %v1171 = vadd.f32 %v1149, %v1158
    %v1172 = vadd.f32 %v1150, %v1158
    %v1173 = vadd.f32 %v1151, %v1158
    %v1174 = vadd.f32 %v1152, %v1158
    %v1175 = vadd.f32 %v1153, %v1158
    %vm1176 = vcmp.ge.f32.partialorder %v1160, 0.0
    %vm1177 = vcmp.ge.f32.partialorder %v1161, 0.0
    %vm1178 = vcmp.ge.f32.partialorder %v1162, 0.0
    %vm1179 = vcmp.ge.f32.partialorder %v1163, 0.0
    %vm1180 = vcmp.ge.f32.partialorder %v1164, 0.0
    %vm1181 = vcmp.ge.f32.partialorder %v1165, 0.0
    %vm1182 = vcmp.ge.f32.partialorder %v1166, 0.0
    %vm1183 = vcmp.ge.f32.partialorder %v1167, 0.0
    %vm1184 = vcmp.ge.f32.partialorder %v1168, 0.0
    %vm1185 = vcmp.ge.f32.partialorder %v1169, 0.0
    %vm1186 = vcmp.ge.f32.partialorder %v1170, 0.0
    %vm1187 = vcmp.ge.f32.partialorder %v1171, 0.0
    %vm1188 = vcmp.ge.f32.partialorder %v1172, 0.0
    %vm1189 = vcmp.ge.f32.partialorder %v1173, 0.0
    %vm1190 = vcmp.ge.f32.partialorder %v1174, 0.0
    %vm1191 = vcmp.ge.f32.partialorder %v1175, 0.0
    %v1192 = vmul.f32 %v1160, 0.2
    %v1193 = vmul.f32 %v1161, 0.2
    %v1194 = vmul.f32 %v1162, 0.2
    %v1195 = vmul.f32 %v1163, 0.2
    %v1196 = vmul.f32 %v1164, 0.2
    %v1197 = vmul.f32 %v1165, 0.2
    %v1198 = vmul.f32 %v1166, 0.2
    %v1199 = vmul.f32 %v1167, 0.2
    %v1200 = vmul.f32 %v1168, 0.2
    %v1201 = vmul.f32 %v1169, 0.2
    %v1202 = vmul.f32 %v1170, 0.2
    %v1203 = vmul.f32 %v1171, 0.2
    %v1204 = vmul.f32 %v1172, 0.2
    %v1205 = vmul.f32 %v1173, 0.2
    %v1206 = vmul.f32 %v1174, 0.2
    %v1207 = vmul.f32 %v1175, 0.2
    %v1208 = vsel %vm1176, %v1160, %v1192
    %v1209 = vsel %vm1177, %v1161, %v1193
    %v1210 = vsel %vm1178, %v1162, %v1194
    %v1211 = vsel %vm1179, %v1163, %v1195
    %v1212 = vsel %vm1180, %v1164, %v1196
    %v1213 = vsel %vm1181, %v1165, %v1197
    %v1214 = vsel %vm1182, %v1166, %v1198
    %v1215 = vsel %vm1183, %v1167, %v1199
    %v1216 = vsel %vm1184, %v1168, %v1200
    %v1217 = vsel %vm1185, %v1169, %v1201
    %v1218 = vsel %vm1186, %v1170, %v1202
    %v1219 = vsel %vm1187, %v1171, %v1203
    %v1220 = vsel %vm1188, %v1172, %v1204
    %v1221 = vsel %vm1189, %v1173, %v1205
    %v1222 = vsel %vm1190, %v1174, %v1206
    %v1223 = vsel %vm1191, %v1175, %v1207
    %s1224 = scalar_lea.vmem %s6, %s1114
    %1225 = vst [vmem:[%s1224] sm:$0xff] %v1208
    %1226 = vst [vmem:[%s1224 + $0x8] sm:$0xff] %v1209
    %1227 = vst [vmem:[%s1224 + $0x10] sm:$0xff] %v1210
    %1228 = vst [vmem:[%s1224 + $0x18] sm:$0xff] %v1211
    %1229 = vst [vmem:[%s1224 + $0x20] sm:$0xff] %v1212
    %1230 = vst [vmem:[%s1224 + $0x28] sm:$0xff] %v1213
    %1231 = vst [vmem:[%s1224 + $0x30] sm:$0xff] %v1214
    %1232 = vst [vmem:[%s1224 + $0x38] sm:$0xff] %v1215
    %1233 = vst [vmem:[%s1224 + $0x40] sm:$0xff] %v1216
    %1234 = vst [vmem:[%s1224 + $0x48] sm:$0xff] %v1217
    %1235 = vst [vmem:[%s1224 + $0x50] sm:$0xff] %v1218
    %1236 = vst [vmem:[%s1224 + $0x58] sm:$0xff] %v1219
    %1237 = vst [vmem:[%s1224 + $0x60] sm:$0xff] %v1220
    %1238 = vst [vmem:[%s1224 + $0x68] sm:$0xff] %v1221
    %1239 = vst [vmem:[%s1224 + $0x70] sm:$0xff] %v1222
    %1240 = vst [vmem:[%s1224 + $0x78] sm:$0xff] %v1223
  $region51: #{depth_generator_forward.8} parent=0 // loop_footer
    %s1113 = sadd.s32 1, %s1109
  $region52: #{depth_generator_forward.8} parent=0 // loop_footer_branch
    %1108 = sbr.rel target = $region48
  $region53: #{depth_generator_forward.8} parent=0 // loop_exit
    _
  // Predicated region
  $region54: #{depth_generator_forward.8} parent=0 // pred_check
    _
  $region55: #{depth_generator_forward.8} parent=0 // pred_check_branch
    %1242 = sbr.rel (0) target = $region57
  $region56: #{depth_generator_forward.8} parent=0 // pred_region
    _
  $region57: #{depth_generator_forward.8} parent=0 // pred_fallthru
    _
  // Predicated region
  $region58: #{depth_generator_forward.8} parent=0 // pred_check
    _
  $region59: #{depth_generator_forward.8} parent=0 // pred_check_branch
    %1244 = sbr.rel (0) target = $region61
  $region60: #{depth_generator_forward.8} parent=0 // pred_region
    _
  $region61: #{depth_generator_forward.8} parent=0 // pred_fallthru
    _

// kernel: depth_generator_forward.9
$region0: #{depth_generator_forward.9}
  #allocation0 [shape = 'u32[]', space=smem, size = 0x4, offset = 0x4, fixed_abs, tag = 'smem constant byte address 0x4 - core index']
  #allocation1 [shape = 'u32[144,128]{1,0:T(1,128)}', space=vmem, size = 0x12000, scoped, tag = 'internal scratch']
  #allocation2 [shape = 'f32[8192,288]{1,0:T(8,128)}', space=vmem, size = 0xc00000, scoped, tag = 'scratch operand']
  #allocation3 [shape = 'f32[8192,128]{1,0:T(8,128)}', space=vmem, size = 0x400000, scoped, tag = 'scratch operand']
  %s0 = inlined_call_operand.vmem [shape: f32[132,66,32], index: 0, kind: input, shape index: {}]
  %s1 = inlined_call_operand.vmem [shape: bf16[288,128], index: 1, kind: input, shape index: {}]
  %s2 = inlined_call_operand.vmem [shape: f32[1,128], index: 2, kind: input, shape index: {}]
  %s3 = inlined_call_operand.vmem [shape: f32[1,128], index: 3, kind: input, shape index: {}]
  %s4 = inlined_call_operand.vmem [shape: f32[1,128], index: 4, kind: input, shape index: {}]
  %s5 = inlined_call_operand.vmem [shape: f32[128,128], index: 5, kind: input, shape index: {}]
  %s6 = inlined_call_operand.vmem [shape: f32[8192,4], index: 6, kind: output, shape index: {}]
  %s7 = sld [smem:[#allocation0]]
  $region62: #{depth_generator_forward.9} parent=0
    _
  %s9 = ssub.s32 1, %s7
  %s10 = scalar_select 0, %s9, %s7
  // Predicated region
  $region2: #{depth_generator_forward.9} parent=0 // pred_check
    _
  $region3: #{depth_generator_forward.9} parent=0 // pred_check_branch
    %12 = sbr.rel (0) target = $region5
  $region4: #{depth_generator_forward.9} parent=0 // pred_region
    _
  $region5: #{depth_generator_forward.9} parent=0 // pred_fallthru
    _
  // Predicated region
  $region6: #{depth_generator_forward.9} parent=0 // pred_check
    _
  $region7: #{depth_generator_forward.9} parent=0 // pred_check_branch
    %14 = sbr.rel (0) target = $region9
  $region8: #{depth_generator_forward.9} parent=0 // pred_region
    _
  $region9: #{depth_generator_forward.9} parent=0 // pred_fallthru
    _
  // Predicated region
  $region10: #{depth_generator_forward.9} parent=0 // pred_check
    _
  $region11: #{depth_generator_forward.9} parent=0 // pred_check_branch
    %16 = sbr.rel (0) target = $region13
  $region12: #{depth_generator_forward.9} parent=0 // pred_region
    _
  $region13: #{depth_generator_forward.9} parent=0 // pred_fallthru
    _
  // Predicated region
  $region14: #{depth_generator_forward.9} parent=0 // pred_check
    _
  $region15: #{depth_generator_forward.9} parent=0 // pred_check_branch
    %18 = sbr.rel (0) target = $region17
  $region16: #{depth_generator_forward.9} parent=0 // pred_region
    _
  $region17: #{depth_generator_forward.9} parent=0 // pred_fallthru
    _
  // Predicated region
  $region18: #{depth_generator_forward.9} parent=0 // pred_check
    _
  $region19: #{depth_generator_forward.9} parent=0 // pred_check_branch
    %20 = sbr.rel (0) target = $region21
  $region20: #{depth_generator_forward.9} parent=0 // pred_region
    _
  $region21: #{depth_generator_forward.9} parent=0 // pred_fallthru
    _
  // Predicated region
  $region22: #{depth_generator_forward.9} parent=0 // pred_check
    _
  $region23: #{depth_generator_forward.9} parent=0 // pred_check_branch
    %22 = sbr.rel (0) target = $region25
  $region24: #{depth_generator_forward.9} parent=0 // pred_region
    _
  $region25: #{depth_generator_forward.9} parent=0 // pred_fallthru
    _
  loop: start=0, step=1, limit=64
  $region26: #{depth_generator_forward.9} parent=0 // loop_pre_header
    _
  $region27: #{depth_generator_forward.9} parent=0 // loop_header
    %s25 = sphi 0, %s29
    %p26 = scmp.ge.s32.totalorder %s25, 64
  $region28: #{depth_generator_forward.9} parent=0 // loop_header_branch
    %28 = sbr.rel (%p26) target = $region32
  $region29: #{depth_generator_forward.9} parent=0 // loop_body
    %s30 = smul.u32 %s25, 64
    %s31 = smul.u32 %s25, 72
    %s32 = scalar_lea.vmem %s0, %s31
    %v33 = vld [vmem:[%s32] sm:$0xff]
    %v34 = vld [vmem:[%s32 + $0x8] sm:$0xff]
    %v35 = vld [vmem:[%s32 + $0x10] sm:$0xff]
    %v36 = vld [vmem:[%s32 + $0x18] sm:$0xff]
    %v37 = vld [vmem:[%s32 + $0x20] sm:$0xff]
    %v38 = vld [vmem:[%s32 + $0x28] sm:$0xff]
    %v39 = vld [vmem:[%s32 + $0x30] sm:$0xff]
    %v40 = vld [vmem:[%s32 + $0x38] sm:$0xff]
    %s41 = sshra.s32 %s30, 3
    %s42 = sand.u32 %s30, 7
    %s43 = smul.u32 %s41, 3
    %s44 = smul.addr %s43, 8
    %s45 = scalar_lea.vmem [#allocation2], %s44
    %vm46 = vcmask 261120
    %47 = vst.msk [vmem:[%s45] sm:$0xff] %vm46, %v33
    %48 = vst.msk [vmem:[%s45 + $0x18] sm:$0xff] %vm46, %v34
    %49 = vst.msk [vmem:[%s45 + $0x30] sm:$0xff] %vm46, %v35
    %50 = vst.msk [vmem:[%s45 + $0x48] sm:$0xff] %vm46, %v36
    %51 = vst.msk [vmem:[%s45 + $0x60] sm:$0xff] %vm46, %v37
    %52 = vst.msk [vmem:[%s45 + $0x78] sm:$0xff] %vm46, %v38
    %53 = vst.msk [vmem:[%s45 + $0x90] sm:$0xff] %vm46, %v39
    %54 = vst.msk [vmem:[%s45 + $0xa8] sm:$0xff] %vm46, %v40
    %v55 = vld [vmem:[%s32 + $0x1] sm:$0xff]
    %v56 = vld [vmem:[%s32 + $0x9] sm:$0xff]
    %v57 = vld [vmem:[%s32 + $0x11] sm:$0xff]
    %v58 = vld [vmem:[%s32 + $0x19] sm:$0xff]
    %v59 = vld [vmem:[%s32 + $0x21] sm:$0xff]
    %v60 = vld [vmem:[%s32 + $0x29] sm:$0xff]
    %v61 = vld [vmem:[%s32 + $0x31] sm:$0xff]
    %v62 = vld [vmem:[%s32 + $0x39] sm:$0xff]
    %71 = vrot.lane.b32.xlu0 %v55, 32
    %v72 = vpop.permute.xlu0 %71
    %73 = vrot.lane.b32.xlu0 %v56, 32
    %v74 = vpop.permute.xlu0 %73
    %75 = vrot.lane.b32.xlu0 %v57, 32
    %v76 = vpop.permute.xlu0 %75
    %77 = vrot.lane.b32.xlu0 %v58, 32
    %v78 = vpop.permute.xlu0 %77
    %79 = vrot.lane.b32.xlu0 %v59, 32
    %v80 = vpop.permute.xlu0 %79
    %81 = vrot.lane.b32.xlu0 %v60, 32
    %v82 = vpop.permute.xlu0 %81
    %83 = vrot.lane.b32.xlu0 %v61, 32
    %v84 = vpop.permute.xlu0 %83
    %85 = vrot.lane.b32.xlu0 %v62, 32
    %v86 = vpop.permute.xlu0 %85
    %vm95 = vcmask 523520
    %96 = vst.msk [vmem:[%s45] sm:$0xff] %vm95, %v72
    %97 = vst.msk [vmem:[%s45 + $0x18] sm:$0xff] %vm95, %v74
    %98 = vst.msk [vmem:[%s45 + $0x30] sm:$0xff] %vm95, %v76
    %99 = vst.msk [vmem:[%s45 + $0x48] sm:$0xff] %vm95, %v78
    %100 = vst.msk [vmem:[%s45 + $0x60] sm:$0xff] %vm95, %v80
    %101 = vst.msk [vmem:[%s45 + $0x78] sm:$0xff] %vm95, %v82
    %102 = vst.msk [vmem:[%s45 + $0x90] sm:$0xff] %vm95, %v84
    %103 = vst.msk [vmem:[%s45 + $0xa8] sm:$0xff] %vm95, %v86
    %v104 = vld [vmem:[%s32 + $0x2] sm:$0xff]
    %v105 = vld [vmem:[%s32 + $0xa] sm:$0xff]
    %v106 = vld [vmem:[%s32 + $0x12] sm:$0xff]
    %v107 = vld [vmem:[%s32 + $0x1a] sm:$0xff]
    %v108 = vld [vmem:[%s32 + $0x22] sm:$0xff]
    %v109 = vld [vmem:[%s32 + $0x2a] sm:$0xff]
    %v110 = vld [vmem:[%s32 + $0x32] sm:$0xff]
    %v111 = vld [vmem:[%s32 + $0x3a] sm:$0xff]
    %120 = vrot.lane.b32.xlu0 %v104, 64
    %v121 = vpop.permute.xlu0 %120
    %122 = vrot.lane.b32.xlu0 %v105, 64
    %v123 = vpop.permute.xlu0 %122
    %124 = vrot.lane.b32.xlu0 %v106, 64
    %v125 = vpop.permute.xlu0 %124
    %126 = vrot.lane.b32.xlu0 %v107, 64
    %v127 = vpop.permute.xlu0 %126
    %128 = vrot.lane.b32.xlu0 %v108, 64
    %v129 = vpop.permute.xlu0 %128
    %130 = vrot.lane.b32.xlu0 %v109, 64
    %v131 = vpop.permute.xlu0 %130
    %132 = vrot.lane.b32.xlu0 %v110, 64
    %v133 = vpop.permute.xlu0 %132
    %134 = vrot.lane.b32.xlu0 %v111, 64
    %v135 = vpop.permute.xlu0 %134
    %vm144 = vcmask 785920
    %145 = vst.msk [vmem:[%s45] sm:$0xff] %vm144, %v121
    %146 = vst.msk [vmem:[%s45 + $0x18] sm:$0xff] %vm144, %v123
    %147 = vst.msk [vmem:[%s45 + $0x30] sm:$0xff] %vm144, %v125
    %148 = vst.msk [vmem:[%s45 + $0x48] sm:$0xff] %vm144, %v127
    %149 = vst.msk [vmem:[%s45 + $0x60] sm:$0xff] %vm144, %v129
    %150 = vst.msk [vmem:[%s45 + $0x78] sm:$0xff] %vm144, %v131
    %151 = vst.msk [vmem:[%s45 + $0x90] sm:$0xff] %vm144, %v133
    %152 = vst.msk [vmem:[%s45 + $0xa8] sm:$0xff] %vm144, %v135
    %s153 = sadd.s32 %s25, 1
    %s154 = smul.u32 %s153, 72
    %s155 = scalar_lea.vmem %s0, %s154
    %v156 = vld [vmem:[%s155] sm:$0xff]
    %v157 = vld [vmem:[%s155 + $0x8] sm:$0xff]
    %v158 = vld [vmem:[%s155 + $0x10] sm:$0xff]
    %v159 = vld [vmem:[%s155 + $0x18] sm:$0xff]
    %v160 = vld [vmem:[%s155 + $0x20] sm:$0xff]
    %v161 = vld [vmem:[%s155 + $0x28] sm:$0xff]
    %v162 = vld [vmem:[%s155 + $0x30] sm:$0xff]
    %v163 = vld [vmem:[%s155 + $0x38] sm:$0xff]
    %172 = vrot.lane.b32.xlu0 %v156, 96
    %v173 = vpop.permute.xlu0 %172
    %174 = vrot.lane.b32.xlu0 %v157, 96
    %v175 = vpop.permute.xlu0 %174
    %176 = vrot.lane.b32.xlu0 %v158, 96
    %v177 = vpop.permute.xlu0 %176
    %178 = vrot.lane.b32.xlu0 %v159, 96
    %v179 = vpop.permute.xlu0 %178
    %180 = vrot.lane.b32.xlu0 %v160, 96
    %v181 = vpop.permute.xlu0 %180
    %182 = vrot.lane.b32.xlu0 %v161, 96
    %v183 = vpop.permute.xlu0 %182
    %184 = vrot.lane.b32.xlu0 %v162, 96
    %v185 = vpop.permute.xlu0 %184
    %186 = vrot.lane.b32.xlu0 %v163, 96
    %v187 = vpop.permute.xlu0 %186
    %vm196 = vcmask 1048320
    %197 = vst.msk [vmem:[%s45] sm:$0xff] %vm196, %v173
    %198 = vst.msk [vmem:[%s45 + $0x18] sm:$0xff] %vm196, %v175
    %199 = vst.msk [vmem:[%s45 + $0x30] sm:$0xff] %vm196, %v177
    %200 = vst.msk [vmem:[%s45 + $0x48] sm:$0xff] %vm196, %v179
    %201 = vst.msk [vmem:[%s45 + $0x60] sm:$0xff] %vm196, %v181
    %202 = vst.msk [vmem:[%s45 + $0x78] sm:$0xff] %vm196, %v183
    %203 = vst.msk [vmem:[%s45 + $0x90] sm:$0xff] %vm196, %v185
    %204 = vst.msk [vmem:[%s45 + $0xa8] sm:$0xff] %vm196, %v187
    %v205 = vld [vmem:[%s155 + $0x1] sm:$0xff]
    %v206 = vld [vmem:[%s155 + $0x9] sm:$0xff]
    %v207 = vld [vmem:[%s155 + $0x11] sm:$0xff]
    %v208 = vld [vmem:[%s155 + $0x19] sm:$0xff]
    %v209 = vld [vmem:[%s155 + $0x21] sm:$0xff]
    %v210 = vld [vmem:[%s155 + $0x29] sm:$0xff]
    %v211 = vld [vmem:[%s155 + $0x31] sm:$0xff]
    %v212 = vld [vmem:[%s155 + $0x39] sm:$0xff]
    %213 = vst.msk [vmem:[%s45 + $0x8] sm:$0xff] %vm46, %v205
    %214 = vst.msk [vmem:[%s45 + $0x20] sm:$0xff] %vm46, %v206
    %215 = vst.msk [vmem:[%s45 + $0x38] sm:$0xff] %vm46, %v207
    %216 = vst.msk [vmem:[%s45 + $0x50] sm:$0xff] %vm46, %v208
    %217 = vst.msk [vmem:[%s45 + $0x68] sm:$0xff] %vm46, %v209
    %218 = vst.msk [vmem:[%s45 + $0x80] sm:$0xff] %vm46, %v210
    %219 = vst.msk [vmem:[%s45 + $0x98] sm:$0xff] %vm46, %v211
    %220 = vst.msk [vmem:[%s45 + $0xb0] sm:$0xff] %vm46, %v212
    %v221 = vld [vmem:[%s155 + $0x2] sm:$0xff]
    %v222 = vld [vmem:[%s155 + $0xa] sm:$0xff]
    %v223 = vld [vmem:[%s155 + $0x12] sm:$0xff]
    %v224 = vld [vmem:[%s155 + $0x1a] sm:$0xff]
    %v225 = vld [vmem:[%s155 + $0x22] sm:$0xff]
    %v226 = vld [vmem:[%s155 + $0x2a] sm:$0xff]
    %v227 = vld [vmem:[%s155 + $0x32] sm:$0xff]
    %v228 = vld [vmem:[%s155 + $0x3a] sm:$0xff]
    %237 = vrot.lane.b32.xlu0 %v221, 32
    %v238 = vpop.permute.xlu0 %237
    %239 = vrot.lane.b32.xlu0 %v222, 32
    %v240 = vpop.permute.xlu0 %239
    %241 = vrot.lane.b32.xlu0 %v223, 32
    %v242 = vpop.permute.xlu0 %241
    %243 = vrot.lane.b32.xlu0 %v224, 32
    %v244 = vpop.permute.xlu0 %243
    %245 = vrot.lane.b32.xlu0 %v225, 32
    %v246 = vpop.permute.xlu0 %245
    %247 = vrot.lane.b32.xlu0 %v226, 32
    %v248 = vpop.permute.xlu0 %247
    %249 = vrot.lane.b32.xlu0 %v227, 32
    %v250 = vpop.permute.xlu0 %249
    %251 = vrot.lane.b32.xlu0 %v228, 32
    %v252 = vpop.permute.xlu0 %251
    %261 = vst.msk [vmem:[%s45 + $0x8] sm:$0xff] %vm95, %v238
    %262 = vst.msk [vmem:[%s45 + $0x20] sm:$0xff] %vm95, %v240
    %263 = vst.msk [vmem:[%s45 + $0x38] sm:$0xff] %vm95, %v242
    %264 = vst.msk [vmem:[%s45 + $0x50] sm:$0xff] %vm95, %v244
    %265 = vst.msk [vmem:[%s45 + $0x68] sm:$0xff] %vm95, %v246
    %266 = vst.msk [vmem:[%s45 + $0x80] sm:$0xff] %vm95, %v248
    %267 = vst.msk [vmem:[%s45 + $0x98] sm:$0xff] %vm95, %v250
    %268 = vst.msk [vmem:[%s45 + $0xb0] sm:$0xff] %vm95, %v252
    %s269 = sadd.s32 %s25, 2
    %s270 = smul.u32 %s269, 72
    %s271 = scalar_lea.vmem %s0, %s270
    %v272 = vld [vmem:[%s271] sm:$0xff]
    %v273 = vld [vmem:[%s271 + $0x8] sm:$0xff]
    %v274 = vld [vmem:[%s271 + $0x10] sm:$0xff]
    %v275 = vld [vmem:[%s271 + $0x18] sm:$0xff]
    %v276 = vld [vmem:[%s271 + $0x20] sm:$0xff]
    %v277 = vld [vmem:[%s271 + $0x28] sm:$0xff]
    %v278 = vld [vmem:[%s271 + $0x30] sm:$0xff]
    %v279 = vld [vmem:[%s271 + $0x38] sm:$0xff]
    %288 = vrot.lane.b32.xlu0 %v272, 64
    %v289 = vpop.permute.xlu0 %288
    %290 = vrot.lane.b32.xlu0 %v273, 64
    %v291 = vpop.permute.xlu0 %290
    %292 = vrot.lane.b32.xlu0 %v274, 64
    %v293 = vpop.permute.xlu0 %292
    %294 = vrot.lane.b32.xlu0 %v275, 64
    %v295 = vpop.permute.xlu0 %294
    %296 = vrot.lane.b32.xlu0 %v276, 64
    %v297 = vpop.permute.xlu0 %296
    %298 = vrot.lane.b32.xlu0 %v277, 64
    %v299 = vpop.permute.xlu0 %298
    %300 = vrot.lane.b32.xlu0 %v278, 64
    %v301 = vpop.permute.xlu0 %300
    %302 = vrot.lane.b32.xlu0 %v279, 64
    %v303 = vpop.permute.xlu0 %302
    %312 = vst.msk [vmem:[%s45 + $0x8] sm:$0xff] %vm144, %v289
    %313 = vst.msk [vmem:[%s45 + $0x20] sm:$0xff] %vm144, %v291
    %314 = vst.msk [vmem:[%s45 + $0x38] sm:$0xff] %vm144, %v293
    %315 = vst.msk [vmem:[%s45 + $0x50] sm:$0xff] %vm144, %v295
    %316 = vst.msk [vmem:[%s45 + $0x68] sm:$0xff] %vm144, %v297
    %317 = vst.msk [vmem:[%s45 + $0x80] sm:$0xff] %vm144, %v299
    %318 = vst.msk [vmem:[%s45 + $0x98] sm:$0xff] %vm144, %v301
    %319 = vst.msk [vmem:[%s45 + $0xb0] sm:$0xff] %vm144, %v303
    %v320 = vld [vmem:[%s271 + $0x1] sm:$0xff]
    %v321 = vld [vmem:[%s271 + $0x9] sm:$0xff]
    %v322 = vld [vmem:[%s271 + $0x11] sm:$0xff]
    %v323 = vld [vmem:[%s271 + $0x19] sm:$0xff]
    %v324 = vld [vmem:[%s271 + $0x21] sm:$0xff]
    %v325 = vld [vmem:[%s271 + $0x29] sm:$0xff]
    %v326 = vld [vmem:[%s271 + $0x31] sm:$0xff]
    %v327 = vld [vmem:[%s271 + $0x39] sm:$0xff]
    %336 = vrot.lane.b32.xlu0 %v320, 96
    %v337 = vpop.permute.xlu0 %336
    %338 = vrot.lane.b32.xlu0 %v321, 96
    %v339 = vpop.permute.xlu0 %338
    %340 = vrot.lane.b32.xlu0 %v322, 96
    %v341 = vpop.permute.xlu0 %340
    %342 = vrot.lane.b32.xlu0 %v323, 96
    %v343 = vpop.permute.xlu0 %342
    %344 = vrot.lane.b32.xlu0 %v324, 96
    %v345 = vpop.permute.xlu0 %344
    %346 = vrot.lane.b32.xlu0 %v325, 96
    %v347 = vpop.permute.xlu0 %346
    %348 = vrot.lane.b32.xlu0 %v326, 96
    %v349 = vpop.permute.xlu0 %348
    %350 = vrot.lane.b32.xlu0 %v327, 96
    %v351 = vpop.permute.xlu0 %350
    %360 = vst.msk [vmem:[%s45 + $0x8] sm:$0xff] %vm196, %v337
    %361 = vst.msk [vmem:[%s45 + $0x20] sm:$0xff] %vm196, %v339
    %362 = vst.msk [vmem:[%s45 + $0x38] sm:$0xff] %vm196, %v341
    %363 = vst.msk [vmem:[%s45 + $0x50] sm:$0xff] %vm196, %v343
    %364 = vst.msk [vmem:[%s45 + $0x68] sm:$0xff] %vm196, %v345
    %365 = vst.msk [vmem:[%s45 + $0x80] sm:$0xff] %vm196, %v347
    %366 = vst.msk [vmem:[%s45 + $0x98] sm:$0xff] %vm196, %v349
    %367 = vst.msk [vmem:[%s45 + $0xb0] sm:$0xff] %vm196, %v351
    %v368 = vld [vmem:[%s271 + $0x2] sm:$0xff]
    %v369 = vld [vmem:[%s271 + $0xa] sm:$0xff]
    %v370 = vld [vmem:[%s271 + $0x12] sm:$0xff]
    %v371 = vld [vmem:[%s271 + $0x1a] sm:$0xff]
    %v372 = vld [vmem:[%s271 + $0x22] sm:$0xff]
    %v373 = vld [vmem:[%s271 + $0x2a] sm:$0xff]
    %v374 = vld [vmem:[%s271 + $0x32] sm:$0xff]
    %v375 = vld [vmem:[%s271 + $0x3a] sm:$0xff]
    %376 = vst.msk [vmem:[%s45 + $0x10] sm:$0xff] %vm46, %v368
    %377 = vst.msk [vmem:[%s45 + $0x28] sm:$0xff] %vm46, %v369
    %378 = vst.msk [vmem:[%s45 + $0x40] sm:$0xff] %vm46, %v370
    %379 = vst.msk [vmem:[%s45 + $0x58] sm:$0xff] %vm46, %v371
    %380 = vst.msk [vmem:[%s45 + $0x70] sm:$0xff] %vm46, %v372
    %381 = vst.msk [vmem:[%s45 + $0x88] sm:$0xff] %vm46, %v373
    %382 = vst.msk [vmem:[%s45 + $0xa0] sm:$0xff] %vm46, %v374
    %383 = vst.msk [vmem:[%s45 + $0xb8] sm:$0xff] %vm46, %v375
  $region30: #{depth_generator_forward.9} parent=0 // loop_footer
    %s29 = sadd.s32 1, %s25
  $region31: #{depth_generator_forward.9} parent=0 // loop_footer_branch
    %24 = sbr.rel target = $region27
  $region32: #{depth_generator_forward.9} parent=0 // loop_exit
    _
  loop: start=0, step=1, limit=64
  $region33: #{depth_generator_forward.9} parent=0 // loop_pre_header
    _
  $region34: #{depth_generator_forward.9} parent=0 // loop_header
    %s385 = sphi 0, %s389
    %p386 = scmp.ge.s32.totalorder %s385, 64
  $region35: #{depth_generator_forward.9} parent=0 // loop_header_branch
    %388 = sbr.rel (%p386) target = $region39
  $region36: #{depth_generator_forward.9} parent=0 // loop_body
    %s390 = smul.u32 %s385, 64
    %s391 = sadd.s32 %s390, 4096
    %s392 = sadd.s32 %s385, 66
    %s393 = smul.u32 %s392, 72
    %s394 = scalar_lea.vmem %s0, %s393
    %v395 = vld [vmem:[%s394] sm:$0xff]
    %v396 = vld [vmem:[%s394 + $0x8] sm:$0xff]
    %v397 = vld [vmem:[%s394 + $0x10] sm:$0xff]
    %v398 = vld [vmem:[%s394 + $0x18] sm:$0xff]
    %v399 = vld [vmem:[%s394 + $0x20] sm:$0xff]
    %v400 = vld [vmem:[%s394 + $0x28] sm:$0xff]
    %v401 = vld [vmem:[%s394 + $0x30] sm:$0xff]
    %v402 = vld [vmem:[%s394 + $0x38] sm:$0xff]
    %s403 = sshra.s32 %s391, 3
    %s404 = sand.u32 %s391, 7
    %s405 = smul.u32 %s403, 3
    %s406 = smul.addr %s405, 8
    %s407 = scalar_lea.vmem [#allocation2], %s406
    %vm408 = vcmask 261120
    %409 = vst.msk [vmem:[%s407] sm:$0xff] %vm408, %v395
    %410 = vst.msk [vmem:[%s407 + $0x18] sm:$0xff] %vm408, %v396
    %411 = vst.msk [vmem:[%s407 + $0x30] sm:$0xff] %vm408, %v397
    %412 = vst.msk [vmem:[%s407 + $0x48] sm:$0xff] %vm408, %v398
    %413 = vst.msk [vmem:[%s407 + $0x60] sm:$0xff] %vm408, %v399
    %414 = vst.msk [vmem:[%s407 + $0x78] sm:$0xff] %vm408, %v400
    %415 = vst.msk [vmem:[%s407 + $0x90] sm:$0xff] %vm408, %v401
    %416 = vst.msk [vmem:[%s407 + $0xa8] sm:$0xff] %vm408, %v402
    %v417 = vld [vmem:[%s394 + $0x1] sm:$0xff]
    %v418 = vld [vmem:[%s394 + $0x9] sm:$0xff]
    %v419 = vld [vmem:[%s394 + $0x11] sm:$0xff]
    %v420 = vld [vmem:[%s394 + $0x19] sm:$0xff]
    %v421 = vld [vmem:[%s394 + $0x21] sm:$0xff]
    %v422 = vld [vmem:[%s394 + $0x29] sm:$0xff]
    %v423 = vld [vmem:[%s394 + $0x31] sm:$0xff]
    %v424 = vld [vmem:[%s394 + $0x39] sm:$0xff]
    %433 = vrot.lane.b32.xlu0 %v417, 32
    %v434 = vpop.permute.xlu0 %433
    %435 = vrot.lane.b32.xlu0 %v418, 32
    %v436 = vpop.permute.xlu0 %435
    %437 = vrot.lane.b32.xlu0 %v419, 32
    %v438 = vpop.permute.xlu0 %437
    %439 = vrot.lane.b32.xlu0 %v420, 32
    %v440 = vpop.permute.xlu0 %439
    %441 = vrot.lane.b32.xlu0 %v421, 32
    %v442 = vpop.permute.xlu0 %441
    %443 = vrot.lane.b32.xlu0 %v422, 32
    %v444 = vpop.permute.xlu0 %443
    %445 = vrot.lane.b32.xlu0 %v423, 32
    %v446 = vpop.permute.xlu0 %445
    %447 = vrot.lane.b32.xlu0 %v424, 32
    %v448 = vpop.permute.xlu0 %447
    %vm457 = vcmask 523520
    %458 = vst.msk [vmem:[%s407] sm:$0xff] %vm457, %v434
    %459 = vst.msk [vmem:[%s407 + $0x18] sm:$0xff] %vm457, %v436
    %460 = vst.msk [vmem:[%s407 + $0x30] sm:$0xff] %vm457, %v438
    %461 = vst.msk [vmem:[%s407 + $0x48] sm:$0xff] %vm457, %v440
    %462 = vst.msk [vmem:[%s407 + $0x60] sm:$0xff] %vm457, %v442
    %463 = vst.msk [vmem:[%s407 + $0x78] sm:$0xff] %vm457, %v444
    %464 = vst.msk [vmem:[%s407 + $0x90] sm:$0xff] %vm457, %v446
    %465 = vst.msk [vmem:[%s407 + $0xa8] sm:$0xff] %vm457, %v448
    %v466 = vld [vmem:[%s394 + $0x2] sm:$0xff]
    %v467 = vld [vmem:[%s394 + $0xa] sm:$0xff]
    %v468 = vld [vmem:[%s394 + $0x12] sm:$0xff]
    %v469 = vld [vmem:[%s394 + $0x1a] sm:$0xff]
    %v470 = vld [vmem:[%s394 + $0x22] sm:$0xff]
    %v471 = vld [vmem:[%s394 + $0x2a] sm:$0xff]
    %v472 = vld [vmem:[%s394 + $0x32] sm:$0xff]
    %v473 = vld [vmem:[%s394 + $0x3a] sm:$0xff]
    %482 = vrot.lane.b32.xlu0 %v466, 64
    %v483 = vpop.permute.xlu0 %482
    %484 = vrot.lane.b32.xlu0 %v467, 64
    %v485 = vpop.permute.xlu0 %484
    %486 = vrot.lane.b32.xlu0 %v468, 64
    %v487 = vpop.permute.xlu0 %486
    %488 = vrot.lane.b32.xlu0 %v469, 64
    %v489 = vpop.permute.xlu0 %488
    %490 = vrot.lane.b32.xlu0 %v470, 64
    %v491 = vpop.permute.xlu0 %490
    %492 = vrot.lane.b32.xlu0 %v471, 64
    %v493 = vpop.permute.xlu0 %492
    %494 = vrot.lane.b32.xlu0 %v472, 64
    %v495 = vpop.permute.xlu0 %494
    %496 = vrot.lane.b32.xlu0 %v473, 64
    %v497 = vpop.permute.xlu0 %496
    %vm506 = vcmask 785920
    %507 = vst.msk [vmem:[%s407] sm:$0xff] %vm506, %v483
    %508 = vst.msk [vmem:[%s407 + $0x18] sm:$0xff] %vm506, %v485
    %509 = vst.msk [vmem:[%s407 + $0x30] sm:$0xff] %vm506, %v487
    %510 = vst.msk [vmem:[%s407 + $0x48] sm:$0xff] %vm506, %v489
    %511 = vst.msk [vmem:[%s407 + $0x60] sm:$0xff] %vm506, %v491
    %512 = vst.msk [vmem:[%s407 + $0x78] sm:$0xff] %vm506, %v493
    %513 = vst.msk [vmem:[%s407 + $0x90] sm:$0xff] %vm506, %v495
    %514 = vst.msk [vmem:[%s407 + $0xa8] sm:$0xff] %vm506, %v497
    %s515 = sadd.s32 %s385, 67
    %s516 = smul.u32 %s515, 72
    %s517 = scalar_lea.vmem %s0, %s516
    %v518 = vld [vmem:[%s517] sm:$0xff]
    %v519 = vld [vmem:[%s517 + $0x8] sm:$0xff]
    %v520 = vld [vmem:[%s517 + $0x10] sm:$0xff]
    %v521 = vld [vmem:[%s517 + $0x18] sm:$0xff]
    %v522 = vld [vmem:[%s517 + $0x20] sm:$0xff]
    %v523 = vld [vmem:[%s517 + $0x28] sm:$0xff]
    %v524 = vld [vmem:[%s517 + $0x30] sm:$0xff]
    %v525 = vld [vmem:[%s517 + $0x38] sm:$0xff]
    %534 = vrot.lane.b32.xlu0 %v518, 96
    %v535 = vpop.permute.xlu0 %534
    %536 = vrot.lane.b32.xlu0 %v519, 96
    %v537 = vpop.permute.xlu0 %536
    %538 = vrot.lane.b32.xlu0 %v520, 96
    %v539 = vpop.permute.xlu0 %538
    %540 = vrot.lane.b32.xlu0 %v521, 96
    %v541 = vpop.permute.xlu0 %540
    %542 = vrot.lane.b32.xlu0 %v522, 96
    %v543 = vpop.permute.xlu0 %542
    %544 = vrot.lane.b32.xlu0 %v523, 96
    %v545 = vpop.permute.xlu0 %544
    %546 = vrot.lane.b32.xlu0 %v524, 96
    %v547 = vpop.permute.xlu0 %546
    %548 = vrot.lane.b32.xlu0 %v525, 96
    %v549 = vpop.permute.xlu0 %548
    %vm558 = vcmask 1048320
    %559 = vst.msk [vmem:[%s407] sm:$0xff] %vm558, %v535
    %560 = vst.msk [vmem:[%s407 + $0x18] sm:$0xff] %vm558, %v537
    %561 = vst.msk [vmem:[%s407 + $0x30] sm:$0xff] %vm558, %v539
    %562 = vst.msk [vmem:[%s407 + $0x48] sm:$0xff] %vm558, %v541
    %563 = vst.msk [vmem:[%s407 + $0x60] sm:$0xff] %vm558, %v543
    %564 = vst.msk [vmem:[%s407 + $0x78] sm:$0xff] %vm558, %v545
    %565 = vst.msk [vmem:[%s407 + $0x90] sm:$0xff] %vm558, %v547
    %566 = vst.msk [vmem:[%s407 + $0xa8] sm:$0xff] %vm558, %v549
    %v567 = vld [vmem:[%s517 + $0x1] sm:$0xff]
    %v568 = vld [vmem:[%s517 + $0x9] sm:$0xff]
    %v569 = vld [vmem:[%s517 + $0x11] sm:$0xff]
    %v570 = vld [vmem:[%s517 + $0x19] sm:$0xff]
    %v571 = vld [vmem:[%s517 + $0x21] sm:$0xff]
    %v572 = vld [vmem:[%s517 + $0x29] sm:$0xff]
    %v573 = vld [vmem:[%s517 + $0x31] sm:$0xff]
    %v574 = vld [vmem:[%s517 + $0x39] sm:$0xff]
    %575 = vst.msk [vmem:[%s407 + $0x8] sm:$0xff] %vm408, %v567
    %576 = vst.msk [vmem:[%s407 + $0x20] sm:$0xff] %vm408, %v568
    %577 = vst.msk [vmem:[%s407 + $0x38] sm:$0xff] %vm408, %v569
    %578 = vst.msk [vmem:[%s407 + $0x50] sm:$0xff] %vm408, %v570
    %579 = vst.msk [vmem:[%s407 + $0x68] sm:$0xff] %vm408, %v571
    %580 = vst.msk [vmem:[%s407 + $0x80] sm:$0xff] %vm408, %v572
    %581 = vst.msk [vmem:[%s407 + $0x98] sm:$0xff] %vm408, %v573
    %582 = vst.msk [vmem:[%s407 + $0xb0] sm:$0xff] %vm408, %v574
    %v583 = vld [vmem:[%s517 + $0x2] sm:$0xff]
    %v584 = vld [vmem:[%s517 + $0xa] sm:$0xff]
    %v585 = vld [vmem:[%s517 + $0x12] sm:$0xff]
    %v586 = vld [vmem:[%s517 + $0x1a] sm:$0xff]
    %v587 = vld [vmem:[%s517 + $0x22] sm:$0xff]
    %v588 = vld [vmem:[%s517 + $0x2a] sm:$0xff]
    %v589 = vld [vmem:[%s517 + $0x32] sm:$0xff]
    %v590 = vld [vmem:[%s517 + $0x3a] sm:$0xff]
    %599 = vrot.lane.b32.xlu0 %v583, 32
    %v600 = vpop.permute.xlu0 %599
    %601 = vrot.lane.b32.xlu0 %v584, 32
    %v602 = vpop.permute.xlu0 %601
    %603 = vrot.lane.b32.xlu0 %v585, 32
    %v604 = vpop.permute.xlu0 %603
    %605 = vrot.lane.b32.xlu0 %v586, 32
    %v606 = vpop.permute.xlu0 %605
    %607 = vrot.lane.b32.xlu0 %v587, 32
    %v608 = vpop.permute.xlu0 %607
    %609 = vrot.lane.b32.xlu0 %v588, 32
    %v610 = vpop.permute.xlu0 %609
    %611 = vrot.lane.b32.xlu0 %v589, 32
    %v612 = vpop.permute.xlu0 %611
    %613 = vrot.lane.b32.xlu0 %v590, 32
    %v614 = vpop.permute.xlu0 %613
    %623 = vst.msk [vmem:[%s407 + $0x8] sm:$0xff] %vm457, %v600
    %624 = vst.msk [vmem:[%s407 + $0x20] sm:$0xff] %vm457, %v602
    %625 = vst.msk [vmem:[%s407 + $0x38] sm:$0xff] %vm457, %v604
    %626 = vst.msk [vmem:[%s407 + $0x50] sm:$0xff] %vm457, %v606
    %627 = vst.msk [vmem:[%s407 + $0x68] sm:$0xff] %vm457, %v608
    %628 = vst.msk [vmem:[%s407 + $0x80] sm:$0xff] %vm457, %v610
    %629 = vst.msk [vmem:[%s407 + $0x98] sm:$0xff] %vm457, %v612
    %630 = vst.msk [vmem:[%s407 + $0xb0] sm:$0xff] %vm457, %v614
    %s631 = sadd.s32 %s385, 68
    %s632 = smul.u32 %s631, 72
    %s633 = scalar_lea.vmem %s0, %s632
    %v634 = vld [vmem:[%s633] sm:$0xff]
    %v635 = vld [vmem:[%s633 + $0x8] sm:$0xff]
    %v636 = vld [vmem:[%s633 + $0x10] sm:$0xff]
    %v637 = vld [vmem:[%s633 + $0x18] sm:$0xff]
    %v638 = vld [vmem:[%s633 + $0x20] sm:$0xff]
    %v639 = vld [vmem:[%s633 + $0x28] sm:$0xff]
    %v640 = vld [vmem:[%s633 + $0x30] sm:$0xff]
    %v641 = vld [vmem:[%s633 + $0x38] sm:$0xff]
    %650 = vrot.lane.b32.xlu0 %v634, 64
    %v651 = vpop.permute.xlu0 %650
    %652 = vrot.lane.b32.xlu0 %v635, 64
    %v653 = vpop.permute.xlu0 %652
    %654 = vrot.lane.b32.xlu0 %v636, 64
    %v655 = vpop.permute.xlu0 %654
    %656 = vrot.lane.b32.xlu0 %v637, 64
    %v657 = vpop.permute.xlu0 %656
    %658 = vrot.lane.b32.xlu0 %v638, 64
    %v659 = vpop.permute.xlu0 %658
    %660 = vrot.lane.b32.xlu0 %v639, 64
    %v661 = vpop.permute.xlu0 %660
    %662 = vrot.lane.b32.xlu0 %v640, 64
    %v663 = vpop.permute.xlu0 %662
    %664 = vrot.lane.b32.xlu0 %v641, 64
    %v665 = vpop.permute.xlu0 %664
    %674 = vst.msk [vmem:[%s407 + $0x8] sm:$0xff] %vm506, %v651
    %675 = vst.msk [vmem:[%s407 + $0x20] sm:$0xff] %vm506, %v653
    %676 = vst.msk [vmem:[%s407 + $0x38] sm:$0xff] %vm506, %v655
    %677 = vst.msk [vmem:[%s407 + $0x50] sm:$0xff] %vm506, %v657
    %678 = vst.msk [vmem:[%s407 + $0x68] sm:$0xff] %vm506, %v659
    %679 = vst.msk [vmem:[%s407 + $0x80] sm:$0xff] %vm506, %v661
    %680 = vst.msk [vmem:[%s407 + $0x98] sm:$0xff] %vm506, %v663
    %681 = vst.msk [vmem:[%s407 + $0xb0] sm:$0xff] %vm506, %v665
    %v682 = vld [vmem:[%s633 + $0x1] sm:$0xff]
    %v683 = vld [vmem:[%s633 + $0x9] sm:$0xff]
    %v684 = vld [vmem:[%s633 + $0x11] sm:$0xff]
    %v685 = vld [vmem:[%s633 + $0x19] sm:$0xff]
    %v686 = vld [vmem:[%s633 + $0x21] sm:$0xff]
    %v687 = vld [vmem:[%s633 + $0x29] sm:$0xff]
    %v688 = vld [vmem:[%s633 + $0x31] sm:$0xff]
    %v689 = vld [vmem:[%s633 + $0x39] sm:$0xff]
    %698 = vrot.lane.b32.xlu0 %v682, 96
    %v699 = vpop.permute.xlu0 %698
    %700 = vrot.lane.b32.xlu0 %v683, 96
    %v701 = vpop.permute.xlu0 %700
    %702 = vrot.lane.b32.xlu0 %v684, 96
    %v703 = vpop.permute.xlu0 %702
    %704 = vrot.lane.b32.xlu0 %v685, 96
    %v705 = vpop.permute.xlu0 %704
    %706 = vrot.lane.b32.xlu0 %v686, 96
    %v707 = vpop.permute.xlu0 %706
    %708 = vrot.lane.b32.xlu0 %v687, 96
    %v709 = vpop.permute.xlu0 %708
    %710 = vrot.lane.b32.xlu0 %v688, 96
    %v711 = vpop.permute.xlu0 %710
    %712 = vrot.lane.b32.xlu0 %v689, 96
    %v713 = vpop.permute.xlu0 %712
    %722 = vst.msk [vmem:[%s407 + $0x8] sm:$0xff] %vm558, %v699
    %723 = vst.msk [vmem:[%s407 + $0x20] sm:$0xff] %vm558, %v701
    %724 = vst.msk [vmem:[%s407 + $0x38] sm:$0xff] %vm558, %v703
    %725 = vst.msk [vmem:[%s407 + $0x50] sm:$0xff] %vm558, %v705
    %726 = vst.msk [vmem:[%s407 + $0x68] sm:$0xff] %vm558, %v707
    %727 = vst.msk [vmem:[%s407 + $0x80] sm:$0xff] %vm558, %v709
    %728 = vst.msk [vmem:[%s407 + $0x98] sm:$0xff] %vm558, %v711
    %729 = vst.msk [vmem:[%s407 + $0xb0] sm:$0xff] %vm558, %v713
    %v730 = vld [vmem:[%s633 + $0x2] sm:$0xff]
    %v731 = vld [vmem:[%s633 + $0xa] sm:$0xff]
    %v732 = vld [vmem:[%s633 + $0x12] sm:$0xff]
    %v733 = vld [vmem:[%s633 + $0x1a] sm:$0xff]
    %v734 = vld [vmem:[%s633 + $0x22] sm:$0xff]
    %v735 = vld [vmem:[%s633 + $0x2a] sm:$0xff]
    %v736 = vld [vmem:[%s633 + $0x32] sm:$0xff]
    %v737 = vld [vmem:[%s633 + $0x3a] sm:$0xff]
    %738 = vst.msk [vmem:[%s407 + $0x10] sm:$0xff] %vm408, %v730
    %739 = vst.msk [vmem:[%s407 + $0x28] sm:$0xff] %vm408, %v731
    %740 = vst.msk [vmem:[%s407 + $0x40] sm:$0xff] %vm408, %v732
    %741 = vst.msk [vmem:[%s407 + $0x58] sm:$0xff] %vm408, %v733
    %742 = vst.msk [vmem:[%s407 + $0x70] sm:$0xff] %vm408, %v734
    %743 = vst.msk [vmem:[%s407 + $0x88] sm:$0xff] %vm408, %v735
    %744 = vst.msk [vmem:[%s407 + $0xa0] sm:$0xff] %vm408, %v736
    %745 = vst.msk [vmem:[%s407 + $0xb8] sm:$0xff] %vm408, %v737
  $region37: #{depth_generator_forward.9} parent=0 // loop_footer
    %s389 = sadd.s32 1, %s385
  $region38: #{depth_generator_forward.9} parent=0 // loop_footer_branch
    %384 = sbr.rel target = $region34
  $region39: #{depth_generator_forward.9} parent=0 // loop_exit
    _
  %v746 = vld [vmem:[%s1] sm:$0xf]
  %v747 = vld [vmem:[%s1 + $0x4] sm:$0xf]
  %v748 = vld [vmem:[%s1 + $0x8] sm:$0xf]
  %v749 = vld [vmem:[%s1 + $0xc] sm:$0xf]
  %v750 = vld [vmem:[%s1 + $0x10] sm:$0xf]
  %v751 = vld [vmem:[%s1 + $0x14] sm:$0xf]
  %v752 = vld [vmem:[%s1 + $0x18] sm:$0xf]
  %v753 = vld [vmem:[%s1 + $0x1c] sm:$0xf]
  %v754 = vld [vmem:[%s1 + $0x20] sm:$0xf]
  %v755 = vld [vmem:[%s1 + $0x24] sm:$0xf]
  %v756 = vld [vmem:[%s1 + $0x28] sm:$0xf]
  %v757 = vld [vmem:[%s1 + $0x2c] sm:$0xf]
  %v758 = vld [vmem:[%s1 + $0x30] sm:$0xf]
  %v759 = vld [vmem:[%s1 + $0x34] sm:$0xf]
  %v760 = vld [vmem:[%s1 + $0x38] sm:$0xf]
  %v761 = vld [vmem:[%s1 + $0x3c] sm:$0xf]
  %v762 = vld [vmem:[%s1 + $0x40] sm:$0xf]
  %v763 = vld [vmem:[%s1 + $0x44] sm:$0xf]
  %v764 = vld [vmem:[%s1 + $0x48] sm:$0xf]
  %v765 = vld [vmem:[%s1 + $0x4c] sm:$0xf]
  %v766 = vld [vmem:[%s1 + $0x50] sm:$0xf]
  %v767 = vld [vmem:[%s1 + $0x54] sm:$0xf]
  %v768 = vld [vmem:[%s1 + $0x58] sm:$0xf]
  %v769 = vld [vmem:[%s1 + $0x5c] sm:$0xf]
  %v770 = vld [vmem:[%s1 + $0x60] sm:$0xf]
  %v771 = vld [vmem:[%s1 + $0x64] sm:$0xf]
  %v772 = vld [vmem:[%s1 + $0x68] sm:$0xf]
  %v773 = vld [vmem:[%s1 + $0x6c] sm:$0xf]
  %v774 = vld [vmem:[%s1 + $0x70] sm:$0xf]
  %v775 = vld [vmem:[%s1 + $0x74] sm:$0xf]
  %v776 = vld [vmem:[%s1 + $0x78] sm:$0xf]
  %v777 = vld [vmem:[%s1 + $0x7c] sm:$0xf]
  %v778 = vld [vmem:[%s1 + $0x80] sm:$0xf]
  %v779 = vld [vmem:[%s1 + $0x84] sm:$0xf]
  %v780 = vld [vmem:[%s1 + $0x88] sm:$0xf]
  %v781 = vld [vmem:[%s1 + $0x8c] sm:$0xf]
  %v782 = vld [vmem:[%s2] sm:$0x1]
  loop: start=0, step=1, limit=64
  $region40: #{depth_generator_forward.9} parent=0 // loop_pre_header
    _
  $region41: #{depth_generator_forward.9} parent=0 // loop_header
    %s784 = sphi 0, %s788
    %p785 = scmp.ge.s32.totalorder %s784, 64
    %v789 = vphi 0.0, %v1240
    %v790 = vphi 0.0, %v1278
  $region42: #{depth_generator_forward.9} parent=0 // loop_header_branch
    %787 = sbr.rel (%p785) target = $region46
  $region43: #{depth_generator_forward.9} parent=0 // loop_body
    %s791 = smul.u32 %s784, 128
    %s792 = sshra.s32 %s791, 3
    %s793 = sand.u32 %s791, 7
    %s794 = smul.u32 %s792, 3
    %s795 = smul.addr %s794, 8
    %s796 = scalar_lea.vmem [#allocation2], %s795
    %v797 = vld [vmem:[%s796] sm:$0xff]
    %v798 = vld [vmem:[%s796 + $0x8] sm:$0xff]
    %v799 = vld [vmem:[%s796 + $0x10] sm:$0xff]
    %v800 = vld [vmem:[%s796 + $0x18] sm:$0xff]
    %v801 = vld [vmem:[%s796 + $0x20] sm:$0xff]
    %v802 = vld [vmem:[%s796 + $0x28] sm:$0xff]
    %v803 = vld [vmem:[%s796 + $0x30] sm:$0xff]
    %v804 = vld [vmem:[%s796 + $0x38] sm:$0xff]
    %v805 = vld [vmem:[%s796 + $0x40] sm:$0xff]
    %v806 = vld [vmem:[%s796 + $0x48] sm:$0xff]
    %v807 = vld [vmem:[%s796 + $0x50] sm:$0xff]
    %v808 = vld [vmem:[%s796 + $0x58] sm:$0xff]
    %v809 = vld [vmem:[%s796 + $0x60] sm:$0xff]
    %v810 = vld [vmem:[%s796 + $0x68] sm:$0xff]
    %v811 = vld [vmem:[%s796 + $0x70] sm:$0xff]
    %v812 = vld [vmem:[%s796 + $0x78] sm:$0xff]
    %v813 = vld [vmem:[%s796 + $0x80] sm:$0xff]
    %v814 = vld [vmem:[%s796 + $0x88] sm:$0xff]
    %v815 = vld [vmem:[%s796 + $0x90] sm:$0xff]
    %v816 = vld [vmem:[%s796 + $0x98] sm:$0xff]
    %v817 = vld [vmem:[%s796 + $0xa0] sm:$0xff]
    %v818 = vld [vmem:[%s796 + $0xa8] sm:$0xff]
    %v819 = vld [vmem:[%s796 + $0xb0] sm:$0xff]
    %v820 = vld [vmem:[%s796 + $0xb8] sm:$0xff]
    %v821 = vld [vmem:[%s796 + $0xc0] sm:$0xff]
    %v822 = vld [vmem:[%s796 + $0xc8] sm:$0xff]
    %v823 = vld [vmem:[%s796 + $0xd0] sm:$0xff]
    %v824 = vld [vmem:[%s796 + $0xd8] sm:$0xff]
    %v825 = vld [vmem:[%s796 + $0xe0] sm:$0xff]
    %v826 = vld [vmem:[%s796 + $0xe8] sm:$0xff]
    %v827 = vld [vmem:[%s796 + $0xf0] sm:$0xff]
    %v828 = vld [vmem:[%s796 + $0xf8] sm:$0xff]
    %v829 = vld [vmem:[%s796 + $0x100] sm:$0xff]
    %v830 = vld [vmem:[%s796 + $0x108] sm:$0xff]
    %v831 = vld [vmem:[%s796 + $0x110] sm:$0xff]
    %v832 = vld [vmem:[%s796 + $0x118] sm:$0xff]
    %v833 = vld [vmem:[%s796 + $0x120] sm:$0xff]
    %v834 = vld [vmem:[%s796 + $0x128] sm:$0xff]
    %v835 = vld [vmem:[%s796 + $0x130] sm:$0xff]
    %v836 = vld [vmem:[%s796 + $0x138] sm:$0xff]
    %v837 = vld [vmem:[%s796 + $0x140] sm:$0xff]
    %v838 = vld [vmem:[%s796 + $0x148] sm:$0xff]
    %v839 = vld [vmem:[%s796 + $0x150] sm:$0xff]
    %v840 = vld [vmem:[%s796 + $0x158] sm:$0xff]
    %v841 = vld [vmem:[%s796 + $0x160] sm:$0xff]
    %v842 = vld [vmem:[%s796 + $0x168] sm:$0xff]
    %v843 = vld [vmem:[%s796 + $0x170] sm:$0xff]
    %v844 = vld [vmem:[%s796 + $0x178] sm:$0xff]
    %v845 = vpack.c.bf16 %v800, %v797
    %v846 = vpack.c.bf16 %v801, %v798
    %v847 = vpack.c.bf16 %v802, %v799
    %v848 = vpack.c.bf16 %v806, %v803
    %v849 = vpack.c.bf16 %v807, %v804
    %v850 = vpack.c.bf16 %v808, %v805
    %v851 = vpack.c.bf16 %v812, %v809
    %v852 = vpack.c.bf16 %v813, %v810
    %v853 = vpack.c.bf16 %v814, %v811
    %v854 = vpack.c.bf16 %v818, %v815
    %v855 = vpack.c.bf16 %v819, %v816
    %v856 = vpack.c.bf16 %v820, %v817
    %v857 = vpack.c.bf16 %v824, %v821
    %v858 = vpack.c.bf16 %v825, %v822
    %v859 = vpack.c.bf16 %v826, %v823
    %v860 = vpack.c.bf16 %v830, %v827
    %v861 = vpack.c.bf16 %v831, %v828
    %v862 = vpack.c.bf16 %v832, %v829
    %v863 = vpack.c.bf16 %v836, %v833
    %v864 = vpack.c.bf16 %v837, %v834
    %v865 = vpack.c.bf16 %v838, %v835
    %v866 = vpack.c.bf16 %v842, %v839
    %v867 = vpack.c.bf16 %v843, %v840
    %v868 = vpack.c.bf16 %v844, %v841
    %v870 = vlaneseq
    %v871 = vshrl.u32 %v870, 7
    %v872 = vsub.s32 0, %v871
    %v873 = vrot.slane %v782, %v872
    %v911 = vunpack.c.l.b16 %v746
    %v912 = vunpack.c.l.b16 %v747
    %v913 = vunpack.c.l.b16 %v748
    %v914 = vunpack.c.l.b16 %v749
    %v915 = vunpack.c.l.b16 %v750
    %v916 = vunpack.c.l.b16 %v751
    %v917 = vunpack.c.l.b16 %v752
    %v918 = vunpack.c.l.b16 %v753
    %v919 = vunpack.c.l.b16 %v754
    %v920 = vunpack.c.l.b16 %v755
    %v921 = vunpack.c.l.b16 %v756
    %v922 = vunpack.c.l.b16 %v757
    %v923 = vunpack.c.l.b16 %v758
    %v924 = vunpack.c.l.b16 %v759
    %v925 = vunpack.c.l.b16 %v760
    %v926 = vunpack.c.l.b16 %v761
    %v927 = vunpack.c.l.b16 %v762
    %v928 = vunpack.c.l.b16 %v763
    %v929 = vunpack.c.l.b16 %v764
    %v930 = vunpack.c.l.b16 %v765
    %v931 = vunpack.c.l.b16 %v766
    %v932 = vunpack.c.l.b16 %v767
    %v933 = vunpack.c.l.b16 %v768
    %v934 = vunpack.c.l.b16 %v769
    %v935 = vunpack.c.l.b16 %v770
    %v936 = vunpack.c.l.b16 %v771
    %v937 = vunpack.c.l.b16 %v772
    %v938 = vunpack.c.l.b16 %v773
    %v939 = vunpack.c.l.b16 %v774
    %v940 = vunpack.c.l.b16 %v775
    %v941 = vunpack.c.l.b16 %v776
    %v942 = vunpack.c.l.b16 %v777
    %v943 = vunpack.c.l.b16 %v778
    %v944 = vunpack.c.l.b16 %v779
    %v945 = vunpack.c.l.b16 %v780
    %v946 = vunpack.c.l.b16 %v781
    %v947 = vpack.c.b16 %v912, %v911
    %v948 = vpack.c.b16 %v914, %v913
    %v949 = vpack.c.b16 %v916, %v915
    %v950 = vpack.c.b16 %v918, %v917
    %v951 = vpack.c.b16 %v920, %v919
    %v952 = vpack.c.b16 %v922, %v921
    %v953 = vpack.c.b16 %v924, %v923
    %v954 = vpack.c.b16 %v926, %v925
    %v955 = vpack.c.b16 %v928, %v927
    %v956 = vpack.c.b16 %v930, %v929
    %v957 = vpack.c.b16 %v932, %v931
    %v958 = vpack.c.b16 %v934, %v933
    %v959 = vpack.c.b16 %v936, %v935
    %v960 = vpack.c.b16 %v938, %v937
    %v961 = vpack.c.b16 %v940, %v939
    %v962 = vpack.c.b16 %v942, %v941
    %v963 = vpack.c.b16 %v944, %v943
    %v964 = vpack.c.b16 %v946, %v945
    %vm983 = vcmask 261120
    %v985 = vsel %vm983, %v847, 0
    %v988 = vsel %vm983, %v850, 0
    %v991 = vsel %vm983, %v853, 0
    %v994 = vsel %vm983, %v856, 0
    %v997 = vsel %vm983, %v859, 0
    %v1000 = vsel %vm983, %v862, 0
    %v1003 = vsel %vm983, %v865, 0
    %v1006 = vsel %vm983, %v868, 0
    %1008 = vmatprep.subr.bf16.mxu0 0
    %1009 = vmatpush1.bf16.msra.mxu0 %v947
    %1010 = vmatprep.subr.bf16.mxu0 0
    %1011 = vmatpush1.bf16.msra.mxu0 %v948
    %1012 = vmatprep.subr.bf16.mxu0 0
    %1013 = vmatpush1.bf16.msra.mxu0 %v949
    %1014 = vmatprep.subr.bf16.mxu0 0
    %1015 = vmatpush1.bf16.msra.mxu0 %v950
    %1016 = vmatprep.subr.bf16.mxu0 0
    %1017 = vmatpush1.bf16.msra.mxu0 %v951
    %1018 = vmatprep.subr.bf16.mxu0 0
    %1019 = vmatpush1.bf16.msra.mxu0 %v952
    %1020 = vmatprep.subr.bf16.mxu0 0
    %1021 = vmatpush1.bf16.msra.mxu0 %v953
    %1022 = vmatprep.subr.bf16.mxu0 0
    %1023 = vmatpush1.bf16.msra.mxu0 %v954
    %1024 = vmatprep.subr.bf16.mxu0 0
    %1025 = vmatpush1.bf16.msra.mxu0 %v955
    %1026 = vmatprep.subr.bf16.mxu0 0
    %1027 = vmatpush1.bf16.msra.mxu0 %v956
    %1028 = vmatprep.subr.bf16.mxu0 0
    %1029 = vmatpush1.bf16.msra.mxu0 %v957
    %1030 = vmatprep.subr.bf16.mxu0 0
    %1031 = vmatpush1.bf16.msra.mxu0 %v958
    %1032 = vmatprep.subr.bf16.mxu0 0
    %1033 = vmatpush1.bf16.msra.mxu0 %v959
    %1034 = vmatprep.subr.bf16.mxu0 0
    %1035 = vmatpush1.bf16.msra.mxu0 %v960
    %1036 = vmatprep.subr.bf16.mxu0 0
    %1037 = vmatpush1.bf16.msra.mxu0 %v961
    %1038 = vmatprep.subr.bf16.mxu0 0
    %1039 = vmatpush1.bf16.msra.mxu0 %v962
    %1040 = vmatprep.mubr.bf16.mxu0 %v846
    %1041 = vmatmul.mubr.bf16.gmra.mrb[0].mxu0 %v845
    %v1042 = vpop.f32.mrb[0].mxu0
    %v1043 = vadd.f32 %v873, %v1042
    %v1044 = vpop.f32.mrb[0].mxu0
    %v1045 = vpop.f32.mrb[0].mxu0
    %v1046 = vadd.f32 %v873, %v1045
    %v1047 = vpop.f32.mrb[0].mxu0
    %1048 = vmatprep.mubr.bf16.mxu0 %v849
    %1049 = vmatmul.mubr.bf16.gmra.mrb[0].mxu0 %v848
    %v1050 = vpop.f32.mrb[0].mxu0
    %v1051 = vadd.f32 %v873, %v1050
    %v1052 = vpop.f32.mrb[0].mxu0
    %v1053 = vpop.f32.mrb[0].mxu0
    %v1054 = vadd.f32 %v873, %v1053
    %v1055 = vpop.f32.mrb[0].mxu0
    %1056 = vmatprep.mubr.bf16.mxu0 %v852
    %1057 = vmatmul.mubr.bf16.gmra.mrb[0].mxu0 %v851
    %v1058 = vpop.f32.mrb[0].mxu0
    %v1059 = vadd.f32 %v873, %v1058
    %v1060 = vpop.f32.mrb[0].mxu0
    %v1061 = vpop.f32.mrb[0].mxu0
    %v1062 = vadd.f32 %v873, %v1061
    %v1063 = vpop.f32.mrb[0].mxu0
    %1064 = vmatprep.mubr.bf16.mxu0 %v855
    %1065 = vmatmul.mubr.bf16.gmra.mrb[0].mxu0 %v854
    %v1066 = vpop.f32.mrb[0].mxu0
    %v1067 = vadd.f32 %v873, %v1066
    %v1068 = vpop.f32.mrb[0].mxu0
    %v1069 = vpop.f32.mrb[0].mxu0
    %v1070 = vadd.f32 %v873, %v1069
    %v1071 = vpop.f32.mrb[0].mxu0
    %1072 = vmatprep.mubr.bf16.mxu0 %v858
    %1073 = vmatmul.mubr.bf16.gmra.mrb[0].mxu0 %v857
    %v1074 = vpop.f32.mrb[0].mxu0
    %v1075 = vadd.f32 %v873, %v1074
    %v1076 = vpop.f32.mrb[0].mxu0
    %v1077 = vpop.f32.mrb[0].mxu0
    %v1078 = vadd.f32 %v873, %v1077
    %v1079 = vpop.f32.mrb[0].mxu0
    %1080 = vmatprep.mubr.bf16.mxu0 %v861
    %1081 = vmatmul.mubr.bf16.gmra.mrb[0].mxu0 %v860
    %v1082 = vpop.f32.mrb[0].mxu0
    %v1083 = vadd.f32 %v873, %v1082
    %v1084 = vpop.f32.mrb[0].mxu0
    %v1085 = vpop.f32.mrb[0].mxu0
    %v1086 = vadd.f32 %v873, %v1085
    %v1087 = vpop.f32.mrb[0].mxu0
    %1088 = vmatprep.mubr.bf16.mxu0 %v864
    %1089 = vmatmul.mubr.bf16.gmra.mrb[0].mxu0 %v863
    %v1090 = vpop.f32.mrb[0].mxu0
    %v1091 = vadd.f32 %v873, %v1090
    %v1092 = vpop.f32.mrb[0].mxu0
    %v1093 = vpop.f32.mrb[0].mxu0
    %v1094 = vadd.f32 %v873, %v1093
    %v1095 = vpop.f32.mrb[0].mxu0
    %1096 = vmatprep.mubr.bf16.mxu0 %v867
    %1097 = vmatmul.mubr.bf16.gmra.mrb[0].mxu0 %v866
    %v1098 = vpop.f32.mrb[0].mxu0
    %v1099 = vadd.f32 %v873, %v1098
    %v1100 = vpop.f32.mrb[0].mxu0
    %v1101 = vpop.f32.mrb[0].mxu0
    %v1102 = vadd.f32 %v873, %v1101
    %v1103 = vpop.f32.mrb[0].mxu0
    %1104 = vdwg.mxu0
    %1105 = vmatprep.subr.bf16.mxu0 0
    %1106 = vmatpush1.bf16.msra.mxu0 %v963
    %1107 = vmatprep.subr.bf16.mxu0 0
    %1108 = vmatpush1.bf16.msra.mxu0 %v964
    %1109 = vmatprep.subr.bf16.mxu0 0
    %1110 = vmatpush1.bf16.msra.mxu0 0
    %1111 = vmatprep.subr.bf16.mxu0 0
    %1112 = vmatpush1.bf16.msra.mxu0 0
    %1113 = vmatprep.subr.bf16.mxu0 0
    %1114 = vmatpush1.bf16.msra.mxu0 0
    %1115 = vmatprep.subr.bf16.mxu0 0
    %1116 = vmatpush1.bf16.msra.mxu0 0
    %1117 = vmatprep.subr.bf16.mxu0 0
    %1118 = vmatpush1.bf16.msra.mxu0 0
    %1119 = vmatprep.subr.bf16.mxu0 0
    %1120 = vmatpush1.bf16.msra.mxu0 0
    %1121 = vmatprep.subr.bf16.mxu0 0
    %1122 = vmatpush1.bf16.msra.mxu0 0
    %1123 = vmatprep.subr.bf16.mxu0 0
    %1124 = vmatpush1.bf16.msra.mxu0 0
    %1125 = vmatprep.subr.bf16.mxu0 0
    %1126 = vmatpush1.bf16.msra.mxu0 0
    %1127 = vmatprep.subr.bf16.mxu0 0
    %1128 = vmatpush1.bf16.msra.mxu0 0
    %1129 = vmatprep.subr.bf16.mxu0 0
    %1130 = vmatpush1.bf16.msra.mxu0 0
    %1131 = vmatprep.subr.bf16.mxu0 0
    %1132 = vmatpush1.bf16.msra.mxu0 0
    %1133 = vmatprep.subr.bf16.mxu0 0
    %1134 = vmatpush1.bf16.msra.mxu0 0
    %1135 = vmatprep.subr.bf16.mxu0 0
    %1136 = vmatpush1.bf16.msra.mxu0 0
    %1137 = vmatprep.mubr.bf16.mxu0 0
    %1138 = vmatmul.mubr.bf16.gmra.mrb[0].mxu0 %v985
    %v1139 = vpop.f32.mrb[0].mxu0
    %v1140 = vadd.f32 %v1043, %v1139
    %v1141 = vpop.f32.mrb[0].mxu0
    %v1142 = vpop.f32.mrb[0].mxu0
    %v1143 = vadd.f32 %v1046, %v1142
    %v1144 = vpop.f32.mrb[0].mxu0
    %1145 = vmatprep.mubr.bf16.mxu0 0
    %1146 = vmatmul.mubr.bf16.gmra.mrb[0].mxu0 %v988
    %v1147 = vpop.f32.mrb[0].mxu0
    %v1148 = vadd.f32 %v1051, %v1147
    %v1149 = vpop.f32.mrb[0].mxu0
    %v1150 = vpop.f32.mrb[0].mxu0
    %v1151 = vadd.f32 %v1054, %v1150
    %v1152 = vpop.f32.mrb[0].mxu0
    %1153 = vmatprep.mubr.bf16.mxu0 0
    %1154 = vmatmul.mubr.bf16.gmra.mrb[0].mxu0 %v991
    %v1155 = vpop.f32.mrb[0].mxu0
    %v1156 = vadd.f32 %v1059, %v1155
    %v1157 = vpop.f32.mrb[0].mxu0
    %v1158 = vpop.f32.mrb[0].mxu0
    %v1159 = vadd.f32 %v1062, %v1158
    %v1160 = vpop.f32.mrb[0].mxu0
    %1161 = vmatprep.mubr.bf16.mxu0 0
    %1162 = vmatmul.mubr.bf16.gmra.mrb[0].mxu0 %v994
    %v1163 = vpop.f32.mrb[0].mxu0
    %v1164 = vadd.f32 %v1067, %v1163
    %v1165 = vpop.f32.mrb[0].mxu0
    %v1166 = vpop.f32.mrb[0].mxu0
    %v1167 = vadd.f32 %v1070, %v1166
    %v1168 = vpop.f32.mrb[0].mxu0
    %1169 = vmatprep.mubr.bf16.mxu0 0
    %1170 = vmatmul.mubr.bf16.gmra.mrb[0].mxu0 %v997
    %v1171 = vpop.f32.mrb[0].mxu0
    %v1172 = vadd.f32 %v1075, %v1171
    %v1173 = vpop.f32.mrb[0].mxu0
    %v1174 = vpop.f32.mrb[0].mxu0
    %v1175 = vadd.f32 %v1078, %v1174
    %v1176 = vpop.f32.mrb[0].mxu0
    %1177 = vmatprep.mubr.bf16.mxu0 0
    %1178 = vmatmul.mubr.bf16.gmra.mrb[0].mxu0 %v1000
    %v1179 = vpop.f32.mrb[0].mxu0
    %v1180 = vadd.f32 %v1083, %v1179
    %v1181 = vpop.f32.mrb[0].mxu0
    %v1182 = vpop.f32.mrb[0].mxu0
    %v1183 = vadd.f32 %v1086, %v1182
    %v1184 = vpop.f32.mrb[0].mxu0
    %1185 = vmatprep.mubr.bf16.mxu0 0
    %1186 = vmatmul.mubr.bf16.gmra.mrb[0].mxu0 %v1003
    %v1187 = vpop.f32.mrb[0].mxu0
    %v1188 = vadd.f32 %v1091, %v1187
    %v1189 = vpop.f32.mrb[0].mxu0
    %v1190 = vpop.f32.mrb[0].mxu0
    %v1191 = vadd.f32 %v1094, %v1190
    %v1192 = vpop.f32.mrb[0].mxu0
    %1193 = vmatprep.mubr.bf16.mxu0 0
    %1194 = vmatmul.mubr.bf16.gmra.mrb[0].mxu0 %v1006
    %v1195 = vpop.f32.mrb[0].mxu0
    %v1196 = vadd.f32 %v1099, %v1195
    %v1197 = vpop.f32.mrb[0].mxu0
    %v1198 = vpop.f32.mrb[0].mxu0
    %v1199 = vadd.f32 %v1102, %v1198
    %v1200 = vpop.f32.mrb[0].mxu0
    %1201 = vdwg.mxu0
    %s1202 = scalar_lea.vmem [#allocation3], %s791
    %1203 = vst [vmem:[%s1202] sm:$0xff] %v1140
    %1204 = vst [vmem:[%s1202 + $0x8] sm:$0xff] %v1143
    %1205 = vst [vmem:[%s1202 + $0x10] sm:$0xff] %v1148
    %1206 = vst [vmem:[%s1202 + $0x18] sm:$0xff] %v1151
    %1207 = vst [vmem:[%s1202 + $0x20] sm:$0xff] %v1156
    %1208 = vst [vmem:[%s1202 + $0x28] sm:$0xff] %v1159
    %1209 = vst [vmem:[%s1202 + $0x30] sm:$0xff] %v1164
    %1210 = vst [vmem:[%s1202 + $0x38] sm:$0xff] %v1167
    %1211 = vst [vmem:[%s1202 + $0x40] sm:$0xff] %v1172
    %1212 = vst [vmem:[%s1202 + $0x48] sm:$0xff] %v1175
    %1213 = vst [vmem:[%s1202 + $0x50] sm:$0xff] %v1180
    %1214 = vst [vmem:[%s1202 + $0x58] sm:$0xff] %v1183
    %1215 = vst [vmem:[%s1202 + $0x60] sm:$0xff] %v1188
    %1216 = vst [vmem:[%s1202 + $0x68] sm:$0xff] %v1191
    %1217 = vst [vmem:[%s1202 + $0x70] sm:$0xff] %v1196
    %1218 = vst [vmem:[%s1202 + $0x78] sm:$0xff] %v1199
    %v1219 = vadd.f32 %v1140, %v1143
    %v1220 = vadd.f32 %v1219, %v1148
    %v1221 = vadd.f32 %v1220, %v1151
    %v1222 = vadd.f32 %v1221, %v1156
    %v1223 = vadd.f32 %v1222, %v1159
    %v1224 = vadd.f32 %v1223, %v1164
    %v1225 = vadd.f32 %v1224, %v1167
    %v1226 = vadd.f32 %v1225, %v1172
    %v1227 = vadd.f32 %v1226, %v1175
    %v1228 = vadd.f32 %v1227, %v1180
    %v1229 = vadd.f32 %v1228, %v1183
    %v1230 = vadd.f32 %v1229, %v1188
    %v1231 = vadd.f32 %v1230, %v1191
    %v1232 = vadd.f32 %v1231, %v1196
    %v1233 = vadd.f32 %v1232, %v1199
    %v1234 = vrot.slane %v1233, 4
    %v1235 = vadd.f32 %v1233, %v1234
    %v1236 = vrot.slane %v1235, 2
    %v1237 = vadd.f32 %v1235, %v1236
    %v1238 = vrot.slane %v1237, 1
    %v1239 = vadd.f32 %v1237, %v1238
    %v1240 = vadd.f32 %v789, %v1239
    %v1241 = vmul.f32 %v1140, %v1140
    %v1242 = vmul.f32 %v1143, %v1143
    %v1243 = vmul.f32 %v1148, %v1148
    %v1244 = vmul.f32 %v1151, %v1151
    %v1245 = vmul.f32 %v1156, %v1156
    %v1246 = vmul.f32 %v1159, %v1159
    %v1247 = vmul.f32 %v1164, %v1164
    %v1248 = vmul.f32 %v1167, %v1167
    %v1249 = vmul.f32 %v1172, %v1172
    %v1250 = vmul.f32 %v1175, %v1175
    %v1251 = vmul.f32 %v1180, %v1180
    %v1252 = vmul.f32 %v1183, %v1183
    %v1253 = vmul.f32 %v1188, %v1188
    %v1254 = vmul.f32 %v1191, %v1191
    %v1255 = vmul.f32 %v1196, %v1196
    %v1256 = vmul.f32 %v1199, %v1199
    %v1257 = vadd.f32 %v1241, %v1242
    %v1258 = vadd.f32 %v1257, %v1243
    %v1259 = vadd.f32 %v1258, %v1244
    %v1260 = vadd.f32 %v1259, %v1245
    %v1261 = vadd.f32 %v1260, %v1246
    %v1262 = vadd.f32 %v1261, %v1247
    %v1263 = vadd.f32 %v1262, %v1248
    %v1264 = vadd.f32 %v1263, %v1249
    %v1265 = vadd.f32 %v1264, %v1250
    %v1266 = vadd.f32 %v1265, %v1251
    %v1267 = vadd.f32 %v1266, %v1252
    %v1268 = vadd.f32 %v1267, %v1253
    %v1269 = vadd.f32 %v1268, %v1254
    %v1270 = vadd.f32 %v1269, %v1255
    %v1271 = vadd.f32 %v1270, %v1256
    %v1272 = vrot.slane %v1271, 4
    %v1273 = vadd.f32 %v1271, %v1272
    %v1274 = vrot.slane %v1273, 2
    %v1275 = vadd.f32 %v1273, %v1274
    %v1276 = vrot.slane %v1275, 1
    %v1277 = vadd.f32 %v1275, %v1276
    %v1278 = vadd.f32 %v790, %v1277
  $region44: #{depth_generator_forward.9} parent=0 // loop_footer
    %s788 = sadd.s32 1, %s784
  $region45: #{depth_generator_forward.9} parent=0 // loop_footer_branch
    %783 = sbr.rel target = $region41
  $region46: #{depth_generator_forward.9} parent=0 // loop_exit
    _
  %v1279 = vld [vmem:[%s5] sm:$0xff]
  %v1280 = vld [vmem:[%s5 + $0x8] sm:$0xff]
  %v1281 = vld [vmem:[%s5 + $0x10] sm:$0xff]
  %v1282 = vld [vmem:[%s5 + $0x18] sm:$0xff]
  %v1283 = vld [vmem:[%s5 + $0x20] sm:$0xff]
  %v1284 = vld [vmem:[%s5 + $0x28] sm:$0xff]
  %v1285 = vld [vmem:[%s5 + $0x30] sm:$0xff]
  %v1286 = vld [vmem:[%s5 + $0x38] sm:$0xff]
  %v1287 = vld [vmem:[%s5 + $0x40] sm:$0xff]
  %v1288 = vld [vmem:[%s5 + $0x48] sm:$0xff]
  %v1289 = vld [vmem:[%s5 + $0x50] sm:$0xff]
  %v1290 = vld [vmem:[%s5 + $0x58] sm:$0xff]
  %v1291 = vld [vmem:[%s5 + $0x60] sm:$0xff]
  %v1292 = vld [vmem:[%s5 + $0x68] sm:$0xff]
  %v1293 = vld [vmem:[%s5 + $0x70] sm:$0xff]
  %v1294 = vld [vmem:[%s5 + $0x78] sm:$0xff]
  %1295 = vmatprep.subr.mxu0 0.0
  %1296 = vmatpush1.msra.mxu0 %v1279
  %1297 = vmatprep.subr.mxu0 0.0
  %1298 = vmatpush1.msra.mxu0 %v1280
  %1299 = vmatprep.subr.mxu0 0.0
  %1300 = vmatpush1.msra.mxu0 %v1281
  %1301 = vmatprep.subr.mxu0 0.0
  %1302 = vmatpush1.msra.mxu0 %v1282
  %1303 = vmatprep.subr.mxu0 0.0
  %1304 = vmatpush1.msra.mxu0 %v1283
  %1305 = vmatprep.subr.mxu0 0.0
  %1306 = vmatpush1.msra.mxu0 %v1284
  %1307 = vmatprep.subr.mxu0 0.0
  %1308 = vmatpush1.msra.mxu0 %v1285
  %1309 = vmatprep.subr.mxu0 0.0
  %1310 = vmatpush1.msra.mxu0 %v1286
  %1311 = vmatprep.subr.mxu0 0.0
  %1312 = vmatpush1.msra.mxu0 %v1287
  %1313 = vmatprep.subr.mxu0 0.0
  %1314 = vmatpush1.msra.mxu0 %v1288
  %1315 = vmatprep.subr.mxu0 0.0
  %1316 = vmatpush1.msra.mxu0 %v1289
  %1317 = vmatprep.subr.mxu0 0.0
  %1318 = vmatpush1.msra.mxu0 %v1290
  %1319 = vmatprep.subr.mxu0 0.0
  %1320 = vmatpush1.msra.mxu0 %v1291
  %1321 = vmatprep.subr.mxu0 0.0
  %1322 = vmatpush1.msra.mxu0 %v1292
  %1323 = vmatprep.subr.mxu0 0.0
  %1324 = vmatpush1.msra.mxu0 %v1293
  %1325 = vmatprep.subr.mxu0 0.0
  %1326 = vmatpush1.msra.mxu0 %v1294
  %1327 = vmatprep.subr.mxu0 0.0
  %1328 = vmatpush1.msra.mxu0 0.0
  %1329 = vmatprep.subr.mxu0 0.0
  %1330 = vmatpush1.msra.mxu0 0.0
  %1331 = vmatprep.subr.mxu0 0.0
  %1332 = vmatpush1.msra.mxu0 0.0
  %1333 = vmatprep.subr.mxu0 0.0
  %1334 = vmatpush1.msra.mxu0 0.0
  %1335 = vmatprep.subr.mxu0 0.0
  %1336 = vmatpush1.msra.mxu0 0.0
  %1337 = vmatprep.subr.mxu0 0.0
  %1338 = vmatpush1.msra.mxu0 0.0
  %1339 = vmatprep.subr.mxu0 0.0
  %1340 = vmatpush1.msra.mxu0 0.0
  %1341 = vmatprep.subr.mxu0 0.0
  %1342 = vmatpush1.msra.mxu0 0.0
  %1343 = vmatprep.subr.mxu0 0.0
  %1344 = vmatpush1.msra.mxu0 0.0
  %1345 = vmatprep.subr.mxu0 0.0
  %1346 = vmatpush1.msra.mxu0 0.0
  %1347 = vmatprep.subr.mxu0 0.0
  %1348 = vmatpush1.msra.mxu0 0.0
  %1349 = vmatprep.subr.mxu0 0.0
  %1350 = vmatpush1.msra.mxu0 0.0
  %1351 = vmatprep.subr.mxu0 0.0
  %1352 = vmatpush1.msra.mxu0 0.0
  %1353 = vmatprep.subr.mxu0 0.0
  %1354 = vmatpush1.msra.mxu0 0.0
  %1355 = vmatprep.subr.mxu0 0.0
  %1356 = vmatpush1.msra.mxu0 0.0
  %1357 = vmatprep.subr.mxu0 0.0
  %1358 = vmatpush1.msra.mxu0 0.0
  %1359 = vmatprep.mubr.f32.mxu0 0.0
  %1360 = vmatmul.mubr.f32.gmra.mrb[0].mxu0 %v789
  %v1361 = vpop.f32.mrb[0].mxu0
  %v1362 = vadd.f32 0.0, %v1361
  %v1363 = vpop.f32.mrb[0].mxu0
  %1364 = vdwg.mxu0
  %1365 = vmatprep.subr.mxu0 0.0
  %1366 = vmatpush1.msra.mxu0 %v1279
  %1367 = vmatprep.subr.mxu0 0.0
  %1368 = vmatpush1.msra.mxu0 %v1280
  %1369 = vmatprep.subr.mxu0 0.0
  %1370 = vmatpush1.msra.mxu0 %v1281
  %1371 = vmatprep.subr.mxu0 0.0
  %1372 = vmatpush1.msra.mxu0 %v1282
  %1373 = vmatprep.subr.mxu0 0.0
  %1374 = vmatpush1.msra.mxu0 %v1283
  %1375 = vmatprep.subr.mxu0 0.0
  %1376 = vmatpush1.msra.mxu0 %v1284
  %1377 = vmatprep.subr.mxu0 0.0
  %1378 = vmatpush1.msra.mxu0 %v1285
  %1379 = vmatprep.subr.mxu0 0.0
  %1380 = vmatpush1.msra.mxu0 %v1286
  %1381 = vmatprep.subr.mxu0 0.0
  %1382 = vmatpush1.msra.mxu0 %v1287
  %1383 = vmatprep.subr.mxu0 0.0
  %1384 = vmatpush1.msra.mxu0 %v1288
  %1385 = vmatprep.subr.mxu0 0.0
  %1386 = vmatpush1.msra.mxu0 %v1289
  %1387 = vmatprep.subr.mxu0 0.0
  %1388 = vmatpush1.msra.mxu0 %v1290
  %1389 = vmatprep.subr.mxu0 0.0
  %1390 = vmatpush1.msra.mxu0 %v1291
  %1391 = vmatprep.subr.mxu0 0.0
  %1392 = vmatpush1.msra.mxu0 %v1292
  %1393 = vmatprep.subr.mxu0 0.0
  %1394 = vmatpush1.msra.mxu0 %v1293
  %1395 = vmatprep.subr.mxu0 0.0
  %1396 = vmatpush1.msra.mxu0 %v1294
  %1397 = vmatprep.subr.mxu0 0.0
  %1398 = vmatpush1.msra.mxu0 0.0
  %1399 = vmatprep.subr.mxu0 0.0
  %1400 = vmatpush1.msra.mxu0 0.0
  %1401 = vmatprep.subr.mxu0 0.0
  %1402 = vmatpush1.msra.mxu0 0.0
  %1403 = vmatprep.subr.mxu0 0.0
  %1404 = vmatpush1.msra.mxu0 0.0
  %1405 = vmatprep.subr.mxu0 0.0
  %1406 = vmatpush1.msra.mxu0 0.0
  %1407 = vmatprep.subr.mxu0 0.0
  %1408 = vmatpush1.msra.mxu0 0.0
  %1409 = vmatprep.subr.mxu0 0.0
  %1410 = vmatpush1.msra.mxu0 0.0
  %1411 = vmatprep.subr.mxu0 0.0
  %1412 = vmatpush1.msra.mxu0 0.0
  %1413 = vmatprep.subr.mxu0 0.0
  %1414 = vmatpush1.msra.mxu0 0.0
  %1415 = vmatprep.subr.mxu0 0.0
  %1416 = vmatpush1.msra.mxu0 0.0
  %1417 = vmatprep.subr.mxu0 0.0
  %1418 = vmatpush1.msra.mxu0 0.0
  %1419 = vmatprep.subr.mxu0 0.0
  %1420 = vmatpush1.msra.mxu0 0.0
  %1421 = vmatprep.subr.mxu0 0.0
  %1422 = vmatpush1.msra.mxu0 0.0
  %1423 = vmatprep.subr.mxu0 0.0
  %1424 = vmatpush1.msra.mxu0 0.0
  %1425 = vmatprep.subr.mxu0 0.0
  %1426 = vmatpush1.msra.mxu0 0.0
  %1427 = vmatprep.subr.mxu0 0.0
  %1428 = vmatpush1.msra.mxu0 0.0
  %1429 = vmatprep.mubr.f32.mxu0 0.0
  %1430 = vmatmul.mubr.f32.gmra.mrb[0].mxu0 %v790
  %v1431 = vpop.f32.mrb[0].mxu0
  %v1432 = vadd.f32 0.0, %v1431
  %v1433 = vpop.f32.mrb[0].mxu0
  %1434 = vdwg.mxu0
  %v1435 = vmul.f32 %v1362, %v1362
  %v1436 = vsub.f32 %v1432, %v1435
  %v1437 = vld [vmem:[%s3] sm:$0x1]
  %v1438 = vadd.f32 %v1436, 1e-05
  %v1439 = vrsqrt.pop %v1438
  %v1440 = vmul.f32 %v1437, %v1439
  %v1441 = vld [vmem:[%s4] sm:$0x1]
  %v1442 = vmul.f32 %v1362, %v1440
  %v1443 = vsub.f32 %v1441, %v1442
  loop: start=0, step=1, limit=64
  $region47: #{depth_generator_forward.9} parent=0 // loop_pre_header
    _
  $region48: #{depth_generator_forward.9} parent=0 // loop_header
    %s1445 = sphi 0, %s1449
    %p1446 = scmp.ge.s32.totalorder %s1445, 64
  $region49: #{depth_generator_forward.9} parent=0 // loop_header_branch
    %1448 = sbr.rel (%p1446) target = $region53
  $region50: #{depth_generator_forward.9} parent=0 // loop_body
    %s1450 = smul.u32 %s1445, 128
    %s1451 = scalar_lea.vmem [#allocation3], %s1450
    %v1452 = vld [vmem:[%s1451] sm:$0xff]
    %v1453 = vld [vmem:[%s1451 + $0x8] sm:$0xff]
    %v1454 = vld [vmem:[%s1451 + $0x10] sm:$0xff]
    %v1455 = vld [vmem:[%s1451 + $0x18] sm:$0xff]
    %v1456 = vld [vmem:[%s1451 + $0x20] sm:$0xff]
    %v1457 = vld [vmem:[%s1451 + $0x28] sm:$0xff]
    %v1458 = vld [vmem:[%s1451 + $0x30] sm:$0xff]
    %v1459 = vld [vmem:[%s1451 + $0x38] sm:$0xff]
    %v1460 = vld [vmem:[%s1451 + $0x40] sm:$0xff]
    %v1461 = vld [vmem:[%s1451 + $0x48] sm:$0xff]
    %v1462 = vld [vmem:[%s1451 + $0x50] sm:$0xff]
    %v1463 = vld [vmem:[%s1451 + $0x58] sm:$0xff]
    %v1464 = vld [vmem:[%s1451 + $0x60] sm:$0xff]
    %v1465 = vld [vmem:[%s1451 + $0x68] sm:$0xff]
    %v1466 = vld [vmem:[%s1451 + $0x70] sm:$0xff]
    %v1467 = vld [vmem:[%s1451 + $0x78] sm:$0xff]
    %v1469 = vlaneseq
    %v1470 = vshrl.u32 %v1469, 7
    %v1471 = vsub.s32 0, %v1470
    %v1472 = vrot.slane %v1440, %v1471
    %v1474 = vmul.f32 %v1452, %v1472
    %v1475 = vmul.f32 %v1453, %v1472
    %v1476 = vmul.f32 %v1454, %v1472
    %v1477 = vmul.f32 %v1455, %v1472
    %v1478 = vmul.f32 %v1456, %v1472
    %v1479 = vmul.f32 %v1457, %v1472
    %v1480 = vmul.f32 %v1458, %v1472
    %v1481 = vmul.f32 %v1459, %v1472
    %v1482 = vmul.f32 %v1460, %v1472
    %v1483 = vmul.f32 %v1461, %v1472
    %v1484 = vmul.f32 %v1462, %v1472
    %v1485 = vmul.f32 %v1463, %v1472
    %v1486 = vmul.f32 %v1464, %v1472
    %v1487 = vmul.f32 %v1465, %v1472
    %v1488 = vmul.f32 %v1466, %v1472
    %v1489 = vmul.f32 %v1467, %v1472
    %v1491 = vlaneseq
    %v1492 = vshrl.u32 %v1491, 7
    %v1493 = vsub.s32 0, %v1492
    %v1494 = vrot.slane %v1443, %v1493
    %v1496 = vadd.f32 %v1474, %v1494
    %v1497 = vadd.f32 %v1475, %v1494
    %v1498 = vadd.f32 %v1476, %v1494
    %v1499 = vadd.f32 %v1477, %v1494
    %v1500 = vadd.f32 %v1478, %v1494
    %v1501 = vadd.f32 %v1479, %v1494
    %v1502 = vadd.f32 %v1480, %v1494
    %v1503 = vadd.f32 %v1481, %v1494
    %v1504 = vadd.f32 %v1482, %v1494
    %v1505 = vadd.f32 %v1483, %v1494
    %v1506 = vadd.f32 %v1484, %v1494
    %v1507 = vadd.f32 %v1485, %v1494
    %v1508 = vadd.f32 %v1486, %v1494
    %v1509 = vadd.f32 %v1487, %v1494
    %v1510 = vadd.f32 %v1488, %v1494
    %v1511 = vadd.f32 %v1489, %v1494
    %vm1512 = vcmp.ge.f32.partialorder %v1496, 0.0
    %vm1513 = vcmp.ge.f32.partialorder %v1497, 0.0
    %vm1514 = vcmp.ge.f32.partialorder %v1498, 0.0
    %vm1515 = vcmp.ge.f32.partialorder %v1499, 0.0
    %vm1516 = vcmp.ge.f32.partialorder %v1500, 0.0
    %vm1517 = vcmp.ge.f32.partialorder %v1501, 0.0
    %vm1518 = vcmp.ge.f32.partialorder %v1502, 0.0
    %vm1519 = vcmp.ge.f32.partialorder %v1503, 0.0
    %vm1520 = vcmp.ge.f32.partialorder %v1504, 0.0
    %vm1521 = vcmp.ge.f32.partialorder %v1505, 0.0
    %vm1522 = vcmp.ge.f32.partialorder %v1506, 0.0
    %vm1523 = vcmp.ge.f32.partialorder %v1507, 0.0
    %vm1524 = vcmp.ge.f32.partialorder %v1508, 0.0
    %vm1525 = vcmp.ge.f32.partialorder %v1509, 0.0
    %vm1526 = vcmp.ge.f32.partialorder %v1510, 0.0
    %vm1527 = vcmp.ge.f32.partialorder %v1511, 0.0
    %v1528 = vmul.f32 %v1496, 0.2
    %v1529 = vmul.f32 %v1497, 0.2
    %v1530 = vmul.f32 %v1498, 0.2
    %v1531 = vmul.f32 %v1499, 0.2
    %v1532 = vmul.f32 %v1500, 0.2
    %v1533 = vmul.f32 %v1501, 0.2
    %v1534 = vmul.f32 %v1502, 0.2
    %v1535 = vmul.f32 %v1503, 0.2
    %v1536 = vmul.f32 %v1504, 0.2
    %v1537 = vmul.f32 %v1505, 0.2
    %v1538 = vmul.f32 %v1506, 0.2
    %v1539 = vmul.f32 %v1507, 0.2
    %v1540 = vmul.f32 %v1508, 0.2
    %v1541 = vmul.f32 %v1509, 0.2
    %v1542 = vmul.f32 %v1510, 0.2
    %v1543 = vmul.f32 %v1511, 0.2
    %v1544 = vsel %vm1512, %v1496, %v1528
    %v1545 = vsel %vm1513, %v1497, %v1529
    %v1546 = vsel %vm1514, %v1498, %v1530
    %v1547 = vsel %vm1515, %v1499, %v1531
    %v1548 = vsel %vm1516, %v1500, %v1532
    %v1549 = vsel %vm1517, %v1501, %v1533
    %v1550 = vsel %vm1518, %v1502, %v1534
    %v1551 = vsel %vm1519, %v1503, %v1535
    %v1552 = vsel %vm1520, %v1504, %v1536
    %v1553 = vsel %vm1521, %v1505, %v1537
    %v1554 = vsel %vm1522, %v1506, %v1538
    %v1555 = vsel %vm1523, %v1507, %v1539
    %v1556 = vsel %vm1524, %v1508, %v1540
    %v1557 = vsel %vm1525, %v1509, %v1541
    %v1558 = vsel %vm1526, %v1510, %v1542
    %v1559 = vsel %vm1527, %v1511, %v1543
    %s1560 = scalar_lea.vmem %s6, %s1450
    %vm1561 = vcmask 31744
    %1562 = vst.msk [vmem:[%s1560] sm:$0xff] %vm1561, %v1544
    %1563 = vst.msk [vmem:[%s1560 + $0x8] sm:$0xff] %vm1561, %v1545
    %1564 = vst.msk [vmem:[%s1560 + $0x10] sm:$0xff] %vm1561, %v1546
    %1565 = vst.msk [vmem:[%s1560 + $0x18] sm:$0xff] %vm1561, %v1547
    %1566 = vst.msk [vmem:[%s1560 + $0x20] sm:$0xff] %vm1561, %v1548
    %1567 = vst.msk [vmem:[%s1560 + $0x28] sm:$0xff] %vm1561, %v1549
    %1568 = vst.msk [vmem:[%s1560 + $0x30] sm:$0xff] %vm1561, %v1550
    %1569 = vst.msk [vmem:[%s1560 + $0x38] sm:$0xff] %vm1561, %v1551
    %1570 = vst.msk [vmem:[%s1560 + $0x40] sm:$0xff] %vm1561, %v1552
    %1571 = vst.msk [vmem:[%s1560 + $0x48] sm:$0xff] %vm1561, %v1553
    %1572 = vst.msk [vmem:[%s1560 + $0x50] sm:$0xff] %vm1561, %v1554
    %1573 = vst.msk [vmem:[%s1560 + $0x58] sm:$0xff] %vm1561, %v1555
    %1574 = vst.msk [vmem:[%s1560 + $0x60] sm:$0xff] %vm1561, %v1556
    %1575 = vst.msk [vmem:[%s1560 + $0x68] sm:$0xff] %vm1561, %v1557
    %1576 = vst.msk [vmem:[%s1560 + $0x70] sm:$0xff] %vm1561, %v1558
    %1577 = vst.msk [vmem:[%s1560 + $0x78] sm:$0xff] %vm1561, %v1559
  $region51: #{depth_generator_forward.9} parent=0 // loop_footer
    %s1449 = sadd.s32 1, %s1445
  $region52: #{depth_generator_forward.9} parent=0 // loop_footer_branch
    %1444 = sbr.rel target = $region48
  $region53: #{depth_generator_forward.9} parent=0 // loop_exit
    _
  // Predicated region
  $region54: #{depth_generator_forward.9} parent=0 // pred_check
    _
  $region55: #{depth_generator_forward.9} parent=0 // pred_check_branch
    %1579 = sbr.rel (0) target = $region57
  $region56: #{depth_generator_forward.9} parent=0 // pred_region
    _
  $region57: #{depth_generator_forward.9} parent=0 // pred_fallthru
    _
  // Predicated region
  $region58: #{depth_generator_forward.9} parent=0 // pred_check
    _
  $region59: #{depth_generator_forward.9} parent=0 // pred_check_branch
    %1581 = sbr.rel (0) target = $region61
  $region60: #{depth_generator_forward.9} parent=0 // pred_region
    _
  $region61: #{depth_generator_forward.9} parent=0 // pred_fallthru
    _

</llo_original>
